<compile_context>
chip_gen: v7x
topology: tpu7x:2x2x1
jax: 0.10.0
libtpu: 0.0.40
codegen_flags: <defaults>
</compile_context>

<pallas_src>
import functools

import jax
import jax.numpy as jnp
from jax.experimental import pallas as pl
from jax.experimental.pallas import tpu as pltpu

EPS = 1e-5
EXPANSION = 4
ROW_TILE = 1024                      # target rows per 1x1-conv tile
VMEM_LIMIT = 32 * 1024 * 1024        # explicit scoped-VMEM budget (safe on v5e/v6e/v7x)


def _largest_divisor(n, target, multiple=1):
    """Largest divisor of n that is <= target and a multiple of `multiple`."""
    t = min(n, target)
    while t > 0:
        if n % t == 0 and t % multiple == 0:
            return t
        t -= 1
    return n


# ----------------------------- Pallas kernels ------------------------------ #

def _pw_bn_kernel(x_ref, w_ref, scale_ref, shift_ref, o_ref, *, relu):
    # 1x1 conv (row-tile matmul) + folded BN (+ optional ReLU), f32 epilogue.
    acc = jnp.dot(x_ref[...], w_ref[...], preferred_element_type=jnp.float32)
    y = acc * scale_ref[...] + shift_ref[...]
    if relu:
        y = jnp.maximum(y, 0.0)
    o_ref[...] = y.astype(o_ref.dtype)


def _pw_bn_add_relu_kernel(x_ref, w_ref, scale_ref, shift_ref, res_ref, o_ref):
    # conv3 (1x1) + bn3 + residual add + relu3, fully fused (f32 epilogue).
    acc = jnp.dot(x_ref[...], w_ref[...], preferred_element_type=jnp.float32)
    y = acc * scale_ref[...] + shift_ref[...] + res_ref[...].astype(jnp.float32)
    o_ref[...] = jnp.maximum(y, 0.0).astype(o_ref.dtype)


def _conv3x3_bn_relu_kernel(x_ref, w_ref, scale_ref, shift_ref, o_ref, *, H, W):
    # 3x3 conv for one image: padded image is loaded once, the 9 (ky,kx) shifted
    # windows are sliced in VMEM and accumulated through 9 MXU matmuls in f32.
    cin = x_ref.shape[-1]
    cout = w_ref.shape[-1]
    xp = x_ref[0]                      # (H+2, W+2, cin), bf16
    w = w_ref[...]                     # (3, 3, cin, cout), bf16
    acc = jnp.zeros((H * W, cout), jnp.float32)
    for ky in range(3):
        for kx in range(3):
            win = xp[ky:ky + H, kx:kx + W, :].reshape(H * W, cin)
            acc = acc + jnp.dot(win, w[ky, kx],
                                preferred_element_type=jnp.float32)
    y = acc * scale_ref[...] + shift_ref[...]
    o_ref[0] = jnp.maximum(y, 0.0).astype(o_ref.dtype)


def _avgpool_kernel(x_ref, o_ref, *, inv):
    # AvgPool2d(s): input block is the free (tb, s, Wo, s, C) view; reduce the
    # two window axes in-kernel (no HBM-side copies).
    x = x_ref[...].astype(jnp.float32)          # (tb, s, Wo, s, C)
    x = x.sum(axis=1)                           # (tb, Wo, s, C)
    x = x.sum(axis=2)                           # (tb, Wo, C)
    o_ref[...] = (x * inv).astype(o_ref.dtype)


# ------------------------------ wrappers ----------------------------------- #

def pw_conv_bn(x2d, w, scale, shift, *, relu, out_dtype):
    M, cin = x2d.shape
    cout = w.shape[1]
    tm = _largest_divisor(M, ROW_TILE, multiple=8)
    return pl.pallas_call(
        functools.partial(_pw_bn_kernel, relu=relu),
        out_shape=jax.ShapeDtypeStruct((M, cout), out_dtype),
        grid=(M // tm,),
        in_specs=[
            pl.BlockSpec((tm, cin), lambda i: (i, 0)),
            pl.BlockSpec((cin, cout), lambda i: (0, 0)),
            pl.BlockSpec((1, cout), lambda i: (0, 0)),
            pl.BlockSpec((1, cout), lambda i: (0, 0)),
        ],
        out_specs=pl.BlockSpec((tm, cout), lambda i: (i, 0)),
        compiler_params=pltpu.CompilerParams(
            dimension_semantics=("parallel",),
            vmem_limit_bytes=VMEM_LIMIT),
    )(x2d, w, scale.reshape(1, -1), shift.reshape(1, -1))


def pw_conv_bn_add_relu(x2d, w, scale, shift, res, *, out_dtype):
    M, cin = x2d.shape
    cout = w.shape[1]
    tm = _largest_divisor(M, ROW_TILE, multiple=8)
    return pl.pallas_call(
        _pw_bn_add_relu_kernel,
        out_shape=jax.ShapeDtypeStruct((M, cout), out_dtype),
        grid=(M // tm,),
        in_specs=[
            pl.BlockSpec((tm, cin), lambda i: (i, 0)),
            pl.BlockSpec((cin, cout), lambda i: (0, 0)),
            pl.BlockSpec((1, cout), lambda i: (0, 0)),
            pl.BlockSpec((1, cout), lambda i: (0, 0)),
            pl.BlockSpec((tm, cout), lambda i: (i, 0)),
        ],
        out_specs=pl.BlockSpec((tm, cout), lambda i: (i, 0)),
        compiler_params=pltpu.CompilerParams(
            dimension_semantics=("parallel",),
            vmem_limit_bytes=VMEM_LIMIT),
    )(x2d, w, scale.reshape(1, -1), shift.reshape(1, -1), res)


def conv3x3_bn_relu(xpad, w2, scale, shift, *, out_dtype):
    # xpad: (N, H+2, W+2, cin) zero-padded activation; w2: (3, 3, cin, cout).
    N, Hp, Wp, cin = xpad.shape
    H, W = Hp - 2, Wp - 2
    cout = w2.shape[-1]
    return pl.pallas_call(
        functools.partial(_conv3x3_bn_relu_kernel, H=H, W=W),
        out_shape=jax.ShapeDtypeStruct((N, H * W, cout), out_dtype),
        grid=(N,),
        in_specs=[
            pl.BlockSpec((1, Hp, Wp, cin), lambda n: (n, 0, 0, 0)),
            pl.BlockSpec((3, 3, cin, cout), lambda n: (0, 0, 0, 0)),
            pl.BlockSpec((1, cout), lambda n: (0, 0)),
            pl.BlockSpec((1, cout), lambda n: (0, 0)),
        ],
        out_specs=pl.BlockSpec((1, H * W, cout), lambda n: (n, 0, 0)),
        compiler_params=pltpu.CompilerParams(
            dimension_semantics=("parallel",),
            vmem_limit_bytes=VMEM_LIMIT),
    )(xpad, w2, scale.reshape(1, -1), shift.reshape(1, -1))


def avgpool_nhwc(x_nhwc, s):
    # Free view (no data movement) exposing the pooling window to the BlockSpec.
    N, H, W, C = x_nhwc.shape
    assert H % s == 0 and W % s == 0, "AvgPool assumes H, W divisible by stride"
    Ho, Wo = H // s, W // s
    xv = x_nhwc.reshape(N * Ho, s, Wo, s, C)
    tb = _largest_divisor(N * Ho, 256, multiple=1)
    out = pl.pallas_call(
        functools.partial(_avgpool_kernel, inv=1.0 / (s * s)),
        out_shape=jax.ShapeDtypeStruct((N * Ho, Wo, C), x_nhwc.dtype),
        grid=((N * Ho) // tb,),
        in_specs=[pl.BlockSpec((tb, s, Wo, s, C), lambda i: (i, 0, 0, 0, 0))],
        out_specs=pl.BlockSpec((tb, Wo, C), lambda i: (i, 0, 0)),
        compiler_params=pltpu.CompilerParams(
            dimension_semantics=("parallel",),
            vmem_limit_bytes=VMEM_LIMIT),
    )(xv)
    return out.reshape(N * Ho * Wo, C)


def fold_bn(bn):
    gamma, beta, mean, var = bn
    scale = gamma * jax.lax.rsqrt(var + EPS)
    shift = beta - mean * scale
    return scale, shift


def bottleneck_forward(x_nchw, params, *, planes, stride):
    N, cin, H, W = x_nchw.shape
    outc = planes * EXPANSION
    xh = jnp.transpose(x_nchw, (0, 2, 3, 1))                 # NHWC, f32
    xh_bf = xh.astype(jnp.bfloat16)
    x2d_bf = xh_bf.reshape(N * H * W, cin)

    # conv1 (1x1) + bn1 + relu1 -> bf16 activation
    s1, b1 = fold_bn(params["bn1"])
    out1 = pw_conv_bn(x2d_bf, params["w1"].astype(jnp.bfloat16), s1, b1,
                      relu=True, out_dtype=jnp.bfloat16)     # (M, planes)

    # conv2 (3x3, pad=1) + bn2 + relu2: pad once, 9 in-kernel shifted matmuls
    xpad = jnp.pad(out1.reshape(N, H, W, planes),
                   ((0, 0), (1, 1), (1, 1), (0, 0)))
    s2, b2 = fold_bn(params["bn2"])
    out2 = conv3x3_bn_relu(xpad, params["w2"].astype(jnp.bfloat16), s2, b2,
                           out_dtype=jnp.bfloat16)           # (N, H*W, planes)

    # avgpool (stride > 1): in-place window reduction via the free 5-D view
    if stride > 1:
        pooled = avgpool_nhwc(out2.reshape(N, H, W, planes), stride)
        Ho, Wo = H // stride, W // stride
    else:
        pooled = out2.reshape(N * H * W, planes)
        Ho, Wo = H, W

    # downsample branch -> identity (kept in f32 for the residual add)
    if stride > 1 or cin != outc:
        xp = avgpool_nhwc(xh_bf, stride) if stride > 1 else x2d_bf
        sd, bd = fold_bn(params["bnd"])
        identity = pw_conv_bn(xp, params["wd"].astype(jnp.bfloat16), sd, bd,
                              relu=False, out_dtype=jnp.float32)
    else:
        identity = xh.reshape(N * H * W, cin)

    # conv3 (1x1) + bn3 + residual add + relu3, fused
    s3, b3 = fold_bn(params["bn3"])
    out = pw_conv_bn_add_relu(pooled, params["w3"].astype(jnp.bfloat16),
                              s3, b3, identity, out_dtype=jnp.float32)

    return jnp.transpose(out.reshape(N, Ho, Wo, outc), (0, 3, 1, 2))


# --------------------------- params & reference ---------------------------- #

def init_params(key, inplanes, planes):
    outc = planes * EXPANSION
    ks = jax.random.split(key, 8)

    def bn_params(k, c):
        k1, k2, k3, k4 = jax.random.split(k, 4)
        gamma = jax.random.uniform(k1, (c,), minval=0.9, maxval=1.1)
        beta = 0.1 * jax.random.normal(k2, (c,))
        mean = 0.1 * jax.random.normal(k3, (c,))
        var = jax.random.uniform(k4, (c,), minval=0.8, maxval=1.2)
        return (gamma, beta, mean, var)

    return {
        "w1": 0.2 * jax.random.normal(ks[0], (inplanes, planes), jnp.float32),
        "bn1": bn_params(ks[1], planes),
        "w2": 0.2 * jax.random.normal(ks[2], (3, 3, planes, planes), jnp.float32),
        "bn2": bn_params(ks[3], planes),
        "w3": 0.2 * jax.random.normal(ks[4], (planes, outc), jnp.float32),
        "bn3": bn_params(ks[5], outc),
        "wd": 0.2 * jax.random.normal(ks[6], (inplanes, outc), jnp.float32),
        "bnd": bn_params(ks[7], outc),
    }


def reference(x_nchw, params, *, stride):
    xh = jnp.transpose(x_nchw, (0, 2, 3, 1))

    def bn(y, p):
        g, b, m, v = p
        return (y - m) / jnp.sqrt(v + EPS) * g + b

    def conv(y, w_hwio, pad):
        return jax.lax.conv_general_dilated(
            y, w_hwio, (1, 1), pad,
            dimension_numbers=("NHWC", "HWIO", "NHWC"),
            precision=jax.lax.Precision.HIGHEST)

    def pool(y, s):
        if s == 1:
            return y
        N, H, W, C = y.shape
        return y.reshape(N, H // s, s, W // s, s, C).mean(axis=(2, 4))

    o = jax.nn.relu(bn(conv(xh, params["w1"][None, None], "VALID"), params["bn1"]))
    o = jax.nn.relu(bn(conv(o, params["w2"], "SAME"), params["bn2"]))
    o = pool(o, stride)
    o = bn(conv(o, params["w3"][None, None], "VALID"), params["bn3"])
    idn = bn(conv(pool(xh, stride), params["wd"][None, None], "VALID"), params["bnd"])
    o = jax.nn.relu(o + idn)
    return jnp.transpose(o, (0, 3, 1, 2))


if __name__ == "__main__":
    N, inplanes, H, W = 2, 4, 16, 16
    planes, stride = 8, 2

    key = jax.random.PRNGKey(0)
    kx, kp = jax.random.split(key)
    x = jax.random.normal(kx, (N, inplanes, H, W), dtype=jnp.float32)  # NCHW input
    params = init_params(kp, inplanes, planes)

    fwd = jax.jit(functools.partial(bottleneck_forward, planes=planes, stride=stride))
    out = jax.block_until_ready(fwd(x, params))

    ref = reference(x, params, stride=stride)
    assert out.shape == (N, planes * EXPANSION, H // stride, W // stride), out.shape
    # bf16 matmuls vs. f32-HIGHEST reference -> tolerance sized for bf16 rounding.
    assert jnp.allclose(out, ref, rtol=3e-2, atol=3e-2), float(jnp.max(jnp.abs(out - ref)))

    print("KERNEL_OK")
</pallas_src>

<mosaic_0001>
module attributes {stable_mosaic.version = 11 : i64} {
  func.func @_pw_bn_kernel(%arg0: i32, %arg1: memref<128x4xbf16, #tpu.memory_space<vmem>>, %arg2: memref<4x32xbf16, #tpu.memory_space<vmem>>, %arg3: memref<1x32xf32, #tpu.memory_space<vmem>>, %arg4: memref<1x32xf32, #tpu.memory_space<vmem>>, %arg5: memref<128x32xf32, #tpu.memory_space<vmem>>) attributes {dimension_semantics = [#tpu.dimension_semantics<parallel>], iteration_bounds = array<i64: 1>, scalar_prefetch = 0 : i64, scratch_operands = 0 : i64, tpu.core_type = #tpu.core_type<tc>, window_params = [{transform_indices = @transform_0, window_bounds = array<i64: 128, 4>}, {pipeline_mode = #tpu.pipeline_mode<synchronous>, transform_indices = @transform_1, window_bounds = array<i64: 4, 32>}, {pipeline_mode = #tpu.pipeline_mode<synchronous>, transform_indices = @transform_2, window_bounds = array<i64: 1, 32>}, {pipeline_mode = #tpu.pipeline_mode<synchronous>, transform_indices = @transform_3, window_bounds = array<i64: 1, 32>}, {transform_indices = @transform_4, window_bounds = array<i64: 128, 32>}]} {
    %c0 = arith.constant 0 : index
    %c0_0 = arith.constant 0 : index
    %0 = vector.load %arg1[%c0, %c0_0] : memref<128x4xbf16, #tpu.memory_space<vmem>>, vector<128x4xbf16>
    %c0_1 = arith.constant 0 : index
    %c0_2 = arith.constant 0 : index
    %1 = vector.load %arg2[%c0_1, %c0_2] : memref<4x32xbf16, #tpu.memory_space<vmem>>, vector<4x32xbf16>
    %cst = arith.constant dense<0.000000e+00> : vector<128x32xf32>
    %2 = tpu.matmul %0, %1, %cst {dimension_numbers = #tpu.dot_dimension_numbers<[1], [0], [0], [1], [0, 0, 1, 1], [], []>} : vector<128x4xbf16>, vector<4x32xbf16>, vector<128x32xf32> -> vector<128x32xf32>
    %c0_3 = arith.constant 0 : index
    %c0_4 = arith.constant 0 : index
    %3 = vector.load %arg3[%c0_3, %c0_4] : memref<1x32xf32, #tpu.memory_space<vmem>>, vector<1x32xf32>
    %4 = vector.broadcast %3 : vector<1x32xf32> to vector<128x32xf32>
    %5 = arith.mulf %2, %4 : vector<128x32xf32>
    %c0_5 = arith.constant 0 : index
    %c0_6 = arith.constant 0 : index
    %6 = vector.load %arg4[%c0_5, %c0_6] : memref<1x32xf32, #tpu.memory_space<vmem>>, vector<1x32xf32>
    %7 = vector.broadcast %6 : vector<1x32xf32> to vector<128x32xf32>
    %8 = arith.addf %5, %7 : vector<128x32xf32>
    %c0_7 = arith.constant 0 : index
    %c0_8 = arith.constant 0 : index
    %9 = vector.load %arg5[%c0_7, %c0_8] : memref<128x32xf32, #tpu.memory_space<vmem>>, vector<128x32xf32>
    tpu.vector_store %arg5[%c0_7, %c0_8], %8 {strides = array<i32>} : memref<128x32xf32, #tpu.memory_space<vmem>>, vector<128x32xf32>,
    return
  }
  func.func @transform_0(%arg0: i32) -> (i32, i32) {
    %c0_i32 = arith.constant 0 : i32
    %c0_i32_0 = arith.constant 0 : i32
    return %arg0, %c0_i32 : i32, i32
  }
  func.func @transform_1(%arg0: i32) -> (i32, i32) {
    %c0_i32 = arith.constant 0 : i32
    %c0_i32_0 = arith.constant 0 : i32
    %c0_i32_1 = arith.constant 0 : i32
    return %c0_i32, %c0_i32_0 : i32, i32
  }
  func.func @transform_2(%arg0: i32) -> (i32, i32) {
    %c0_i32 = arith.constant 0 : i32
    %c0_i32_0 = arith.constant 0 : i32
    %c0_i32_1 = arith.constant 0 : i32
    return %c0_i32, %c0_i32_0 : i32, i32
  }
  func.func @transform_3(%arg0: i32) -> (i32, i32) {
    %c0_i32 = arith.constant 0 : i32
    %c0_i32_0 = arith.constant 0 : i32
    %c0_i32_1 = arith.constant 0 : i32
    return %c0_i32, %c0_i32_0 : i32, i32
  }
  func.func @transform_4(%arg0: i32) -> (i32, i32) {
    %c0_i32 = arith.constant 0 : i32
    %c0_i32_0 = arith.constant 0 : i32
    return %arg0, %c0_i32 : i32, i32
  }
}

module attributes {stable_mosaic.version = 11 : i64} {
  func.func @_avgpool_kernel(%arg0: i32, %arg1: memref<16x2x8x2x4xbf16, #tpu.memory_space<vmem>>, %arg2: memref<16x8x4xbf16, #tpu.memory_space<vmem>>) attributes {dimension_semantics = [#tpu.dimension_semantics<parallel>], iteration_bounds = array<i64: 1>, scalar_prefetch = 0 : i64, scratch_operands = 0 : i64, tpu.core_type = #tpu.core_type<tc>, window_params = [{transform_indices = @transform_0, window_bounds = array<i64: 16, 2, 8, 2, 4>}, {transform_indices = @transform_1, window_bounds = array<i64: 16, 8, 4>}]} {
    %c0 = arith.constant 0 : index
    %c0_0 = arith.constant 0 : index
    %c0_1 = arith.constant 0 : index
    %c0_2 = arith.constant 0 : index
    %c0_3 = arith.constant 0 : index
    %0 = vector.load %arg1[%c0, %c0_0, %c0_1, %c0_2, %c0_3] : memref<16x2x8x2x4xbf16, #tpu.memory_space<vmem>>, vector<16x2x8x2x4xbf16>
    %1 = arith.extf %0 : vector<16x2x8x2x4xbf16> to vector<16x2x8x2x4xf32>
    %cst = arith.constant dense<0.000000e+00> : vector<16x8x2x4xf32>
    %2 = vector.multi_reduction <add>, %1, %cst [1] : vector<16x2x8x2x4xf32> to vector<16x8x2x4xf32>
    %cst_4 = arith.constant dense<0.000000e+00> : vector<16x8x4xf32>
    %3 = vector.multi_reduction <add>, %2, %cst_4 [2] : vector<16x8x2x4xf32> to vector<16x8x4xf32>
    %cst_5 = arith.constant 2.500000e-01 : f32
    %4 = vector.broadcast %cst_5 : f32 to vector<16x8x4xf32>
    %5 = arith.mulf %3, %4 : vector<16x8x4xf32>
    %6 = arith.truncf %5 : vector<16x8x4xf32> to vector<16x8x4xbf16>
    %c0_6 = arith.constant 0 : index
    %c0_7 = arith.constant 0 : index
    %c0_8 = arith.constant 0 : index
    %7 = vector.load %arg2[%c0_6, %c0_7, %c0_8] : memref<16x8x4xbf16, #tpu.memory_space<vmem>>, vector<16x8x4xbf16>
    tpu.vector_store %arg2[%c0_6, %c0_7, %c0_8], %6 {strides = array<i32>} : memref<16x8x4xbf16, #tpu.memory_space<vmem>>, vector<16x8x4xbf16>,
    return
  }
  func.func @transform_0(%arg0: i32) -> (i32, i32, i32, i32, i32) {
    %c0_i32 = arith.constant 0 : i32
    %c0_i32_0 = arith.constant 0 : i32
    %c0_i32_1 = arith.constant 0 : i32
    %c0_i32_2 = arith.constant 0 : i32
    %c0_i32_3 = arith.constant 0 : i32
    return %arg0, %c0_i32, %c0_i32_0, %c0_i32_1, %c0_i32_2 : i32, i32, i32, i32, i32
  }
  func.func @transform_1(%arg0: i32) -> (i32, i32, i32) {
    %c0_i32 = arith.constant 0 : i32
    %c0_i32_0 = arith.constant 0 : i32
    %c0_i32_1 = arith.constant 0 : i32
    return %arg0, %c0_i32, %c0_i32_0 : i32, i32, i32
  }
}

module attributes {stable_mosaic.version = 11 : i64} {
  func.func @_pw_bn_kernel(%arg0: i32, %arg1: memref<512x4xbf16, #tpu.memory_space<vmem>>, %arg2: memref<4x8xbf16, #tpu.memory_space<vmem>>, %arg3: memref<1x8xf32, #tpu.memory_space<vmem>>, %arg4: memref<1x8xf32, #tpu.memory_space<vmem>>, %arg5: memref<512x8xbf16, #tpu.memory_space<vmem>>) attributes {dimension_semantics = [#tpu.dimension_semantics<parallel>], iteration_bounds = array<i64: 1>, scalar_prefetch = 0 : i64, scratch_operands = 0 : i64, tpu.core_type = #tpu.core_type<tc>, window_params = [{transform_indices = @transform_0, window_bounds = array<i64: 512, 4>}, {pipeline_mode = #tpu.pipeline_mode<synchronous>, transform_indices = @transform_1, window_bounds = array<i64: 4, 8>}, {pipeline_mode = #tpu.pipeline_mode<synchronous>, transform_indices = @transform_2, window_bounds = array<i64: 1, 8>}, {pipeline_mode = #tpu.pipeline_mode<synchronous>, transform_indices = @transform_3, window_bounds = array<i64: 1, 8>}, {transform_indices = @transform_4, window_bounds = array<i64: 512, 8>}]} {
    %c0 = arith.constant 0 : index
    %c0_0 = arith.constant 0 : index
    %0 = vector.load %arg1[%c0, %c0_0] : memref<512x4xbf16, #tpu.memory_space<vmem>>, vector<512x4xbf16>
    %c0_1 = arith.constant 0 : index
    %c0_2 = arith.constant 0 : index
    %1 = vector.load %arg2[%c0_1, %c0_2] : memref<4x8xbf16, #tpu.memory_space<vmem>>, vector<4x8xbf16>
    %cst = arith.constant dense<0.000000e+00> : vector<512x8xf32>
    %2 = tpu.matmul %0, %1, %cst {dimension_numbers = #tpu.dot_dimension_numbers<[1], [0], [0], [1], [0, 0, 1, 1], [], []>} : vector<512x4xbf16>, vector<4x8xbf16>, vector<512x8xf32> -> vector<512x8xf32>
    %c0_3 = arith.constant 0 : index
    %c0_4 = arith.constant 0 : index
    %3 = vector.load %arg3[%c0_3, %c0_4] : memref<1x8xf32, #tpu.memory_space<vmem>>, vector<1x8xf32>
    %4 = vector.broadcast %3 : vector<1x8xf32> to vector<512x8xf32>
    %5 = arith.mulf %2, %4 : vector<512x8xf32>
    %c0_5 = arith.constant 0 : index
    %c0_6 = arith.constant 0 : index
    %6 = vector.load %arg4[%c0_5, %c0_6] : memref<1x8xf32, #tpu.memory_space<vmem>>, vector<1x8xf32>
    %7 = vector.broadcast %6 : vector<1x8xf32> to vector<512x8xf32>
    %8 = arith.addf %5, %7 : vector<512x8xf32>
    %cst_7 = arith.constant 0.000000e+00 : f32
    %9 = vector.broadcast %cst_7 : f32 to vector<512x8xf32>
    %10 = arith.maximumf %8, %9 : vector<512x8xf32>
    %11 = arith.truncf %10 : vector<512x8xf32> to vector<512x8xbf16>
    %c0_8 = arith.constant 0 : index
    %c0_9 = arith.constant 0 : index
    %12 = vector.load %arg5[%c0_8, %c0_9] : memref<512x8xbf16, #tpu.memory_space<vmem>>, vector<512x8xbf16>
    tpu.vector_store %arg5[%c0_8, %c0_9], %11 {strides = array<i32>} : memref<512x8xbf16, #tpu.memory_space<vmem>>, vector<512x8xbf16>,
    return
  }
  func.func @transform_0(%arg0: i32) -> (i32, i32) {
    %c0_i32 = arith.constant 0 : i32
    %c0_i32_0 = arith.constant 0 : i32
    return %arg0, %c0_i32 : i32, i32
  }
  func.func @transform_1(%arg0: i32) -> (i32, i32) {
    %c0_i32 = arith.constant 0 : i32
    %c0_i32_0 = arith.constant 0 : i32
    %c0_i32_1 = arith.constant 0 : i32
    return %c0_i32, %c0_i32_0 : i32, i32
  }
  func.func @transform_2(%arg0: i32) -> (i32, i32) {
    %c0_i32 = arith.constant 0 : i32
    %c0_i32_0 = arith.constant 0 : i32
    %c0_i32_1 = arith.constant 0 : i32
    return %c0_i32, %c0_i32_0 : i32, i32
  }
  func.func @transform_3(%arg0: i32) -> (i32, i32) {
    %c0_i32 = arith.constant 0 : i32
    %c0_i32_0 = arith.constant 0 : i32
    %c0_i32_1 = arith.constant 0 : i32
    return %c0_i32, %c0_i32_0 : i32, i32
  }
  func.func @transform_4(%arg0: i32) -> (i32, i32) {
    %c0_i32 = arith.constant 0 : i32
    %c0_i32_0 = arith.constant 0 : i32
    return %arg0, %c0_i32 : i32, i32
  }
}

module attributes {stable_mosaic.version = 11 : i64} {
  func.func @_conv3x3_bn_relu_kernel(%arg0: i32, %arg1: memref<1x18x18x8xbf16, #tpu.memory_space<vmem>>, %arg2: memref<3x3x8x8xbf16, #tpu.memory_space<vmem>>, %arg3: memref<1x8xf32, #tpu.memory_space<vmem>>, %arg4: memref<1x8xf32, #tpu.memory_space<vmem>>, %arg5: memref<1x256x8xbf16, #tpu.memory_space<vmem>>) attributes {dimension_semantics = [#tpu.dimension_semantics<parallel>], iteration_bounds = array<i64: 2>, scalar_prefetch = 0 : i64, scratch_operands = 0 : i64, tpu.core_type = #tpu.core_type<tc>, window_params = [{transform_indices = @transform_0, window_bounds = array<i64: 1, 18, 18, 8>}, {pipeline_mode = #tpu.pipeline_mode<synchronous>, transform_indices = @transform_1, window_bounds = array<i64: 3, 3, 8, 8>}, {pipeline_mode = #tpu.pipeline_mode<synchronous>, transform_indices = @transform_2, window_bounds = array<i64: 1, 8>}, {pipeline_mode = #tpu.pipeline_mode<synchronous>, transform_indices = @transform_3, window_bounds = array<i64: 1, 8>}, {transform_indices = @transform_4, window_bounds = array<i64: 1, 256, 8>}]} {
    %c0 = arith.constant 0 : index
    %c0_0 = arith.constant 0 : index
    %c0_1 = arith.constant 0 : index
    %c0_2 = arith.constant 0 : index
    %0 = vector.load %arg1[%c0, %c0_0, %c0_1, %c0_2] : memref<1x18x18x8xbf16, #tpu.memory_space<vmem>>, vector<1x18x18x8xbf16>
    %1 = vector.shape_cast %0 : vector<1x18x18x8xbf16> to vector<18x18x8xbf16>
    %c0_3 = arith.constant 0 : index
    %c0_4 = arith.constant 0 : index
    %c0_5 = arith.constant 0 : index
    %c0_6 = arith.constant 0 : index
    %2 = vector.load %arg2[%c0_3, %c0_4, %c0_5, %c0_6] : memref<3x3x8x8xbf16, #tpu.memory_space<vmem>>, vector<3x3x8x8xbf16>
    %cst = arith.constant 0.000000e+00 : f32
    %3 = vector.broadcast %cst : f32 to vector<256x8xf32>
    %4 = vector.extract_strided_slice %1 {offsets = [0, 0, 0], sizes = [16, 16, 8], strides = [1, 1, 1]} : vector<18x18x8xbf16> to vector<16x16x8xbf16>
    %5 = vector.shape_cast %4 : vector<16x16x8xbf16> to vector<256x8xbf16>
    %6 = vector.extract_strided_slice %2 {offsets = [0, 0, 0, 0], sizes = [1, 1, 8, 8], strides = [1, 1, 1, 1]} : vector<3x3x8x8xbf16> to vector<1x1x8x8xbf16>
    %7 = vector.shape_cast %6 : vector<1x1x8x8xbf16> to vector<8x8xbf16>
    %cst_7 = arith.constant dense<0.000000e+00> : vector<256x8xf32>
    %8 = tpu.matmul %5, %7, %cst_7 {dimension_numbers = #tpu.dot_dimension_numbers<[1], [0], [0], [1], [0, 0, 1, 1], [], []>} : vector<256x8xbf16>, vector<8x8xbf16>, vector<256x8xf32> -> vector<256x8xf32>
    %9 = arith.addf %3, %8 : vector<256x8xf32>
    %10 = vector.extract_strided_slice %1 {offsets = [0, 1, 0], sizes = [16, 16, 8], strides = [1, 1, 1]} : vector<18x18x8xbf16> to vector<16x16x8xbf16>
    %11 = vector.shape_cast %10 : vector<16x16x8xbf16> to vector<256x8xbf16>
    %12 = vector.extract_strided_slice %2 {offsets = [0, 1, 0, 0], sizes = [1, 1, 8, 8], strides = [1, 1, 1, 1]} : vector<3x3x8x8xbf16> to vector<1x1x8x8xbf16>
    %13 = vector.shape_cast %12 : vector<1x1x8x8xbf16> to vector<8x8xbf16>
    %cst_8 = arith.constant dense<0.000000e+00> : vector<256x8xf32>
    %14 = tpu.matmul %11, %13, %cst_8 {dimension_numbers = #tpu.dot_dimension_numbers<[1], [0], [0], [1], [0, 0, 1, 1], [], []>} : vector<256x8xbf16>, vector<8x8xbf16>, vector<256x8xf32> -> vector<256x8xf32>
    %15 = arith.addf %9, %14 : vector<256x8xf32>
    %16 = vector.extract_strided_slice %1 {offsets = [0, 2, 0], sizes = [16, 16, 8], strides = [1, 1, 1]} : vector<18x18x8xbf16> to vector<16x16x8xbf16>
    %17 = vector.shape_cast %16 : vector<16x16x8xbf16> to vector<256x8xbf16>
    %18 = vector.extract_strided_slice %2 {offsets = [0, 2, 0, 0], sizes = [1, 1, 8, 8], strides = [1, 1, 1, 1]} : vector<3x3x8x8xbf16> to vector<1x1x8x8xbf16>
    %19 = vector.shape_cast %18 : vector<1x1x8x8xbf16> to vector<8x8xbf16>
    %cst_9 = arith.constant dense<0.000000e+00> : vector<256x8xf32>
    %20 = tpu.matmul %17, %19, %cst_9 {dimension_numbers = #tpu.dot_dimension_numbers<[1], [0], [0], [1], [0, 0, 1, 1], [], []>} : vector<256x8xbf16>, vector<8x8xbf16>, vector<256x8xf32> -> vector<256x8xf32>
    %21 = arith.addf %15, %20 : vector<256x8xf32>
    %22 = vector.extract_strided_slice %1 {offsets = [1, 0, 0], sizes = [16, 16, 8], strides = [1, 1, 1]} : vector<18x18x8xbf16> to vector<16x16x8xbf16>
    %23 = vector.shape_cast %22 : vector<16x16x8xbf16> to vector<256x8xbf16>
    %24 = vector.extract_strided_slice %2 {offsets = [1, 0, 0, 0], sizes = [1, 1, 8, 8], strides = [1, 1, 1, 1]} : vector<3x3x8x8xbf16> to vector<1x1x8x8xbf16>
    %25 = vector.shape_cast %24 : vector<1x1x8x8xbf16> to vector<8x8xbf16>
    %cst_10 = arith.constant dense<0.000000e+00> : vector<256x8xf32>
    %26 = tpu.matmul %23, %25, %cst_10 {dimension_numbers = #tpu.dot_dimension_numbers<[1], [0], [0], [1], [0, 0, 1, 1], [], []>} : vector<256x8xbf16>, vector<8x8xbf16>, vector<256x8xf32> -> vector<256x8xf32>
    %27 = arith.addf %21, %26 : vector<256x8xf32>
    %28 = vector.extract_strided_slice %1 {offsets = [1, 1, 0], sizes = [16, 16, 8], strides = [1, 1, 1]} : vector<18x18x8xbf16> to vector<16x16x8xbf16>
    %29 = vector.shape_cast %28 : vector<16x16x8xbf16> to vector<256x8xbf16>
    %30 = vector.extract_strided_slice %2 {offsets = [1, 1, 0, 0], sizes = [1, 1, 8, 8], strides = [1, 1, 1, 1]} : vector<3x3x8x8xbf16> to vector<1x1x8x8xbf16>
    %31 = vector.shape_cast %30 : vector<1x1x8x8xbf16> to vector<8x8xbf16>
    %cst_11 = arith.constant dense<0.000000e+00> : vector<256x8xf32>
    %32 = tpu.matmul %29, %31, %cst_11 {dimension_numbers = #tpu.dot_dimension_numbers<[1], [0], [0], [1], [0, 0, 1, 1], [], []>} : vector<256x8xbf16>, vector<8x8xbf16>, vector<256x8xf32> -> vector<256x8xf32>
    %33 = arith.addf %27, %32 : vector<256x8xf32>
    %34 = vector.extract_strided_slice %1 {offsets = [1, 2, 0], sizes = [16, 16, 8], strides = [1, 1, 1]} : vector<18x18x8xbf16> to vector<16x16x8xbf16>
    %35 = vector.shape_cast %34 : vector<16x16x8xbf16> to vector<256x8xbf16>
    %36 = vector.extract_strided_slice %2 {offsets = [1, 2, 0, 0], sizes = [1, 1, 8, 8], strides = [1, 1, 1, 1]} : vector<3x3x8x8xbf16> to vector<1x1x8x8xbf16>
    %37 = vector.shape_cast %36 : vector<1x1x8x8xbf16> to vector<8x8xbf16>
    %cst_12 = arith.constant dense<0.000000e+00> : vector<256x8xf32>
    %38 = tpu.matmul %35, %37, %cst_12 {dimension_numbers = #tpu.dot_dimension_numbers<[1], [0], [0], [1], [0, 0, 1, 1], [], []>} : vector<256x8xbf16>, vector<8x8xbf16>, vector<256x8xf32> -> vector<256x8xf32>
    %39 = arith.addf %33, %38 : vector<256x8xf32>
    %40 = vector.extract_strided_slice %1 {offsets = [2, 0, 0], sizes = [16, 16, 8], strides = [1, 1, 1]} : vector<18x18x8xbf16> to vector<16x16x8xbf16>
    %41 = vector.shape_cast %40 : vector<16x16x8xbf16> to vector<256x8xbf16>
    %42 = vector.extract_strided_slice %2 {offsets = [2, 0, 0, 0], sizes = [1, 1, 8, 8], strides = [1, 1, 1, 1]} : vector<3x3x8x8xbf16> to vector<1x1x8x8xbf16>
    %43 = vector.shape_cast %42 : vector<1x1x8x8xbf16> to vector<8x8xbf16>
    %cst_13 = arith.constant dense<0.000000e+00> : vector<256x8xf32>
    %44 = tpu.matmul %41, %43, %cst_13 {dimension_numbers = #tpu.dot_dimension_numbers<[1], [0], [0], [1], [0, 0, 1, 1], [], []>} : vector<256x8xbf16>, vector<8x8xbf16>, vector<256x8xf32> -> vector<256x8xf32>
    %45 = arith.addf %39, %44 : vector<256x8xf32>
    %46 = vector.extract_strided_slice %1 {offsets = [2, 1, 0], sizes = [16, 16, 8], strides = [1, 1, 1]} : vector<18x18x8xbf16> to vector<16x16x8xbf16>
    %47 = vector.shape_cast %46 : vector<16x16x8xbf16> to vector<256x8xbf16>
    %48 = vector.extract_strided_slice %2 {offsets = [2, 1, 0, 0], sizes = [1, 1, 8, 8], strides = [1, 1, 1, 1]} : vector<3x3x8x8xbf16> to vector<1x1x8x8xbf16>
    %49 = vector.shape_cast %48 : vector<1x1x8x8xbf16> to vector<8x8xbf16>
    %cst_14 = arith.constant dense<0.000000e+00> : vector<256x8xf32>
    %50 = tpu.matmul %47, %49, %cst_14 {dimension_numbers = #tpu.dot_dimension_numbers<[1], [0], [0], [1], [0, 0, 1, 1], [], []>} : vector<256x8xbf16>, vector<8x8xbf16>, vector<256x8xf32> -> vector<256x8xf32>
    %51 = arith.addf %45, %50 : vector<256x8xf32>
    %52 = vector.extract_strided_slice %1 {offsets = [2, 2, 0], sizes = [16, 16, 8], strides = [1, 1, 1]} : vector<18x18x8xbf16> to vector<16x16x8xbf16>
    %53 = vector.shape_cast %52 : vector<16x16x8xbf16> to vector<256x8xbf16>
    %54 = vector.extract_strided_slice %2 {offsets = [2, 2, 0, 0], sizes = [1, 1, 8, 8], strides = [1, 1, 1, 1]} : vector<3x3x8x8xbf16> to vector<1x1x8x8xbf16>
    %55 = vector.shape_cast %54 : vector<1x1x8x8xbf16> to vector<8x8xbf16>
    %cst_15 = arith.constant dense<0.000000e+00> : vector<256x8xf32>
    %56 = tpu.matmul %53, %55, %cst_15 {dimension_numbers = #tpu.dot_dimension_numbers<[1], [0], [0], [1], [0, 0, 1, 1], [], []>} : vector<256x8xbf16>, vector<8x8xbf16>, vector<256x8xf32> -> vector<256x8xf32>
    %57 = arith.addf %51, %56 : vector<256x8xf32>
    %c0_16 = arith.constant 0 : index
    %c0_17 = arith.constant 0 : index
    %58 = vector.load %arg3[%c0_16, %c0_17] : memref<1x8xf32, #tpu.memory_space<vmem>>, vector<1x8xf32>
    %59 = vector.broadcast %58 : vector<1x8xf32> to vector<256x8xf32>
    %60 = arith.mulf %57, %59 : vector<256x8xf32>
    %c0_18 = arith.constant 0 : index
    %c0_19 = arith.constant 0 : index
    %61 = vector.load %arg4[%c0_18, %c0_19] : memref<1x8xf32, #tpu.memory_space<vmem>>, vector<1x8xf32>
    %62 = vector.broadcast %61 : vector<1x8xf32> to vector<256x8xf32>
    %63 = arith.addf %60, %62 : vector<256x8xf32>
    %cst_20 = arith.constant 0.000000e+00 : f32
    %64 = vector.broadcast %cst_20 : f32 to vector<256x8xf32>
    %65 = arith.maximumf %63, %64 : vector<256x8xf32>
    %66 = arith.truncf %65 : vector<256x8xf32> to vector<256x8xbf16>
    %c0_21 = arith.constant 0 : index
    %c0_22 = arith.constant 0 : index
    %c0_23 = arith.constant 0 : index
    %67 = vector.load %arg5[%c0_21, %c0_22, %c0_23] : memref<1x256x8xbf16, #tpu.memory_space<vmem>>, vector<1x256x8xbf16>
    %68 = vector.shape_cast %67 : vector<1x256x8xbf16> to vector<256x8xbf16>
    %69 = vector.shape_cast %66 : vector<256x8xbf16> to vector<1x256x8xbf16>
    tpu.vector_store %arg5[%c0_21, %c0_22, %c0_23], %69 {strides = array<i32>} : memref<1x256x8xbf16, #tpu.memory_space<vmem>>, vector<1x256x8xbf16>,
    return
  }
  func.func @transform_0(%arg0: i32) -> (i32, i32, i32, i32) {
    %c0_i32 = arith.constant 0 : i32
    %c0_i32_0 = arith.constant 0 : i32
    %c0_i32_1 = arith.constant 0 : i32
    %c0_i32_2 = arith.constant 0 : i32
    return %arg0, %c0_i32, %c0_i32_0, %c0_i32_1 : i32, i32, i32, i32
  }
  func.func @transform_1(%arg0: i32) -> (i32, i32, i32, i32) {
    %c0_i32 = arith.constant 0 : i32
    %c0_i32_0 = arith.constant 0 : i32
    %c0_i32_1 = arith.constant 0 : i32
    %c0_i32_2 = arith.constant 0 : i32
    %c0_i32_3 = arith.constant 0 : i32
    return %c0_i32, %c0_i32_0, %c0_i32_1, %c0_i32_2 : i32, i32, i32, i32
  }
  func.func @transform_2(%arg0: i32) -> (i32, i32) {
    %c0_i32 = arith.constant 0 : i32
    %c0_i32_0 = arith.constant 0 : i32
    %c0_i32_1 = arith.constant 0 : i32
    return %c0_i32, %c0_i32_0 : i32, i32
  }
  func.func @transform_3(%arg0: i32) -> (i32, i32) {
    %c0_i32 = arith.constant 0 : i32
    %c0_i32_0 = arith.constant 0 : i32
    %c0_i32_1 = arith.constant 0 : i32
    return %c0_i32, %c0_i32_0 : i32, i32
  }
  func.func @transform_4(%arg0: i32) -> (i32, i32, i32) {
    %c0_i32 = arith.constant 0 : i32
    %c0_i32_0 = arith.constant 0 : i32
    %c0_i32_1 = arith.constant 0 : i32
    return %arg0, %c0_i32, %c0_i32_0 : i32, i32, i32
  }
}

module attributes {stable_mosaic.version = 11 : i64} {
  func.func @_pw_bn_add_relu_kernel(%arg0: i32, %arg1: memref<128x8xbf16, #tpu.memory_space<vmem>>, %arg2: memref<8x32xbf16, #tpu.memory_space<vmem>>, %arg3: memref<1x32xf32, #tpu.memory_space<vmem>>, %arg4: memref<1x32xf32, #tpu.memory_space<vmem>>, %arg5: memref<128x32xf32, #tpu.memory_space<vmem>>, %arg6: memref<128x32xf32, #tpu.memory_space<vmem>>) attributes {dimension_semantics = [#tpu.dimension_semantics<parallel>], iteration_bounds = array<i64: 1>, scalar_prefetch = 0 : i64, scratch_operands = 0 : i64, tpu.core_type = #tpu.core_type<tc>, window_params = [{transform_indices = @transform_0, window_bounds = array<i64: 128, 8>}, {pipeline_mode = #tpu.pipeline_mode<synchronous>, transform_indices = @transform_1, window_bounds = array<i64: 8, 32>}, {pipeline_mode = #tpu.pipeline_mode<synchronous>, transform_indices = @transform_2, window_bounds = array<i64: 1, 32>}, {pipeline_mode = #tpu.pipeline_mode<synchronous>, transform_indices = @transform_3, window_bounds = array<i64: 1, 32>}, {transform_indices = @transform_4, window_bounds = array<i64: 128, 32>}, {transform_indices = @transform_5, window_bounds = array<i64: 128, 32>}]} {
    %c0 = arith.constant 0 : index
    %c0_0 = arith.constant 0 : index
    %0 = vector.load %arg1[%c0, %c0_0] : memref<128x8xbf16, #tpu.memory_space<vmem>>, vector<128x8xbf16>
    %c0_1 = arith.constant 0 : index
    %c0_2 = arith.constant 0 : index
    %1 = vector.load %arg2[%c0_1, %c0_2] : memref<8x32xbf16, #tpu.memory_space<vmem>>, vector<8x32xbf16>
    %cst = arith.constant dense<0.000000e+00> : vector<128x32xf32>
    %2 = tpu.matmul %0, %1, %cst {dimension_numbers = #tpu.dot_dimension_numbers<[1], [0], [0], [1], [0, 0, 1, 1], [], []>} : vector<128x8xbf16>, vector<8x32xbf16>, vector<128x32xf32> -> vector<128x32xf32>
    %c0_3 = arith.constant 0 : index
    %c0_4 = arith.constant 0 : index
    %3 = vector.load %arg3[%c0_3, %c0_4] : memref<1x32xf32, #tpu.memory_space<vmem>>, vector<1x32xf32>
    %4 = vector.broadcast %3 : vector<1x32xf32> to vector<128x32xf32>
    %5 = arith.mulf %2, %4 : vector<128x32xf32>
    %c0_5 = arith.constant 0 : index
    %c0_6 = arith.constant 0 : index
    %6 = vector.load %arg4[%c0_5, %c0_6] : memref<1x32xf32, #tpu.memory_space<vmem>>, vector<1x32xf32>
    %7 = vector.broadcast %6 : vector<1x32xf32> to vector<128x32xf32>
    %8 = arith.addf %5, %7 : vector<128x32xf32>
    %c0_7 = arith.constant 0 : index
    %c0_8 = arith.constant 0 : index
    %9 = vector.load %arg5[%c0_7, %c0_8] : memref<128x32xf32, #tpu.memory_space<vmem>>, vector<128x32xf32>
    %10 = arith.addf %8, %9 : vector<128x32xf32>
    %cst_9 = arith.constant 0.000000e+00 : f32
    %11 = vector.broadcast %cst_9 : f32 to vector<128x32xf32>
    %12 = arith.maximumf %10, %11 : vector<128x32xf32>
    %c0_10 = arith.constant 0 : index
    %c0_11 = arith.constant 0 : index
    %13 = vector.load %arg6[%c0_10, %c0_11] : memref<128x32xf32, #tpu.memory_space<vmem>>, vector<128x32xf32>
    tpu.vector_store %arg6[%c0_10, %c0_11], %12 {strides = array<i32>} : memref<128x32xf32, #tpu.memory_space<vmem>>, vector<128x32xf32>,
    return
  }
  func.func @transform_0(%arg0: i32) -> (i32, i32) {
    %c0_i32 = arith.constant 0 : i32
    %c0_i32_0 = arith.constant 0 : i32
    return %arg0, %c0_i32 : i32, i32
  }
  func.func @transform_1(%arg0: i32) -> (i32, i32) {
    %c0_i32 = arith.constant 0 : i32
    %c0_i32_0 = arith.constant 0 : i32
    %c0_i32_1 = arith.constant 0 : i32
    return %c0_i32, %c0_i32_0 : i32, i32
  }
  func.func @transform_2(%arg0: i32) -> (i32, i32) {
    %c0_i32 = arith.constant 0 : i32
    %c0_i32_0 = arith.constant 0 : i32
    %c0_i32_1 = arith.constant 0 : i32
    return %c0_i32, %c0_i32_0 : i32, i32
  }
  func.func @transform_3(%arg0: i32) -> (i32, i32) {
    %c0_i32 = arith.constant 0 : i32
    %c0_i32_0 = arith.constant 0 : i32
    %c0_i32_1 = arith.constant 0 : i32
    return %c0_i32, %c0_i32_0 : i32, i32
  }
  func.func @transform_4(%arg0: i32) -> (i32, i32) {
    %c0_i32 = arith.constant 0 : i32
    %c0_i32_0 = arith.constant 0 : i32
    return %arg0, %c0_i32 : i32, i32
  }
  func.func @transform_5(%arg0: i32) -> (i32, i32) {
    %c0_i32 = arith.constant 0 : i32
    %c0_i32_0 = arith.constant 0 : i32
    return %arg0, %c0_i32 : i32, i32
  }
}

module attributes {stable_mosaic.version = 11 : i64} {
  func.func @_avgpool_kernel(%arg0: i32, %arg1: memref<16x2x8x2x8xbf16, #tpu.memory_space<vmem>>, %arg2: memref<16x8x8xbf16, #tpu.memory_space<vmem>>) attributes {dimension_semantics = [#tpu.dimension_semantics<parallel>], iteration_bounds = array<i64: 1>, scalar_prefetch = 0 : i64, scratch_operands = 0 : i64, tpu.core_type = #tpu.core_type<tc>, window_params = [{transform_indices = @transform_0, window_bounds = array<i64: 16, 2, 8, 2, 8>}, {transform_indices = @transform_1, window_bounds = array<i64: 16, 8, 8>}]} {
    %c0 = arith.constant 0 : index
    %c0_0 = arith.constant 0 : index
    %c0_1 = arith.constant 0 : index
    %c0_2 = arith.constant 0 : index
    %c0_3 = arith.constant 0 : index
    %0 = vector.load %arg1[%c0, %c0_0, %c0_1, %c0_2, %c0_3] : memref<16x2x8x2x8xbf16, #tpu.memory_space<vmem>>, vector<16x2x8x2x8xbf16>
    %1 = arith.extf %0 : vector<16x2x8x2x8xbf16> to vector<16x2x8x2x8xf32>
    %cst = arith.constant dense<0.000000e+00> : vector<16x8x2x8xf32>
    %2 = vector.multi_reduction <add>, %1, %cst [1] : vector<16x2x8x2x8xf32> to vector<16x8x2x8xf32>
    %cst_4 = arith.constant dense<0.000000e+00> : vector<16x8x8xf32>
    %3 = vector.multi_reduction <add>, %2, %cst_4 [2] : vector<16x8x2x8xf32> to vector<16x8x8xf32>
    %cst_5 = arith.constant 2.500000e-01 : f32
    %4 = vector.broadcast %cst_5 : f32 to vector<16x8x8xf32>
    %5 = arith.mulf %3, %4 : vector<16x8x8xf32>
    %6 = arith.truncf %5 : vector<16x8x8xf32> to vector<16x8x8xbf16>
    %c0_6 = arith.constant 0 : index
    %c0_7 = arith.constant 0 : index
    %c0_8 = arith.constant 0 : index
    %7 = vector.load %arg2[%c0_6, %c0_7, %c0_8] : memref<16x8x8xbf16, #tpu.memory_space<vmem>>, vector<16x8x8xbf16>
    tpu.vector_store %arg2[%c0_6, %c0_7, %c0_8], %6 {strides = array<i32>} : memref<16x8x8xbf16, #tpu.memory_space<vmem>>, vector<16x8x8xbf16>,
    return
  }
  func.func @transform_0(%arg0: i32) -> (i32, i32, i32, i32, i32) {
    %c0_i32 = arith.constant 0 : i32
    %c0_i32_0 = arith.constant 0 : i32
    %c0_i32_1 = arith.constant 0 : i32
    %c0_i32_2 = arith.constant 0 : i32
    %c0_i32_3 = arith.constant 0 : i32
    return %arg0, %c0_i32, %c0_i32_0, %c0_i32_1, %c0_i32_2 : i32, i32, i32, i32, i32
  }
  func.func @transform_1(%arg0: i32) -> (i32, i32, i32) {
    %c0_i32 = arith.constant 0 : i32
    %c0_i32_0 = arith.constant 0 : i32
    %c0_i32_1 = arith.constant 0 : i32
    return %arg0, %c0_i32, %c0_i32_0 : i32, i32, i32
  }
}

</mosaic_0001>

<llo_original>
// kernel: bottleneck_forward.10
$region0: #{bottleneck_forward.10}
  #allocation0 [shape = 'u32[]', space=smem, size = 0x4, offset = 0x4, fixed_abs, tag = 'smem constant byte address 0x4 - core index']
  #allocation1 [shape = 'u32[144,128]{1,0:T(1,128)}', space=vmem, size = 0x12000, scoped, tag = 'internal scratch']
  %s0 = inlined_call_operand.vmem [shape: bf16[128,4], index: 0, kind: input, shape index: {}]
  %s1 = inlined_call_operand.vmem [shape: bf16[4,32], index: 1, kind: input, shape index: {}]
  %s2 = inlined_call_operand.vmem [shape: f32[1,32], index: 2, kind: input, shape index: {}]
  %s3 = inlined_call_operand.vmem [shape: f32[1,32], index: 3, kind: input, shape index: {}]
  %s4 = inlined_call_operand.vmem [shape: f32[128,32], index: 4, kind: output, shape index: {}]
  %s5 = sld [smem:[#allocation0]]
  $region26: #{bottleneck_forward.10} parent=0
    _
  %s7 = ssub.s32 1, %s5
  %s8 = scalar_select 0, %s7, %s5
  // Predicated region
  $region2: #{bottleneck_forward.10} parent=0 // pred_check
    _
  $region3: #{bottleneck_forward.10} parent=0 // pred_check_branch
    %10 = sbr.rel (0) target = $region5
  $region4: #{bottleneck_forward.10} parent=0 // pred_region
    _
  $region5: #{bottleneck_forward.10} parent=0 // pred_fallthru
    _
  // Predicated region
  $region6: #{bottleneck_forward.10} parent=0 // pred_check
    _
  $region7: #{bottleneck_forward.10} parent=0 // pred_check_branch
    %12 = sbr.rel (0) target = $region9
  $region8: #{bottleneck_forward.10} parent=0 // pred_region
    _
  $region9: #{bottleneck_forward.10} parent=0 // pred_fallthru
    _
  // Predicated region
  $region10: #{bottleneck_forward.10} parent=0 // pred_check
    _
  $region11: #{bottleneck_forward.10} parent=0 // pred_check_branch
    %14 = sbr.rel (0) target = $region13
  $region12: #{bottleneck_forward.10} parent=0 // pred_region
    _
  $region13: #{bottleneck_forward.10} parent=0 // pred_fallthru
    _
  // Predicated region
  $region14: #{bottleneck_forward.10} parent=0 // pred_check
    _
  $region15: #{bottleneck_forward.10} parent=0 // pred_check_branch
    %16 = sbr.rel (0) target = $region17
  $region16: #{bottleneck_forward.10} parent=0 // pred_region
    _
  $region17: #{bottleneck_forward.10} parent=0 // pred_fallthru
    _
  %v18 = vld [vmem:[%s0] sm:$0xf]
  %v19 = vld [vmem:[%s0 + $0x4] sm:$0xf]
  %v20 = vld [vmem:[%s0 + $0x8] sm:$0xf]
  %v21 = vld [vmem:[%s0 + $0xc] sm:$0xf]
  %v22 = vld [vmem:[%s0 + $0x10] sm:$0xf]
  %v23 = vld [vmem:[%s0 + $0x14] sm:$0xf]
  %v24 = vld [vmem:[%s0 + $0x18] sm:$0xf]
  %v25 = vld [vmem:[%s0 + $0x1c] sm:$0xf]
  %v26 = vld [vmem:[%s0 + $0x20] sm:$0xf]
  %v27 = vld [vmem:[%s0 + $0x24] sm:$0xf]
  %v28 = vld [vmem:[%s0 + $0x28] sm:$0xf]
  %v29 = vld [vmem:[%s0 + $0x2c] sm:$0xf]
  %v30 = vld [vmem:[%s0 + $0x30] sm:$0xf]
  %v31 = vld [vmem:[%s0 + $0x34] sm:$0xf]
  %v32 = vld [vmem:[%s0 + $0x38] sm:$0xf]
  %v33 = vld [vmem:[%s0 + $0x3c] sm:$0xf]
  %v34 = vld [vmem:[%s1] sm:$0x3]
  %v51 = vunpack.c.l.b16 %v18
  %v52 = vunpack.c.l.b16 %v19
  %v53 = vunpack.c.l.b16 %v20
  %v54 = vunpack.c.l.b16 %v21
  %v55 = vunpack.c.l.b16 %v22
  %v56 = vunpack.c.l.b16 %v23
  %v57 = vunpack.c.l.b16 %v24
  %v58 = vunpack.c.l.b16 %v25
  %v59 = vunpack.c.l.b16 %v26
  %v60 = vunpack.c.l.b16 %v27
  %v61 = vunpack.c.l.b16 %v28
  %v62 = vunpack.c.l.b16 %v29
  %v63 = vunpack.c.l.b16 %v30
  %v64 = vunpack.c.l.b16 %v31
  %v65 = vunpack.c.l.b16 %v32
  %v66 = vunpack.c.l.b16 %v33
  %v67 = vpack.c.b16 %v52, %v51
  %v68 = vpack.c.b16 %v54, %v53
  %v69 = vpack.c.b16 %v56, %v55
  %v70 = vpack.c.b16 %v58, %v57
  %v71 = vpack.c.b16 %v60, %v59
  %v72 = vpack.c.b16 %v62, %v61
  %v73 = vpack.c.b16 %v64, %v63
  %v74 = vpack.c.b16 %v66, %v65
  %vm75 = vcmask 31744
  %v77 = vsel %vm75, %v67, 0
  %v80 = vsel %vm75, %v68, 0
  %v83 = vsel %vm75, %v69, 0
  %v86 = vsel %vm75, %v70, 0
  %v89 = vsel %vm75, %v71, 0
  %v92 = vsel %vm75, %v72, 0
  %v95 = vsel %vm75, %v73, 0
  %v98 = vsel %vm75, %v74, 0
  %vm100 = vcmask 1041408
  %v102 = vsel %vm100, %v34, 0
  %104 = vmatprep.subr.bf16.mxu0 0
  %105 = vmatpush1.bf16.msra.mxu0 %v102
  %106 = vmatprep.subr.bf16.mxu0 0
  %107 = vmatpush1.bf16.msra.mxu0 0
  %108 = vmatprep.subr.bf16.mxu0 0
  %109 = vmatpush1.bf16.msra.mxu0 0
  %110 = vmatprep.subr.bf16.mxu0 0
  %111 = vmatpush1.bf16.msra.mxu0 0
  %112 = vmatprep.subr.bf16.mxu0 0
  %113 = vmatpush1.bf16.msra.mxu0 0
  %114 = vmatprep.subr.bf16.mxu0 0
  %115 = vmatpush1.bf16.msra.mxu0 0
  %116 = vmatprep.subr.bf16.mxu0 0
  %117 = vmatpush1.bf16.msra.mxu0 0
  %118 = vmatprep.subr.bf16.mxu0 0
  %119 = vmatpush1.bf16.msra.mxu0 0
  %120 = vmatprep.subr.bf16.mxu0 0
  %121 = vmatpush1.bf16.msra.mxu0 0
  %122 = vmatprep.subr.bf16.mxu0 0
  %123 = vmatpush1.bf16.msra.mxu0 0
  %124 = vmatprep.subr.bf16.mxu0 0
  %125 = vmatpush1.bf16.msra.mxu0 0
  %126 = vmatprep.subr.bf16.mxu0 0
  %127 = vmatpush1.bf16.msra.mxu0 0
  %128 = vmatprep.subr.bf16.mxu0 0
  %129 = vmatpush1.bf16.msra.mxu0 0
  %130 = vmatprep.subr.bf16.mxu0 0
  %131 = vmatpush1.bf16.msra.mxu0 0
  %132 = vmatprep.subr.bf16.mxu0 0
  %133 = vmatpush1.bf16.msra.mxu0 0
  %134 = vmatprep.subr.bf16.mxu0 0
  %135 = vmatpush1.bf16.msra.mxu0 0
  %136 = vmatprep.mubr.bf16.mxu0 0
  %137 = vmatmul.mubr.bf16.gmra.mrb[0].mxu0 %v77
  %v138 = vpop.f32.mrb[0].mxu0
  %v139 = vadd.f32 0.0, %v138
  %v140 = vpop.f32.mrb[0].mxu0
  %v141 = vpop.f32.mrb[0].mxu0
  %v142 = vadd.f32 0.0, %v141
  %v143 = vpop.f32.mrb[0].mxu0
  %144 = vmatprep.mubr.bf16.mxu0 0
  %145 = vmatmul.mubr.bf16.gmra.mrb[0].mxu0 %v80
  %v146 = vpop.f32.mrb[0].mxu0
  %v147 = vadd.f32 0.0, %v146
  %v148 = vpop.f32.mrb[0].mxu0
  %v149 = vpop.f32.mrb[0].mxu0
  %v150 = vadd.f32 0.0, %v149
  %v151 = vpop.f32.mrb[0].mxu0
  %152 = vmatprep.mubr.bf16.mxu0 0
  %153 = vmatmul.mubr.bf16.gmra.mrb[0].mxu0 %v83
  %v154 = vpop.f32.mrb[0].mxu0
  %v155 = vadd.f32 0.0, %v154
  %v156 = vpop.f32.mrb[0].mxu0
  %v157 = vpop.f32.mrb[0].mxu0
  %v158 = vadd.f32 0.0, %v157
  %v159 = vpop.f32.mrb[0].mxu0
  %160 = vmatprep.mubr.bf16.mxu0 0
  %161 = vmatmul.mubr.bf16.gmra.mrb[0].mxu0 %v86
  %v162 = vpop.f32.mrb[0].mxu0
  %v163 = vadd.f32 0.0, %v162
  %v164 = vpop.f32.mrb[0].mxu0
  %v165 = vpop.f32.mrb[0].mxu0
  %v166 = vadd.f32 0.0, %v165
  %v167 = vpop.f32.mrb[0].mxu0
  %168 = vmatprep.mubr.bf16.mxu0 0
  %169 = vmatmul.mubr.bf16.gmra.mrb[0].mxu0 %v89
  %v170 = vpop.f32.mrb[0].mxu0
  %v171 = vadd.f32 0.0, %v170
  %v172 = vpop.f32.mrb[0].mxu0
  %v173 = vpop.f32.mrb[0].mxu0
  %v174 = vadd.f32 0.0, %v173
  %v175 = vpop.f32.mrb[0].mxu0
  %176 = vmatprep.mubr.bf16.mxu0 0
  %177 = vmatmul.mubr.bf16.gmra.mrb[0].mxu0 %v92
  %v178 = vpop.f32.mrb[0].mxu0
  %v179 = vadd.f32 0.0, %v178
  %v180 = vpop.f32.mrb[0].mxu0
  %v181 = vpop.f32.mrb[0].mxu0
  %v182 = vadd.f32 0.0, %v181
  %v183 = vpop.f32.mrb[0].mxu0
  %184 = vmatprep.mubr.bf16.mxu0 0
  %185 = vmatmul.mubr.bf16.gmra.mrb[0].mxu0 %v95
  %v186 = vpop.f32.mrb[0].mxu0
  %v187 = vadd.f32 0.0, %v186
  %v188 = vpop.f32.mrb[0].mxu0
  %v189 = vpop.f32.mrb[0].mxu0
  %v190 = vadd.f32 0.0, %v189
  %v191 = vpop.f32.mrb[0].mxu0
  %192 = vmatprep.mubr.bf16.mxu0 0
  %193 = vmatmul.mubr.bf16.gmra.mrb[0].mxu0 %v98
  %v194 = vpop.f32.mrb[0].mxu0
  %v195 = vadd.f32 0.0, %v194
  %v196 = vpop.f32.mrb[0].mxu0
  %v197 = vpop.f32.mrb[0].mxu0
  %v198 = vadd.f32 0.0, %v197
  %v199 = vpop.f32.mrb[0].mxu0
  %200 = vdwg.mxu0
  %v201 = vld [vmem:[%s2] sm:$0x1]
  %v203 = vlaneseq
  %v204 = vshrl.u32 %v203, 7
  %v205 = vsub.s32 0, %v204
  %v206 = vrot.slane %v201, %v205
  %v208 = vmul.f32 %v139, %v206
  %v209 = vmul.f32 %v142, %v206
  %v210 = vmul.f32 %v147, %v206
  %v211 = vmul.f32 %v150, %v206
  %v212 = vmul.f32 %v155, %v206
  %v213 = vmul.f32 %v158, %v206
  %v214 = vmul.f32 %v163, %v206
  %v215 = vmul.f32 %v166, %v206
  %v216 = vmul.f32 %v171, %v206
  %v217 = vmul.f32 %v174, %v206
  %v218 = vmul.f32 %v179, %v206
  %v219 = vmul.f32 %v182, %v206
  %v220 = vmul.f32 %v187, %v206
  %v221 = vmul.f32 %v190, %v206
  %v222 = vmul.f32 %v195, %v206
  %v223 = vmul.f32 %v198, %v206
  %v224 = vld [vmem:[%s3] sm:$0x1]
  %v226 = vlaneseq
  %v227 = vshrl.u32 %v226, 7
  %v228 = vsub.s32 0, %v227
  %v229 = vrot.slane %v224, %v228
  %v231 = vadd.f32 %v208, %v229
  %v232 = vadd.f32 %v209, %v229
  %v233 = vadd.f32 %v210, %v229
  %v234 = vadd.f32 %v211, %v229
  %v235 = vadd.f32 %v212, %v229
  %v236 = vadd.f32 %v213, %v229
  %v237 = vadd.f32 %v214, %v229
  %v238 = vadd.f32 %v215, %v229
  %v239 = vadd.f32 %v216, %v229
  %v240 = vadd.f32 %v217, %v229
  %v241 = vadd.f32 %v218, %v229
  %v242 = vadd.f32 %v219, %v229
  %v243 = vadd.f32 %v220, %v229
  %v244 = vadd.f32 %v221, %v229
  %v245 = vadd.f32 %v222, %v229
  %v246 = vadd.f32 %v223, %v229
  %vm247 = vcmask 261120
  %248 = vst.msk [vmem:[%s4] sm:$0xff] %vm247, %v231
  %249 = vst.msk [vmem:[%s4 + $0x8] sm:$0xff] %vm247, %v232
  %250 = vst.msk [vmem:[%s4 + $0x10] sm:$0xff] %vm247, %v233
  %251 = vst.msk [vmem:[%s4 + $0x18] sm:$0xff] %vm247, %v234
  %252 = vst.msk [vmem:[%s4 + $0x20] sm:$0xff] %vm247, %v235
  %253 = vst.msk [vmem:[%s4 + $0x28] sm:$0xff] %vm247, %v236
  %254 = vst.msk [vmem:[%s4 + $0x30] sm:$0xff] %vm247, %v237
  %255 = vst.msk [vmem:[%s4 + $0x38] sm:$0xff] %vm247, %v238
  %256 = vst.msk [vmem:[%s4 + $0x40] sm:$0xff] %vm247, %v239
  %257 = vst.msk [vmem:[%s4 + $0x48] sm:$0xff] %vm247, %v240
  %258 = vst.msk [vmem:[%s4 + $0x50] sm:$0xff] %vm247, %v241
  %259 = vst.msk [vmem:[%s4 + $0x58] sm:$0xff] %vm247, %v242
  %260 = vst.msk [vmem:[%s4 + $0x60] sm:$0xff] %vm247, %v243
  %261 = vst.msk [vmem:[%s4 + $0x68] sm:$0xff] %vm247, %v244
  %262 = vst.msk [vmem:[%s4 + $0x70] sm:$0xff] %vm247, %v245
  %263 = vst.msk [vmem:[%s4 + $0x78] sm:$0xff] %vm247, %v246
  // Predicated region
  $region18: #{bottleneck_forward.10} parent=0 // pred_check
    _
  $region19: #{bottleneck_forward.10} parent=0 // pred_check_branch
    %265 = sbr.rel (0) target = $region21
  $region20: #{bottleneck_forward.10} parent=0 // pred_region
    _
  $region21: #{bottleneck_forward.10} parent=0 // pred_fallthru
    _
  // Predicated region
  $region22: #{bottleneck_forward.10} parent=0 // pred_check
    _
  $region23: #{bottleneck_forward.10} parent=0 // pred_check_branch
    %267 = sbr.rel (0) target = $region25
  $region24: #{bottleneck_forward.10} parent=0 // pred_region
    _
  $region25: #{bottleneck_forward.10} parent=0 // pred_fallthru
    _

// kernel: bottleneck_forward.6
$region0: #{bottleneck_forward.6}
  #allocation0 [shape = 'u32[]', space=smem, size = 0x4, offset = 0x4, fixed_abs, tag = 'smem constant byte address 0x4 - core index']
  #allocation1 [shape = 'u32[144,128]{1,0:T(1,128)}', space=vmem, size = 0x12000, scoped, tag = 'internal scratch']
  %s0 = inlined_call_operand.vmem [shape: bf16[512,4], index: 0, kind: input, shape index: {}]
  %s1 = inlined_call_operand.vmem [shape: bf16[4,8], index: 1, kind: input, shape index: {}]
  %s2 = inlined_call_operand.vmem [shape: f32[1,8], index: 2, kind: input, shape index: {}]
  %s3 = inlined_call_operand.vmem [shape: f32[1,8], index: 3, kind: input, shape index: {}]
  %s4 = inlined_call_operand.vmem [shape: bf16[512,8], index: 4, kind: output, shape index: {}]
  %s5 = sld [smem:[#allocation0]]
  $region26: #{bottleneck_forward.6} parent=0
    _
  %s7 = ssub.s32 1, %s5
  %s8 = scalar_select 0, %s7, %s5
  // Predicated region
  $region2: #{bottleneck_forward.6} parent=0 // pred_check
    _
  $region3: #{bottleneck_forward.6} parent=0 // pred_check_branch
    %10 = sbr.rel (0) target = $region5
  $region4: #{bottleneck_forward.6} parent=0 // pred_region
    _
  $region5: #{bottleneck_forward.6} parent=0 // pred_fallthru
    _
  // Predicated region
  $region6: #{bottleneck_forward.6} parent=0 // pred_check
    _
  $region7: #{bottleneck_forward.6} parent=0 // pred_check_branch
    %12 = sbr.rel (0) target = $region9
  $region8: #{bottleneck_forward.6} parent=0 // pred_region
    _
  $region9: #{bottleneck_forward.6} parent=0 // pred_fallthru
    _
  // Predicated region
  $region10: #{bottleneck_forward.6} parent=0 // pred_check
    _
  $region11: #{bottleneck_forward.6} parent=0 // pred_check_branch
    %14 = sbr.rel (0) target = $region13
  $region12: #{bottleneck_forward.6} parent=0 // pred_region
    _
  $region13: #{bottleneck_forward.6} parent=0 // pred_fallthru
    _
  // Predicated region
  $region14: #{bottleneck_forward.6} parent=0 // pred_check
    _
  $region15: #{bottleneck_forward.6} parent=0 // pred_check_branch
    %16 = sbr.rel (0) target = $region17
  $region16: #{bottleneck_forward.6} parent=0 // pred_region
    _
  $region17: #{bottleneck_forward.6} parent=0 // pred_fallthru
    _
  %v18 = vld [vmem:[%s0] sm:$0xf]
  %v19 = vld [vmem:[%s0 + $0x4] sm:$0xf]
  %v20 = vld [vmem:[%s0 + $0x8] sm:$0xf]
  %v21 = vld [vmem:[%s0 + $0xc] sm:$0xf]
  %v22 = vld [vmem:[%s0 + $0x10] sm:$0xf]
  %v23 = vld [vmem:[%s0 + $0x14] sm:$0xf]
  %v24 = vld [vmem:[%s0 + $0x18] sm:$0xf]
  %v25 = vld [vmem:[%s0 + $0x1c] sm:$0xf]
  %v26 = vld [vmem:[%s0 + $0x20] sm:$0xf]
  %v27 = vld [vmem:[%s0 + $0x24] sm:$0xf]
  %v28 = vld [vmem:[%s0 + $0x28] sm:$0xf]
  %v29 = vld [vmem:[%s0 + $0x2c] sm:$0xf]
  %v30 = vld [vmem:[%s0 + $0x30] sm:$0xf]
  %v31 = vld [vmem:[%s0 + $0x34] sm:$0xf]
  %v32 = vld [vmem:[%s0 + $0x38] sm:$0xf]
  %v33 = vld [vmem:[%s0 + $0x3c] sm:$0xf]
  %v34 = vld [vmem:[%s0 + $0x40] sm:$0xf]
  %v35 = vld [vmem:[%s0 + $0x44] sm:$0xf]
  %v36 = vld [vmem:[%s0 + $0x48] sm:$0xf]
  %v37 = vld [vmem:[%s0 + $0x4c] sm:$0xf]
  %v38 = vld [vmem:[%s0 + $0x50] sm:$0xf]
  %v39 = vld [vmem:[%s0 + $0x54] sm:$0xf]
  %v40 = vld [vmem:[%s0 + $0x58] sm:$0xf]
  %v41 = vld [vmem:[%s0 + $0x5c] sm:$0xf]
  %v42 = vld [vmem:[%s0 + $0x60] sm:$0xf]
  %v43 = vld [vmem:[%s0 + $0x64] sm:$0xf]
  %v44 = vld [vmem:[%s0 + $0x68] sm:$0xf]
  %v45 = vld [vmem:[%s0 + $0x6c] sm:$0xf]
  %v46 = vld [vmem:[%s0 + $0x70] sm:$0xf]
  %v47 = vld [vmem:[%s0 + $0x74] sm:$0xf]
  %v48 = vld [vmem:[%s0 + $0x78] sm:$0xf]
  %v49 = vld [vmem:[%s0 + $0x7c] sm:$0xf]
  %v50 = vld [vmem:[%s0 + $0x80] sm:$0xf]
  %v51 = vld [vmem:[%s0 + $0x84] sm:$0xf]
  %v52 = vld [vmem:[%s0 + $0x88] sm:$0xf]
  %v53 = vld [vmem:[%s0 + $0x8c] sm:$0xf]
  %v54 = vld [vmem:[%s0 + $0x90] sm:$0xf]
  %v55 = vld [vmem:[%s0 + $0x94] sm:$0xf]
  %v56 = vld [vmem:[%s0 + $0x98] sm:$0xf]
  %v57 = vld [vmem:[%s0 + $0x9c] sm:$0xf]
  %v58 = vld [vmem:[%s0 + $0xa0] sm:$0xf]
  %v59 = vld [vmem:[%s0 + $0xa4] sm:$0xf]
  %v60 = vld [vmem:[%s0 + $0xa8] sm:$0xf]
  %v61 = vld [vmem:[%s0 + $0xac] sm:$0xf]
  %v62 = vld [vmem:[%s0 + $0xb0] sm:$0xf]
  %v63 = vld [vmem:[%s0 + $0xb4] sm:$0xf]
  %v64 = vld [vmem:[%s0 + $0xb8] sm:$0xf]
  %v65 = vld [vmem:[%s0 + $0xbc] sm:$0xf]
  %v66 = vld [vmem:[%s0 + $0xc0] sm:$0xf]
  %v67 = vld [vmem:[%s0 + $0xc4] sm:$0xf]
  %v68 = vld [vmem:[%s0 + $0xc8] sm:$0xf]
  %v69 = vld [vmem:[%s0 + $0xcc] sm:$0xf]
  %v70 = vld [vmem:[%s0 + $0xd0] sm:$0xf]
  %v71 = vld [vmem:[%s0 + $0xd4] sm:$0xf]
  %v72 = vld [vmem:[%s0 + $0xd8] sm:$0xf]
  %v73 = vld [vmem:[%s0 + $0xdc] sm:$0xf]
  %v74 = vld [vmem:[%s0 + $0xe0] sm:$0xf]
  %v75 = vld [vmem:[%s0 + $0xe4] sm:$0xf]
  %v76 = vld [vmem:[%s0 + $0xe8] sm:$0xf]
  %v77 = vld [vmem:[%s0 + $0xec] sm:$0xf]
  %v78 = vld [vmem:[%s0 + $0xf0] sm:$0xf]
  %v79 = vld [vmem:[%s0 + $0xf4] sm:$0xf]
  %v80 = vld [vmem:[%s0 + $0xf8] sm:$0xf]
  %v81 = vld [vmem:[%s0 + $0xfc] sm:$0xf]
  %v82 = vld [vmem:[%s1] sm:$0x3]
  %v147 = vunpack.c.l.b16 %v18
  %v148 = vunpack.c.l.b16 %v19
  %v149 = vunpack.c.l.b16 %v20
  %v150 = vunpack.c.l.b16 %v21
  %v151 = vunpack.c.l.b16 %v22
  %v152 = vunpack.c.l.b16 %v23
  %v153 = vunpack.c.l.b16 %v24
  %v154 = vunpack.c.l.b16 %v25
  %v155 = vunpack.c.l.b16 %v26
  %v156 = vunpack.c.l.b16 %v27
  %v157 = vunpack.c.l.b16 %v28
  %v158 = vunpack.c.l.b16 %v29
  %v159 = vunpack.c.l.b16 %v30
  %v160 = vunpack.c.l.b16 %v31
  %v161 = vunpack.c.l.b16 %v32
  %v162 = vunpack.c.l.b16 %v33
  %v163 = vunpack.c.l.b16 %v34
  %v164 = vunpack.c.l.b16 %v35
  %v165 = vunpack.c.l.b16 %v36
  %v166 = vunpack.c.l.b16 %v37
  %v167 = vunpack.c.l.b16 %v38
  %v168 = vunpack.c.l.b16 %v39
  %v169 = vunpack.c.l.b16 %v40
  %v170 = vunpack.c.l.b16 %v41
  %v171 = vunpack.c.l.b16 %v42
  %v172 = vunpack.c.l.b16 %v43
  %v173 = vunpack.c.l.b16 %v44
  %v174 = vunpack.c.l.b16 %v45
  %v175 = vunpack.c.l.b16 %v46
  %v176 = vunpack.c.l.b16 %v47
  %v177 = vunpack.c.l.b16 %v48
  %v178 = vunpack.c.l.b16 %v49
  %v179 = vunpack.c.l.b16 %v50
  %v180 = vunpack.c.l.b16 %v51
  %v181 = vunpack.c.l.b16 %v52
  %v182 = vunpack.c.l.b16 %v53
  %v183 = vunpack.c.l.b16 %v54
  %v184 = vunpack.c.l.b16 %v55
  %v185 = vunpack.c.l.b16 %v56
  %v186 = vunpack.c.l.b16 %v57
  %v187 = vunpack.c.l.b16 %v58
  %v188 = vunpack.c.l.b16 %v59
  %v189 = vunpack.c.l.b16 %v60
  %v190 = vunpack.c.l.b16 %v61
  %v191 = vunpack.c.l.b16 %v62
  %v192 = vunpack.c.l.b16 %v63
  %v193 = vunpack.c.l.b16 %v64
  %v194 = vunpack.c.l.b16 %v65
  %v195 = vunpack.c.l.b16 %v66
  %v196 = vunpack.c.l.b16 %v67
  %v197 = vunpack.c.l.b16 %v68
  %v198 = vunpack.c.l.b16 %v69
  %v199 = vunpack.c.l.b16 %v70
  %v200 = vunpack.c.l.b16 %v71
  %v201 = vunpack.c.l.b16 %v72
  %v202 = vunpack.c.l.b16 %v73
  %v203 = vunpack.c.l.b16 %v74
  %v204 = vunpack.c.l.b16 %v75
  %v205 = vunpack.c.l.b16 %v76
  %v206 = vunpack.c.l.b16 %v77
  %v207 = vunpack.c.l.b16 %v78
  %v208 = vunpack.c.l.b16 %v79
  %v209 = vunpack.c.l.b16 %v80
  %v210 = vunpack.c.l.b16 %v81
  %v211 = vpack.c.b16 %v148, %v147
  %v212 = vpack.c.b16 %v150, %v149
  %v213 = vpack.c.b16 %v152, %v151
  %v214 = vpack.c.b16 %v154, %v153
  %v215 = vpack.c.b16 %v156, %v155
  %v216 = vpack.c.b16 %v158, %v157
  %v217 = vpack.c.b16 %v160, %v159
  %v218 = vpack.c.b16 %v162, %v161
  %v219 = vpack.c.b16 %v164, %v163
  %v220 = vpack.c.b16 %v166, %v165
  %v221 = vpack.c.b16 %v168, %v167
  %v222 = vpack.c.b16 %v170, %v169
  %v223 = vpack.c.b16 %v172, %v171
  %v224 = vpack.c.b16 %v174, %v173
  %v225 = vpack.c.b16 %v176, %v175
  %v226 = vpack.c.b16 %v178, %v177
  %v227 = vpack.c.b16 %v180, %v179
  %v228 = vpack.c.b16 %v182, %v181
  %v229 = vpack.c.b16 %v184, %v183
  %v230 = vpack.c.b16 %v186, %v185
  %v231 = vpack.c.b16 %v188, %v187
  %v232 = vpack.c.b16 %v190, %v189
  %v233 = vpack.c.b16 %v192, %v191
  %v234 = vpack.c.b16 %v194, %v193
  %v235 = vpack.c.b16 %v196, %v195
  %v236 = vpack.c.b16 %v198, %v197
  %v237 = vpack.c.b16 %v200, %v199
  %v238 = vpack.c.b16 %v202, %v201
  %v239 = vpack.c.b16 %v204, %v203
  %v240 = vpack.c.b16 %v206, %v205
  %v241 = vpack.c.b16 %v208, %v207
  %v242 = vpack.c.b16 %v210, %v209
  %vm243 = vcmask 31744
  %v245 = vsel %vm243, %v211, 0
  %v248 = vsel %vm243, %v212, 0
  %v251 = vsel %vm243, %v213, 0
  %v254 = vsel %vm243, %v214, 0
  %v257 = vsel %vm243, %v215, 0
  %v260 = vsel %vm243, %v216, 0
  %v263 = vsel %vm243, %v217, 0
  %v266 = vsel %vm243, %v218, 0
  %v269 = vsel %vm243, %v219, 0
  %v272 = vsel %vm243, %v220, 0
  %v275 = vsel %vm243, %v221, 0
  %v278 = vsel %vm243, %v222, 0
  %v281 = vsel %vm243, %v223, 0
  %v284 = vsel %vm243, %v224, 0
  %v287 = vsel %vm243, %v225, 0
  %v290 = vsel %vm243, %v226, 0
  %v293 = vsel %vm243, %v227, 0
  %v296 = vsel %vm243, %v228, 0
  %v299 = vsel %vm243, %v229, 0
  %v302 = vsel %vm243, %v230, 0
  %v305 = vsel %vm243, %v231, 0
  %v308 = vsel %vm243, %v232, 0
  %v311 = vsel %vm243, %v233, 0
  %v314 = vsel %vm243, %v234, 0
  %v317 = vsel %vm243, %v235, 0
  %v320 = vsel %vm243, %v236, 0
  %v323 = vsel %vm243, %v237, 0
  %v326 = vsel %vm243, %v238, 0
  %v329 = vsel %vm243, %v239, 0
  %v332 = vsel %vm243, %v240, 0
  %v335 = vsel %vm243, %v241, 0
  %v338 = vsel %vm243, %v242, 0
  %vm340 = vcmask 1041408
  %v342 = vsel %vm340, %v82, 0
  %344 = vmatprep.subr.bf16.mxu0 0
  %345 = vmatpush1.bf16.msra.mxu0 %v342
  %346 = vmatprep.subr.bf16.mxu0 0
  %347 = vmatpush1.bf16.msra.mxu0 0
  %348 = vmatprep.subr.bf16.mxu0 0
  %349 = vmatpush1.bf16.msra.mxu0 0
  %350 = vmatprep.subr.bf16.mxu0 0
  %351 = vmatpush1.bf16.msra.mxu0 0
  %352 = vmatprep.subr.bf16.mxu0 0
  %353 = vmatpush1.bf16.msra.mxu0 0
  %354 = vmatprep.subr.bf16.mxu0 0
  %355 = vmatpush1.bf16.msra.mxu0 0
  %356 = vmatprep.subr.bf16.mxu0 0
  %357 = vmatpush1.bf16.msra.mxu0 0
  %358 = vmatprep.subr.bf16.mxu0 0
  %359 = vmatpush1.bf16.msra.mxu0 0
  %360 = vmatprep.subr.bf16.mxu0 0
  %361 = vmatpush1.bf16.msra.mxu0 0
  %362 = vmatprep.subr.bf16.mxu0 0
  %363 = vmatpush1.bf16.msra.mxu0 0
  %364 = vmatprep.subr.bf16.mxu0 0
  %365 = vmatpush1.bf16.msra.mxu0 0
  %366 = vmatprep.subr.bf16.mxu0 0
  %367 = vmatpush1.bf16.msra.mxu0 0
  %368 = vmatprep.subr.bf16.mxu0 0
  %369 = vmatpush1.bf16.msra.mxu0 0
  %370 = vmatprep.subr.bf16.mxu0 0
  %371 = vmatpush1.bf16.msra.mxu0 0
  %372 = vmatprep.subr.bf16.mxu0 0
  %373 = vmatpush1.bf16.msra.mxu0 0
  %374 = vmatprep.subr.bf16.mxu0 0
  %375 = vmatpush1.bf16.msra.mxu0 0
  %376 = vmatprep.mubr.bf16.mxu0 0
  %377 = vmatmul.mubr.bf16.gmra.mrb[0].mxu0 %v245
  %v378 = vpop.f32.mrb[0].mxu0
  %v379 = vadd.f32 0.0, %v378
  %v380 = vpop.f32.mrb[0].mxu0
  %v381 = vpop.f32.mrb[0].mxu0
  %v382 = vadd.f32 0.0, %v381
  %v383 = vpop.f32.mrb[0].mxu0
  %384 = vmatprep.mubr.bf16.mxu0 0
  %385 = vmatmul.mubr.bf16.gmra.mrb[0].mxu0 %v248
  %v386 = vpop.f32.mrb[0].mxu0
  %v387 = vadd.f32 0.0, %v386
  %v388 = vpop.f32.mrb[0].mxu0
  %v389 = vpop.f32.mrb[0].mxu0
  %v390 = vadd.f32 0.0, %v389
  %v391 = vpop.f32.mrb[0].mxu0
  %392 = vmatprep.mubr.bf16.mxu0 0
  %393 = vmatmul.mubr.bf16.gmra.mrb[0].mxu0 %v251
  %v394 = vpop.f32.mrb[0].mxu0
  %v395 = vadd.f32 0.0, %v394
  %v396 = vpop.f32.mrb[0].mxu0
  %v397 = vpop.f32.mrb[0].mxu0
  %v398 = vadd.f32 0.0, %v397
  %v399 = vpop.f32.mrb[0].mxu0
  %400 = vmatprep.mubr.bf16.mxu0 0
  %401 = vmatmul.mubr.bf16.gmra.mrb[0].mxu0 %v254
  %v402 = vpop.f32.mrb[0].mxu0
  %v403 = vadd.f32 0.0, %v402
  %v404 = vpop.f32.mrb[0].mxu0
  %v405 = vpop.f32.mrb[0].mxu0
  %v406 = vadd.f32 0.0, %v405
  %v407 = vpop.f32.mrb[0].mxu0
  %408 = vmatprep.mubr.bf16.mxu0 0
  %409 = vmatmul.mubr.bf16.gmra.mrb[0].mxu0 %v257
  %v410 = vpop.f32.mrb[0].mxu0
  %v411 = vadd.f32 0.0, %v410
  %v412 = vpop.f32.mrb[0].mxu0
  %v413 = vpop.f32.mrb[0].mxu0
  %v414 = vadd.f32 0.0, %v413
  %v415 = vpop.f32.mrb[0].mxu0
  %416 = vmatprep.mubr.bf16.mxu0 0
  %417 = vmatmul.mubr.bf16.gmra.mrb[0].mxu0 %v260
  %v418 = vpop.f32.mrb[0].mxu0
  %v419 = vadd.f32 0.0, %v418
  %v420 = vpop.f32.mrb[0].mxu0
  %v421 = vpop.f32.mrb[0].mxu0
  %v422 = vadd.f32 0.0, %v421
  %v423 = vpop.f32.mrb[0].mxu0
  %424 = vmatprep.mubr.bf16.mxu0 0
  %425 = vmatmul.mubr.bf16.gmra.mrb[0].mxu0 %v263
  %v426 = vpop.f32.mrb[0].mxu0
  %v427 = vadd.f32 0.0, %v426
  %v428 = vpop.f32.mrb[0].mxu0
  %v429 = vpop.f32.mrb[0].mxu0
  %v430 = vadd.f32 0.0, %v429
  %v431 = vpop.f32.mrb[0].mxu0
  %432 = vmatprep.mubr.bf16.mxu0 0
  %433 = vmatmul.mubr.bf16.gmra.mrb[0].mxu0 %v266
  %v434 = vpop.f32.mrb[0].mxu0
  %v435 = vadd.f32 0.0, %v434
  %v436 = vpop.f32.mrb[0].mxu0
  %v437 = vpop.f32.mrb[0].mxu0
  %v438 = vadd.f32 0.0, %v437
  %v439 = vpop.f32.mrb[0].mxu0
  %440 = vmatprep.mubr.bf16.mxu0 0
  %441 = vmatmul.mubr.bf16.gmra.mrb[0].mxu0 %v269
  %v442 = vpop.f32.mrb[0].mxu0
  %v443 = vadd.f32 0.0, %v442
  %v444 = vpop.f32.mrb[0].mxu0
  %v445 = vpop.f32.mrb[0].mxu0
  %v446 = vadd.f32 0.0, %v445
  %v447 = vpop.f32.mrb[0].mxu0
  %448 = vmatprep.mubr.bf16.mxu0 0
  %449 = vmatmul.mubr.bf16.gmra.mrb[0].mxu0 %v272
  %v450 = vpop.f32.mrb[0].mxu0
  %v451 = vadd.f32 0.0, %v450
  %v452 = vpop.f32.mrb[0].mxu0
  %v453 = vpop.f32.mrb[0].mxu0
  %v454 = vadd.f32 0.0, %v453
  %v455 = vpop.f32.mrb[0].mxu0
  %456 = vmatprep.mubr.bf16.mxu0 0
  %457 = vmatmul.mubr.bf16.gmra.mrb[0].mxu0 %v275
  %v458 = vpop.f32.mrb[0].mxu0
  %v459 = vadd.f32 0.0, %v458
  %v460 = vpop.f32.mrb[0].mxu0
  %v461 = vpop.f32.mrb[0].mxu0
  %v462 = vadd.f32 0.0, %v461
  %v463 = vpop.f32.mrb[0].mxu0
  %464 = vmatprep.mubr.bf16.mxu0 0
  %465 = vmatmul.mubr.bf16.gmra.mrb[0].mxu0 %v278
  %v466 = vpop.f32.mrb[0].mxu0
  %v467 = vadd.f32 0.0, %v466
  %v468 = vpop.f32.mrb[0].mxu0
  %v469 = vpop.f32.mrb[0].mxu0
  %v470 = vadd.f32 0.0, %v469
  %v471 = vpop.f32.mrb[0].mxu0
  %472 = vmatprep.mubr.bf16.mxu0 0
  %473 = vmatmul.mubr.bf16.gmra.mrb[0].mxu0 %v281
  %v474 = vpop.f32.mrb[0].mxu0
  %v475 = vadd.f32 0.0, %v474
  %v476 = vpop.f32.mrb[0].mxu0
  %v477 = vpop.f32.mrb[0].mxu0
  %v478 = vadd.f32 0.0, %v477
  %v479 = vpop.f32.mrb[0].mxu0
  %480 = vmatprep.mubr.bf16.mxu0 0
  %481 = vmatmul.mubr.bf16.gmra.mrb[0].mxu0 %v284
  %v482 = vpop.f32.mrb[0].mxu0
  %v483 = vadd.f32 0.0, %v482
  %v484 = vpop.f32.mrb[0].mxu0
  %v485 = vpop.f32.mrb[0].mxu0
  %v486 = vadd.f32 0.0, %v485
  %v487 = vpop.f32.mrb[0].mxu0
  %488 = vmatprep.mubr.bf16.mxu0 0
  %489 = vmatmul.mubr.bf16.gmra.mrb[0].mxu0 %v287
  %v490 = vpop.f32.mrb[0].mxu0
  %v491 = vadd.f32 0.0, %v490
  %v492 = vpop.f32.mrb[0].mxu0
  %v493 = vpop.f32.mrb[0].mxu0
  %v494 = vadd.f32 0.0, %v493
  %v495 = vpop.f32.mrb[0].mxu0
  %496 = vmatprep.mubr.bf16.mxu0 0
  %497 = vmatmul.mubr.bf16.gmra.mrb[0].mxu0 %v290
  %v498 = vpop.f32.mrb[0].mxu0
  %v499 = vadd.f32 0.0, %v498
  %v500 = vpop.f32.mrb[0].mxu0
  %v501 = vpop.f32.mrb[0].mxu0
  %v502 = vadd.f32 0.0, %v501
  %v503 = vpop.f32.mrb[0].mxu0
  %504 = vmatprep.mubr.bf16.mxu0 0
  %505 = vmatmul.mubr.bf16.gmra.mrb[0].mxu0 %v293
  %v506 = vpop.f32.mrb[0].mxu0
  %v507 = vadd.f32 0.0, %v506
  %v508 = vpop.f32.mrb[0].mxu0
  %v509 = vpop.f32.mrb[0].mxu0
  %v510 = vadd.f32 0.0, %v509
  %v511 = vpop.f32.mrb[0].mxu0
  %512 = vmatprep.mubr.bf16.mxu0 0
  %513 = vmatmul.mubr.bf16.gmra.mrb[0].mxu0 %v296
  %v514 = vpop.f32.mrb[0].mxu0
  %v515 = vadd.f32 0.0, %v514
  %v516 = vpop.f32.mrb[0].mxu0
  %v517 = vpop.f32.mrb[0].mxu0
  %v518 = vadd.f32 0.0, %v517
  %v519 = vpop.f32.mrb[0].mxu0
  %520 = vmatprep.mubr.bf16.mxu0 0
  %521 = vmatmul.mubr.bf16.gmra.mrb[0].mxu0 %v299
  %v522 = vpop.f32.mrb[0].mxu0
  %v523 = vadd.f32 0.0, %v522
  %v524 = vpop.f32.mrb[0].mxu0
  %v525 = vpop.f32.mrb[0].mxu0
  %v526 = vadd.f32 0.0, %v525
  %v527 = vpop.f32.mrb[0].mxu0
  %528 = vmatprep.mubr.bf16.mxu0 0
  %529 = vmatmul.mubr.bf16.gmra.mrb[0].mxu0 %v302
  %v530 = vpop.f32.mrb[0].mxu0
  %v531 = vadd.f32 0.0, %v530
  %v532 = vpop.f32.mrb[0].mxu0
  %v533 = vpop.f32.mrb[0].mxu0
  %v534 = vadd.f32 0.0, %v533
  %v535 = vpop.f32.mrb[0].mxu0
  %536 = vmatprep.mubr.bf16.mxu0 0
  %537 = vmatmul.mubr.bf16.gmra.mrb[0].mxu0 %v305
  %v538 = vpop.f32.mrb[0].mxu0
  %v539 = vadd.f32 0.0, %v538
  %v540 = vpop.f32.mrb[0].mxu0
  %v541 = vpop.f32.mrb[0].mxu0
  %v542 = vadd.f32 0.0, %v541
  %v543 = vpop.f32.mrb[0].mxu0
  %544 = vmatprep.mubr.bf16.mxu0 0
  %545 = vmatmul.mubr.bf16.gmra.mrb[0].mxu0 %v308
  %v546 = vpop.f32.mrb[0].mxu0
  %v547 = vadd.f32 0.0, %v546
  %v548 = vpop.f32.mrb[0].mxu0
  %v549 = vpop.f32.mrb[0].mxu0
  %v550 = vadd.f32 0.0, %v549
  %v551 = vpop.f32.mrb[0].mxu0
  %552 = vmatprep.mubr.bf16.mxu0 0
  %553 = vmatmul.mubr.bf16.gmra.mrb[0].mxu0 %v311
  %v554 = vpop.f32.mrb[0].mxu0
  %v555 = vadd.f32 0.0, %v554
  %v556 = vpop.f32.mrb[0].mxu0
  %v557 = vpop.f32.mrb[0].mxu0
  %v558 = vadd.f32 0.0, %v557
  %v559 = vpop.f32.mrb[0].mxu0
  %560 = vmatprep.mubr.bf16.mxu0 0
  %561 = vmatmul.mubr.bf16.gmra.mrb[0].mxu0 %v314
  %v562 = vpop.f32.mrb[0].mxu0
  %v563 = vadd.f32 0.0, %v562
  %v564 = vpop.f32.mrb[0].mxu0
  %v565 = vpop.f32.mrb[0].mxu0
  %v566 = vadd.f32 0.0, %v565
  %v567 = vpop.f32.mrb[0].mxu0
  %568 = vmatprep.mubr.bf16.mxu0 0
  %569 = vmatmul.mubr.bf16.gmra.mrb[0].mxu0 %v317
  %v570 = vpop.f32.mrb[0].mxu0
  %v571 = vadd.f32 0.0, %v570
  %v572 = vpop.f32.mrb[0].mxu0
  %v573 = vpop.f32.mrb[0].mxu0
  %v574 = vadd.f32 0.0, %v573
  %v575 = vpop.f32.mrb[0].mxu0
  %576 = vmatprep.mubr.bf16.mxu0 0
  %577 = vmatmul.mubr.bf16.gmra.mrb[0].mxu0 %v320
  %v578 = vpop.f32.mrb[0].mxu0
  %v579 = vadd.f32 0.0, %v578
  %v580 = vpop.f32.mrb[0].mxu0
  %v581 = vpop.f32.mrb[0].mxu0
  %v582 = vadd.f32 0.0, %v581
  %v583 = vpop.f32.mrb[0].mxu0
  %584 = vmatprep.mubr.bf16.mxu0 0
  %585 = vmatmul.mubr.bf16.gmra.mrb[0].mxu0 %v323
  %v586 = vpop.f32.mrb[0].mxu0
  %v587 = vadd.f32 0.0, %v586
  %v588 = vpop.f32.mrb[0].mxu0
  %v589 = vpop.f32.mrb[0].mxu0
  %v590 = vadd.f32 0.0, %v589
  %v591 = vpop.f32.mrb[0].mxu0
  %592 = vmatprep.mubr.bf16.mxu0 0
  %593 = vmatmul.mubr.bf16.gmra.mrb[0].mxu0 %v326
  %v594 = vpop.f32.mrb[0].mxu0
  %v595 = vadd.f32 0.0, %v594
  %v596 = vpop.f32.mrb[0].mxu0
  %v597 = vpop.f32.mrb[0].mxu0
  %v598 = vadd.f32 0.0, %v597
  %v599 = vpop.f32.mrb[0].mxu0
  %600 = vmatprep.mubr.bf16.mxu0 0
  %601 = vmatmul.mubr.bf16.gmra.mrb[0].mxu0 %v329
  %v602 = vpop.f32.mrb[0].mxu0
  %v603 = vadd.f32 0.0, %v602
  %v604 = vpop.f32.mrb[0].mxu0
  %v605 = vpop.f32.mrb[0].mxu0
  %v606 = vadd.f32 0.0, %v605
  %v607 = vpop.f32.mrb[0].mxu0
  %608 = vmatprep.mubr.bf16.mxu0 0
  %609 = vmatmul.mubr.bf16.gmra.mrb[0].mxu0 %v332
  %v610 = vpop.f32.mrb[0].mxu0
  %v611 = vadd.f32 0.0, %v610
  %v612 = vpop.f32.mrb[0].mxu0
  %v613 = vpop.f32.mrb[0].mxu0
  %v614 = vadd.f32 0.0, %v613
  %v615 = vpop.f32.mrb[0].mxu0
  %616 = vmatprep.mubr.bf16.mxu0 0
  %617 = vmatmul.mubr.bf16.gmra.mrb[0].mxu0 %v335
  %v618 = vpop.f32.mrb[0].mxu0
  %v619 = vadd.f32 0.0, %v618
  %v620 = vpop.f32.mrb[0].mxu0
  %v621 = vpop.f32.mrb[0].mxu0
  %v622 = vadd.f32 0.0, %v621
  %v623 = vpop.f32.mrb[0].mxu0
  %624 = vmatprep.mubr.bf16.mxu0 0
  %625 = vmatmul.mubr.bf16.gmra.mrb[0].mxu0 %v338
  %v626 = vpop.f32.mrb[0].mxu0
  %v627 = vadd.f32 0.0, %v626
  %v628 = vpop.f32.mrb[0].mxu0
  %v629 = vpop.f32.mrb[0].mxu0
  %v630 = vadd.f32 0.0, %v629
  %v631 = vpop.f32.mrb[0].mxu0
  %632 = vdwg.mxu0
  %v633 = vld [vmem:[%s2] sm:$0x1]
  %v635 = vlaneseq
  %v636 = vshrl.u32 %v635, 7
  %v637 = vsub.s32 0, %v636
  %v638 = vrot.slane %v633, %v637
  %v640 = vmul.f32 %v379, %v638
  %v641 = vmul.f32 %v382, %v638
  %v642 = vmul.f32 %v387, %v638
  %v643 = vmul.f32 %v390, %v638
  %v644 = vmul.f32 %v395, %v638
  %v645 = vmul.f32 %v398, %v638
  %v646 = vmul.f32 %v403, %v638
  %v647 = vmul.f32 %v406, %v638
  %v648 = vmul.f32 %v411, %v638
  %v649 = vmul.f32 %v414, %v638
  %v650 = vmul.f32 %v419, %v638
  %v651 = vmul.f32 %v422, %v638
  %v652 = vmul.f32 %v427, %v638
  %v653 = vmul.f32 %v430, %v638
  %v654 = vmul.f32 %v435, %v638
  %v655 = vmul.f32 %v438, %v638
  %v656 = vmul.f32 %v443, %v638
  %v657 = vmul.f32 %v446, %v638
  %v658 = vmul.f32 %v451, %v638
  %v659 = vmul.f32 %v454, %v638
  %v660 = vmul.f32 %v459, %v638
  %v661 = vmul.f32 %v462, %v638
  %v662 = vmul.f32 %v467, %v638
  %v663 = vmul.f32 %v470, %v638
  %v664 = vmul.f32 %v475, %v638
  %v665 = vmul.f32 %v478, %v638
  %v666 = vmul.f32 %v483, %v638
  %v667 = vmul.f32 %v486, %v638
  %v668 = vmul.f32 %v491, %v638
  %v669 = vmul.f32 %v494, %v638
  %v670 = vmul.f32 %v499, %v638
  %v671 = vmul.f32 %v502, %v638
  %v672 = vmul.f32 %v507, %v638
  %v673 = vmul.f32 %v510, %v638
  %v674 = vmul.f32 %v515, %v638
  %v675 = vmul.f32 %v518, %v638
  %v676 = vmul.f32 %v523, %v638
  %v677 = vmul.f32 %v526, %v638
  %v678 = vmul.f32 %v531, %v638
  %v679 = vmul.f32 %v534, %v638
  %v680 = vmul.f32 %v539, %v638
  %v681 = vmul.f32 %v542, %v638
  %v682 = vmul.f32 %v547, %v638
  %v683 = vmul.f32 %v550, %v638
  %v684 = vmul.f32 %v555, %v638
  %v685 = vmul.f32 %v558, %v638
  %v686 = vmul.f32 %v563, %v638
  %v687 = vmul.f32 %v566, %v638
  %v688 = vmul.f32 %v571, %v638
  %v689 = vmul.f32 %v574, %v638
  %v690 = vmul.f32 %v579, %v638
  %v691 = vmul.f32 %v582, %v638
  %v692 = vmul.f32 %v587, %v638
  %v693 = vmul.f32 %v590, %v638
  %v694 = vmul.f32 %v595, %v638
  %v695 = vmul.f32 %v598, %v638
  %v696 = vmul.f32 %v603, %v638
  %v697 = vmul.f32 %v606, %v638
  %v698 = vmul.f32 %v611, %v638
  %v699 = vmul.f32 %v614, %v638
  %v700 = vmul.f32 %v619, %v638
  %v701 = vmul.f32 %v622, %v638
  %v702 = vmul.f32 %v627, %v638
  %v703 = vmul.f32 %v630, %v638
  %v704 = vld [vmem:[%s3] sm:$0x1]
  %v706 = vlaneseq
  %v707 = vshrl.u32 %v706, 7
  %v708 = vsub.s32 0, %v707
  %v709 = vrot.slane %v704, %v708
  %v711 = vadd.f32 %v640, %v709
  %v712 = vadd.f32 %v641, %v709
  %v713 = vadd.f32 %v642, %v709
  %v714 = vadd.f32 %v643, %v709
  %v715 = vadd.f32 %v644, %v709
  %v716 = vadd.f32 %v645, %v709
  %v717 = vadd.f32 %v646, %v709
  %v718 = vadd.f32 %v647, %v709
  %v719 = vadd.f32 %v648, %v709
  %v720 = vadd.f32 %v649, %v709
  %v721 = vadd.f32 %v650, %v709
  %v722 = vadd.f32 %v651, %v709
  %v723 = vadd.f32 %v652, %v709
  %v724 = vadd.f32 %v653, %v709
  %v725 = vadd.f32 %v654, %v709
  %v726 = vadd.f32 %v655, %v709
  %v727 = vadd.f32 %v656, %v709
  %v728 = vadd.f32 %v657, %v709
  %v729 = vadd.f32 %v658, %v709
  %v730 = vadd.f32 %v659, %v709
  %v731 = vadd.f32 %v660, %v709
  %v732 = vadd.f32 %v661, %v709
  %v733 = vadd.f32 %v662, %v709
  %v734 = vadd.f32 %v663, %v709
  %v735 = vadd.f32 %v664, %v709
  %v736 = vadd.f32 %v665, %v709
  %v737 = vadd.f32 %v666, %v709
  %v738 = vadd.f32 %v667, %v709
  %v739 = vadd.f32 %v668, %v709
  %v740 = vadd.f32 %v669, %v709
  %v741 = vadd.f32 %v670, %v709
  %v742 = vadd.f32 %v671, %v709
  %v743 = vadd.f32 %v672, %v709
  %v744 = vadd.f32 %v673, %v709
  %v745 = vadd.f32 %v674, %v709
  %v746 = vadd.f32 %v675, %v709
  %v747 = vadd.f32 %v676, %v709
  %v748 = vadd.f32 %v677, %v709
  %v749 = vadd.f32 %v678, %v709
  %v750 = vadd.f32 %v679, %v709
  %v751 = vadd.f32 %v680, %v709
  %v752 = vadd.f32 %v681, %v709
  %v753 = vadd.f32 %v682, %v709
  %v754 = vadd.f32 %v683, %v709
  %v755 = vadd.f32 %v684, %v709
  %v756 = vadd.f32 %v685, %v709
  %v757 = vadd.f32 %v686, %v709
  %v758 = vadd.f32 %v687, %v709
  %v759 = vadd.f32 %v688, %v709
  %v760 = vadd.f32 %v689, %v709
  %v761 = vadd.f32 %v690, %v709
  %v762 = vadd.f32 %v691, %v709
  %v763 = vadd.f32 %v692, %v709
  %v764 = vadd.f32 %v693, %v709
  %v765 = vadd.f32 %v694, %v709
  %v766 = vadd.f32 %v695, %v709
  %v767 = vadd.f32 %v696, %v709
  %v768 = vadd.f32 %v697, %v709
  %v769 = vadd.f32 %v698, %v709
  %v770 = vadd.f32 %v699, %v709
  %v771 = vadd.f32 %v700, %v709
  %v772 = vadd.f32 %v701, %v709
  %v773 = vadd.f32 %v702, %v709
  %v774 = vadd.f32 %v703, %v709
  %v775 = vmax.f32 %v711, 0.0
  %v776 = vmax.f32 %v712, 0.0
  %v777 = vmax.f32 %v713, 0.0
  %v778 = vmax.f32 %v714, 0.0
  %v779 = vmax.f32 %v715, 0.0
  %v780 = vmax.f32 %v716, 0.0
  %v781 = vmax.f32 %v717, 0.0
  %v782 = vmax.f32 %v718, 0.0
  %v783 = vmax.f32 %v719, 0.0
  %v784 = vmax.f32 %v720, 0.0
  %v785 = vmax.f32 %v721, 0.0
  %v786 = vmax.f32 %v722, 0.0
  %v787 = vmax.f32 %v723, 0.0
  %v788 = vmax.f32 %v724, 0.0
  %v789 = vmax.f32 %v725, 0.0
  %v790 = vmax.f32 %v726, 0.0
  %v791 = vmax.f32 %v727, 0.0
  %v792 = vmax.f32 %v728, 0.0
  %v793 = vmax.f32 %v729, 0.0
  %v794 = vmax.f32 %v730, 0.0
  %v795 = vmax.f32 %v731, 0.0
  %v796 = vmax.f32 %v732, 0.0
  %v797 = vmax.f32 %v733, 0.0
  %v798 = vmax.f32 %v734, 0.0
  %v799 = vmax.f32 %v735, 0.0
  %v800 = vmax.f32 %v736, 0.0
  %v801 = vmax.f32 %v737, 0.0
  %v802 = vmax.f32 %v738, 0.0
  %v803 = vmax.f32 %v739, 0.0
  %v804 = vmax.f32 %v740, 0.0
  %v805 = vmax.f32 %v741, 0.0
  %v806 = vmax.f32 %v742, 0.0
  %v807 = vmax.f32 %v743, 0.0
  %v808 = vmax.f32 %v744, 0.0
  %v809 = vmax.f32 %v745, 0.0
  %v810 = vmax.f32 %v746, 0.0
  %v811 = vmax.f32 %v747, 0.0
  %v812 = vmax.f32 %v748, 0.0
  %v813 = vmax.f32 %v749, 0.0
  %v814 = vmax.f32 %v750, 0.0
  %v815 = vmax.f32 %v751, 0.0
  %v816 = vmax.f32 %v752, 0.0
  %v817 = vmax.f32 %v753, 0.0
  %v818 = vmax.f32 %v754, 0.0
  %v819 = vmax.f32 %v755, 0.0
  %v820 = vmax.f32 %v756, 0.0
  %v821 = vmax.f32 %v757, 0.0
  %v822 = vmax.f32 %v758, 0.0
  %v823 = vmax.f32 %v759, 0.0
  %v824 = vmax.f32 %v760, 0.0
  %v825 = vmax.f32 %v761, 0.0
  %v826 = vmax.f32 %v762, 0.0
  %v827 = vmax.f32 %v763, 0.0
  %v828 = vmax.f32 %v764, 0.0
  %v829 = vmax.f32 %v765, 0.0
  %v830 = vmax.f32 %v766, 0.0
  %v831 = vmax.f32 %v767, 0.0
  %v832 = vmax.f32 %v768, 0.0
  %v833 = vmax.f32 %v769, 0.0
  %v834 = vmax.f32 %v770, 0.0
  %v835 = vmax.f32 %v771, 0.0
  %v836 = vmax.f32 %v772, 0.0
  %v837 = vmax.f32 %v773, 0.0
  %v838 = vmax.f32 %v774, 0.0
  %v839 = vpack.c.bf16 %v776, %v775
  %v840 = vpack.c.bf16 %v778, %v777
  %v841 = vpack.c.bf16 %v780, %v779
  %v842 = vpack.c.bf16 %v782, %v781
  %v843 = vpack.c.bf16 %v784, %v783
  %v844 = vpack.c.bf16 %v786, %v785
  %v845 = vpack.c.bf16 %v788, %v787
  %v846 = vpack.c.bf16 %v790, %v789
  %v847 = vpack.c.bf16 %v792, %v791
  %v848 = vpack.c.bf16 %v794, %v793
  %v849 = vpack.c.bf16 %v796, %v795
  %v850 = vpack.c.bf16 %v798, %v797
  %v851 = vpack.c.bf16 %v800, %v799
  %v852 = vpack.c.bf16 %v802, %v801
  %v853 = vpack.c.bf16 %v804, %v803
  %v854 = vpack.c.bf16 %v806, %v805
  %v855 = vpack.c.bf16 %v808, %v807
  %v856 = vpack.c.bf16 %v810, %v809
  %v857 = vpack.c.bf16 %v812, %v811
  %v858 = vpack.c.bf16 %v814, %v813
  %v859 = vpack.c.bf16 %v816, %v815
  %v860 = vpack.c.bf16 %v818, %v817
  %v861 = vpack.c.bf16 %v820, %v819
  %v862 = vpack.c.bf16 %v822, %v821
  %v863 = vpack.c.bf16 %v824, %v823
  %v864 = vpack.c.bf16 %v826, %v825
  %v865 = vpack.c.bf16 %v828, %v827
  %v866 = vpack.c.bf16 %v830, %v829
  %v867 = vpack.c.bf16 %v832, %v831
  %v868 = vpack.c.bf16 %v834, %v833
  %v869 = vpack.c.bf16 %v836, %v835
  %v870 = vpack.c.bf16 %v838, %v837
  %v903 = vunpack.c.l.b16 %v839
  %v904 = vunpack.c.h.b16 %v839
  %v905 = vunpack.c.l.b16 %v840
  %v906 = vunpack.c.h.b16 %v840
  %v907 = vunpack.c.l.b16 %v841
  %v908 = vunpack.c.h.b16 %v841
  %v909 = vunpack.c.l.b16 %v842
  %v910 = vunpack.c.h.b16 %v842
  %v911 = vunpack.c.l.b16 %v843
  %v912 = vunpack.c.h.b16 %v843
  %v913 = vunpack.c.l.b16 %v844
  %v914 = vunpack.c.h.b16 %v844
  %v915 = vunpack.c.l.b16 %v845
  %v916 = vunpack.c.h.b16 %v845
  %v917 = vunpack.c.l.b16 %v846
  %v918 = vunpack.c.h.b16 %v846
  %v919 = vunpack.c.l.b16 %v847
  %v920 = vunpack.c.h.b16 %v847
  %v921 = vunpack.c.l.b16 %v848
  %v922 = vunpack.c.h.b16 %v848
  %v923 = vunpack.c.l.b16 %v849
  %v924 = vunpack.c.h.b16 %v849
  %v925 = vunpack.c.l.b16 %v850
  %v926 = vunpack.c.h.b16 %v850
  %v927 = vunpack.c.l.b16 %v851
  %v928 = vunpack.c.h.b16 %v851
  %v929 = vunpack.c.l.b16 %v852
  %v930 = vunpack.c.h.b16 %v852
  %v931 = vunpack.c.l.b16 %v853
  %v932 = vunpack.c.h.b16 %v853
  %v933 = vunpack.c.l.b16 %v854
  %v934 = vunpack.c.h.b16 %v854
  %v935 = vunpack.c.l.b16 %v855
  %v936 = vunpack.c.h.b16 %v855
  %v937 = vunpack.c.l.b16 %v856
  %v938 = vunpack.c.h.b16 %v856
  %v939 = vunpack.c.l.b16 %v857
  %v940 = vunpack.c.h.b16 %v857
  %v941 = vunpack.c.l.b16 %v858
  %v942 = vunpack.c.h.b16 %v858
  %v943 = vunpack.c.l.b16 %v859
  %v944 = vunpack.c.h.b16 %v859
  %v945 = vunpack.c.l.b16 %v860
  %v946 = vunpack.c.h.b16 %v860
  %v947 = vunpack.c.l.b16 %v861
  %v948 = vunpack.c.h.b16 %v861
  %v949 = vunpack.c.l.b16 %v862
  %v950 = vunpack.c.h.b16 %v862
  %v951 = vunpack.c.l.b16 %v863
  %v952 = vunpack.c.h.b16 %v863
  %v953 = vunpack.c.l.b16 %v864
  %v954 = vunpack.c.h.b16 %v864
  %v955 = vunpack.c.l.b16 %v865
  %v956 = vunpack.c.h.b16 %v865
  %v957 = vunpack.c.l.b16 %v866
  %v958 = vunpack.c.h.b16 %v866
  %v959 = vunpack.c.l.b16 %v867
  %v960 = vunpack.c.h.b16 %v867
  %v961 = vunpack.c.l.b16 %v868
  %v962 = vunpack.c.h.b16 %v868
  %v963 = vunpack.c.l.b16 %v869
  %v964 = vunpack.c.h.b16 %v869
  %v965 = vunpack.c.l.b16 %v870
  %v966 = vunpack.c.h.b16 %v870
  %v967 = vpack.c.b16 %v903, %v903
  %v968 = vpack.c.b16 %v904, %v904
  %v969 = vpack.c.b16 %v905, %v905
  %v970 = vpack.c.b16 %v906, %v906
  %v971 = vpack.c.b16 %v907, %v907
  %v972 = vpack.c.b16 %v908, %v908
  %v973 = vpack.c.b16 %v909, %v909
  %v974 = vpack.c.b16 %v910, %v910
  %v975 = vpack.c.b16 %v911, %v911
  %v976 = vpack.c.b16 %v912, %v912
  %v977 = vpack.c.b16 %v913, %v913
  %v978 = vpack.c.b16 %v914, %v914
  %v979 = vpack.c.b16 %v915, %v915
  %v980 = vpack.c.b16 %v916, %v916
  %v981 = vpack.c.b16 %v917, %v917
  %v982 = vpack.c.b16 %v918, %v918
  %v983 = vpack.c.b16 %v919, %v919
  %v984 = vpack.c.b16 %v920, %v920
  %v985 = vpack.c.b16 %v921, %v921
  %v986 = vpack.c.b16 %v922, %v922
  %v987 = vpack.c.b16 %v923, %v923
  %v988 = vpack.c.b16 %v924, %v924
  %v989 = vpack.c.b16 %v925, %v925
  %v990 = vpack.c.b16 %v926, %v926
  %v991 = vpack.c.b16 %v927, %v927
  %v992 = vpack.c.b16 %v928, %v928
  %v993 = vpack.c.b16 %v929, %v929
  %v994 = vpack.c.b16 %v930, %v930
  %v995 = vpack.c.b16 %v931, %v931
  %v996 = vpack.c.b16 %v932, %v932
  %v997 = vpack.c.b16 %v933, %v933
  %v998 = vpack.c.b16 %v934, %v934
  %v999 = vpack.c.b16 %v935, %v935
  %v1000 = vpack.c.b16 %v936, %v936
  %v1001 = vpack.c.b16 %v937, %v937
  %v1002 = vpack.c.b16 %v938, %v938
  %v1003 = vpack.c.b16 %v939, %v939
  %v1004 = vpack.c.b16 %v940, %v940
  %v1005 = vpack.c.b16 %v941, %v941
  %v1006 = vpack.c.b16 %v942, %v942
  %v1007 = vpack.c.b16 %v943, %v943
  %v1008 = vpack.c.b16 %v944, %v944
  %v1009 = vpack.c.b16 %v945, %v945
  %v1010 = vpack.c.b16 %v946, %v946
  %v1011 = vpack.c.b16 %v947, %v947
  %v1012 = vpack.c.b16 %v948, %v948
  %v1013 = vpack.c.b16 %v949, %v949
  %v1014 = vpack.c.b16 %v950, %v950
  %v1015 = vpack.c.b16 %v951, %v951
  %v1016 = vpack.c.b16 %v952, %v952
  %v1017 = vpack.c.b16 %v953, %v953
  %v1018 = vpack.c.b16 %v954, %v954
  %v1019 = vpack.c.b16 %v955, %v955
  %v1020 = vpack.c.b16 %v956, %v956
  %v1021 = vpack.c.b16 %v957, %v957
  %v1022 = vpack.c.b16 %v958, %v958
  %v1023 = vpack.c.b16 %v959, %v959
  %v1024 = vpack.c.b16 %v960, %v960
  %v1025 = vpack.c.b16 %v961, %v961
  %v1026 = vpack.c.b16 %v962, %v962
  %v1027 = vpack.c.b16 %v963, %v963
  %v1028 = vpack.c.b16 %v964, %v964
  %v1029 = vpack.c.b16 %v965, %v965
  %v1030 = vpack.c.b16 %v966, %v966
  %vm1095 = vcmask 60416
  %1096 = vst.msk [vmem:[%s4] sm:$0xf] %vm1095, %v967
  %1097 = vst.msk [vmem:[%s4 + $0x4] sm:$0xf] %vm1095, %v968
  %1098 = vst.msk [vmem:[%s4 + $0x8] sm:$0xf] %vm1095, %v969
  %1099 = vst.msk [vmem:[%s4 + $0xc] sm:$0xf] %vm1095, %v970
  %1100 = vst.msk [vmem:[%s4 + $0x10] sm:$0xf] %vm1095, %v971
  %1101 = vst.msk [vmem:[%s4 + $0x14] sm:$0xf] %vm1095, %v972
  %1102 = vst.msk [vmem:[%s4 + $0x18] sm:$0xf] %vm1095, %v973
  %1103 = vst.msk [vmem:[%s4 + $0x1c] sm:$0xf] %vm1095, %v974
  %1104 = vst.msk [vmem:[%s4 + $0x20] sm:$0xf] %vm1095, %v975
  %1105 = vst.msk [vmem:[%s4 + $0x24] sm:$0xf] %vm1095, %v976
  %1106 = vst.msk [vmem:[%s4 + $0x28] sm:$0xf] %vm1095, %v977
  %1107 = vst.msk [vmem:[%s4 + $0x2c] sm:$0xf] %vm1095, %v978
  %1108 = vst.msk [vmem:[%s4 + $0x30] sm:$0xf] %vm1095, %v979
  %1109 = vst.msk [vmem:[%s4 + $0x34] sm:$0xf] %vm1095, %v980
  %1110 = vst.msk [vmem:[%s4 + $0x38] sm:$0xf] %vm1095, %v981
  %1111 = vst.msk [vmem:[%s4 + $0x3c] sm:$0xf] %vm1095, %v982
  %1112 = vst.msk [vmem:[%s4 + $0x40] sm:$0xf] %vm1095, %v983
  %1113 = vst.msk [vmem:[%s4 + $0x44] sm:$0xf] %vm1095, %v984
  %1114 = vst.msk [vmem:[%s4 + $0x48] sm:$0xf] %vm1095, %v985
  %1115 = vst.msk [vmem:[%s4 + $0x4c] sm:$0xf] %vm1095, %v986
  %1116 = vst.msk [vmem:[%s4 + $0x50] sm:$0xf] %vm1095, %v987
  %1117 = vst.msk [vmem:[%s4 + $0x54] sm:$0xf] %vm1095, %v988
  %1118 = vst.msk [vmem:[%s4 + $0x58] sm:$0xf] %vm1095, %v989
  %1119 = vst.msk [vmem:[%s4 + $0x5c] sm:$0xf] %vm1095, %v990
  %1120 = vst.msk [vmem:[%s4 + $0x60] sm:$0xf] %vm1095, %v991
  %1121 = vst.msk [vmem:[%s4 + $0x64] sm:$0xf] %vm1095, %v992
  %1122 = vst.msk [vmem:[%s4 + $0x68] sm:$0xf] %vm1095, %v993
  %1123 = vst.msk [vmem:[%s4 + $0x6c] sm:$0xf] %vm1095, %v994
  %1124 = vst.msk [vmem:[%s4 + $0x70] sm:$0xf] %vm1095, %v995
  %1125 = vst.msk [vmem:[%s4 + $0x74] sm:$0xf] %vm1095, %v996
  %1126 = vst.msk [vmem:[%s4 + $0x78] sm:$0xf] %vm1095, %v997
  %1127 = vst.msk [vmem:[%s4 + $0x7c] sm:$0xf] %vm1095, %v998
  %1128 = vst.msk [vmem:[%s4 + $0x80] sm:$0xf] %vm1095, %v999
  %1129 = vst.msk [vmem:[%s4 + $0x84] sm:$0xf] %vm1095, %v1000
  %1130 = vst.msk [vmem:[%s4 + $0x88] sm:$0xf] %vm1095, %v1001
  %1131 = vst.msk [vmem:[%s4 + $0x8c] sm:$0xf] %vm1095, %v1002
  %1132 = vst.msk [vmem:[%s4 + $0x90] sm:$0xf] %vm1095, %v1003
  %1133 = vst.msk [vmem:[%s4 + $0x94] sm:$0xf] %vm1095, %v1004
  %1134 = vst.msk [vmem:[%s4 + $0x98] sm:$0xf] %vm1095, %v1005
  %1135 = vst.msk [vmem:[%s4 + $0x9c] sm:$0xf] %vm1095, %v1006
  %1136 = vst.msk [vmem:[%s4 + $0xa0] sm:$0xf] %vm1095, %v1007
  %1137 = vst.msk [vmem:[%s4 + $0xa4] sm:$0xf] %vm1095, %v1008
  %1138 = vst.msk [vmem:[%s4 + $0xa8] sm:$0xf] %vm1095, %v1009
  %1139 = vst.msk [vmem:[%s4 + $0xac] sm:$0xf] %vm1095, %v1010
  %1140 = vst.msk [vmem:[%s4 + $0xb0] sm:$0xf] %vm1095, %v1011
  %1141 = vst.msk [vmem:[%s4 + $0xb4] sm:$0xf] %vm1095, %v1012
  %1142 = vst.msk [vmem:[%s4 + $0xb8] sm:$0xf] %vm1095, %v1013
  %1143 = vst.msk [vmem:[%s4 + $0xbc] sm:$0xf] %vm1095, %v1014
  %1144 = vst.msk [vmem:[%s4 + $0xc0] sm:$0xf] %vm1095, %v1015
  %1145 = vst.msk [vmem:[%s4 + $0xc4] sm:$0xf] %vm1095, %v1016
  %1146 = vst.msk [vmem:[%s4 + $0xc8] sm:$0xf] %vm1095, %v1017
  %1147 = vst.msk [vmem:[%s4 + $0xcc] sm:$0xf] %vm1095, %v1018
  %1148 = vst.msk [vmem:[%s4 + $0xd0] sm:$0xf] %vm1095, %v1019
  %1149 = vst.msk [vmem:[%s4 + $0xd4] sm:$0xf] %vm1095, %v1020
  %1150 = vst.msk [vmem:[%s4 + $0xd8] sm:$0xf] %vm1095, %v1021
  %1151 = vst.msk [vmem:[%s4 + $0xdc] sm:$0xf] %vm1095, %v1022
  %1152 = vst.msk [vmem:[%s4 + $0xe0] sm:$0xf] %vm1095, %v1023
  %1153 = vst.msk [vmem:[%s4 + $0xe4] sm:$0xf] %vm1095, %v1024
  %1154 = vst.msk [vmem:[%s4 + $0xe8] sm:$0xf] %vm1095, %v1025
  %1155 = vst.msk [vmem:[%s4 + $0xec] sm:$0xf] %vm1095, %v1026
  %1156 = vst.msk [vmem:[%s4 + $0xf0] sm:$0xf] %vm1095, %v1027
  %1157 = vst.msk [vmem:[%s4 + $0xf4] sm:$0xf] %vm1095, %v1028
  %1158 = vst.msk [vmem:[%s4 + $0xf8] sm:$0xf] %vm1095, %v1029
  %1159 = vst.msk [vmem:[%s4 + $0xfc] sm:$0xf] %vm1095, %v1030
  // Predicated region
  $region18: #{bottleneck_forward.6} parent=0 // pred_check
    _
  $region19: #{bottleneck_forward.6} parent=0 // pred_check_branch
    %1161 = sbr.rel (0) target = $region21
  $region20: #{bottleneck_forward.6} parent=0 // pred_region
    _
  $region21: #{bottleneck_forward.6} parent=0 // pred_fallthru
    _
  // Predicated region
  $region22: #{bottleneck_forward.6} parent=0 // pred_check
    _
  $region23: #{bottleneck_forward.6} parent=0 // pred_check_branch
    %1163 = sbr.rel (0) target = $region25
  $region24: #{bottleneck_forward.6} parent=0 // pred_region
    _
  $region25: #{bottleneck_forward.6} parent=0 // pred_fallthru
    _

// kernel: bottleneck_forward.11
$region0: #{bottleneck_forward.11}
  #allocation0 [shape = 'u32[]', space=smem, size = 0x4, offset = 0x4, fixed_abs, tag = 'smem constant byte address 0x4 - core index']
  #allocation1 [shape = 'u32[144,128]{1,0:T(1,128)}', space=vmem, size = 0x12000, scoped, tag = 'internal scratch']
  %s0 = inlined_call_operand.vmem [shape: bf16[128,8], index: 0, kind: input, shape index: {}]
  %s1 = inlined_call_operand.vmem [shape: bf16[8,32], index: 1, kind: input, shape index: {}]
  %s2 = inlined_call_operand.vmem [shape: f32[1,32], index: 2, kind: input, shape index: {}]
  %s3 = inlined_call_operand.vmem [shape: f32[1,32], index: 3, kind: input, shape index: {}]
  %s4 = inlined_call_operand.vmem [shape: f32[128,32], index: 4, kind: input, shape index: {}]
  %s5 = inlined_call_operand.hbm [shape: f32[128,32], index: 5, kind: output, shape index: {}]
  %s6 = sld [smem:[#allocation0]]
  $region30: #{bottleneck_forward.11} parent=0
    _
  %s8 = ssub.s32 1, %s6
  %s9 = scalar_select 0, %s8, %s6
  $region1: #{bottleneck_forward.11} parent=0
    #allocation2 [shape = 'u8[65536]{0}', space=vmem, size = 0x10000, scoped, tag = 'output window, operand 0, single buffered']
    #allocation3 [shape = 's32[1]{0}', space=sflag, size = 0x4, scoped, tag = 'scoped memory for bottleneck_forward.11']
    %10 = vsyncpa [#allocation3], 0
    // Predicated region
    $region2: #{bottleneck_forward.11} parent=1 // pred_check
      _
    $region3: #{bottleneck_forward.11} parent=1 // pred_check_branch
      %12 = sbr.rel (0) target = $region5
    $region4: #{bottleneck_forward.11} parent=1 // pred_region
      _
    $region5: #{bottleneck_forward.11} parent=1 // pred_fallthru
      _
    // Predicated region
    $region6: #{bottleneck_forward.11} parent=1 // pred_check
      _
    $region7: #{bottleneck_forward.11} parent=1 // pred_check_branch
      %14 = sbr.rel (0) target = $region9
    $region8: #{bottleneck_forward.11} parent=1 // pred_region
      _
    $region9: #{bottleneck_forward.11} parent=1 // pred_fallthru
      _
    // Predicated region
    $region10: #{bottleneck_forward.11} parent=1 // pred_check
      _
    $region11: #{bottleneck_forward.11} parent=1 // pred_check_branch
      %16 = sbr.rel (0) target = $region13
    $region12: #{bottleneck_forward.11} parent=1 // pred_region
      _
    $region13: #{bottleneck_forward.11} parent=1 // pred_fallthru
      _
    // Predicated region
    $region14: #{bottleneck_forward.11} parent=1 // pred_check
      _
    $region15: #{bottleneck_forward.11} parent=1 // pred_check_branch
      %18 = sbr.rel (0) target = $region17
    $region16: #{bottleneck_forward.11} parent=1 // pred_region
      _
    $region17: #{bottleneck_forward.11} parent=1 // pred_fallthru
      _
    // Predicated region
    $region18: #{bottleneck_forward.11} parent=1 // pred_check
      _
    $region19: #{bottleneck_forward.11} parent=1 // pred_check_branch
      %20 = sbr.rel (0) target = $region21
    $region20: #{bottleneck_forward.11} parent=1 // pred_region
      _
    $region21: #{bottleneck_forward.11} parent=1 // pred_fallthru
      _
    %v22 = vld [vmem:[%s0] sm:$0xf]
    %v23 = vld [vmem:[%s0 + $0x4] sm:$0xf]
    %v24 = vld [vmem:[%s0 + $0x8] sm:$0xf]
    %v25 = vld [vmem:[%s0 + $0xc] sm:$0xf]
    %v26 = vld [vmem:[%s0 + $0x10] sm:$0xf]
    %v27 = vld [vmem:[%s0 + $0x14] sm:$0xf]
    %v28 = vld [vmem:[%s0 + $0x18] sm:$0xf]
    %v29 = vld [vmem:[%s0 + $0x1c] sm:$0xf]
    %v30 = vld [vmem:[%s0 + $0x20] sm:$0xf]
    %v31 = vld [vmem:[%s0 + $0x24] sm:$0xf]
    %v32 = vld [vmem:[%s0 + $0x28] sm:$0xf]
    %v33 = vld [vmem:[%s0 + $0x2c] sm:$0xf]
    %v34 = vld [vmem:[%s0 + $0x30] sm:$0xf]
    %v35 = vld [vmem:[%s0 + $0x34] sm:$0xf]
    %v36 = vld [vmem:[%s0 + $0x38] sm:$0xf]
    %v37 = vld [vmem:[%s0 + $0x3c] sm:$0xf]
    %v38 = vld [vmem:[%s1] sm:$0xf]
    %v55 = vunpack.c.l.b16 %v22
    %v56 = vunpack.c.l.b16 %v23
    %v57 = vunpack.c.l.b16 %v24
    %v58 = vunpack.c.l.b16 %v25
    %v59 = vunpack.c.l.b16 %v26
    %v60 = vunpack.c.l.b16 %v27
    %v61 = vunpack.c.l.b16 %v28
    %v62 = vunpack.c.l.b16 %v29
    %v63 = vunpack.c.l.b16 %v30
    %v64 = vunpack.c.l.b16 %v31
    %v65 = vunpack.c.l.b16 %v32
    %v66 = vunpack.c.l.b16 %v33
    %v67 = vunpack.c.l.b16 %v34
    %v68 = vunpack.c.l.b16 %v35
    %v69 = vunpack.c.l.b16 %v36
    %v70 = vunpack.c.l.b16 %v37
    %v71 = vpack.c.b16 %v56, %v55
    %v72 = vpack.c.b16 %v58, %v57
    %v73 = vpack.c.b16 %v60, %v59
    %v74 = vpack.c.b16 %v62, %v61
    %v75 = vpack.c.b16 %v64, %v63
    %v76 = vpack.c.b16 %v66, %v65
    %v77 = vpack.c.b16 %v68, %v67
    %v78 = vpack.c.b16 %v70, %v69
    %vm79 = vcmask 64512
    %v81 = vsel %vm79, %v71, 0
    %v84 = vsel %vm79, %v72, 0
    %v87 = vsel %vm79, %v73, 0
    %v90 = vsel %vm79, %v74, 0
    %v93 = vsel %vm79, %v75, 0
    %v96 = vsel %vm79, %v76, 0
    %v99 = vsel %vm79, %v77, 0
    %v102 = vsel %vm79, %v78, 0
    %vm104 = vcmask 1043456
    %v106 = vsel %vm104, %v38, 0
    %108 = vmatprep.subr.bf16.mxu0 0
    %109 = vmatpush1.bf16.msra.mxu0 %v106
    %110 = vmatprep.subr.bf16.mxu0 0
    %111 = vmatpush1.bf16.msra.mxu0 0
    %112 = vmatprep.subr.bf16.mxu0 0
    %113 = vmatpush1.bf16.msra.mxu0 0
    %114 = vmatprep.subr.bf16.mxu0 0
    %115 = vmatpush1.bf16.msra.mxu0 0
    %116 = vmatprep.subr.bf16.mxu0 0
    %117 = vmatpush1.bf16.msra.mxu0 0
    %118 = vmatprep.subr.bf16.mxu0 0
    %119 = vmatpush1.bf16.msra.mxu0 0
    %120 = vmatprep.subr.bf16.mxu0 0
    %121 = vmatpush1.bf16.msra.mxu0 0
    %122 = vmatprep.subr.bf16.mxu0 0
    %123 = vmatpush1.bf16.msra.mxu0 0
    %124 = vmatprep.subr.bf16.mxu0 0
    %125 = vmatpush1.bf16.msra.mxu0 0
    %126 = vmatprep.subr.bf16.mxu0 0
    %127 = vmatpush1.bf16.msra.mxu0 0
    %128 = vmatprep.subr.bf16.mxu0 0
    %129 = vmatpush1.bf16.msra.mxu0 0
    %130 = vmatprep.subr.bf16.mxu0 0
    %131 = vmatpush1.bf16.msra.mxu0 0
    %132 = vmatprep.subr.bf16.mxu0 0
    %133 = vmatpush1.bf16.msra.mxu0 0
    %134 = vmatprep.subr.bf16.mxu0 0
    %135 = vmatpush1.bf16.msra.mxu0 0
    %136 = vmatprep.subr.bf16.mxu0 0
    %137 = vmatpush1.bf16.msra.mxu0 0
    %138 = vmatprep.subr.bf16.mxu0 0
    %139 = vmatpush1.bf16.msra.mxu0 0
    %140 = vmatprep.mubr.bf16.mxu0 0
    %141 = vmatmul.mubr.bf16.gmra.mrb[0].mxu0 %v81
    %v142 = vpop.f32.mrb[0].mxu0
    %v143 = vadd.f32 0.0, %v142
    %v144 = vpop.f32.mrb[0].mxu0
    %v145 = vpop.f32.mrb[0].mxu0
    %v146 = vadd.f32 0.0, %v145
    %v147 = vpop.f32.mrb[0].mxu0
    %148 = vmatprep.mubr.bf16.mxu0 0
    %149 = vmatmul.mubr.bf16.gmra.mrb[0].mxu0 %v84
    %v150 = vpop.f32.mrb[0].mxu0
    %v151 = vadd.f32 0.0, %v150
    %v152 = vpop.f32.mrb[0].mxu0
    %v153 = vpop.f32.mrb[0].mxu0
    %v154 = vadd.f32 0.0, %v153
    %v155 = vpop.f32.mrb[0].mxu0
    %156 = vmatprep.mubr.bf16.mxu0 0
    %157 = vmatmul.mubr.bf16.gmra.mrb[0].mxu0 %v87
    %v158 = vpop.f32.mrb[0].mxu0
    %v159 = vadd.f32 0.0, %v158
    %v160 = vpop.f32.mrb[0].mxu0
    %v161 = vpop.f32.mrb[0].mxu0
    %v162 = vadd.f32 0.0, %v161
    %v163 = vpop.f32.mrb[0].mxu0
    %164 = vmatprep.mubr.bf16.mxu0 0
    %165 = vmatmul.mubr.bf16.gmra.mrb[0].mxu0 %v90
    %v166 = vpop.f32.mrb[0].mxu0
    %v167 = vadd.f32 0.0, %v166
    %v168 = vpop.f32.mrb[0].mxu0
    %v169 = vpop.f32.mrb[0].mxu0
    %v170 = vadd.f32 0.0, %v169
    %v171 = vpop.f32.mrb[0].mxu0
    %172 = vmatprep.mubr.bf16.mxu0 0
    %173 = vmatmul.mubr.bf16.gmra.mrb[0].mxu0 %v93
    %v174 = vpop.f32.mrb[0].mxu0
    %v175 = vadd.f32 0.0, %v174
    %v176 = vpop.f32.mrb[0].mxu0
    %v177 = vpop.f32.mrb[0].mxu0
    %v178 = vadd.f32 0.0, %v177
    %v179 = vpop.f32.mrb[0].mxu0
    %180 = vmatprep.mubr.bf16.mxu0 0
    %181 = vmatmul.mubr.bf16.gmra.mrb[0].mxu0 %v96
    %v182 = vpop.f32.mrb[0].mxu0
    %v183 = vadd.f32 0.0, %v182
    %v184 = vpop.f32.mrb[0].mxu0
    %v185 = vpop.f32.mrb[0].mxu0
    %v186 = vadd.f32 0.0, %v185
    %v187 = vpop.f32.mrb[0].mxu0
    %188 = vmatprep.mubr.bf16.mxu0 0
    %189 = vmatmul.mubr.bf16.gmra.mrb[0].mxu0 %v99
    %v190 = vpop.f32.mrb[0].mxu0
    %v191 = vadd.f32 0.0, %v190
    %v192 = vpop.f32.mrb[0].mxu0
    %v193 = vpop.f32.mrb[0].mxu0
    %v194 = vadd.f32 0.0, %v193
    %v195 = vpop.f32.mrb[0].mxu0
    %196 = vmatprep.mubr.bf16.mxu0 0
    %197 = vmatmul.mubr.bf16.gmra.mrb[0].mxu0 %v102
    %v198 = vpop.f32.mrb[0].mxu0
    %v199 = vadd.f32 0.0, %v198
    %v200 = vpop.f32.mrb[0].mxu0
    %v201 = vpop.f32.mrb[0].mxu0
    %v202 = vadd.f32 0.0, %v201
    %v203 = vpop.f32.mrb[0].mxu0
    %204 = vdwg.mxu0
    %v205 = vld [vmem:[%s2] sm:$0x1]
    %v207 = vlaneseq
    %v208 = vshrl.u32 %v207, 7
    %v209 = vsub.s32 0, %v208
    %v210 = vrot.slane %v205, %v209
    %v212 = vmul.f32 %v143, %v210
    %v213 = vmul.f32 %v146, %v210
    %v214 = vmul.f32 %v151, %v210
    %v215 = vmul.f32 %v154, %v210
    %v216 = vmul.f32 %v159, %v210
    %v217 = vmul.f32 %v162, %v210
    %v218 = vmul.f32 %v167, %v210
    %v219 = vmul.f32 %v170, %v210
    %v220 = vmul.f32 %v175, %v210
    %v221 = vmul.f32 %v178, %v210
    %v222 = vmul.f32 %v183, %v210
    %v223 = vmul.f32 %v186, %v210
    %v224 = vmul.f32 %v191, %v210
    %v225 = vmul.f32 %v194, %v210
    %v226 = vmul.f32 %v199, %v210
    %v227 = vmul.f32 %v202, %v210
    %v228 = vld [vmem:[%s3] sm:$0x1]
    %v230 = vlaneseq
    %v231 = vshrl.u32 %v230, 7
    %v232 = vsub.s32 0, %v231
    %v233 = vrot.slane %v228, %v232
    %v235 = vadd.f32 %v212, %v233
    %v236 = vadd.f32 %v213, %v233
    %v237 = vadd.f32 %v214, %v233
    %v238 = vadd.f32 %v215, %v233
    %v239 = vadd.f32 %v216, %v233
    %v240 = vadd.f32 %v217, %v233
    %v241 = vadd.f32 %v218, %v233
    %v242 = vadd.f32 %v219, %v233
    %v243 = vadd.f32 %v220, %v233
    %v244 = vadd.f32 %v221, %v233
    %v245 = vadd.f32 %v222, %v233
    %v246 = vadd.f32 %v223, %v233
    %v247 = vadd.f32 %v224, %v233
    %v248 = vadd.f32 %v225, %v233
    %v249 = vadd.f32 %v226, %v233
    %v250 = vadd.f32 %v227, %v233
    %v251 = vld [vmem:[%s4] sm:$0xff]
    %v252 = vld [vmem:[%s4 + $0x8] sm:$0xff]
    %v253 = vld [vmem:[%s4 + $0x10] sm:$0xff]
    %v254 = vld [vmem:[%s4 + $0x18] sm:$0xff]
    %v255 = vld [vmem:[%s4 + $0x20] sm:$0xff]
    %v256 = vld [vmem:[%s4 + $0x28] sm:$0xff]
    %v257 = vld [vmem:[%s4 + $0x30] sm:$0xff]
    %v258 = vld [vmem:[%s4 + $0x38] sm:$0xff]
    %v259 = vld [vmem:[%s4 + $0x40] sm:$0xff]
    %v260 = vld [vmem:[%s4 + $0x48] sm:$0xff]
    %v261 = vld [vmem:[%s4 + $0x50] sm:$0xff]
    %v262 = vld [vmem:[%s4 + $0x58] sm:$0xff]
    %v263 = vld [vmem:[%s4 + $0x60] sm:$0xff]
    %v264 = vld [vmem:[%s4 + $0x68] sm:$0xff]
    %v265 = vld [vmem:[%s4 + $0x70] sm:$0xff]
    %v266 = vld [vmem:[%s4 + $0x78] sm:$0xff]
    %v267 = vadd.f32 %v235, %v251
    %v268 = vadd.f32 %v236, %v252
    %v269 = vadd.f32 %v237, %v253
    %v270 = vadd.f32 %v238, %v254
    %v271 = vadd.f32 %v239, %v255
    %v272 = vadd.f32 %v240, %v256
    %v273 = vadd.f32 %v241, %v257
    %v274 = vadd.f32 %v242, %v258
    %v275 = vadd.f32 %v243, %v259
    %v276 = vadd.f32 %v244, %v260
    %v277 = vadd.f32 %v245, %v261
    %v278 = vadd.f32 %v246, %v262
    %v279 = vadd.f32 %v247, %v263
    %v280 = vadd.f32 %v248, %v264
    %v281 = vadd.f32 %v249, %v265
    %v282 = vadd.f32 %v250, %v266
    %v283 = vmax.f32 %v267, 0.0
    %v284 = vmax.f32 %v268, 0.0
    %v285 = vmax.f32 %v269, 0.0
    %v286 = vmax.f32 %v270, 0.0
    %v287 = vmax.f32 %v271, 0.0
    %v288 = vmax.f32 %v272, 0.0
    %v289 = vmax.f32 %v273, 0.0
    %v290 = vmax.f32 %v274, 0.0
    %v291 = vmax.f32 %v275, 0.0
    %v292 = vmax.f32 %v276, 0.0
    %v293 = vmax.f32 %v277, 0.0
    %v294 = vmax.f32 %v278, 0.0
    %v295 = vmax.f32 %v279, 0.0
    %v296 = vmax.f32 %v280, 0.0
    %v297 = vmax.f32 %v281, 0.0
    %v298 = vmax.f32 %v282, 0.0
    %vm299 = vcmask 261120
    %300 = vst.msk [vmem:[#allocation2] sm:$0xff] %vm299, %v283
    %301 = vst.msk [vmem:[#allocation2 + $0x8] sm:$0xff] %vm299, %v284
    %302 = vst.msk [vmem:[#allocation2 + $0x10] sm:$0xff] %vm299, %v285
    %303 = vst.msk [vmem:[#allocation2 + $0x18] sm:$0xff] %vm299, %v286
    %304 = vst.msk [vmem:[#allocation2 + $0x20] sm:$0xff] %vm299, %v287
    %305 = vst.msk [vmem:[#allocation2 + $0x28] sm:$0xff] %vm299, %v288
    %306 = vst.msk [vmem:[#allocation2 + $0x30] sm:$0xff] %vm299, %v289
    %307 = vst.msk [vmem:[#allocation2 + $0x38] sm:$0xff] %vm299, %v290
    %308 = vst.msk [vmem:[#allocation2 + $0x40] sm:$0xff] %vm299, %v291
    %309 = vst.msk [vmem:[#allocation2 + $0x48] sm:$0xff] %vm299, %v292
    %310 = vst.msk [vmem:[#allocation2 + $0x50] sm:$0xff] %vm299, %v293
    %311 = vst.msk [vmem:[#allocation2 + $0x58] sm:$0xff] %vm299, %v294
    %312 = vst.msk [vmem:[#allocation2 + $0x60] sm:$0xff] %vm299, %v295
    %313 = vst.msk [vmem:[#allocation2 + $0x68] sm:$0xff] %vm299, %v296
    %314 = vst.msk [vmem:[#allocation2 + $0x70] sm:$0xff] %vm299, %v297
    %315 = vst.msk [vmem:[#allocation2 + $0x78] sm:$0xff] %vm299, %v298
    // Predicated region
    $region22: #{bottleneck_forward.11} parent=1 // pred_check
      _
    $region23: #{bottleneck_forward.11} parent=1 // pred_check_branch
      %317 = sbr.rel (0) target = $region25
    $region24: #{bottleneck_forward.11} parent=1 // pred_region
      %s319 = ssub.s32 2048, 2048
      %320 = vsyncadd [#allocation3], %s319
      %s321 = sshll.u32 [#allocation2], 4
      %s322 = int_to_ptr.vmem [resolvable:$true] %s321
      %327 = dma.vmem_to_hbm [thread:$0]  %s322, 2048, %s5, [#allocation3], 128, 128, 8
    $region25: #{bottleneck_forward.11} parent=1 // pred_fallthru
      _
    // Predicated region
    $region26: #{bottleneck_forward.11} parent=1 // pred_check
      _
    $region27: #{bottleneck_forward.11} parent=1 // pred_check_branch
      %329 = sbr.rel (0) target = $region29
    $region28: #{bottleneck_forward.11} parent=1 // pred_region
      %330 = dma.done [#allocation3], 2048
    $region29: #{bottleneck_forward.11} parent=1 // pred_fallthru
      _
    %331 = vsyncpa [#allocation3], 1

// kernel: bottleneck_forward.9
$region0: #{bottleneck_forward.9}
  #allocation0 [shape = 'u32[]', space=smem, size = 0x4, offset = 0x4, fixed_abs, tag = 'smem constant byte address 0x4 - core index']
  #allocation1 [shape = 'u32[144,128]{1,0:T(1,128)}', space=vmem, size = 0x12000, scoped, tag = 'internal scratch']
  %s0 = inlined_call_operand.vmem [shape: bf16[16,2,8,2,4], index: 0, kind: input, shape index: {}]
  %s1 = inlined_call_operand.vmem [shape: bf16[16,8,4], index: 1, kind: output, shape index: {}]
  %s2 = sld [smem:[#allocation0]]
  $region14: #{bottleneck_forward.9} parent=0
    _
  %s4 = ssub.s32 1, %s2
  %s5 = scalar_select 0, %s4, %s2
  // Predicated region
  $region2: #{bottleneck_forward.9} parent=0 // pred_check
    _
  $region3: #{bottleneck_forward.9} parent=0 // pred_check_branch
    %7 = sbr.rel (0) target = $region5
  $region4: #{bottleneck_forward.9} parent=0 // pred_region
    _
  $region5: #{bottleneck_forward.9} parent=0 // pred_fallthru
    _
  %v8 = vld [vmem:[%s0] sm:$0x1]
  %v9 = vld [vmem:[%s0 + $0x1] sm:$0x1]
  %v10 = vld [vmem:[%s0 + $0x2] sm:$0x1]
  %v11 = vld [vmem:[%s0 + $0x3] sm:$0x1]
  %v12 = vld [vmem:[%s0 + $0x4] sm:$0x1]
  %v13 = vld [vmem:[%s0 + $0x5] sm:$0x1]
  %v14 = vld [vmem:[%s0 + $0x6] sm:$0x1]
  %v15 = vld [vmem:[%s0 + $0x7] sm:$0x1]
  %v16 = vld [vmem:[%s0 + $0x8] sm:$0x1]
  %v17 = vld [vmem:[%s0 + $0x9] sm:$0x1]
  %v18 = vld [vmem:[%s0 + $0xa] sm:$0x1]
  %v19 = vld [vmem:[%s0 + $0xb] sm:$0x1]
  %v20 = vld [vmem:[%s0 + $0xc] sm:$0x1]
  %v21 = vld [vmem:[%s0 + $0xd] sm:$0x1]
  %v22 = vld [vmem:[%s0 + $0xe] sm:$0x1]
  %v23 = vld [vmem:[%s0 + $0xf] sm:$0x1]
  %v24 = vld [vmem:[%s0 + $0x10] sm:$0x1]
  %v25 = vld [vmem:[%s0 + $0x11] sm:$0x1]
  %v26 = vld [vmem:[%s0 + $0x12] sm:$0x1]
  %v27 = vld [vmem:[%s0 + $0x13] sm:$0x1]
  %v28 = vld [vmem:[%s0 + $0x14] sm:$0x1]
  %v29 = vld [vmem:[%s0 + $0x15] sm:$0x1]
  %v30 = vld [vmem:[%s0 + $0x16] sm:$0x1]
  %v31 = vld [vmem:[%s0 + $0x17] sm:$0x1]
  %v32 = vld [vmem:[%s0 + $0x18] sm:$0x1]
  %v33 = vld [vmem:[%s0 + $0x19] sm:$0x1]
  %v34 = vld [vmem:[%s0 + $0x1a] sm:$0x1]
  %v35 = vld [vmem:[%s0 + $0x1b] sm:$0x1]
  %v36 = vld [vmem:[%s0 + $0x1c] sm:$0x1]
  %v37 = vld [vmem:[%s0 + $0x1d] sm:$0x1]
  %v38 = vld [vmem:[%s0 + $0x1e] sm:$0x1]
  %v39 = vld [vmem:[%s0 + $0x1f] sm:$0x1]
  %v40 = vld [vmem:[%s0 + $0x20] sm:$0x1]
  %v41 = vld [vmem:[%s0 + $0x21] sm:$0x1]
  %v42 = vld [vmem:[%s0 + $0x22] sm:$0x1]
  %v43 = vld [vmem:[%s0 + $0x23] sm:$0x1]
  %v44 = vld [vmem:[%s0 + $0x24] sm:$0x1]
  %v45 = vld [vmem:[%s0 + $0x25] sm:$0x1]
  %v46 = vld [vmem:[%s0 + $0x26] sm:$0x1]
  %v47 = vld [vmem:[%s0 + $0x27] sm:$0x1]
  %v48 = vld [vmem:[%s0 + $0x28] sm:$0x1]
  %v49 = vld [vmem:[%s0 + $0x29] sm:$0x1]
  %v50 = vld [vmem:[%s0 + $0x2a] sm:$0x1]
  %v51 = vld [vmem:[%s0 + $0x2b] sm:$0x1]
  %v52 = vld [vmem:[%s0 + $0x2c] sm:$0x1]
  %v53 = vld [vmem:[%s0 + $0x2d] sm:$0x1]
  %v54 = vld [vmem:[%s0 + $0x2e] sm:$0x1]
  %v55 = vld [vmem:[%s0 + $0x2f] sm:$0x1]
  %v56 = vld [vmem:[%s0 + $0x30] sm:$0x1]
  %v57 = vld [vmem:[%s0 + $0x31] sm:$0x1]
  %v58 = vld [vmem:[%s0 + $0x32] sm:$0x1]
  %v59 = vld [vmem:[%s0 + $0x33] sm:$0x1]
  %v60 = vld [vmem:[%s0 + $0x34] sm:$0x1]
  %v61 = vld [vmem:[%s0 + $0x35] sm:$0x1]
  %v62 = vld [vmem:[%s0 + $0x36] sm:$0x1]
  %v63 = vld [vmem:[%s0 + $0x37] sm:$0x1]
  %v64 = vld [vmem:[%s0 + $0x38] sm:$0x1]
  %v65 = vld [vmem:[%s0 + $0x39] sm:$0x1]
  %v66 = vld [vmem:[%s0 + $0x3a] sm:$0x1]
  %v67 = vld [vmem:[%s0 + $0x3b] sm:$0x1]
  %v68 = vld [vmem:[%s0 + $0x3c] sm:$0x1]
  %v69 = vld [vmem:[%s0 + $0x3d] sm:$0x1]
  %v70 = vld [vmem:[%s0 + $0x3e] sm:$0x1]
  %v71 = vld [vmem:[%s0 + $0x3f] sm:$0x1]
  %v72 = vld [vmem:[%s0 + $0x40] sm:$0x1]
  %v73 = vld [vmem:[%s0 + $0x41] sm:$0x1]
  %v74 = vld [vmem:[%s0 + $0x42] sm:$0x1]
  %v75 = vld [vmem:[%s0 + $0x43] sm:$0x1]
  %v76 = vld [vmem:[%s0 + $0x44] sm:$0x1]
  %v77 = vld [vmem:[%s0 + $0x45] sm:$0x1]
  %v78 = vld [vmem:[%s0 + $0x46] sm:$0x1]
  %v79 = vld [vmem:[%s0 + $0x47] sm:$0x1]
  %v80 = vld [vmem:[%s0 + $0x48] sm:$0x1]
  %v81 = vld [vmem:[%s0 + $0x49] sm:$0x1]
  %v82 = vld [vmem:[%s0 + $0x4a] sm:$0x1]
  %v83 = vld [vmem:[%s0 + $0x4b] sm:$0x1]
  %v84 = vld [vmem:[%s0 + $0x4c] sm:$0x1]
  %v85 = vld [vmem:[%s0 + $0x4d] sm:$0x1]
  %v86 = vld [vmem:[%s0 + $0x4e] sm:$0x1]
  %v87 = vld [vmem:[%s0 + $0x4f] sm:$0x1]
  %v88 = vld [vmem:[%s0 + $0x50] sm:$0x1]
  %v89 = vld [vmem:[%s0 + $0x51] sm:$0x1]
  %v90 = vld [vmem:[%s0 + $0x52] sm:$0x1]
  %v91 = vld [vmem:[%s0 + $0x53] sm:$0x1]
  %v92 = vld [vmem:[%s0 + $0x54] sm:$0x1]
  %v93 = vld [vmem:[%s0 + $0x55] sm:$0x1]
  %v94 = vld [vmem:[%s0 + $0x56] sm:$0x1]
  %v95 = vld [vmem:[%s0 + $0x57] sm:$0x1]
  %v96 = vld [vmem:[%s0 + $0x58] sm:$0x1]
  %v97 = vld [vmem:[%s0 + $0x59] sm:$0x1]
  %v98 = vld [vmem:[%s0 + $0x5a] sm:$0x1]
  %v99 = vld [vmem:[%s0 + $0x5b] sm:$0x1]
  %v100 = vld [vmem:[%s0 + $0x5c] sm:$0x1]
  %v101 = vld [vmem:[%s0 + $0x5d] sm:$0x1]
  %v102 = vld [vmem:[%s0 + $0x5e] sm:$0x1]
  %v103 = vld [vmem:[%s0 + $0x5f] sm:$0x1]
  %v104 = vld [vmem:[%s0 + $0x60] sm:$0x1]
  %v105 = vld [vmem:[%s0 + $0x61] sm:$0x1]
  %v106 = vld [vmem:[%s0 + $0x62] sm:$0x1]
  %v107 = vld [vmem:[%s0 + $0x63] sm:$0x1]
  %v108 = vld [vmem:[%s0 + $0x64] sm:$0x1]
  %v109 = vld [vmem:[%s0 + $0x65] sm:$0x1]
  %v110 = vld [vmem:[%s0 + $0x66] sm:$0x1]
  %v111 = vld [vmem:[%s0 + $0x67] sm:$0x1]
  %v112 = vld [vmem:[%s0 + $0x68] sm:$0x1]
  %v113 = vld [vmem:[%s0 + $0x69] sm:$0x1]
  %v114 = vld [vmem:[%s0 + $0x6a] sm:$0x1]
  %v115 = vld [vmem:[%s0 + $0x6b] sm:$0x1]
  %v116 = vld [vmem:[%s0 + $0x6c] sm:$0x1]
  %v117 = vld [vmem:[%s0 + $0x6d] sm:$0x1]
  %v118 = vld [vmem:[%s0 + $0x6e] sm:$0x1]
  %v119 = vld [vmem:[%s0 + $0x6f] sm:$0x1]
  %v120 = vld [vmem:[%s0 + $0x70] sm:$0x1]
  %v121 = vld [vmem:[%s0 + $0x71] sm:$0x1]
  %v122 = vld [vmem:[%s0 + $0x72] sm:$0x1]
  %v123 = vld [vmem:[%s0 + $0x73] sm:$0x1]
  %v124 = vld [vmem:[%s0 + $0x74] sm:$0x1]
  %v125 = vld [vmem:[%s0 + $0x75] sm:$0x1]
  %v126 = vld [vmem:[%s0 + $0x76] sm:$0x1]
  %v127 = vld [vmem:[%s0 + $0x77] sm:$0x1]
  %v128 = vld [vmem:[%s0 + $0x78] sm:$0x1]
  %v129 = vld [vmem:[%s0 + $0x79] sm:$0x1]
  %v130 = vld [vmem:[%s0 + $0x7a] sm:$0x1]
  %v131 = vld [vmem:[%s0 + $0x7b] sm:$0x1]
  %v132 = vld [vmem:[%s0 + $0x7c] sm:$0x1]
  %v133 = vld [vmem:[%s0 + $0x7d] sm:$0x1]
  %v134 = vld [vmem:[%s0 + $0x7e] sm:$0x1]
  %v135 = vld [vmem:[%s0 + $0x7f] sm:$0x1]
  %v136 = vld [vmem:[%s0 + $0x80] sm:$0x1]
  %v137 = vld [vmem:[%s0 + $0x81] sm:$0x1]
  %v138 = vld [vmem:[%s0 + $0x82] sm:$0x1]
  %v139 = vld [vmem:[%s0 + $0x83] sm:$0x1]
  %v140 = vld [vmem:[%s0 + $0x84] sm:$0x1]
  %v141 = vld [vmem:[%s0 + $0x85] sm:$0x1]
  %v142 = vld [vmem:[%s0 + $0x86] sm:$0x1]
  %v143 = vld [vmem:[%s0 + $0x87] sm:$0x1]
  %v144 = vld [vmem:[%s0 + $0x88] sm:$0x1]
  %v145 = vld [vmem:[%s0 + $0x89] sm:$0x1]
  %v146 = vld [vmem:[%s0 + $0x8a] sm:$0x1]
  %v147 = vld [vmem:[%s0 + $0x8b] sm:$0x1]
  %v148 = vld [vmem:[%s0 + $0x8c] sm:$0x1]
  %v149 = vld [vmem:[%s0 + $0x8d] sm:$0x1]
  %v150 = vld [vmem:[%s0 + $0x8e] sm:$0x1]
  %v151 = vld [vmem:[%s0 + $0x8f] sm:$0x1]
  %v152 = vld [vmem:[%s0 + $0x90] sm:$0x1]
  %v153 = vld [vmem:[%s0 + $0x91] sm:$0x1]
  %v154 = vld [vmem:[%s0 + $0x92] sm:$0x1]
  %v155 = vld [vmem:[%s0 + $0x93] sm:$0x1]
  %v156 = vld [vmem:[%s0 + $0x94] sm:$0x1]
  %v157 = vld [vmem:[%s0 + $0x95] sm:$0x1]
  %v158 = vld [vmem:[%s0 + $0x96] sm:$0x1]
  %v159 = vld [vmem:[%s0 + $0x97] sm:$0x1]
  %v160 = vld [vmem:[%s0 + $0x98] sm:$0x1]
  %v161 = vld [vmem:[%s0 + $0x99] sm:$0x1]
  %v162 = vld [vmem:[%s0 + $0x9a] sm:$0x1]
  %v163 = vld [vmem:[%s0 + $0x9b] sm:$0x1]
  %v164 = vld [vmem:[%s0 + $0x9c] sm:$0x1]
  %v165 = vld [vmem:[%s0 + $0x9d] sm:$0x1]
  %v166 = vld [vmem:[%s0 + $0x9e] sm:$0x1]
  %v167 = vld [vmem:[%s0 + $0x9f] sm:$0x1]
  %v168 = vld [vmem:[%s0 + $0xa0] sm:$0x1]
  %v169 = vld [vmem:[%s0 + $0xa1] sm:$0x1]
  %v170 = vld [vmem:[%s0 + $0xa2] sm:$0x1]
  %v171 = vld [vmem:[%s0 + $0xa3] sm:$0x1]
  %v172 = vld [vmem:[%s0 + $0xa4] sm:$0x1]
  %v173 = vld [vmem:[%s0 + $0xa5] sm:$0x1]
  %v174 = vld [vmem:[%s0 + $0xa6] sm:$0x1]
  %v175 = vld [vmem:[%s0 + $0xa7] sm:$0x1]
  %v176 = vld [vmem:[%s0 + $0xa8] sm:$0x1]
  %v177 = vld [vmem:[%s0 + $0xa9] sm:$0x1]
  %v178 = vld [vmem:[%s0 + $0xaa] sm:$0x1]
  %v179 = vld [vmem:[%s0 + $0xab] sm:$0x1]
  %v180 = vld [vmem:[%s0 + $0xac] sm:$0x1]
  %v181 = vld [vmem:[%s0 + $0xad] sm:$0x1]
  %v182 = vld [vmem:[%s0 + $0xae] sm:$0x1]
  %v183 = vld [vmem:[%s0 + $0xaf] sm:$0x1]
  %v184 = vld [vmem:[%s0 + $0xb0] sm:$0x1]
  %v185 = vld [vmem:[%s0 + $0xb1] sm:$0x1]
  %v186 = vld [vmem:[%s0 + $0xb2] sm:$0x1]
  %v187 = vld [vmem:[%s0 + $0xb3] sm:$0x1]
  %v188 = vld [vmem:[%s0 + $0xb4] sm:$0x1]
  %v189 = vld [vmem:[%s0 + $0xb5] sm:$0x1]
  %v190 = vld [vmem:[%s0 + $0xb6] sm:$0x1]
  %v191 = vld [vmem:[%s0 + $0xb7] sm:$0x1]
  %v192 = vld [vmem:[%s0 + $0xb8] sm:$0x1]
  %v193 = vld [vmem:[%s0 + $0xb9] sm:$0x1]
  %v194 = vld [vmem:[%s0 + $0xba] sm:$0x1]
  %v195 = vld [vmem:[%s0 + $0xbb] sm:$0x1]
  %v196 = vld [vmem:[%s0 + $0xbc] sm:$0x1]
  %v197 = vld [vmem:[%s0 + $0xbd] sm:$0x1]
  %v198 = vld [vmem:[%s0 + $0xbe] sm:$0x1]
  %v199 = vld [vmem:[%s0 + $0xbf] sm:$0x1]
  %v200 = vld [vmem:[%s0 + $0xc0] sm:$0x1]
  %v201 = vld [vmem:[%s0 + $0xc1] sm:$0x1]
  %v202 = vld [vmem:[%s0 + $0xc2] sm:$0x1]
  %v203 = vld [vmem:[%s0 + $0xc3] sm:$0x1]
  %v204 = vld [vmem:[%s0 + $0xc4] sm:$0x1]
  %v205 = vld [vmem:[%s0 + $0xc5] sm:$0x1]
  %v206 = vld [vmem:[%s0 + $0xc6] sm:$0x1]
  %v207 = vld [vmem:[%s0 + $0xc7] sm:$0x1]
  %v208 = vld [vmem:[%s0 + $0xc8] sm:$0x1]
  %v209 = vld [vmem:[%s0 + $0xc9] sm:$0x1]
  %v210 = vld [vmem:[%s0 + $0xca] sm:$0x1]
  %v211 = vld [vmem:[%s0 + $0xcb] sm:$0x1]
  %v212 = vld [vmem:[%s0 + $0xcc] sm:$0x1]
  %v213 = vld [vmem:[%s0 + $0xcd] sm:$0x1]
  %v214 = vld [vmem:[%s0 + $0xce] sm:$0x1]
  %v215 = vld [vmem:[%s0 + $0xcf] sm:$0x1]
  %v216 = vld [vmem:[%s0 + $0xd0] sm:$0x1]
  %v217 = vld [vmem:[%s0 + $0xd1] sm:$0x1]
  %v218 = vld [vmem:[%s0 + $0xd2] sm:$0x1]
  %v219 = vld [vmem:[%s0 + $0xd3] sm:$0x1]
  %v220 = vld [vmem:[%s0 + $0xd4] sm:$0x1]
  %v221 = vld [vmem:[%s0 + $0xd5] sm:$0x1]
  %v222 = vld [vmem:[%s0 + $0xd6] sm:$0x1]
  %v223 = vld [vmem:[%s0 + $0xd7] sm:$0x1]
  %v224 = vld [vmem:[%s0 + $0xd8] sm:$0x1]
  %v225 = vld [vmem:[%s0 + $0xd9] sm:$0x1]
  %v226 = vld [vmem:[%s0 + $0xda] sm:$0x1]
  %v227 = vld [vmem:[%s0 + $0xdb] sm:$0x1]
  %v228 = vld [vmem:[%s0 + $0xdc] sm:$0x1]
  %v229 = vld [vmem:[%s0 + $0xdd] sm:$0x1]
  %v230 = vld [vmem:[%s0 + $0xde] sm:$0x1]
  %v231 = vld [vmem:[%s0 + $0xdf] sm:$0x1]
  %v232 = vld [vmem:[%s0 + $0xe0] sm:$0x1]
  %v233 = vld [vmem:[%s0 + $0xe1] sm:$0x1]
  %v234 = vld [vmem:[%s0 + $0xe2] sm:$0x1]
  %v235 = vld [vmem:[%s0 + $0xe3] sm:$0x1]
  %v236 = vld [vmem:[%s0 + $0xe4] sm:$0x1]
  %v237 = vld [vmem:[%s0 + $0xe5] sm:$0x1]
  %v238 = vld [vmem:[%s0 + $0xe6] sm:$0x1]
  %v239 = vld [vmem:[%s0 + $0xe7] sm:$0x1]
  %v240 = vld [vmem:[%s0 + $0xe8] sm:$0x1]
  %v241 = vld [vmem:[%s0 + $0xe9] sm:$0x1]
  %v242 = vld [vmem:[%s0 + $0xea] sm:$0x1]
  %v243 = vld [vmem:[%s0 + $0xeb] sm:$0x1]
  %v244 = vld [vmem:[%s0 + $0xec] sm:$0x1]
  %v245 = vld [vmem:[%s0 + $0xed] sm:$0x1]
  %v246 = vld [vmem:[%s0 + $0xee] sm:$0x1]
  %v247 = vld [vmem:[%s0 + $0xef] sm:$0x1]
  %v248 = vld [vmem:[%s0 + $0xf0] sm:$0x1]
  %v249 = vld [vmem:[%s0 + $0xf1] sm:$0x1]
  %v250 = vld [vmem:[%s0 + $0xf2] sm:$0x1]
  %v251 = vld [vmem:[%s0 + $0xf3] sm:$0x1]
  %v252 = vld [vmem:[%s0 + $0xf4] sm:$0x1]
  %v253 = vld [vmem:[%s0 + $0xf5] sm:$0x1]
  %v254 = vld [vmem:[%s0 + $0xf6] sm:$0x1]
  %v255 = vld [vmem:[%s0 + $0xf7] sm:$0x1]
  %v256 = vld [vmem:[%s0 + $0xf8] sm:$0x1]
  %v257 = vld [vmem:[%s0 + $0xf9] sm:$0x1]
  %v258 = vld [vmem:[%s0 + $0xfa] sm:$0x1]
  %v259 = vld [vmem:[%s0 + $0xfb] sm:$0x1]
  %v260 = vld [vmem:[%s0 + $0xfc] sm:$0x1]
  %v261 = vld [vmem:[%s0 + $0xfd] sm:$0x1]
  %v262 = vld [vmem:[%s0 + $0xfe] sm:$0x1]
  %v263 = vld [vmem:[%s0 + $0xff] sm:$0x1]
  %v264 = vunpack.c.l.bf16 %v8
  %v265 = vunpack.c.l.bf16 %v9
  %v266 = vunpack.c.l.bf16 %v10
  %v267 = vunpack.c.l.bf16 %v11
  %v268 = vunpack.c.l.bf16 %v12
  %v269 = vunpack.c.l.bf16 %v13
  %v270 = vunpack.c.l.bf16 %v14
  %v271 = vunpack.c.l.bf16 %v15
  %v272 = vunpack.c.l.bf16 %v16
  %v273 = vunpack.c.l.bf16 %v17
  %v274 = vunpack.c.l.bf16 %v18
  %v275 = vunpack.c.l.bf16 %v19
  %v276 = vunpack.c.l.bf16 %v20
  %v277 = vunpack.c.l.bf16 %v21
  %v278 = vunpack.c.l.bf16 %v22
  %v279 = vunpack.c.l.bf16 %v23
  %v280 = vunpack.c.l.bf16 %v24
  %v281 = vunpack.c.l.bf16 %v25
  %v282 = vunpack.c.l.bf16 %v26
  %v283 = vunpack.c.l.bf16 %v27
  %v284 = vunpack.c.l.bf16 %v28
  %v285 = vunpack.c.l.bf16 %v29
  %v286 = vunpack.c.l.bf16 %v30
  %v287 = vunpack.c.l.bf16 %v31
  %v288 = vunpack.c.l.bf16 %v32
  %v289 = vunpack.c.l.bf16 %v33
  %v290 = vunpack.c.l.bf16 %v34
  %v291 = vunpack.c.l.bf16 %v35
  %v292 = vunpack.c.l.bf16 %v36
  %v293 = vunpack.c.l.bf16 %v37
  %v294 = vunpack.c.l.bf16 %v38
  %v295 = vunpack.c.l.bf16 %v39
  %v296 = vunpack.c.l.bf16 %v40
  %v297 = vunpack.c.l.bf16 %v41
  %v298 = vunpack.c.l.bf16 %v42
  %v299 = vunpack.c.l.bf16 %v43
  %v300 = vunpack.c.l.bf16 %v44
  %v301 = vunpack.c.l.bf16 %v45
  %v302 = vunpack.c.l.bf16 %v46
  %v303 = vunpack.c.l.bf16 %v47
  %v304 = vunpack.c.l.bf16 %v48
  %v305 = vunpack.c.l.bf16 %v49
  %v306 = vunpack.c.l.bf16 %v50
  %v307 = vunpack.c.l.bf16 %v51
  %v308 = vunpack.c.l.bf16 %v52
  %v309 = vunpack.c.l.bf16 %v53
  %v310 = vunpack.c.l.bf16 %v54
  %v311 = vunpack.c.l.bf16 %v55
  %v312 = vunpack.c.l.bf16 %v56
  %v313 = vunpack.c.l.bf16 %v57
  %v314 = vunpack.c.l.bf16 %v58
  %v315 = vunpack.c.l.bf16 %v59
  %v316 = vunpack.c.l.bf16 %v60
  %v317 = vunpack.c.l.bf16 %v61
  %v318 = vunpack.c.l.bf16 %v62
  %v319 = vunpack.c.l.bf16 %v63
  %v320 = vunpack.c.l.bf16 %v64
  %v321 = vunpack.c.l.bf16 %v65
  %v322 = vunpack.c.l.bf16 %v66
  %v323 = vunpack.c.l.bf16 %v67
  %v324 = vunpack.c.l.bf16 %v68
  %v325 = vunpack.c.l.bf16 %v69
  %v326 = vunpack.c.l.bf16 %v70
  %v327 = vunpack.c.l.bf16 %v71
  %v328 = vunpack.c.l.bf16 %v72
  %v329 = vunpack.c.l.bf16 %v73
  %v330 = vunpack.c.l.bf16 %v74
  %v331 = vunpack.c.l.bf16 %v75
  %v332 = vunpack.c.l.bf16 %v76
  %v333 = vunpack.c.l.bf16 %v77
  %v334 = vunpack.c.l.bf16 %v78
  %v335 = vunpack.c.l.bf16 %v79
  %v336 = vunpack.c.l.bf16 %v80
  %v337 = vunpack.c.l.bf16 %v81
  %v338 = vunpack.c.l.bf16 %v82
  %v339 = vunpack.c.l.bf16 %v83
  %v340 = vunpack.c.l.bf16 %v84
  %v341 = vunpack.c.l.bf16 %v85
  %v342 = vunpack.c.l.bf16 %v86
  %v343 = vunpack.c.l.bf16 %v87
  %v344 = vunpack.c.l.bf16 %v88
  %v345 = vunpack.c.l.bf16 %v89
  %v346 = vunpack.c.l.bf16 %v90
  %v347 = vunpack.c.l.bf16 %v91
  %v348 = vunpack.c.l.bf16 %v92
  %v349 = vunpack.c.l.bf16 %v93
  %v350 = vunpack.c.l.bf16 %v94
  %v351 = vunpack.c.l.bf16 %v95
  %v352 = vunpack.c.l.bf16 %v96
  %v353 = vunpack.c.l.bf16 %v97
  %v354 = vunpack.c.l.bf16 %v98
  %v355 = vunpack.c.l.bf16 %v99
  %v356 = vunpack.c.l.bf16 %v100
  %v357 = vunpack.c.l.bf16 %v101
  %v358 = vunpack.c.l.bf16 %v102
  %v359 = vunpack.c.l.bf16 %v103
  %v360 = vunpack.c.l.bf16 %v104
  %v361 = vunpack.c.l.bf16 %v105
  %v362 = vunpack.c.l.bf16 %v106
  %v363 = vunpack.c.l.bf16 %v107
  %v364 = vunpack.c.l.bf16 %v108
  %v365 = vunpack.c.l.bf16 %v109
  %v366 = vunpack.c.l.bf16 %v110
  %v367 = vunpack.c.l.bf16 %v111
  %v368 = vunpack.c.l.bf16 %v112
  %v369 = vunpack.c.l.bf16 %v113
  %v370 = vunpack.c.l.bf16 %v114
  %v371 = vunpack.c.l.bf16 %v115
  %v372 = vunpack.c.l.bf16 %v116
  %v373 = vunpack.c.l.bf16 %v117
  %v374 = vunpack.c.l.bf16 %v118
  %v375 = vunpack.c.l.bf16 %v119
  %v376 = vunpack.c.l.bf16 %v120
  %v377 = vunpack.c.l.bf16 %v121
  %v378 = vunpack.c.l.bf16 %v122
  %v379 = vunpack.c.l.bf16 %v123
  %v380 = vunpack.c.l.bf16 %v124
  %v381 = vunpack.c.l.bf16 %v125
  %v382 = vunpack.c.l.bf16 %v126
  %v383 = vunpack.c.l.bf16 %v127
  %v384 = vunpack.c.l.bf16 %v128
  %v385 = vunpack.c.l.bf16 %v129
  %v386 = vunpack.c.l.bf16 %v130
  %v387 = vunpack.c.l.bf16 %v131
  %v388 = vunpack.c.l.bf16 %v132
  %v389 = vunpack.c.l.bf16 %v133
  %v390 = vunpack.c.l.bf16 %v134
  %v391 = vunpack.c.l.bf16 %v135
  %v392 = vunpack.c.l.bf16 %v136
  %v393 = vunpack.c.l.bf16 %v137
  %v394 = vunpack.c.l.bf16 %v138
  %v395 = vunpack.c.l.bf16 %v139
  %v396 = vunpack.c.l.bf16 %v140
  %v397 = vunpack.c.l.bf16 %v141
  %v398 = vunpack.c.l.bf16 %v142
  %v399 = vunpack.c.l.bf16 %v143
  %v400 = vunpack.c.l.bf16 %v144
  %v401 = vunpack.c.l.bf16 %v145
  %v402 = vunpack.c.l.bf16 %v146
  %v403 = vunpack.c.l.bf16 %v147
  %v404 = vunpack.c.l.bf16 %v148
  %v405 = vunpack.c.l.bf16 %v149
  %v406 = vunpack.c.l.bf16 %v150
  %v407 = vunpack.c.l.bf16 %v151
  %v408 = vunpack.c.l.bf16 %v152
  %v409 = vunpack.c.l.bf16 %v153
  %v410 = vunpack.c.l.bf16 %v154
  %v411 = vunpack.c.l.bf16 %v155
  %v412 = vunpack.c.l.bf16 %v156
  %v413 = vunpack.c.l.bf16 %v157
  %v414 = vunpack.c.l.bf16 %v158
  %v415 = vunpack.c.l.bf16 %v159
  %v416 = vunpack.c.l.bf16 %v160
  %v417 = vunpack.c.l.bf16 %v161
  %v418 = vunpack.c.l.bf16 %v162
  %v419 = vunpack.c.l.bf16 %v163
  %v420 = vunpack.c.l.bf16 %v164
  %v421 = vunpack.c.l.bf16 %v165
  %v422 = vunpack.c.l.bf16 %v166
  %v423 = vunpack.c.l.bf16 %v167
  %v424 = vunpack.c.l.bf16 %v168
  %v425 = vunpack.c.l.bf16 %v169
  %v426 = vunpack.c.l.bf16 %v170
  %v427 = vunpack.c.l.bf16 %v171
  %v428 = vunpack.c.l.bf16 %v172
  %v429 = vunpack.c.l.bf16 %v173
  %v430 = vunpack.c.l.bf16 %v174
  %v431 = vunpack.c.l.bf16 %v175
  %v432 = vunpack.c.l.bf16 %v176
  %v433 = vunpack.c.l.bf16 %v177
  %v434 = vunpack.c.l.bf16 %v178
  %v435 = vunpack.c.l.bf16 %v179
  %v436 = vunpack.c.l.bf16 %v180
  %v437 = vunpack.c.l.bf16 %v181
  %v438 = vunpack.c.l.bf16 %v182
  %v439 = vunpack.c.l.bf16 %v183
  %v440 = vunpack.c.l.bf16 %v184
  %v441 = vunpack.c.l.bf16 %v185
  %v442 = vunpack.c.l.bf16 %v186
  %v443 = vunpack.c.l.bf16 %v187
  %v444 = vunpack.c.l.bf16 %v188
  %v445 = vunpack.c.l.bf16 %v189
  %v446 = vunpack.c.l.bf16 %v190
  %v447 = vunpack.c.l.bf16 %v191
  %v448 = vunpack.c.l.bf16 %v192
  %v449 = vunpack.c.l.bf16 %v193
  %v450 = vunpack.c.l.bf16 %v194
  %v451 = vunpack.c.l.bf16 %v195
  %v452 = vunpack.c.l.bf16 %v196
  %v453 = vunpack.c.l.bf16 %v197
  %v454 = vunpack.c.l.bf16 %v198
  %v455 = vunpack.c.l.bf16 %v199
  %v456 = vunpack.c.l.bf16 %v200
  %v457 = vunpack.c.l.bf16 %v201
  %v458 = vunpack.c.l.bf16 %v202
  %v459 = vunpack.c.l.bf16 %v203
  %v460 = vunpack.c.l.bf16 %v204
  %v461 = vunpack.c.l.bf16 %v205
  %v462 = vunpack.c.l.bf16 %v206
  %v463 = vunpack.c.l.bf16 %v207
  %v464 = vunpack.c.l.bf16 %v208
  %v465 = vunpack.c.l.bf16 %v209
  %v466 = vunpack.c.l.bf16 %v210
  %v467 = vunpack.c.l.bf16 %v211
  %v468 = vunpack.c.l.bf16 %v212
  %v469 = vunpack.c.l.bf16 %v213
  %v470 = vunpack.c.l.bf16 %v214
  %v471 = vunpack.c.l.bf16 %v215
  %v472 = vunpack.c.l.bf16 %v216
  %v473 = vunpack.c.l.bf16 %v217
  %v474 = vunpack.c.l.bf16 %v218
  %v475 = vunpack.c.l.bf16 %v219
  %v476 = vunpack.c.l.bf16 %v220
  %v477 = vunpack.c.l.bf16 %v221
  %v478 = vunpack.c.l.bf16 %v222
  %v479 = vunpack.c.l.bf16 %v223
  %v480 = vunpack.c.l.bf16 %v224
  %v481 = vunpack.c.l.bf16 %v225
  %v482 = vunpack.c.l.bf16 %v226
  %v483 = vunpack.c.l.bf16 %v227
  %v484 = vunpack.c.l.bf16 %v228
  %v485 = vunpack.c.l.bf16 %v229
  %v486 = vunpack.c.l.bf16 %v230
  %v487 = vunpack.c.l.bf16 %v231
  %v488 = vunpack.c.l.bf16 %v232
  %v489 = vunpack.c.l.bf16 %v233
  %v490 = vunpack.c.l.bf16 %v234
  %v491 = vunpack.c.l.bf16 %v235
  %v492 = vunpack.c.l.bf16 %v236
  %v493 = vunpack.c.l.bf16 %v237
  %v494 = vunpack.c.l.bf16 %v238
  %v495 = vunpack.c.l.bf16 %v239
  %v496 = vunpack.c.l.bf16 %v240
  %v497 = vunpack.c.l.bf16 %v241
  %v498 = vunpack.c.l.bf16 %v242
  %v499 = vunpack.c.l.bf16 %v243
  %v500 = vunpack.c.l.bf16 %v244
  %v501 = vunpack.c.l.bf16 %v245
  %v502 = vunpack.c.l.bf16 %v246
  %v503 = vunpack.c.l.bf16 %v247
  %v504 = vunpack.c.l.bf16 %v248
  %v505 = vunpack.c.l.bf16 %v249
  %v506 = vunpack.c.l.bf16 %v250
  %v507 = vunpack.c.l.bf16 %v251
  %v508 = vunpack.c.l.bf16 %v252
  %v509 = vunpack.c.l.bf16 %v253
  %v510 = vunpack.c.l.bf16 %v254
  %v511 = vunpack.c.l.bf16 %v255
  %v512 = vunpack.c.l.bf16 %v256
  %v513 = vunpack.c.l.bf16 %v257
  %v514 = vunpack.c.l.bf16 %v258
  %v515 = vunpack.c.l.bf16 %v259
  %v516 = vunpack.c.l.bf16 %v260
  %v517 = vunpack.c.l.bf16 %v261
  %v518 = vunpack.c.l.bf16 %v262
  %v519 = vunpack.c.l.bf16 %v263
  %vm520 = vcmask 25600
  %v521 = vsel %vm520, %v264, 0.0
  %v522 = vsel %vm520, %v272, 0.0
  %v523 = vadd.f32 %v521, %v522
  %v524 = vsel %vm520, %v265, 0.0
  %v525 = vsel %vm520, %v273, 0.0
  %v526 = vadd.f32 %v524, %v525
  %v527 = vsel %vm520, %v266, 0.0
  %v528 = vsel %vm520, %v274, 0.0
  %v529 = vadd.f32 %v527, %v528
  %v530 = vsel %vm520, %v267, 0.0
  %v531 = vsel %vm520, %v275, 0.0
  %v532 = vadd.f32 %v530, %v531
  %v533 = vsel %vm520, %v268, 0.0
  %v534 = vsel %vm520, %v276, 0.0
  %v535 = vadd.f32 %v533, %v534
  %v536 = vsel %vm520, %v269, 0.0
  %v537 = vsel %vm520, %v277, 0.0
  %v538 = vadd.f32 %v536, %v537
  %v539 = vsel %vm520, %v270, 0.0
  %v540 = vsel %vm520, %v278, 0.0
  %v541 = vadd.f32 %v539, %v540
  %v542 = vsel %vm520, %v271, 0.0
  %v543 = vsel %vm520, %v279, 0.0
  %v544 = vadd.f32 %v542, %v543
  %v545 = vsel %vm520, %v280, 0.0
  %v546 = vsel %vm520, %v288, 0.0
  %v547 = vadd.f32 %v545, %v546
  %v548 = vsel %vm520, %v281, 0.0
  %v549 = vsel %vm520, %v289, 0.0
  %v550 = vadd.f32 %v548, %v549
  %v551 = vsel %vm520, %v282, 0.0
  %v552 = vsel %vm520, %v290, 0.0
  %v553 = vadd.f32 %v551, %v552
  %v554 = vsel %vm520, %v283, 0.0
  %v555 = vsel %vm520, %v291, 0.0
  %v556 = vadd.f32 %v554, %v555
  %v557 = vsel %vm520, %v284, 0.0
  %v558 = vsel %vm520, %v292, 0.0
  %v559 = vadd.f32 %v557, %v558
  %v560 = vsel %vm520, %v285, 0.0
  %v561 = vsel %vm520, %v293, 0.0
  %v562 = vadd.f32 %v560, %v561
  %v563 = vsel %vm520, %v286, 0.0
  %v564 = vsel %vm520, %v294, 0.0
  %v565 = vadd.f32 %v563, %v564
  %v566 = vsel %vm520, %v287, 0.0
  %v567 = vsel %vm520, %v295, 0.0
  %v568 = vadd.f32 %v566, %v567
  %v569 = vsel %vm520, %v296, 0.0
  %v570 = vsel %vm520, %v304, 0.0
  %v571 = vadd.f32 %v569, %v570
  %v572 = vsel %vm520, %v297, 0.0
  %v573 = vsel %vm520, %v305, 0.0
  %v574 = vadd.f32 %v572, %v573
  %v575 = vsel %vm520, %v298, 0.0
  %v576 = vsel %vm520, %v306, 0.0
  %v577 = vadd.f32 %v575, %v576
  %v578 = vsel %vm520, %v299, 0.0
  %v579 = vsel %vm520, %v307, 0.0
  %v580 = vadd.f32 %v578, %v579
  %v581 = vsel %vm520, %v300, 0.0
  %v582 = vsel %vm520, %v308, 0.0
  %v583 = vadd.f32 %v581, %v582
  %v584 = vsel %vm520, %v301, 0.0
  %v585 = vsel %vm520, %v309, 0.0
  %v586 = vadd.f32 %v584, %v585
  %v587 = vsel %vm520, %v302, 0.0
  %v588 = vsel %vm520, %v310, 0.0
  %v589 = vadd.f32 %v587, %v588
  %v590 = vsel %vm520, %v303, 0.0
  %v591 = vsel %vm520, %v311, 0.0
  %v592 = vadd.f32 %v590, %v591
  %v593 = vsel %vm520, %v312, 0.0
  %v594 = vsel %vm520, %v320, 0.0
  %v595 = vadd.f32 %v593, %v594
  %v596 = vsel %vm520, %v313, 0.0
  %v597 = vsel %vm520, %v321, 0.0
  %v598 = vadd.f32 %v596, %v597
  %v599 = vsel %vm520, %v314, 0.0
  %v600 = vsel %vm520, %v322, 0.0
  %v601 = vadd.f32 %v599, %v600
  %v602 = vsel %vm520, %v315, 0.0
  %v603 = vsel %vm520, %v323, 0.0
  %v604 = vadd.f32 %v602, %v603
  %v605 = vsel %vm520, %v316, 0.0
  %v606 = vsel %vm520, %v324, 0.0
  %v607 = vadd.f32 %v605, %v606
  %v608 = vsel %vm520, %v317, 0.0
  %v609 = vsel %vm520, %v325, 0.0
  %v610 = vadd.f32 %v608, %v609
  %v611 = vsel %vm520, %v318, 0.0
  %v612 = vsel %vm520, %v326, 0.0
  %v613 = vadd.f32 %v611, %v612
  %v614 = vsel %vm520, %v319, 0.0
  %v615 = vsel %vm520, %v327, 0.0
  %v616 = vadd.f32 %v614, %v615
  %v617 = vsel %vm520, %v328, 0.0
  %v618 = vsel %vm520, %v336, 0.0
  %v619 = vadd.f32 %v617, %v618
  %v620 = vsel %vm520, %v329, 0.0
  %v621 = vsel %vm520, %v337, 0.0
  %v622 = vadd.f32 %v620, %v621
  %v623 = vsel %vm520, %v330, 0.0
  %v624 = vsel %vm520, %v338, 0.0
  %v625 = vadd.f32 %v623, %v624
  %v626 = vsel %vm520, %v331, 0.0
  %v627 = vsel %vm520, %v339, 0.0
  %v628 = vadd.f32 %v626, %v627
  %v629 = vsel %vm520, %v332, 0.0
  %v630 = vsel %vm520, %v340, 0.0
  %v631 = vadd.f32 %v629, %v630
  %v632 = vsel %vm520, %v333, 0.0
  %v633 = vsel %vm520, %v341, 0.0
  %v634 = vadd.f32 %v632, %v633
  %v635 = vsel %vm520, %v334, 0.0
  %v636 = vsel %vm520, %v342, 0.0
  %v637 = vadd.f32 %v635, %v636
  %v638 = vsel %vm520, %v335, 0.0
  %v639 = vsel %vm520, %v343, 0.0
  %v640 = vadd.f32 %v638, %v639
  %v641 = vsel %vm520, %v344, 0.0
  %v642 = vsel %vm520, %v352, 0.0
  %v643 = vadd.f32 %v641, %v642
  %v644 = vsel %vm520, %v345, 0.0
  %v645 = vsel %vm520, %v353, 0.0
  %v646 = vadd.f32 %v644, %v645
  %v647 = vsel %vm520, %v346, 0.0
  %v648 = vsel %vm520, %v354, 0.0
  %v649 = vadd.f32 %v647, %v648
  %v650 = vsel %vm520, %v347, 0.0
  %v651 = vsel %vm520, %v355, 0.0
  %v652 = vadd.f32 %v650, %v651
  %v653 = vsel %vm520, %v348, 0.0
  %v654 = vsel %vm520, %v356, 0.0
  %v655 = vadd.f32 %v653, %v654
  %v656 = vsel %vm520, %v349, 0.0
  %v657 = vsel %vm520, %v357, 0.0
  %v658 = vadd.f32 %v656, %v657
  %v659 = vsel %vm520, %v350, 0.0
  %v660 = vsel %vm520, %v358, 0.0
  %v661 = vadd.f32 %v659, %v660
  %v662 = vsel %vm520, %v351, 0.0
  %v663 = vsel %vm520, %v359, 0.0
  %v664 = vadd.f32 %v662, %v663
  %v665 = vsel %vm520, %v360, 0.0
  %v666 = vsel %vm520, %v368, 0.0
  %v667 = vadd.f32 %v665, %v666
  %v668 = vsel %vm520, %v361, 0.0
  %v669 = vsel %vm520, %v369, 0.0
  %v670 = vadd.f32 %v668, %v669
  %v671 = vsel %vm520, %v362, 0.0
  %v672 = vsel %vm520, %v370, 0.0
  %v673 = vadd.f32 %v671, %v672
  %v674 = vsel %vm520, %v363, 0.0
  %v675 = vsel %vm520, %v371, 0.0
  %v676 = vadd.f32 %v674, %v675
  %v677 = vsel %vm520, %v364, 0.0
  %v678 = vsel %vm520, %v372, 0.0
  %v679 = vadd.f32 %v677, %v678
  %v680 = vsel %vm520, %v365, 0.0
  %v681 = vsel %vm520, %v373, 0.0
  %v682 = vadd.f32 %v680, %v681
  %v683 = vsel %vm520, %v366, 0.0
  %v684 = vsel %vm520, %v374, 0.0
  %v685 = vadd.f32 %v683, %v684
  %v686 = vsel %vm520, %v367, 0.0
  %v687 = vsel %vm520, %v375, 0.0
  %v688 = vadd.f32 %v686, %v687
  %v689 = vsel %vm520, %v376, 0.0
  %v690 = vsel %vm520, %v384, 0.0
  %v691 = vadd.f32 %v689, %v690
  %v692 = vsel %vm520, %v377, 0.0
  %v693 = vsel %vm520, %v385, 0.0
  %v694 = vadd.f32 %v692, %v693
  %v695 = vsel %vm520, %v378, 0.0
  %v696 = vsel %vm520, %v386, 0.0
  %v697 = vadd.f32 %v695, %v696
  %v698 = vsel %vm520, %v379, 0.0
  %v699 = vsel %vm520, %v387, 0.0
  %v700 = vadd.f32 %v698, %v699
  %v701 = vsel %vm520, %v380, 0.0
  %v702 = vsel %vm520, %v388, 0.0
  %v703 = vadd.f32 %v701, %v702
  %v704 = vsel %vm520, %v381, 0.0
  %v705 = vsel %vm520, %v389, 0.0
  %v706 = vadd.f32 %v704, %v705
  %v707 = vsel %vm520, %v382, 0.0
  %v708 = vsel %vm520, %v390, 0.0
  %v709 = vadd.f32 %v707, %v708
  %v710 = vsel %vm520, %v383, 0.0
  %v711 = vsel %vm520, %v391, 0.0
  %v712 = vadd.f32 %v710, %v711
  %v713 = vsel %vm520, %v392, 0.0
  %v714 = vsel %vm520, %v400, 0.0
  %v715 = vadd.f32 %v713, %v714
  %v716 = vsel %vm520, %v393, 0.0
  %v717 = vsel %vm520, %v401, 0.0
  %v718 = vadd.f32 %v716, %v717
  %v719 = vsel %vm520, %v394, 0.0
  %v720 = vsel %vm520, %v402, 0.0
  %v721 = vadd.f32 %v719, %v720
  %v722 = vsel %vm520, %v395, 0.0
  %v723 = vsel %vm520, %v403, 0.0
  %v724 = vadd.f32 %v722, %v723
  %v725 = vsel %vm520, %v396, 0.0
  %v726 = vsel %vm520, %v404, 0.0
  %v727 = vadd.f32 %v725, %v726
  %v728 = vsel %vm520, %v397, 0.0
  %v729 = vsel %vm520, %v405, 0.0
  %v730 = vadd.f32 %v728, %v729
  %v731 = vsel %vm520, %v398, 0.0
  %v732 = vsel %vm520, %v406, 0.0
  %v733 = vadd.f32 %v731, %v732
  %v734 = vsel %vm520, %v399, 0.0
  %v735 = vsel %vm520, %v407, 0.0
  %v736 = vadd.f32 %v734, %v735
  %v737 = vsel %vm520, %v408, 0.0
  %v738 = vsel %vm520, %v416, 0.0
  %v739 = vadd.f32 %v737, %v738
  %v740 = vsel %vm520, %v409, 0.0
  %v741 = vsel %vm520, %v417, 0.0
  %v742 = vadd.f32 %v740, %v741
  %v743 = vsel %vm520, %v410, 0.0
  %v744 = vsel %vm520, %v418, 0.0
  %v745 = vadd.f32 %v743, %v744
  %v746 = vsel %vm520, %v411, 0.0
  %v747 = vsel %vm520, %v419, 0.0
  %v748 = vadd.f32 %v746, %v747
  %v749 = vsel %vm520, %v412, 0.0
  %v750 = vsel %vm520, %v420, 0.0
  %v751 = vadd.f32 %v749, %v750
  %v752 = vsel %vm520, %v413, 0.0
  %v753 = vsel %vm520, %v421, 0.0
  %v754 = vadd.f32 %v752, %v753
  %v755 = vsel %vm520, %v414, 0.0
  %v756 = vsel %vm520, %v422, 0.0
  %v757 = vadd.f32 %v755, %v756
  %v758 = vsel %vm520, %v415, 0.0
  %v759 = vsel %vm520, %v423, 0.0
  %v760 = vadd.f32 %v758, %v759
  %v761 = vsel %vm520, %v424, 0.0
  %v762 = vsel %vm520, %v432, 0.0
  %v763 = vadd.f32 %v761, %v762
  %v764 = vsel %vm520, %v425, 0.0
  %v765 = vsel %vm520, %v433, 0.0
  %v766 = vadd.f32 %v764, %v765
  %v767 = vsel %vm520, %v426, 0.0
  %v768 = vsel %vm520, %v434, 0.0
  %v769 = vadd.f32 %v767, %v768
  %v770 = vsel %vm520, %v427, 0.0
  %v771 = vsel %vm520, %v435, 0.0
  %v772 = vadd.f32 %v770, %v771
  %v773 = vsel %vm520, %v428, 0.0
  %v774 = vsel %vm520, %v436, 0.0
  %v775 = vadd.f32 %v773, %v774
  %v776 = vsel %vm520, %v429, 0.0
  %v777 = vsel %vm520, %v437, 0.0
  %v778 = vadd.f32 %v776, %v777
  %v779 = vsel %vm520, %v430, 0.0
  %v780 = vsel %vm520, %v438, 0.0
  %v781 = vadd.f32 %v779, %v780
  %v782 = vsel %vm520, %v431, 0.0
  %v783 = vsel %vm520, %v439, 0.0
  %v784 = vadd.f32 %v782, %v783
  %v785 = vsel %vm520, %v440, 0.0
  %v786 = vsel %vm520, %v448, 0.0
  %v787 = vadd.f32 %v785, %v786
  %v788 = vsel %vm520, %v441, 0.0
  %v789 = vsel %vm520, %v449, 0.0
  %v790 = vadd.f32 %v788, %v789
  %v791 = vsel %vm520, %v442, 0.0
  %v792 = vsel %vm520, %v450, 0.0
  %v793 = vadd.f32 %v791, %v792
  %v794 = vsel %vm520, %v443, 0.0
  %v795 = vsel %vm520, %v451, 0.0
  %v796 = vadd.f32 %v794, %v795
  %v797 = vsel %vm520, %v444, 0.0
  %v798 = vsel %vm520, %v452, 0.0
  %v799 = vadd.f32 %v797, %v798
  %v800 = vsel %vm520, %v445, 0.0
  %v801 = vsel %vm520, %v453, 0.0
  %v802 = vadd.f32 %v800, %v801
  %v803 = vsel %vm520, %v446, 0.0
  %v804 = vsel %vm520, %v454, 0.0
  %v805 = vadd.f32 %v803, %v804
  %v806 = vsel %vm520, %v447, 0.0
  %v807 = vsel %vm520, %v455, 0.0
  %v808 = vadd.f32 %v806, %v807
  %v809 = vsel %vm520, %v456, 0.0
  %v810 = vsel %vm520, %v464, 0.0
  %v811 = vadd.f32 %v809, %v810
  %v812 = vsel %vm520, %v457, 0.0
  %v813 = vsel %vm520, %v465, 0.0
  %v814 = vadd.f32 %v812, %v813
  %v815 = vsel %vm520, %v458, 0.0
  %v816 = vsel %vm520, %v466, 0.0
  %v817 = vadd.f32 %v815, %v816
  %v818 = vsel %vm520, %v459, 0.0
  %v819 = vsel %vm520, %v467, 0.0
  %v820 = vadd.f32 %v818, %v819
  %v821 = vsel %vm520, %v460, 0.0
  %v822 = vsel %vm520, %v468, 0.0
  %v823 = vadd.f32 %v821, %v822
  %v824 = vsel %vm520, %v461, 0.0
  %v825 = vsel %vm520, %v469, 0.0
  %v826 = vadd.f32 %v824, %v825
  %v827 = vsel %vm520, %v462, 0.0
  %v828 = vsel %vm520, %v470, 0.0
  %v829 = vadd.f32 %v827, %v828
  %v830 = vsel %vm520, %v463, 0.0
  %v831 = vsel %vm520, %v471, 0.0
  %v832 = vadd.f32 %v830, %v831
  %v833 = vsel %vm520, %v472, 0.0
  %v834 = vsel %vm520, %v480, 0.0
  %v835 = vadd.f32 %v833, %v834
  %v836 = vsel %vm520, %v473, 0.0
  %v837 = vsel %vm520, %v481, 0.0
  %v838 = vadd.f32 %v836, %v837
  %v839 = vsel %vm520, %v474, 0.0
  %v840 = vsel %vm520, %v482, 0.0
  %v841 = vadd.f32 %v839, %v840
  %v842 = vsel %vm520, %v475, 0.0
  %v843 = vsel %vm520, %v483, 0.0
  %v844 = vadd.f32 %v842, %v843
  %v845 = vsel %vm520, %v476, 0.0
  %v846 = vsel %vm520, %v484, 0.0
  %v847 = vadd.f32 %v845, %v846
  %v848 = vsel %vm520, %v477, 0.0
  %v849 = vsel %vm520, %v485, 0.0
  %v850 = vadd.f32 %v848, %v849
  %v851 = vsel %vm520, %v478, 0.0
  %v852 = vsel %vm520, %v486, 0.0
  %v853 = vadd.f32 %v851, %v852
  %v854 = vsel %vm520, %v479, 0.0
  %v855 = vsel %vm520, %v487, 0.0
  %v856 = vadd.f32 %v854, %v855
  %v857 = vsel %vm520, %v488, 0.0
  %v858 = vsel %vm520, %v496, 0.0
  %v859 = vadd.f32 %v857, %v858
  %v860 = vsel %vm520, %v489, 0.0
  %v861 = vsel %vm520, %v497, 0.0
  %v862 = vadd.f32 %v860, %v861
  %v863 = vsel %vm520, %v490, 0.0
  %v864 = vsel %vm520, %v498, 0.0
  %v865 = vadd.f32 %v863, %v864
  %v866 = vsel %vm520, %v491, 0.0
  %v867 = vsel %vm520, %v499, 0.0
  %v868 = vadd.f32 %v866, %v867
  %v869 = vsel %vm520, %v492, 0.0
  %v870 = vsel %vm520, %v500, 0.0
  %v871 = vadd.f32 %v869, %v870
  %v872 = vsel %vm520, %v493, 0.0
  %v873 = vsel %vm520, %v501, 0.0
  %v874 = vadd.f32 %v872, %v873
  %v875 = vsel %vm520, %v494, 0.0
  %v876 = vsel %vm520, %v502, 0.0
  %v877 = vadd.f32 %v875, %v876
  %v878 = vsel %vm520, %v495, 0.0
  %v879 = vsel %vm520, %v503, 0.0
  %v880 = vadd.f32 %v878, %v879
  %v881 = vsel %vm520, %v504, 0.0
  %v882 = vsel %vm520, %v512, 0.0
  %v883 = vadd.f32 %v881, %v882
  %v884 = vsel %vm520, %v505, 0.0
  %v885 = vsel %vm520, %v513, 0.0
  %v886 = vadd.f32 %v884, %v885
  %v887 = vsel %vm520, %v506, 0.0
  %v888 = vsel %vm520, %v514, 0.0
  %v889 = vadd.f32 %v887, %v888
  %v890 = vsel %vm520, %v507, 0.0
  %v891 = vsel %vm520, %v515, 0.0
  %v892 = vadd.f32 %v890, %v891
  %v893 = vsel %vm520, %v508, 0.0
  %v894 = vsel %vm520, %v516, 0.0
  %v895 = vadd.f32 %v893, %v894
  %v896 = vsel %vm520, %v509, 0.0
  %v897 = vsel %vm520, %v517, 0.0
  %v898 = vadd.f32 %v896, %v897
  %v899 = vsel %vm520, %v510, 0.0
  %v900 = vsel %vm520, %v518, 0.0
  %v901 = vadd.f32 %v899, %v900
  %v902 = vsel %vm520, %v511, 0.0
  %v903 = vsel %vm520, %v519, 0.0
  %v904 = vadd.f32 %v902, %v903
  %v905 = vsel %vm520, %v523, 0.0
  %v906 = vrot.slane %v905, 4
  %v907 = vadd.f32 %v905, %v906
  %v908 = vrot.slane %v907, 2
  %v909 = vadd.f32 %v907, %v908
  %v910 = vrot.slane %v909, 1
  %v911 = vadd.f32 %v909, %v910
  %v912 = vsel %vm520, %v526, 0.0
  %v913 = vrot.slane %v912, 4
  %v914 = vadd.f32 %v912, %v913
  %v915 = vrot.slane %v914, 2
  %v916 = vadd.f32 %v914, %v915
  %v917 = vrot.slane %v916, 1
  %v918 = vadd.f32 %v916, %v917
  %v919 = vsel %vm520, %v529, 0.0
  %v920 = vrot.slane %v919, 4
  %v921 = vadd.f32 %v919, %v920
  %v922 = vrot.slane %v921, 2
  %v923 = vadd.f32 %v921, %v922
  %v924 = vrot.slane %v923, 1
  %v925 = vadd.f32 %v923, %v924
  %v926 = vsel %vm520, %v532, 0.0
  %v927 = vrot.slane %v926, 4
  %v928 = vadd.f32 %v926, %v927
  %v929 = vrot.slane %v928, 2
  %v930 = vadd.f32 %v928, %v929
  %v931 = vrot.slane %v930, 1
  %v932 = vadd.f32 %v930, %v931
  %v933 = vsel %vm520, %v535, 0.0
  %v934 = vrot.slane %v933, 4
  %v935 = vadd.f32 %v933, %v934
  %v936 = vrot.slane %v935, 2
  %v937 = vadd.f32 %v935, %v936
  %v938 = vrot.slane %v937, 1
  %v939 = vadd.f32 %v937, %v938
  %v940 = vsel %vm520, %v538, 0.0
  %v941 = vrot.slane %v940, 4
  %v942 = vadd.f32 %v940, %v941
  %v943 = vrot.slane %v942, 2
  %v944 = vadd.f32 %v942, %v943
  %v945 = vrot.slane %v944, 1
  %v946 = vadd.f32 %v944, %v945
  %v947 = vsel %vm520, %v541, 0.0
  %v948 = vrot.slane %v947, 4
  %v949 = vadd.f32 %v947, %v948
  %v950 = vrot.slane %v949, 2
  %v951 = vadd.f32 %v949, %v950
  %v952 = vrot.slane %v951, 1
  %v953 = vadd.f32 %v951, %v952
  %v954 = vsel %vm520, %v544, 0.0
  %v955 = vrot.slane %v954, 4
  %v956 = vadd.f32 %v954, %v955
  %v957 = vrot.slane %v956, 2
  %v958 = vadd.f32 %v956, %v957
  %v959 = vrot.slane %v958, 1
  %v960 = vadd.f32 %v958, %v959
  %v961 = vsel %vm520, %v547, 0.0
  %v962 = vrot.slane %v961, 4
  %v963 = vadd.f32 %v961, %v962
  %v964 = vrot.slane %v963, 2
  %v965 = vadd.f32 %v963, %v964
  %v966 = vrot.slane %v965, 1
  %v967 = vadd.f32 %v965, %v966
  %v968 = vsel %vm520, %v550, 0.0
  %v969 = vrot.slane %v968, 4
  %v970 = vadd.f32 %v968, %v969
  %v971 = vrot.slane %v970, 2
  %v972 = vadd.f32 %v970, %v971
  %v973 = vrot.slane %v972, 1
  %v974 = vadd.f32 %v972, %v973
  %v975 = vsel %vm520, %v553, 0.0
  %v976 = vrot.slane %v975, 4
  %v977 = vadd.f32 %v975, %v976
  %v978 = vrot.slane %v977, 2
  %v979 = vadd.f32 %v977, %v978
  %v980 = vrot.slane %v979, 1
  %v981 = vadd.f32 %v979, %v980
  %v982 = vsel %vm520, %v556, 0.0
  %v983 = vrot.slane %v982, 4
  %v984 = vadd.f32 %v982, %v983
  %v985 = vrot.slane %v984, 2
  %v986 = vadd.f32 %v984, %v985
  %v987 = vrot.slane %v986, 1
  %v988 = vadd.f32 %v986, %v987
  %v989 = vsel %vm520, %v559, 0.0
  %v990 = vrot.slane %v989, 4
  %v991 = vadd.f32 %v989, %v990
  %v992 = vrot.slane %v991, 2
  %v993 = vadd.f32 %v991, %v992
  %v994 = vrot.slane %v993, 1
  %v995 = vadd.f32 %v993, %v994
  %v996 = vsel %vm520, %v562, 0.0
  %v997 = vrot.slane %v996, 4
  %v998 = vadd.f32 %v996, %v997
  %v999 = vrot.slane %v998, 2
  %v1000 = vadd.f32 %v998, %v999
  %v1001 = vrot.slane %v1000, 1
  %v1002 = vadd.f32 %v1000, %v1001
  %v1003 = vsel %vm520, %v565, 0.0
  %v1004 = vrot.slane %v1003, 4
  %v1005 = vadd.f32 %v1003, %v1004
  %v1006 = vrot.slane %v1005, 2
  %v1007 = vadd.f32 %v1005, %v1006
  %v1008 = vrot.slane %v1007, 1
  %v1009 = vadd.f32 %v1007, %v1008
  %v1010 = vsel %vm520, %v568, 0.0
  %v1011 = vrot.slane %v1010, 4
  %v1012 = vadd.f32 %v1010, %v1011
  %v1013 = vrot.slane %v1012, 2
  %v1014 = vadd.f32 %v1012, %v1013
  %v1015 = vrot.slane %v1014, 1
  %v1016 = vadd.f32 %v1014, %v1015
  %v1017 = vsel %vm520, %v571, 0.0
  %v1018 = vrot.slane %v1017, 4
  %v1019 = vadd.f32 %v1017, %v1018
  %v1020 = vrot.slane %v1019, 2
  %v1021 = vadd.f32 %v1019, %v1020
  %v1022 = vrot.slane %v1021, 1
  %v1023 = vadd.f32 %v1021, %v1022
  %v1024 = vsel %vm520, %v574, 0.0
  %v1025 = vrot.slane %v1024, 4
  %v1026 = vadd.f32 %v1024, %v1025
  %v1027 = vrot.slane %v1026, 2
  %v1028 = vadd.f32 %v1026, %v1027
  %v1029 = vrot.slane %v1028, 1
  %v1030 = vadd.f32 %v1028, %v1029
  %v1031 = vsel %vm520, %v577, 0.0
  %v1032 = vrot.slane %v1031, 4
  %v1033 = vadd.f32 %v1031, %v1032
  %v1034 = vrot.slane %v1033, 2
  %v1035 = vadd.f32 %v1033, %v1034
  %v1036 = vrot.slane %v1035, 1
  %v1037 = vadd.f32 %v1035, %v1036
  %v1038 = vsel %vm520, %v580, 0.0
  %v1039 = vrot.slane %v1038, 4
  %v1040 = vadd.f32 %v1038, %v1039
  %v1041 = vrot.slane %v1040, 2
  %v1042 = vadd.f32 %v1040, %v1041
  %v1043 = vrot.slane %v1042, 1
  %v1044 = vadd.f32 %v1042, %v1043
  %v1045 = vsel %vm520, %v583, 0.0
  %v1046 = vrot.slane %v1045, 4
  %v1047 = vadd.f32 %v1045, %v1046
  %v1048 = vrot.slane %v1047, 2
  %v1049 = vadd.f32 %v1047, %v1048
  %v1050 = vrot.slane %v1049, 1
  %v1051 = vadd.f32 %v1049, %v1050
  %v1052 = vsel %vm520, %v586, 0.0
  %v1053 = vrot.slane %v1052, 4
  %v1054 = vadd.f32 %v1052, %v1053
  %v1055 = vrot.slane %v1054, 2
  %v1056 = vadd.f32 %v1054, %v1055
  %v1057 = vrot.slane %v1056, 1
  %v1058 = vadd.f32 %v1056, %v1057
  %v1059 = vsel %vm520, %v589, 0.0
  %v1060 = vrot.slane %v1059, 4
  %v1061 = vadd.f32 %v1059, %v1060
  %v1062 = vrot.slane %v1061, 2
  %v1063 = vadd.f32 %v1061, %v1062
  %v1064 = vrot.slane %v1063, 1
  %v1065 = vadd.f32 %v1063, %v1064
  %v1066 = vsel %vm520, %v592, 0.0
  %v1067 = vrot.slane %v1066, 4
  %v1068 = vadd.f32 %v1066, %v1067
  %v1069 = vrot.slane %v1068, 2
  %v1070 = vadd.f32 %v1068, %v1069
  %v1071 = vrot.slane %v1070, 1
  %v1072 = vadd.f32 %v1070, %v1071
  %v1073 = vsel %vm520, %v595, 0.0
  %v1074 = vrot.slane %v1073, 4
  %v1075 = vadd.f32 %v1073, %v1074
  %v1076 = vrot.slane %v1075, 2
  %v1077 = vadd.f32 %v1075, %v1076
  %v1078 = vrot.slane %v1077, 1
  %v1079 = vadd.f32 %v1077, %v1078
  %v1080 = vsel %vm520, %v598, 0.0
  %v1081 = vrot.slane %v1080, 4
  %v1082 = vadd.f32 %v1080, %v1081
  %v1083 = vrot.slane %v1082, 2
  %v1084 = vadd.f32 %v1082, %v1083
  %v1085 = vrot.slane %v1084, 1
  %v1086 = vadd.f32 %v1084, %v1085
  %v1087 = vsel %vm520, %v601, 0.0
  %v1088 = vrot.slane %v1087, 4
  %v1089 = vadd.f32 %v1087, %v1088
  %v1090 = vrot.slane %v1089, 2
  %v1091 = vadd.f32 %v1089, %v1090
  %v1092 = vrot.slane %v1091, 1
  %v1093 = vadd.f32 %v1091, %v1092
  %v1094 = vsel %vm520, %v604, 0.0
  %v1095 = vrot.slane %v1094, 4
  %v1096 = vadd.f32 %v1094, %v1095
  %v1097 = vrot.slane %v1096, 2
  %v1098 = vadd.f32 %v1096, %v1097
  %v1099 = vrot.slane %v1098, 1
  %v1100 = vadd.f32 %v1098, %v1099
  %v1101 = vsel %vm520, %v607, 0.0
  %v1102 = vrot.slane %v1101, 4
  %v1103 = vadd.f32 %v1101, %v1102
  %v1104 = vrot.slane %v1103, 2
  %v1105 = vadd.f32 %v1103, %v1104
  %v1106 = vrot.slane %v1105, 1
  %v1107 = vadd.f32 %v1105, %v1106
  %v1108 = vsel %vm520, %v610, 0.0
  %v1109 = vrot.slane %v1108, 4
  %v1110 = vadd.f32 %v1108, %v1109
  %v1111 = vrot.slane %v1110, 2
  %v1112 = vadd.f32 %v1110, %v1111
  %v1113 = vrot.slane %v1112, 1
  %v1114 = vadd.f32 %v1112, %v1113
  %v1115 = vsel %vm520, %v613, 0.0
  %v1116 = vrot.slane %v1115, 4
  %v1117 = vadd.f32 %v1115, %v1116
  %v1118 = vrot.slane %v1117, 2
  %v1119 = vadd.f32 %v1117, %v1118
  %v1120 = vrot.slane %v1119, 1
  %v1121 = vadd.f32 %v1119, %v1120
  %v1122 = vsel %vm520, %v616, 0.0
  %v1123 = vrot.slane %v1122, 4
  %v1124 = vadd.f32 %v1122, %v1123
  %v1125 = vrot.slane %v1124, 2
  %v1126 = vadd.f32 %v1124, %v1125
  %v1127 = vrot.slane %v1126, 1
  %v1128 = vadd.f32 %v1126, %v1127
  %v1129 = vsel %vm520, %v619, 0.0
  %v1130 = vrot.slane %v1129, 4
  %v1131 = vadd.f32 %v1129, %v1130
  %v1132 = vrot.slane %v1131, 2
  %v1133 = vadd.f32 %v1131, %v1132
  %v1134 = vrot.slane %v1133, 1
  %v1135 = vadd.f32 %v1133, %v1134
  %v1136 = vsel %vm520, %v622, 0.0
  %v1137 = vrot.slane %v1136, 4
  %v1138 = vadd.f32 %v1136, %v1137
  %v1139 = vrot.slane %v1138, 2
  %v1140 = vadd.f32 %v1138, %v1139
  %v1141 = vrot.slane %v1140, 1
  %v1142 = vadd.f32 %v1140, %v1141
  %v1143 = vsel %vm520, %v625, 0.0
  %v1144 = vrot.slane %v1143, 4
  %v1145 = vadd.f32 %v1143, %v1144
  %v1146 = vrot.slane %v1145, 2
  %v1147 = vadd.f32 %v1145, %v1146
  %v1148 = vrot.slane %v1147, 1
  %v1149 = vadd.f32 %v1147, %v1148
  %v1150 = vsel %vm520, %v628, 0.0
  %v1151 = vrot.slane %v1150, 4
  %v1152 = vadd.f32 %v1150, %v1151
  %v1153 = vrot.slane %v1152, 2
  %v1154 = vadd.f32 %v1152, %v1153
  %v1155 = vrot.slane %v1154, 1
  %v1156 = vadd.f32 %v1154, %v1155
  %v1157 = vsel %vm520, %v631, 0.0
  %v1158 = vrot.slane %v1157, 4
  %v1159 = vadd.f32 %v1157, %v1158
  %v1160 = vrot.slane %v1159, 2
  %v1161 = vadd.f32 %v1159, %v1160
  %v1162 = vrot.slane %v1161, 1
  %v1163 = vadd.f32 %v1161, %v1162
  %v1164 = vsel %vm520, %v634, 0.0
  %v1165 = vrot.slane %v1164, 4
  %v1166 = vadd.f32 %v1164, %v1165
  %v1167 = vrot.slane %v1166, 2
  %v1168 = vadd.f32 %v1166, %v1167
  %v1169 = vrot.slane %v1168, 1
  %v1170 = vadd.f32 %v1168, %v1169
  %v1171 = vsel %vm520, %v637, 0.0
  %v1172 = vrot.slane %v1171, 4
  %v1173 = vadd.f32 %v1171, %v1172
  %v1174 = vrot.slane %v1173, 2
  %v1175 = vadd.f32 %v1173, %v1174
  %v1176 = vrot.slane %v1175, 1
  %v1177 = vadd.f32 %v1175, %v1176
  %v1178 = vsel %vm520, %v640, 0.0
  %v1179 = vrot.slane %v1178, 4
  %v1180 = vadd.f32 %v1178, %v1179
  %v1181 = vrot.slane %v1180, 2
  %v1182 = vadd.f32 %v1180, %v1181
  %v1183 = vrot.slane %v1182, 1
  %v1184 = vadd.f32 %v1182, %v1183
  %v1185 = vsel %vm520, %v643, 0.0
  %v1186 = vrot.slane %v1185, 4
  %v1187 = vadd.f32 %v1185, %v1186
  %v1188 = vrot.slane %v1187, 2
  %v1189 = vadd.f32 %v1187, %v1188
  %v1190 = vrot.slane %v1189, 1
  %v1191 = vadd.f32 %v1189, %v1190
  %v1192 = vsel %vm520, %v646, 0.0
  %v1193 = vrot.slane %v1192, 4
  %v1194 = vadd.f32 %v1192, %v1193
  %v1195 = vrot.slane %v1194, 2
  %v1196 = vadd.f32 %v1194, %v1195
  %v1197 = vrot.slane %v1196, 1
  %v1198 = vadd.f32 %v1196, %v1197
  %v1199 = vsel %vm520, %v649, 0.0
  %v1200 = vrot.slane %v1199, 4
  %v1201 = vadd.f32 %v1199, %v1200
  %v1202 = vrot.slane %v1201, 2
  %v1203 = vadd.f32 %v1201, %v1202
  %v1204 = vrot.slane %v1203, 1
  %v1205 = vadd.f32 %v1203, %v1204
  %v1206 = vsel %vm520, %v652, 0.0
  %v1207 = vrot.slane %v1206, 4
  %v1208 = vadd.f32 %v1206, %v1207
  %v1209 = vrot.slane %v1208, 2
  %v1210 = vadd.f32 %v1208, %v1209
  %v1211 = vrot.slane %v1210, 1
  %v1212 = vadd.f32 %v1210, %v1211
  %v1213 = vsel %vm520, %v655, 0.0
  %v1214 = vrot.slane %v1213, 4
  %v1215 = vadd.f32 %v1213, %v1214
  %v1216 = vrot.slane %v1215, 2
  %v1217 = vadd.f32 %v1215, %v1216
  %v1218 = vrot.slane %v1217, 1
  %v1219 = vadd.f32 %v1217, %v1218
  %v1220 = vsel %vm520, %v658, 0.0
  %v1221 = vrot.slane %v1220, 4
  %v1222 = vadd.f32 %v1220, %v1221
  %v1223 = vrot.slane %v1222, 2
  %v1224 = vadd.f32 %v1222, %v1223
  %v1225 = vrot.slane %v1224, 1
  %v1226 = vadd.f32 %v1224, %v1225
  %v1227 = vsel %vm520, %v661, 0.0
  %v1228 = vrot.slane %v1227, 4
  %v1229 = vadd.f32 %v1227, %v1228
  %v1230 = vrot.slane %v1229, 2
  %v1231 = vadd.f32 %v1229, %v1230
  %v1232 = vrot.slane %v1231, 1
  %v1233 = vadd.f32 %v1231, %v1232
  %v1234 = vsel %vm520, %v664, 0.0
  %v1235 = vrot.slane %v1234, 4
  %v1236 = vadd.f32 %v1234, %v1235
  %v1237 = vrot.slane %v1236, 2
  %v1238 = vadd.f32 %v1236, %v1237
  %v1239 = vrot.slane %v1238, 1
  %v1240 = vadd.f32 %v1238, %v1239
  %v1241 = vsel %vm520, %v667, 0.0
  %v1242 = vrot.slane %v1241, 4
  %v1243 = vadd.f32 %v1241, %v1242
  %v1244 = vrot.slane %v1243, 2
  %v1245 = vadd.f32 %v1243, %v1244
  %v1246 = vrot.slane %v1245, 1
  %v1247 = vadd.f32 %v1245, %v1246
  %v1248 = vsel %vm520, %v670, 0.0
  %v1249 = vrot.slane %v1248, 4
  %v1250 = vadd.f32 %v1248, %v1249
  %v1251 = vrot.slane %v1250, 2
  %v1252 = vadd.f32 %v1250, %v1251
  %v1253 = vrot.slane %v1252, 1
  %v1254 = vadd.f32 %v1252, %v1253
  %v1255 = vsel %vm520, %v673, 0.0
  %v1256 = vrot.slane %v1255, 4
  %v1257 = vadd.f32 %v1255, %v1256
  %v1258 = vrot.slane %v1257, 2
  %v1259 = vadd.f32 %v1257, %v1258
  %v1260 = vrot.slane %v1259, 1
  %v1261 = vadd.f32 %v1259, %v1260
  %v1262 = vsel %vm520, %v676, 0.0
  %v1263 = vrot.slane %v1262, 4
  %v1264 = vadd.f32 %v1262, %v1263
  %v1265 = vrot.slane %v1264, 2
  %v1266 = vadd.f32 %v1264, %v1265
  %v1267 = vrot.slane %v1266, 1
  %v1268 = vadd.f32 %v1266, %v1267
  %v1269 = vsel %vm520, %v679, 0.0
  %v1270 = vrot.slane %v1269, 4
  %v1271 = vadd.f32 %v1269, %v1270
  %v1272 = vrot.slane %v1271, 2
  %v1273 = vadd.f32 %v1271, %v1272
  %v1274 = vrot.slane %v1273, 1
  %v1275 = vadd.f32 %v1273, %v1274
  %v1276 = vsel %vm520, %v682, 0.0
  %v1277 = vrot.slane %v1276, 4
  %v1278 = vadd.f32 %v1276, %v1277
  %v1279 = vrot.slane %v1278, 2
  %v1280 = vadd.f32 %v1278, %v1279
  %v1281 = vrot.slane %v1280, 1
  %v1282 = vadd.f32 %v1280, %v1281
  %v1283 = vsel %vm520, %v685, 0.0
  %v1284 = vrot.slane %v1283, 4
  %v1285 = vadd.f32 %v1283, %v1284
  %v1286 = vrot.slane %v1285, 2
  %v1287 = vadd.f32 %v1285, %v1286
  %v1288 = vrot.slane %v1287, 1
  %v1289 = vadd.f32 %v1287, %v1288
  %v1290 = vsel %vm520, %v688, 0.0
  %v1291 = vrot.slane %v1290, 4
  %v1292 = vadd.f32 %v1290, %v1291
  %v1293 = vrot.slane %v1292, 2
  %v1294 = vadd.f32 %v1292, %v1293
  %v1295 = vrot.slane %v1294, 1
  %v1296 = vadd.f32 %v1294, %v1295
  %v1297 = vsel %vm520, %v691, 0.0
  %v1298 = vrot.slane %v1297, 4
  %v1299 = vadd.f32 %v1297, %v1298
  %v1300 = vrot.slane %v1299, 2
  %v1301 = vadd.f32 %v1299, %v1300
  %v1302 = vrot.slane %v1301, 1
  %v1303 = vadd.f32 %v1301, %v1302
  %v1304 = vsel %vm520, %v694, 0.0
  %v1305 = vrot.slane %v1304, 4
  %v1306 = vadd.f32 %v1304, %v1305
  %v1307 = vrot.slane %v1306, 2
  %v1308 = vadd.f32 %v1306, %v1307
  %v1309 = vrot.slane %v1308, 1
  %v1310 = vadd.f32 %v1308, %v1309
  %v1311 = vsel %vm520, %v697, 0.0
  %v1312 = vrot.slane %v1311, 4
  %v1313 = vadd.f32 %v1311, %v1312
  %v1314 = vrot.slane %v1313, 2
  %v1315 = vadd.f32 %v1313, %v1314
  %v1316 = vrot.slane %v1315, 1
  %v1317 = vadd.f32 %v1315, %v1316
  %v1318 = vsel %vm520, %v700, 0.0
  %v1319 = vrot.slane %v1318, 4
  %v1320 = vadd.f32 %v1318, %v1319
  %v1321 = vrot.slane %v1320, 2
  %v1322 = vadd.f32 %v1320, %v1321
  %v1323 = vrot.slane %v1322, 1
  %v1324 = vadd.f32 %v1322, %v1323
  %v1325 = vsel %vm520, %v703, 0.0
  %v1326 = vrot.slane %v1325, 4
  %v1327 = vadd.f32 %v1325, %v1326
  %v1328 = vrot.slane %v1327, 2
  %v1329 = vadd.f32 %v1327, %v1328
  %v1330 = vrot.slane %v1329, 1
  %v1331 = vadd.f32 %v1329, %v1330
  %v1332 = vsel %vm520, %v706, 0.0
  %v1333 = vrot.slane %v1332, 4
  %v1334 = vadd.f32 %v1332, %v1333
  %v1335 = vrot.slane %v1334, 2
  %v1336 = vadd.f32 %v1334, %v1335
  %v1337 = vrot.slane %v1336, 1
  %v1338 = vadd.f32 %v1336, %v1337
  %v1339 = vsel %vm520, %v709, 0.0
  %v1340 = vrot.slane %v1339, 4
  %v1341 = vadd.f32 %v1339, %v1340
  %v1342 = vrot.slane %v1341, 2
  %v1343 = vadd.f32 %v1341, %v1342
  %v1344 = vrot.slane %v1343, 1
  %v1345 = vadd.f32 %v1343, %v1344
  %v1346 = vsel %vm520, %v712, 0.0
  %v1347 = vrot.slane %v1346, 4
  %v1348 = vadd.f32 %v1346, %v1347
  %v1349 = vrot.slane %v1348, 2
  %v1350 = vadd.f32 %v1348, %v1349
  %v1351 = vrot.slane %v1350, 1
  %v1352 = vadd.f32 %v1350, %v1351
  %v1353 = vsel %vm520, %v715, 0.0
  %v1354 = vrot.slane %v1353, 4
  %v1355 = vadd.f32 %v1353, %v1354
  %v1356 = vrot.slane %v1355, 2
  %v1357 = vadd.f32 %v1355, %v1356
  %v1358 = vrot.slane %v1357, 1
  %v1359 = vadd.f32 %v1357, %v1358
  %v1360 = vsel %vm520, %v718, 0.0
  %v1361 = vrot.slane %v1360, 4
  %v1362 = vadd.f32 %v1360, %v1361
  %v1363 = vrot.slane %v1362, 2
  %v1364 = vadd.f32 %v1362, %v1363
  %v1365 = vrot.slane %v1364, 1
  %v1366 = vadd.f32 %v1364, %v1365
  %v1367 = vsel %vm520, %v721, 0.0
  %v1368 = vrot.slane %v1367, 4
  %v1369 = vadd.f32 %v1367, %v1368
  %v1370 = vrot.slane %v1369, 2
  %v1371 = vadd.f32 %v1369, %v1370
  %v1372 = vrot.slane %v1371, 1
  %v1373 = vadd.f32 %v1371, %v1372
  %v1374 = vsel %vm520, %v724, 0.0
  %v1375 = vrot.slane %v1374, 4
  %v1376 = vadd.f32 %v1374, %v1375
  %v1377 = vrot.slane %v1376, 2
  %v1378 = vadd.f32 %v1376, %v1377
  %v1379 = vrot.slane %v1378, 1
  %v1380 = vadd.f32 %v1378, %v1379
  %v1381 = vsel %vm520, %v727, 0.0
  %v1382 = vrot.slane %v1381, 4
  %v1383 = vadd.f32 %v1381, %v1382
  %v1384 = vrot.slane %v1383, 2
  %v1385 = vadd.f32 %v1383, %v1384
  %v1386 = vrot.slane %v1385, 1
  %v1387 = vadd.f32 %v1385, %v1386
  %v1388 = vsel %vm520, %v730, 0.0
  %v1389 = vrot.slane %v1388, 4
  %v1390 = vadd.f32 %v1388, %v1389
  %v1391 = vrot.slane %v1390, 2
  %v1392 = vadd.f32 %v1390, %v1391
  %v1393 = vrot.slane %v1392, 1
  %v1394 = vadd.f32 %v1392, %v1393
  %v1395 = vsel %vm520, %v733, 0.0
  %v1396 = vrot.slane %v1395, 4
  %v1397 = vadd.f32 %v1395, %v1396
  %v1398 = vrot.slane %v1397, 2
  %v1399 = vadd.f32 %v1397, %v1398
  %v1400 = vrot.slane %v1399, 1
  %v1401 = vadd.f32 %v1399, %v1400
  %v1402 = vsel %vm520, %v736, 0.0
  %v1403 = vrot.slane %v1402, 4
  %v1404 = vadd.f32 %v1402, %v1403
  %v1405 = vrot.slane %v1404, 2
  %v1406 = vadd.f32 %v1404, %v1405
  %v1407 = vrot.slane %v1406, 1
  %v1408 = vadd.f32 %v1406, %v1407
  %v1409 = vsel %vm520, %v739, 0.0
  %v1410 = vrot.slane %v1409, 4
  %v1411 = vadd.f32 %v1409, %v1410
  %v1412 = vrot.slane %v1411, 2
  %v1413 = vadd.f32 %v1411, %v1412
  %v1414 = vrot.slane %v1413, 1
  %v1415 = vadd.f32 %v1413, %v1414
  %v1416 = vsel %vm520, %v742, 0.0
  %v1417 = vrot.slane %v1416, 4
  %v1418 = vadd.f32 %v1416, %v1417
  %v1419 = vrot.slane %v1418, 2
  %v1420 = vadd.f32 %v1418, %v1419
  %v1421 = vrot.slane %v1420, 1
  %v1422 = vadd.f32 %v1420, %v1421
  %v1423 = vsel %vm520, %v745, 0.0
  %v1424 = vrot.slane %v1423, 4
  %v1425 = vadd.f32 %v1423, %v1424
  %v1426 = vrot.slane %v1425, 2
  %v1427 = vadd.f32 %v1425, %v1426
  %v1428 = vrot.slane %v1427, 1
  %v1429 = vadd.f32 %v1427, %v1428
  %v1430 = vsel %vm520, %v748, 0.0
  %v1431 = vrot.slane %v1430, 4
  %v1432 = vadd.f32 %v1430, %v1431
  %v1433 = vrot.slane %v1432, 2
  %v1434 = vadd.f32 %v1432, %v1433
  %v1435 = vrot.slane %v1434, 1
  %v1436 = vadd.f32 %v1434, %v1435
  %v1437 = vsel %vm520, %v751, 0.0
  %v1438 = vrot.slane %v1437, 4
  %v1439 = vadd.f32 %v1437, %v1438
  %v1440 = vrot.slane %v1439, 2
  %v1441 = vadd.f32 %v1439, %v1440
  %v1442 = vrot.slane %v1441, 1
  %v1443 = vadd.f32 %v1441, %v1442
  %v1444 = vsel %vm520, %v754, 0.0
  %v1445 = vrot.slane %v1444, 4
  %v1446 = vadd.f32 %v1444, %v1445
  %v1447 = vrot.slane %v1446, 2
  %v1448 = vadd.f32 %v1446, %v1447
  %v1449 = vrot.slane %v1448, 1
  %v1450 = vadd.f32 %v1448, %v1449
  %v1451 = vsel %vm520, %v757, 0.0
  %v1452 = vrot.slane %v1451, 4
  %v1453 = vadd.f32 %v1451, %v1452
  %v1454 = vrot.slane %v1453, 2
  %v1455 = vadd.f32 %v1453, %v1454
  %v1456 = vrot.slane %v1455, 1
  %v1457 = vadd.f32 %v1455, %v1456
  %v1458 = vsel %vm520, %v760, 0.0
  %v1459 = vrot.slane %v1458, 4
  %v1460 = vadd.f32 %v1458, %v1459
  %v1461 = vrot.slane %v1460, 2
  %v1462 = vadd.f32 %v1460, %v1461
  %v1463 = vrot.slane %v1462, 1
  %v1464 = vadd.f32 %v1462, %v1463
  %v1465 = vsel %vm520, %v763, 0.0
  %v1466 = vrot.slane %v1465, 4
  %v1467 = vadd.f32 %v1465, %v1466
  %v1468 = vrot.slane %v1467, 2
  %v1469 = vadd.f32 %v1467, %v1468
  %v1470 = vrot.slane %v1469, 1
  %v1471 = vadd.f32 %v1469, %v1470
  %v1472 = vsel %vm520, %v766, 0.0
  %v1473 = vrot.slane %v1472, 4
  %v1474 = vadd.f32 %v1472, %v1473
  %v1475 = vrot.slane %v1474, 2
  %v1476 = vadd.f32 %v1474, %v1475
  %v1477 = vrot.slane %v1476, 1
  %v1478 = vadd.f32 %v1476, %v1477
  %v1479 = vsel %vm520, %v769, 0.0
  %v1480 = vrot.slane %v1479, 4
  %v1481 = vadd.f32 %v1479, %v1480
  %v1482 = vrot.slane %v1481, 2
  %v1483 = vadd.f32 %v1481, %v1482
  %v1484 = vrot.slane %v1483, 1
  %v1485 = vadd.f32 %v1483, %v1484
  %v1486 = vsel %vm520, %v772, 0.0
  %v1487 = vrot.slane %v1486, 4
  %v1488 = vadd.f32 %v1486, %v1487
  %v1489 = vrot.slane %v1488, 2
  %v1490 = vadd.f32 %v1488, %v1489
  %v1491 = vrot.slane %v1490, 1
  %v1492 = vadd.f32 %v1490, %v1491
  %v1493 = vsel %vm520, %v775, 0.0
  %v1494 = vrot.slane %v1493, 4
  %v1495 = vadd.f32 %v1493, %v1494
  %v1496 = vrot.slane %v1495, 2
  %v1497 = vadd.f32 %v1495, %v1496
  %v1498 = vrot.slane %v1497, 1
  %v1499 = vadd.f32 %v1497, %v1498
  %v1500 = vsel %vm520, %v778, 0.0
  %v1501 = vrot.slane %v1500, 4
  %v1502 = vadd.f32 %v1500, %v1501
  %v1503 = vrot.slane %v1502, 2
  %v1504 = vadd.f32 %v1502, %v1503
  %v1505 = vrot.slane %v1504, 1
  %v1506 = vadd.f32 %v1504, %v1505
  %v1507 = vsel %vm520, %v781, 0.0
  %v1508 = vrot.slane %v1507, 4
  %v1509 = vadd.f32 %v1507, %v1508
  %v1510 = vrot.slane %v1509, 2
  %v1511 = vadd.f32 %v1509, %v1510
  %v1512 = vrot.slane %v1511, 1
  %v1513 = vadd.f32 %v1511, %v1512
  %v1514 = vsel %vm520, %v784, 0.0
  %v1515 = vrot.slane %v1514, 4
  %v1516 = vadd.f32 %v1514, %v1515
  %v1517 = vrot.slane %v1516, 2
  %v1518 = vadd.f32 %v1516, %v1517
  %v1519 = vrot.slane %v1518, 1
  %v1520 = vadd.f32 %v1518, %v1519
  %v1521 = vsel %vm520, %v787, 0.0
  %v1522 = vrot.slane %v1521, 4
  %v1523 = vadd.f32 %v1521, %v1522
  %v1524 = vrot.slane %v1523, 2
  %v1525 = vadd.f32 %v1523, %v1524
  %v1526 = vrot.slane %v1525, 1
  %v1527 = vadd.f32 %v1525, %v1526
  %v1528 = vsel %vm520, %v790, 0.0
  %v1529 = vrot.slane %v1528, 4
  %v1530 = vadd.f32 %v1528, %v1529
  %v1531 = vrot.slane %v1530, 2
  %v1532 = vadd.f32 %v1530, %v1531
  %v1533 = vrot.slane %v1532, 1
  %v1534 = vadd.f32 %v1532, %v1533
  %v1535 = vsel %vm520, %v793, 0.0
  %v1536 = vrot.slane %v1535, 4
  %v1537 = vadd.f32 %v1535, %v1536
  %v1538 = vrot.slane %v1537, 2
  %v1539 = vadd.f32 %v1537, %v1538
  %v1540 = vrot.slane %v1539, 1
  %v1541 = vadd.f32 %v1539, %v1540
  %v1542 = vsel %vm520, %v796, 0.0
  %v1543 = vrot.slane %v1542, 4
  %v1544 = vadd.f32 %v1542, %v1543
  %v1545 = vrot.slane %v1544, 2
  %v1546 = vadd.f32 %v1544, %v1545
  %v1547 = vrot.slane %v1546, 1
  %v1548 = vadd.f32 %v1546, %v1547
  %v1549 = vsel %vm520, %v799, 0.0
  %v1550 = vrot.slane %v1549, 4
  %v1551 = vadd.f32 %v1549, %v1550
  %v1552 = vrot.slane %v1551, 2
  %v1553 = vadd.f32 %v1551, %v1552
  %v1554 = vrot.slane %v1553, 1
  %v1555 = vadd.f32 %v1553, %v1554
  %v1556 = vsel %vm520, %v802, 0.0
  %v1557 = vrot.slane %v1556, 4
  %v1558 = vadd.f32 %v1556, %v1557
  %v1559 = vrot.slane %v1558, 2
  %v1560 = vadd.f32 %v1558, %v1559
  %v1561 = vrot.slane %v1560, 1
  %v1562 = vadd.f32 %v1560, %v1561
  %v1563 = vsel %vm520, %v805, 0.0
  %v1564 = vrot.slane %v1563, 4
  %v1565 = vadd.f32 %v1563, %v1564
  %v1566 = vrot.slane %v1565, 2
  %v1567 = vadd.f32 %v1565, %v1566
  %v1568 = vrot.slane %v1567, 1
  %v1569 = vadd.f32 %v1567, %v1568
  %v1570 = vsel %vm520, %v808, 0.0
  %v1571 = vrot.slane %v1570, 4
  %v1572 = vadd.f32 %v1570, %v1571
  %v1573 = vrot.slane %v1572, 2
  %v1574 = vadd.f32 %v1572, %v1573
  %v1575 = vrot.slane %v1574, 1
  %v1576 = vadd.f32 %v1574, %v1575
  %v1577 = vsel %vm520, %v811, 0.0
  %v1578 = vrot.slane %v1577, 4
  %v1579 = vadd.f32 %v1577, %v1578
  %v1580 = vrot.slane %v1579, 2
  %v1581 = vadd.f32 %v1579, %v1580
  %v1582 = vrot.slane %v1581, 1
  %v1583 = vadd.f32 %v1581, %v1582
  %v1584 = vsel %vm520, %v814, 0.0
  %v1585 = vrot.slane %v1584, 4
  %v1586 = vadd.f32 %v1584, %v1585
  %v1587 = vrot.slane %v1586, 2
  %v1588 = vadd.f32 %v1586, %v1587
  %v1589 = vrot.slane %v1588, 1
  %v1590 = vadd.f32 %v1588, %v1589
  %v1591 = vsel %vm520, %v817, 0.0
  %v1592 = vrot.slane %v1591, 4
  %v1593 = vadd.f32 %v1591, %v1592
  %v1594 = vrot.slane %v1593, 2
  %v1595 = vadd.f32 %v1593, %v1594
  %v1596 = vrot.slane %v1595, 1
  %v1597 = vadd.f32 %v1595, %v1596
  %v1598 = vsel %vm520, %v820, 0.0
  %v1599 = vrot.slane %v1598, 4
  %v1600 = vadd.f32 %v1598, %v1599
  %v1601 = vrot.slane %v1600, 2
  %v1602 = vadd.f32 %v1600, %v1601
  %v1603 = vrot.slane %v1602, 1
  %v1604 = vadd.f32 %v1602, %v1603
  %v1605 = vsel %vm520, %v823, 0.0
  %v1606 = vrot.slane %v1605, 4
  %v1607 = vadd.f32 %v1605, %v1606
  %v1608 = vrot.slane %v1607, 2
  %v1609 = vadd.f32 %v1607, %v1608
  %v1610 = vrot.slane %v1609, 1
  %v1611 = vadd.f32 %v1609, %v1610
  %v1612 = vsel %vm520, %v826, 0.0
  %v1613 = vrot.slane %v1612, 4
  %v1614 = vadd.f32 %v1612, %v1613
  %v1615 = vrot.slane %v1614, 2
  %v1616 = vadd.f32 %v1614, %v1615
  %v1617 = vrot.slane %v1616, 1
  %v1618 = vadd.f32 %v1616, %v1617
  %v1619 = vsel %vm520, %v829, 0.0
  %v1620 = vrot.slane %v1619, 4
  %v1621 = vadd.f32 %v1619, %v1620
  %v1622 = vrot.slane %v1621, 2
  %v1623 = vadd.f32 %v1621, %v1622
  %v1624 = vrot.slane %v1623, 1
  %v1625 = vadd.f32 %v1623, %v1624
  %v1626 = vsel %vm520, %v832, 0.0
  %v1627 = vrot.slane %v1626, 4
  %v1628 = vadd.f32 %v1626, %v1627
  %v1629 = vrot.slane %v1628, 2
  %v1630 = vadd.f32 %v1628, %v1629
  %v1631 = vrot.slane %v1630, 1
  %v1632 = vadd.f32 %v1630, %v1631
  %v1633 = vsel %vm520, %v835, 0.0
  %v1634 = vrot.slane %v1633, 4
  %v1635 = vadd.f32 %v1633, %v1634
  %v1636 = vrot.slane %v1635, 2
  %v1637 = vadd.f32 %v1635, %v1636
  %v1638 = vrot.slane %v1637, 1
  %v1639 = vadd.f32 %v1637, %v1638
  %v1640 = vsel %vm520, %v838, 0.0
  %v1641 = vrot.slane %v1640, 4
  %v1642 = vadd.f32 %v1640, %v1641
  %v1643 = vrot.slane %v1642, 2
  %v1644 = vadd.f32 %v1642, %v1643
  %v1645 = vrot.slane %v1644, 1
  %v1646 = vadd.f32 %v1644, %v1645
  %v1647 = vsel %vm520, %v841, 0.0
  %v1648 = vrot.slane %v1647, 4
  %v1649 = vadd.f32 %v1647, %v1648
  %v1650 = vrot.slane %v1649, 2
  %v1651 = vadd.f32 %v1649, %v1650
  %v1652 = vrot.slane %v1651, 1
  %v1653 = vadd.f32 %v1651, %v1652
  %v1654 = vsel %vm520, %v844, 0.0
  %v1655 = vrot.slane %v1654, 4
  %v1656 = vadd.f32 %v1654, %v1655
  %v1657 = vrot.slane %v1656, 2
  %v1658 = vadd.f32 %v1656, %v1657
  %v1659 = vrot.slane %v1658, 1
  %v1660 = vadd.f32 %v1658, %v1659
  %v1661 = vsel %vm520, %v847, 0.0
  %v1662 = vrot.slane %v1661, 4
  %v1663 = vadd.f32 %v1661, %v1662
  %v1664 = vrot.slane %v1663, 2
  %v1665 = vadd.f32 %v1663, %v1664
  %v1666 = vrot.slane %v1665, 1
  %v1667 = vadd.f32 %v1665, %v1666
  %v1668 = vsel %vm520, %v850, 0.0
  %v1669 = vrot.slane %v1668, 4
  %v1670 = vadd.f32 %v1668, %v1669
  %v1671 = vrot.slane %v1670, 2
  %v1672 = vadd.f32 %v1670, %v1671
  %v1673 = vrot.slane %v1672, 1
  %v1674 = vadd.f32 %v1672, %v1673
  %v1675 = vsel %vm520, %v853, 0.0
  %v1676 = vrot.slane %v1675, 4
  %v1677 = vadd.f32 %v1675, %v1676
  %v1678 = vrot.slane %v1677, 2
  %v1679 = vadd.f32 %v1677, %v1678
  %v1680 = vrot.slane %v1679, 1
  %v1681 = vadd.f32 %v1679, %v1680
  %v1682 = vsel %vm520, %v856, 0.0
  %v1683 = vrot.slane %v1682, 4
  %v1684 = vadd.f32 %v1682, %v1683
  %v1685 = vrot.slane %v1684, 2
  %v1686 = vadd.f32 %v1684, %v1685
  %v1687 = vrot.slane %v1686, 1
  %v1688 = vadd.f32 %v1686, %v1687
  %v1689 = vsel %vm520, %v859, 0.0
  %v1690 = vrot.slane %v1689, 4
  %v1691 = vadd.f32 %v1689, %v1690
  %v1692 = vrot.slane %v1691, 2
  %v1693 = vadd.f32 %v1691, %v1692
  %v1694 = vrot.slane %v1693, 1
  %v1695 = vadd.f32 %v1693, %v1694
  %v1696 = vsel %vm520, %v862, 0.0
  %v1697 = vrot.slane %v1696, 4
  %v1698 = vadd.f32 %v1696, %v1697
  %v1699 = vrot.slane %v1698, 2
  %v1700 = vadd.f32 %v1698, %v1699
  %v1701 = vrot.slane %v1700, 1
  %v1702 = vadd.f32 %v1700, %v1701
  %v1703 = vsel %vm520, %v865, 0.0
  %v1704 = vrot.slane %v1703, 4
  %v1705 = vadd.f32 %v1703, %v1704
  %v1706 = vrot.slane %v1705, 2
  %v1707 = vadd.f32 %v1705, %v1706
  %v1708 = vrot.slane %v1707, 1
  %v1709 = vadd.f32 %v1707, %v1708
  %v1710 = vsel %vm520, %v868, 0.0
  %v1711 = vrot.slane %v1710, 4
  %v1712 = vadd.f32 %v1710, %v1711
  %v1713 = vrot.slane %v1712, 2
  %v1714 = vadd.f32 %v1712, %v1713
  %v1715 = vrot.slane %v1714, 1
  %v1716 = vadd.f32 %v1714, %v1715
  %v1717 = vsel %vm520, %v871, 0.0
  %v1718 = vrot.slane %v1717, 4
  %v1719 = vadd.f32 %v1717, %v1718
  %v1720 = vrot.slane %v1719, 2
  %v1721 = vadd.f32 %v1719, %v1720
  %v1722 = vrot.slane %v1721, 1
  %v1723 = vadd.f32 %v1721, %v1722
  %v1724 = vsel %vm520, %v874, 0.0
  %v1725 = vrot.slane %v1724, 4
  %v1726 = vadd.f32 %v1724, %v1725
  %v1727 = vrot.slane %v1726, 2
  %v1728 = vadd.f32 %v1726, %v1727
  %v1729 = vrot.slane %v1728, 1
  %v1730 = vadd.f32 %v1728, %v1729
  %v1731 = vsel %vm520, %v877, 0.0
  %v1732 = vrot.slane %v1731, 4
  %v1733 = vadd.f32 %v1731, %v1732
  %v1734 = vrot.slane %v1733, 2
  %v1735 = vadd.f32 %v1733, %v1734
  %v1736 = vrot.slane %v1735, 1
  %v1737 = vadd.f32 %v1735, %v1736
  %v1738 = vsel %vm520, %v880, 0.0
  %v1739 = vrot.slane %v1738, 4
  %v1740 = vadd.f32 %v1738, %v1739
  %v1741 = vrot.slane %v1740, 2
  %v1742 = vadd.f32 %v1740, %v1741
  %v1743 = vrot.slane %v1742, 1
  %v1744 = vadd.f32 %v1742, %v1743
  %v1745 = vsel %vm520, %v883, 0.0
  %v1746 = vrot.slane %v1745, 4
  %v1747 = vadd.f32 %v1745, %v1746
  %v1748 = vrot.slane %v1747, 2
  %v1749 = vadd.f32 %v1747, %v1748
  %v1750 = vrot.slane %v1749, 1
  %v1751 = vadd.f32 %v1749, %v1750
  %v1752 = vsel %vm520, %v886, 0.0
  %v1753 = vrot.slane %v1752, 4
  %v1754 = vadd.f32 %v1752, %v1753
  %v1755 = vrot.slane %v1754, 2
  %v1756 = vadd.f32 %v1754, %v1755
  %v1757 = vrot.slane %v1756, 1
  %v1758 = vadd.f32 %v1756, %v1757
  %v1759 = vsel %vm520, %v889, 0.0
  %v1760 = vrot.slane %v1759, 4
  %v1761 = vadd.f32 %v1759, %v1760
  %v1762 = vrot.slane %v1761, 2
  %v1763 = vadd.f32 %v1761, %v1762
  %v1764 = vrot.slane %v1763, 1
  %v1765 = vadd.f32 %v1763, %v1764
  %v1766 = vsel %vm520, %v892, 0.0
  %v1767 = vrot.slane %v1766, 4
  %v1768 = vadd.f32 %v1766, %v1767
  %v1769 = vrot.slane %v1768, 2
  %v1770 = vadd.f32 %v1768, %v1769
  %v1771 = vrot.slane %v1770, 1
  %v1772 = vadd.f32 %v1770, %v1771
  %v1773 = vsel %vm520, %v895, 0.0
  %v1774 = vrot.slane %v1773, 4
  %v1775 = vadd.f32 %v1773, %v1774
  %v1776 = vrot.slane %v1775, 2
  %v1777 = vadd.f32 %v1775, %v1776
  %v1778 = vrot.slane %v1777, 1
  %v1779 = vadd.f32 %v1777, %v1778
  %v1780 = vsel %vm520, %v898, 0.0
  %v1781 = vrot.slane %v1780, 4
  %v1782 = vadd.f32 %v1780, %v1781
  %v1783 = vrot.slane %v1782, 2
  %v1784 = vadd.f32 %v1782, %v1783
  %v1785 = vrot.slane %v1784, 1
  %v1786 = vadd.f32 %v1784, %v1785
  %v1787 = vsel %vm520, %v901, 0.0
  %v1788 = vrot.slane %v1787, 4
  %v1789 = vadd.f32 %v1787, %v1788
  %v1790 = vrot.slane %v1789, 2
  %v1791 = vadd.f32 %v1789, %v1790
  %v1792 = vrot.slane %v1791, 1
  %v1793 = vadd.f32 %v1791, %v1792
  %v1794 = vsel %vm520, %v904, 0.0
  %v1795 = vrot.slane %v1794, 4
  %v1796 = vadd.f32 %v1794, %v1795
  %v1797 = vrot.slane %v1796, 2
  %v1798 = vadd.f32 %v1796, %v1797
  %v1799 = vrot.slane %v1798, 1
  %v1800 = vadd.f32 %v1798, %v1799
  %v1801 = vmul.f32 %v911, 0.25
  %v1802 = vmul.f32 %v918, 0.25
  %v1803 = vmul.f32 %v925, 0.25
  %v1804 = vmul.f32 %v932, 0.25
  %v1805 = vmul.f32 %v939, 0.25
  %v1806 = vmul.f32 %v946, 0.25
  %v1807 = vmul.f32 %v953, 0.25
  %v1808 = vmul.f32 %v960, 0.25
  %v1809 = vmul.f32 %v967, 0.25
  %v1810 = vmul.f32 %v974, 0.25
  %v1811 = vmul.f32 %v981, 0.25
  %v1812 = vmul.f32 %v988, 0.25
  %v1813 = vmul.f32 %v995, 0.25
  %v1814 = vmul.f32 %v1002, 0.25
  %v1815 = vmul.f32 %v1009, 0.25
  %v1816 = vmul.f32 %v1016, 0.25
  %v1817 = vmul.f32 %v1023, 0.25
  %v1818 = vmul.f32 %v1030, 0.25
  %v1819 = vmul.f32 %v1037, 0.25
  %v1820 = vmul.f32 %v1044, 0.25
  %v1821 = vmul.f32 %v1051, 0.25
  %v1822 = vmul.f32 %v1058, 0.25
  %v1823 = vmul.f32 %v1065, 0.25
  %v1824 = vmul.f32 %v1072, 0.25
  %v1825 = vmul.f32 %v1079, 0.25
  %v1826 = vmul.f32 %v1086, 0.25
  %v1827 = vmul.f32 %v1093, 0.25
  %v1828 = vmul.f32 %v1100, 0.25
  %v1829 = vmul.f32 %v1107, 0.25
  %v1830 = vmul.f32 %v1114, 0.25
  %v1831 = vmul.f32 %v1121, 0.25
  %v1832 = vmul.f32 %v1128, 0.25
  %v1833 = vmul.f32 %v1135, 0.25
  %v1834 = vmul.f32 %v1142, 0.25
  %v1835 = vmul.f32 %v1149, 0.25
  %v1836 = vmul.f32 %v1156, 0.25
  %v1837 = vmul.f32 %v1163, 0.25
  %v1838 = vmul.f32 %v1170, 0.25
  %v1839 = vmul.f32 %v1177, 0.25
  %v1840 = vmul.f32 %v1184, 0.25
  %v1841 = vmul.f32 %v1191, 0.25
  %v1842 = vmul.f32 %v1198, 0.25
  %v1843 = vmul.f32 %v1205, 0.25
  %v1844 = vmul.f32 %v1212, 0.25
  %v1845 = vmul.f32 %v1219, 0.25
  %v1846 = vmul.f32 %v1226, 0.25
  %v1847 = vmul.f32 %v1233, 0.25
  %v1848 = vmul.f32 %v1240, 0.25
  %v1849 = vmul.f32 %v1247, 0.25
  %v1850 = vmul.f32 %v1254, 0.25
  %v1851 = vmul.f32 %v1261, 0.25
  %v1852 = vmul.f32 %v1268, 0.25
  %v1853 = vmul.f32 %v1275, 0.25
  %v1854 = vmul.f32 %v1282, 0.25
  %v1855 = vmul.f32 %v1289, 0.25
  %v1856 = vmul.f32 %v1296, 0.25
  %v1857 = vmul.f32 %v1303, 0.25
  %v1858 = vmul.f32 %v1310, 0.25
  %v1859 = vmul.f32 %v1317, 0.25
  %v1860 = vmul.f32 %v1324, 0.25
  %v1861 = vmul.f32 %v1331, 0.25
  %v1862 = vmul.f32 %v1338, 0.25
  %v1863 = vmul.f32 %v1345, 0.25
  %v1864 = vmul.f32 %v1352, 0.25
  %v1865 = vmul.f32 %v1359, 0.25
  %v1866 = vmul.f32 %v1366, 0.25
  %v1867 = vmul.f32 %v1373, 0.25
  %v1868 = vmul.f32 %v1380, 0.25
  %v1869 = vmul.f32 %v1387, 0.25
  %v1870 = vmul.f32 %v1394, 0.25
  %v1871 = vmul.f32 %v1401, 0.25
  %v1872 = vmul.f32 %v1408, 0.25
  %v1873 = vmul.f32 %v1415, 0.25
  %v1874 = vmul.f32 %v1422, 0.25
  %v1875 = vmul.f32 %v1429, 0.25
  %v1876 = vmul.f32 %v1436, 0.25
  %v1877 = vmul.f32 %v1443, 0.25
  %v1878 = vmul.f32 %v1450, 0.25
  %v1879 = vmul.f32 %v1457, 0.25
  %v1880 = vmul.f32 %v1464, 0.25
  %v1881 = vmul.f32 %v1471, 0.25
  %v1882 = vmul.f32 %v1478, 0.25
  %v1883 = vmul.f32 %v1485, 0.25
  %v1884 = vmul.f32 %v1492, 0.25
  %v1885 = vmul.f32 %v1499, 0.25
  %v1886 = vmul.f32 %v1506, 0.25
  %v1887 = vmul.f32 %v1513, 0.25
  %v1888 = vmul.f32 %v1520, 0.25
  %v1889 = vmul.f32 %v1527, 0.25
  %v1890 = vmul.f32 %v1534, 0.25
  %v1891 = vmul.f32 %v1541, 0.25
  %v1892 = vmul.f32 %v1548, 0.25
  %v1893 = vmul.f32 %v1555, 0.25
  %v1894 = vmul.f32 %v1562, 0.25
  %v1895 = vmul.f32 %v1569, 0.25
  %v1896 = vmul.f32 %v1576, 0.25
  %v1897 = vmul.f32 %v1583, 0.25
  %v1898 = vmul.f32 %v1590, 0.25
  %v1899 = vmul.f32 %v1597, 0.25
  %v1900 = vmul.f32 %v1604, 0.25
  %v1901 = vmul.f32 %v1611, 0.25
  %v1902 = vmul.f32 %v1618, 0.25
  %v1903 = vmul.f32 %v1625, 0.25
  %v1904 = vmul.f32 %v1632, 0.25
  %v1905 = vmul.f32 %v1639, 0.25
  %v1906 = vmul.f32 %v1646, 0.25
  %v1907 = vmul.f32 %v1653, 0.25
  %v1908 = vmul.f32 %v1660, 0.25
  %v1909 = vmul.f32 %v1667, 0.25
  %v1910 = vmul.f32 %v1674, 0.25
  %v1911 = vmul.f32 %v1681, 0.25
  %v1912 = vmul.f32 %v1688, 0.25
  %v1913 = vmul.f32 %v1695, 0.25
  %v1914 = vmul.f32 %v1702, 0.25
  %v1915 = vmul.f32 %v1709, 0.25
  %v1916 = vmul.f32 %v1716, 0.25
  %v1917 = vmul.f32 %v1723, 0.25
  %v1918 = vmul.f32 %v1730, 0.25
  %v1919 = vmul.f32 %v1737, 0.25
  %v1920 = vmul.f32 %v1744, 0.25
  %v1921 = vmul.f32 %v1751, 0.25
  %v1922 = vmul.f32 %v1758, 0.25
  %v1923 = vmul.f32 %v1765, 0.25
  %v1924 = vmul.f32 %v1772, 0.25
  %v1925 = vmul.f32 %v1779, 0.25
  %v1926 = vmul.f32 %v1786, 0.25
  %v1927 = vmul.f32 %v1793, 0.25
  %v1928 = vmul.f32 %v1800, 0.25
  %v1929 = vpack.c.bf16 %v1801, %v1801
  %v1930 = vpack.c.bf16 %v1802, %v1802
  %v1931 = vpack.c.bf16 %v1803, %v1803
  %v1932 = vpack.c.bf16 %v1804, %v1804
  %v1933 = vpack.c.bf16 %v1805, %v1805
  %v1934 = vpack.c.bf16 %v1806, %v1806
  %v1935 = vpack.c.bf16 %v1807, %v1807
  %v1936 = vpack.c.bf16 %v1808, %v1808
  %v1937 = vpack.c.bf16 %v1809, %v1809
  %v1938 = vpack.c.bf16 %v1810, %v1810
  %v1939 = vpack.c.bf16 %v1811, %v1811
  %v1940 = vpack.c.bf16 %v1812, %v1812
  %v1941 = vpack.c.bf16 %v1813, %v1813
  %v1942 = vpack.c.bf16 %v1814, %v1814
  %v1943 = vpack.c.bf16 %v1815, %v1815
  %v1944 = vpack.c.bf16 %v1816, %v1816
  %v1945 = vpack.c.bf16 %v1817, %v1817
  %v1946 = vpack.c.bf16 %v1818, %v1818
  %v1947 = vpack.c.bf16 %v1819, %v1819
  %v1948 = vpack.c.bf16 %v1820, %v1820
  %v1949 = vpack.c.bf16 %v1821, %v1821
  %v1950 = vpack.c.bf16 %v1822, %v1822
  %v1951 = vpack.c.bf16 %v1823, %v1823
  %v1952 = vpack.c.bf16 %v1824, %v1824
  %v1953 = vpack.c.bf16 %v1825, %v1825
  %v1954 = vpack.c.bf16 %v1826, %v1826
  %v1955 = vpack.c.bf16 %v1827, %v1827
  %v1956 = vpack.c.bf16 %v1828, %v1828
  %v1957 = vpack.c.bf16 %v1829, %v1829
  %v1958 = vpack.c.bf16 %v1830, %v1830
  %v1959 = vpack.c.bf16 %v1831, %v1831
  %v1960 = vpack.c.bf16 %v1832, %v1832
  %v1961 = vpack.c.bf16 %v1833, %v1833
  %v1962 = vpack.c.bf16 %v1834, %v1834
  %v1963 = vpack.c.bf16 %v1835, %v1835
  %v1964 = vpack.c.bf16 %v1836, %v1836
  %v1965 = vpack.c.bf16 %v1837, %v1837
  %v1966 = vpack.c.bf16 %v1838, %v1838
  %v1967 = vpack.c.bf16 %v1839, %v1839
  %v1968 = vpack.c.bf16 %v1840, %v1840
  %v1969 = vpack.c.bf16 %v1841, %v1841
  %v1970 = vpack.c.bf16 %v1842, %v1842
  %v1971 = vpack.c.bf16 %v1843, %v1843
  %v1972 = vpack.c.bf16 %v1844, %v1844
  %v1973 = vpack.c.bf16 %v1845, %v1845
  %v1974 = vpack.c.bf16 %v1846, %v1846
  %v1975 = vpack.c.bf16 %v1847, %v1847
  %v1976 = vpack.c.bf16 %v1848, %v1848
  %v1977 = vpack.c.bf16 %v1849, %v1849
  %v1978 = vpack.c.bf16 %v1850, %v1850
  %v1979 = vpack.c.bf16 %v1851, %v1851
  %v1980 = vpack.c.bf16 %v1852, %v1852
  %v1981 = vpack.c.bf16 %v1853, %v1853
  %v1982 = vpack.c.bf16 %v1854, %v1854
  %v1983 = vpack.c.bf16 %v1855, %v1855
  %v1984 = vpack.c.bf16 %v1856, %v1856
  %v1985 = vpack.c.bf16 %v1857, %v1857
  %v1986 = vpack.c.bf16 %v1858, %v1858
  %v1987 = vpack.c.bf16 %v1859, %v1859
  %v1988 = vpack.c.bf16 %v1860, %v1860
  %v1989 = vpack.c.bf16 %v1861, %v1861
  %v1990 = vpack.c.bf16 %v1862, %v1862
  %v1991 = vpack.c.bf16 %v1863, %v1863
  %v1992 = vpack.c.bf16 %v1864, %v1864
  %v1993 = vpack.c.bf16 %v1865, %v1865
  %v1994 = vpack.c.bf16 %v1866, %v1866
  %v1995 = vpack.c.bf16 %v1867, %v1867
  %v1996 = vpack.c.bf16 %v1868, %v1868
  %v1997 = vpack.c.bf16 %v1869, %v1869
  %v1998 = vpack.c.bf16 %v1870, %v1870
  %v1999 = vpack.c.bf16 %v1871, %v1871
  %v2000 = vpack.c.bf16 %v1872, %v1872
  %v2001 = vpack.c.bf16 %v1873, %v1873
  %v2002 = vpack.c.bf16 %v1874, %v1874
  %v2003 = vpack.c.bf16 %v1875, %v1875
  %v2004 = vpack.c.bf16 %v1876, %v1876
  %v2005 = vpack.c.bf16 %v1877, %v1877
  %v2006 = vpack.c.bf16 %v1878, %v1878
  %v2007 = vpack.c.bf16 %v1879, %v1879
  %v2008 = vpack.c.bf16 %v1880, %v1880
  %v2009 = vpack.c.bf16 %v1881, %v1881
  %v2010 = vpack.c.bf16 %v1882, %v1882
  %v2011 = vpack.c.bf16 %v1883, %v1883
  %v2012 = vpack.c.bf16 %v1884, %v1884
  %v2013 = vpack.c.bf16 %v1885, %v1885
  %v2014 = vpack.c.bf16 %v1886, %v1886
  %v2015 = vpack.c.bf16 %v1887, %v1887
  %v2016 = vpack.c.bf16 %v1888, %v1888
  %v2017 = vpack.c.bf16 %v1889, %v1889
  %v2018 = vpack.c.bf16 %v1890, %v1890
  %v2019 = vpack.c.bf16 %v1891, %v1891
  %v2020 = vpack.c.bf16 %v1892, %v1892
  %v2021 = vpack.c.bf16 %v1893, %v1893
  %v2022 = vpack.c.bf16 %v1894, %v1894
  %v2023 = vpack.c.bf16 %v1895, %v1895
  %v2024 = vpack.c.bf16 %v1896, %v1896
  %v2025 = vpack.c.bf16 %v1897, %v1897
  %v2026 = vpack.c.bf16 %v1898, %v1898
  %v2027 = vpack.c.bf16 %v1899, %v1899
  %v2028 = vpack.c.bf16 %v1900, %v1900
  %v2029 = vpack.c.bf16 %v1901, %v1901
  %v2030 = vpack.c.bf16 %v1902, %v1902
  %v2031 = vpack.c.bf16 %v1903, %v1903
  %v2032 = vpack.c.bf16 %v1904, %v1904
  %v2033 = vpack.c.bf16 %v1905, %v1905
  %v2034 = vpack.c.bf16 %v1906, %v1906
  %v2035 = vpack.c.bf16 %v1907, %v1907
  %v2036 = vpack.c.bf16 %v1908, %v1908
  %v2037 = vpack.c.bf16 %v1909, %v1909
  %v2038 = vpack.c.bf16 %v1910, %v1910
  %v2039 = vpack.c.bf16 %v1911, %v1911
  %v2040 = vpack.c.bf16 %v1912, %v1912
  %v2041 = vpack.c.bf16 %v1913, %v1913
  %v2042 = vpack.c.bf16 %v1914, %v1914
  %v2043 = vpack.c.bf16 %v1915, %v1915
  %v2044 = vpack.c.bf16 %v1916, %v1916
  %v2045 = vpack.c.bf16 %v1917, %v1917
  %v2046 = vpack.c.bf16 %v1918, %v1918
  %v2047 = vpack.c.bf16 %v1919, %v1919
  %v2048 = vpack.c.bf16 %v1920, %v1920
  %v2049 = vpack.c.bf16 %v1921, %v1921
  %v2050 = vpack.c.bf16 %v1922, %v1922
  %v2051 = vpack.c.bf16 %v1923, %v1923
  %v2052 = vpack.c.bf16 %v1924, %v1924
  %v2053 = vpack.c.bf16 %v1925, %v1925
  %v2054 = vpack.c.bf16 %v1926, %v1926
  %v2055 = vpack.c.bf16 %v1927, %v1927
  %v2056 = vpack.c.bf16 %v1928, %v1928
  %v2185 = vunpack.c.l.b16 %v1929
  %v2186 = vunpack.c.l.b16 %v1930
  %v2187 = vunpack.c.l.b16 %v1931
  %v2188 = vunpack.c.l.b16 %v1932
  %v2189 = vunpack.c.l.b16 %v1933
  %v2190 = vunpack.c.l.b16 %v1934
  %v2191 = vunpack.c.l.b16 %v1935
  %v2192 = vunpack.c.l.b16 %v1936
  %v2193 = vunpack.c.l.b16 %v1937
  %v2194 = vunpack.c.l.b16 %v1938
  %v2195 = vunpack.c.l.b16 %v1939
  %v2196 = vunpack.c.l.b16 %v1940
  %v2197 = vunpack.c.l.b16 %v1941
  %v2198 = vunpack.c.l.b16 %v1942
  %v2199 = vunpack.c.l.b16 %v1943
  %v2200 = vunpack.c.l.b16 %v1944
  %v2201 = vunpack.c.l.b16 %v1945
  %v2202 = vunpack.c.l.b16 %v1946
  %v2203 = vunpack.c.l.b16 %v1947
  %v2204 = vunpack.c.l.b16 %v1948
  %v2205 = vunpack.c.l.b16 %v1949
  %v2206 = vunpack.c.l.b16 %v1950
  %v2207 = vunpack.c.l.b16 %v1951
  %v2208 = vunpack.c.l.b16 %v1952
  %v2209 = vunpack.c.l.b16 %v1953
  %v2210 = vunpack.c.l.b16 %v1954
  %v2211 = vunpack.c.l.b16 %v1955
  %v2212 = vunpack.c.l.b16 %v1956
  %v2213 = vunpack.c.l.b16 %v1957
  %v2214 = vunpack.c.l.b16 %v1958
  %v2215 = vunpack.c.l.b16 %v1959
  %v2216 = vunpack.c.l.b16 %v1960
  %v2217 = vunpack.c.l.b16 %v1961
  %v2218 = vunpack.c.l.b16 %v1962
  %v2219 = vunpack.c.l.b16 %v1963
  %v2220 = vunpack.c.l.b16 %v1964
  %v2221 = vunpack.c.l.b16 %v1965
  %v2222 = vunpack.c.l.b16 %v1966
  %v2223 = vunpack.c.l.b16 %v1967
  %v2224 = vunpack.c.l.b16 %v1968
  %v2225 = vunpack.c.l.b16 %v1969
  %v2226 = vunpack.c.l.b16 %v1970
  %v2227 = vunpack.c.l.b16 %v1971
  %v2228 = vunpack.c.l.b16 %v1972
  %v2229 = vunpack.c.l.b16 %v1973
  %v2230 = vunpack.c.l.b16 %v1974
  %v2231 = vunpack.c.l.b16 %v1975
  %v2232 = vunpack.c.l.b16 %v1976
  %v2233 = vunpack.c.l.b16 %v1977
  %v2234 = vunpack.c.l.b16 %v1978
  %v2235 = vunpack.c.l.b16 %v1979
  %v2236 = vunpack.c.l.b16 %v1980
  %v2237 = vunpack.c.l.b16 %v1981
  %v2238 = vunpack.c.l.b16 %v1982
  %v2239 = vunpack.c.l.b16 %v1983
  %v2240 = vunpack.c.l.b16 %v1984
  %v2241 = vunpack.c.l.b16 %v1985
  %v2242 = vunpack.c.l.b16 %v1986
  %v2243 = vunpack.c.l.b16 %v1987
  %v2244 = vunpack.c.l.b16 %v1988
  %v2245 = vunpack.c.l.b16 %v1989
  %v2246 = vunpack.c.l.b16 %v1990
  %v2247 = vunpack.c.l.b16 %v1991
  %v2248 = vunpack.c.l.b16 %v1992
  %v2249 = vunpack.c.l.b16 %v1993
  %v2250 = vunpack.c.l.b16 %v1994
  %v2251 = vunpack.c.l.b16 %v1995
  %v2252 = vunpack.c.l.b16 %v1996
  %v2253 = vunpack.c.l.b16 %v1997
  %v2254 = vunpack.c.l.b16 %v1998
  %v2255 = vunpack.c.l.b16 %v1999
  %v2256 = vunpack.c.l.b16 %v2000
  %v2257 = vunpack.c.l.b16 %v2001
  %v2258 = vunpack.c.l.b16 %v2002
  %v2259 = vunpack.c.l.b16 %v2003
  %v2260 = vunpack.c.l.b16 %v2004
  %v2261 = vunpack.c.l.b16 %v2005
  %v2262 = vunpack.c.l.b16 %v2006
  %v2263 = vunpack.c.l.b16 %v2007
  %v2264 = vunpack.c.l.b16 %v2008
  %v2265 = vunpack.c.l.b16 %v2009
  %v2266 = vunpack.c.l.b16 %v2010
  %v2267 = vunpack.c.l.b16 %v2011
  %v2268 = vunpack.c.l.b16 %v2012
  %v2269 = vunpack.c.l.b16 %v2013
  %v2270 = vunpack.c.l.b16 %v2014
  %v2271 = vunpack.c.l.b16 %v2015
  %v2272 = vunpack.c.l.b16 %v2016
  %v2273 = vunpack.c.l.b16 %v2017
  %v2274 = vunpack.c.l.b16 %v2018
  %v2275 = vunpack.c.l.b16 %v2019
  %v2276 = vunpack.c.l.b16 %v2020
  %v2277 = vunpack.c.l.b16 %v2021
  %v2278 = vunpack.c.l.b16 %v2022
  %v2279 = vunpack.c.l.b16 %v2023
  %v2280 = vunpack.c.l.b16 %v2024
  %v2281 = vunpack.c.l.b16 %v2025
  %v2282 = vunpack.c.l.b16 %v2026
  %v2283 = vunpack.c.l.b16 %v2027
  %v2284 = vunpack.c.l.b16 %v2028
  %v2285 = vunpack.c.l.b16 %v2029
  %v2286 = vunpack.c.l.b16 %v2030
  %v2287 = vunpack.c.l.b16 %v2031
  %v2288 = vunpack.c.l.b16 %v2032
  %v2289 = vunpack.c.l.b16 %v2033
  %v2290 = vunpack.c.l.b16 %v2034
  %v2291 = vunpack.c.l.b16 %v2035
  %v2292 = vunpack.c.l.b16 %v2036
  %v2293 = vunpack.c.l.b16 %v2037
  %v2294 = vunpack.c.l.b16 %v2038
  %v2295 = vunpack.c.l.b16 %v2039
  %v2296 = vunpack.c.l.b16 %v2040
  %v2297 = vunpack.c.l.b16 %v2041
  %v2298 = vunpack.c.l.b16 %v2042
  %v2299 = vunpack.c.l.b16 %v2043
  %v2300 = vunpack.c.l.b16 %v2044
  %v2301 = vunpack.c.l.b16 %v2045
  %v2302 = vunpack.c.l.b16 %v2046
  %v2303 = vunpack.c.l.b16 %v2047
  %v2304 = vunpack.c.l.b16 %v2048
  %v2305 = vunpack.c.l.b16 %v2049
  %v2306 = vunpack.c.l.b16 %v2050
  %v2307 = vunpack.c.l.b16 %v2051
  %v2308 = vunpack.c.l.b16 %v2052
  %v2309 = vunpack.c.l.b16 %v2053
  %v2310 = vunpack.c.l.b16 %v2054
  %v2311 = vunpack.c.l.b16 %v2055
  %v2312 = vunpack.c.l.b16 %v2056
  %v2313 = vpack.c.b16 %v2185, %v2185
  %v2314 = vpack.c.b16 %v2186, %v2186
  %v2315 = vpack.c.b16 %v2187, %v2187
  %v2316 = vpack.c.b16 %v2188, %v2188
  %v2317 = vpack.c.b16 %v2189, %v2189
  %v2318 = vpack.c.b16 %v2190, %v2190
  %v2319 = vpack.c.b16 %v2191, %v2191
  %v2320 = vpack.c.b16 %v2192, %v2192
  %v2321 = vpack.c.b16 %v2193, %v2193
  %v2322 = vpack.c.b16 %v2194, %v2194
  %v2323 = vpack.c.b16 %v2195, %v2195
  %v2324 = vpack.c.b16 %v2196, %v2196
  %v2325 = vpack.c.b16 %v2197, %v2197
  %v2326 = vpack.c.b16 %v2198, %v2198
  %v2327 = vpack.c.b16 %v2199, %v2199
  %v2328 = vpack.c.b16 %v2200, %v2200
  %v2329 = vpack.c.b16 %v2201, %v2201
  %v2330 = vpack.c.b16 %v2202, %v2202
  %v2331 = vpack.c.b16 %v2203, %v2203
  %v2332 = vpack.c.b16 %v2204, %v2204
  %v2333 = vpack.c.b16 %v2205, %v2205
  %v2334 = vpack.c.b16 %v2206, %v2206
  %v2335 = vpack.c.b16 %v2207, %v2207
  %v2336 = vpack.c.b16 %v2208, %v2208
  %v2337 = vpack.c.b16 %v2209, %v2209
  %v2338 = vpack.c.b16 %v2210, %v2210
  %v2339 = vpack.c.b16 %v2211, %v2211
  %v2340 = vpack.c.b16 %v2212, %v2212
  %v2341 = vpack.c.b16 %v2213, %v2213
  %v2342 = vpack.c.b16 %v2214, %v2214
  %v2343 = vpack.c.b16 %v2215, %v2215
  %v2344 = vpack.c.b16 %v2216, %v2216
  %v2345 = vpack.c.b16 %v2217, %v2217
  %v2346 = vpack.c.b16 %v2218, %v2218
  %v2347 = vpack.c.b16 %v2219, %v2219
  %v2348 = vpack.c.b16 %v2220, %v2220
  %v2349 = vpack.c.b16 %v2221, %v2221
  %v2350 = vpack.c.b16 %v2222, %v2222
  %v2351 = vpack.c.b16 %v2223, %v2223
  %v2352 = vpack.c.b16 %v2224, %v2224
  %v2353 = vpack.c.b16 %v2225, %v2225
  %v2354 = vpack.c.b16 %v2226, %v2226
  %v2355 = vpack.c.b16 %v2227, %v2227
  %v2356 = vpack.c.b16 %v2228, %v2228
  %v2357 = vpack.c.b16 %v2229, %v2229
  %v2358 = vpack.c.b16 %v2230, %v2230
  %v2359 = vpack.c.b16 %v2231, %v2231
  %v2360 = vpack.c.b16 %v2232, %v2232
  %v2361 = vpack.c.b16 %v2233, %v2233
  %v2362 = vpack.c.b16 %v2234, %v2234
  %v2363 = vpack.c.b16 %v2235, %v2235
  %v2364 = vpack.c.b16 %v2236, %v2236
  %v2365 = vpack.c.b16 %v2237, %v2237
  %v2366 = vpack.c.b16 %v2238, %v2238
  %v2367 = vpack.c.b16 %v2239, %v2239
  %v2368 = vpack.c.b16 %v2240, %v2240
  %v2369 = vpack.c.b16 %v2241, %v2241
  %v2370 = vpack.c.b16 %v2242, %v2242
  %v2371 = vpack.c.b16 %v2243, %v2243
  %v2372 = vpack.c.b16 %v2244, %v2244
  %v2373 = vpack.c.b16 %v2245, %v2245
  %v2374 = vpack.c.b16 %v2246, %v2246
  %v2375 = vpack.c.b16 %v2247, %v2247
  %v2376 = vpack.c.b16 %v2248, %v2248
  %v2377 = vpack.c.b16 %v2249, %v2249
  %v2378 = vpack.c.b16 %v2250, %v2250
  %v2379 = vpack.c.b16 %v2251, %v2251
  %v2380 = vpack.c.b16 %v2252, %v2252
  %v2381 = vpack.c.b16 %v2253, %v2253
  %v2382 = vpack.c.b16 %v2254, %v2254
  %v2383 = vpack.c.b16 %v2255, %v2255
  %v2384 = vpack.c.b16 %v2256, %v2256
  %v2385 = vpack.c.b16 %v2257, %v2257
  %v2386 = vpack.c.b16 %v2258, %v2258
  %v2387 = vpack.c.b16 %v2259, %v2259
  %v2388 = vpack.c.b16 %v2260, %v2260
  %v2389 = vpack.c.b16 %v2261, %v2261
  %v2390 = vpack.c.b16 %v2262, %v2262
  %v2391 = vpack.c.b16 %v2263, %v2263
  %v2392 = vpack.c.b16 %v2264, %v2264
  %v2393 = vpack.c.b16 %v2265, %v2265
  %v2394 = vpack.c.b16 %v2266, %v2266
  %v2395 = vpack.c.b16 %v2267, %v2267
  %v2396 = vpack.c.b16 %v2268, %v2268
  %v2397 = vpack.c.b16 %v2269, %v2269
  %v2398 = vpack.c.b16 %v2270, %v2270
  %v2399 = vpack.c.b16 %v2271, %v2271
  %v2400 = vpack.c.b16 %v2272, %v2272
  %v2401 = vpack.c.b16 %v2273, %v2273
  %v2402 = vpack.c.b16 %v2274, %v2274
  %v2403 = vpack.c.b16 %v2275, %v2275
  %v2404 = vpack.c.b16 %v2276, %v2276
  %v2405 = vpack.c.b16 %v2277, %v2277
  %v2406 = vpack.c.b16 %v2278, %v2278
  %v2407 = vpack.c.b16 %v2279, %v2279
  %v2408 = vpack.c.b16 %v2280, %v2280
  %v2409 = vpack.c.b16 %v2281, %v2281
  %v2410 = vpack.c.b16 %v2282, %v2282
  %v2411 = vpack.c.b16 %v2283, %v2283
  %v2412 = vpack.c.b16 %v2284, %v2284
  %v2413 = vpack.c.b16 %v2285, %v2285
  %v2414 = vpack.c.b16 %v2286, %v2286
  %v2415 = vpack.c.b16 %v2287, %v2287
  %v2416 = vpack.c.b16 %v2288, %v2288
  %v2417 = vpack.c.b16 %v2289, %v2289
  %v2418 = vpack.c.b16 %v2290, %v2290
  %v2419 = vpack.c.b16 %v2291, %v2291
  %v2420 = vpack.c.b16 %v2292, %v2292
  %v2421 = vpack.c.b16 %v2293, %v2293
  %v2422 = vpack.c.b16 %v2294, %v2294
  %v2423 = vpack.c.b16 %v2295, %v2295
  %v2424 = vpack.c.b16 %v2296, %v2296
  %v2425 = vpack.c.b16 %v2297, %v2297
  %v2426 = vpack.c.b16 %v2298, %v2298
  %v2427 = vpack.c.b16 %v2299, %v2299
  %v2428 = vpack.c.b16 %v2300, %v2300
  %v2429 = vpack.c.b16 %v2301, %v2301
  %v2430 = vpack.c.b16 %v2302, %v2302
  %v2431 = vpack.c.b16 %v2303, %v2303
  %v2432 = vpack.c.b16 %v2304, %v2304
  %v2433 = vpack.c.b16 %v2305, %v2305
  %v2434 = vpack.c.b16 %v2306, %v2306
  %v2435 = vpack.c.b16 %v2307, %v2307
  %v2436 = vpack.c.b16 %v2308, %v2308
  %v2437 = vpack.c.b16 %v2309, %v2309
  %v2438 = vpack.c.b16 %v2310, %v2310
  %v2439 = vpack.c.b16 %v2311, %v2311
  %v2440 = vpack.c.b16 %v2312, %v2312
  %v2441 = vunpack.c.l.b16 %v2313
  %v2442 = vunpack.c.l.b16 %v2314
  %v2443 = vunpack.c.l.b16 %v2315
  %v2444 = vunpack.c.l.b16 %v2316
  %v2445 = vunpack.c.l.b16 %v2317
  %v2446 = vunpack.c.l.b16 %v2318
  %v2447 = vunpack.c.l.b16 %v2319
  %v2448 = vunpack.c.l.b16 %v2320
  %v2449 = vunpack.c.l.b16 %v2321
  %v2450 = vunpack.c.l.b16 %v2322
  %v2451 = vunpack.c.l.b16 %v2323
  %v2452 = vunpack.c.l.b16 %v2324
  %v2453 = vunpack.c.l.b16 %v2325
  %v2454 = vunpack.c.l.b16 %v2326
  %v2455 = vunpack.c.l.b16 %v2327
  %v2456 = vunpack.c.l.b16 %v2328
  %v2457 = vunpack.c.l.b16 %v2329
  %v2458 = vunpack.c.l.b16 %v2330
  %v2459 = vunpack.c.l.b16 %v2331
  %v2460 = vunpack.c.l.b16 %v2332
  %v2461 = vunpack.c.l.b16 %v2333
  %v2462 = vunpack.c.l.b16 %v2334
  %v2463 = vunpack.c.l.b16 %v2335
  %v2464 = vunpack.c.l.b16 %v2336
  %v2465 = vunpack.c.l.b16 %v2337
  %v2466 = vunpack.c.l.b16 %v2338
  %v2467 = vunpack.c.l.b16 %v2339
  %v2468 = vunpack.c.l.b16 %v2340
  %v2469 = vunpack.c.l.b16 %v2341
  %v2470 = vunpack.c.l.b16 %v2342
  %v2471 = vunpack.c.l.b16 %v2343
  %v2472 = vunpack.c.l.b16 %v2344
  %v2473 = vunpack.c.l.b16 %v2345
  %v2474 = vunpack.c.l.b16 %v2346
  %v2475 = vunpack.c.l.b16 %v2347
  %v2476 = vunpack.c.l.b16 %v2348
  %v2477 = vunpack.c.l.b16 %v2349
  %v2478 = vunpack.c.l.b16 %v2350
  %v2479 = vunpack.c.l.b16 %v2351
  %v2480 = vunpack.c.l.b16 %v2352
  %v2481 = vunpack.c.l.b16 %v2353
  %v2482 = vunpack.c.l.b16 %v2354
  %v2483 = vunpack.c.l.b16 %v2355
  %v2484 = vunpack.c.l.b16 %v2356
  %v2485 = vunpack.c.l.b16 %v2357
  %v2486 = vunpack.c.l.b16 %v2358
  %v2487 = vunpack.c.l.b16 %v2359
  %v2488 = vunpack.c.l.b16 %v2360
  %v2489 = vunpack.c.l.b16 %v2361
  %v2490 = vunpack.c.l.b16 %v2362
  %v2491 = vunpack.c.l.b16 %v2363
  %v2492 = vunpack.c.l.b16 %v2364
  %v2493 = vunpack.c.l.b16 %v2365
  %v2494 = vunpack.c.l.b16 %v2366
  %v2495 = vunpack.c.l.b16 %v2367
  %v2496 = vunpack.c.l.b16 %v2368
  %v2497 = vunpack.c.l.b16 %v2369
  %v2498 = vunpack.c.l.b16 %v2370
  %v2499 = vunpack.c.l.b16 %v2371
  %v2500 = vunpack.c.l.b16 %v2372
  %v2501 = vunpack.c.l.b16 %v2373
  %v2502 = vunpack.c.l.b16 %v2374
  %v2503 = vunpack.c.l.b16 %v2375
  %v2504 = vunpack.c.l.b16 %v2376
  %v2505 = vunpack.c.l.b16 %v2377
  %v2506 = vunpack.c.l.b16 %v2378
  %v2507 = vunpack.c.l.b16 %v2379
  %v2508 = vunpack.c.l.b16 %v2380
  %v2509 = vunpack.c.l.b16 %v2381
  %v2510 = vunpack.c.l.b16 %v2382
  %v2511 = vunpack.c.l.b16 %v2383
  %v2512 = vunpack.c.l.b16 %v2384
  %v2513 = vunpack.c.l.b16 %v2385
  %v2514 = vunpack.c.l.b16 %v2386
  %v2515 = vunpack.c.l.b16 %v2387
  %v2516 = vunpack.c.l.b16 %v2388
  %v2517 = vunpack.c.l.b16 %v2389
  %v2518 = vunpack.c.l.b16 %v2390
  %v2519 = vunpack.c.l.b16 %v2391
  %v2520 = vunpack.c.l.b16 %v2392
  %v2521 = vunpack.c.l.b16 %v2393
  %v2522 = vunpack.c.l.b16 %v2394
  %v2523 = vunpack.c.l.b16 %v2395
  %v2524 = vunpack.c.l.b16 %v2396
  %v2525 = vunpack.c.l.b16 %v2397
  %v2526 = vunpack.c.l.b16 %v2398
  %v2527 = vunpack.c.l.b16 %v2399
  %v2528 = vunpack.c.l.b16 %v2400
  %v2529 = vunpack.c.l.b16 %v2401
  %v2530 = vunpack.c.l.b16 %v2402
  %v2531 = vunpack.c.l.b16 %v2403
  %v2532 = vunpack.c.l.b16 %v2404
  %v2533 = vunpack.c.l.b16 %v2405
  %v2534 = vunpack.c.l.b16 %v2406
  %v2535 = vunpack.c.l.b16 %v2407
  %v2536 = vunpack.c.l.b16 %v2408
  %v2537 = vunpack.c.l.b16 %v2409
  %v2538 = vunpack.c.l.b16 %v2410
  %v2539 = vunpack.c.l.b16 %v2411
  %v2540 = vunpack.c.l.b16 %v2412
  %v2541 = vunpack.c.l.b16 %v2413
  %v2542 = vunpack.c.l.b16 %v2414
  %v2543 = vunpack.c.l.b16 %v2415
  %v2544 = vunpack.c.l.b16 %v2416
  %v2545 = vunpack.c.l.b16 %v2417
  %v2546 = vunpack.c.l.b16 %v2418
  %v2547 = vunpack.c.l.b16 %v2419
  %v2548 = vunpack.c.l.b16 %v2420
  %v2549 = vunpack.c.l.b16 %v2421
  %v2550 = vunpack.c.l.b16 %v2422
  %v2551 = vunpack.c.l.b16 %v2423
  %v2552 = vunpack.c.l.b16 %v2424
  %v2553 = vunpack.c.l.b16 %v2425
  %v2554 = vunpack.c.l.b16 %v2426
  %v2555 = vunpack.c.l.b16 %v2427
  %v2556 = vunpack.c.l.b16 %v2428
  %v2557 = vunpack.c.l.b16 %v2429
  %v2558 = vunpack.c.l.b16 %v2430
  %v2559 = vunpack.c.l.b16 %v2431
  %v2560 = vunpack.c.l.b16 %v2432
  %v2561 = vunpack.c.l.b16 %v2433
  %v2562 = vunpack.c.l.b16 %v2434
  %v2563 = vunpack.c.l.b16 %v2435
  %v2564 = vunpack.c.l.b16 %v2436
  %v2565 = vunpack.c.l.b16 %v2437
  %v2566 = vunpack.c.l.b16 %v2438
  %v2567 = vunpack.c.l.b16 %v2439
  %v2568 = vunpack.c.l.b16 %v2440
  %vm2569 = vcmask 1041409
  %v2570 = vsel %vm2569, %v2442, %v2441
  %vm2571 = vcmask 1042434
  %v2572 = vsel %vm2571, %v2443, %v2570
  %vm2573 = vcmask 1043459
  %v2574 = vsel %vm2573, %v2444, %v2572
  %vm2575 = vcmask 1044484
  %v2576 = vsel %vm2575, %v2445, %v2574
  %vm2577 = vcmask 1045509
  %v2578 = vsel %vm2577, %v2446, %v2576
  %vm2579 = vcmask 1046534
  %v2580 = vsel %vm2579, %v2447, %v2578
  %vm2581 = vcmask 1047559
  %v2582 = vsel %vm2581, %v2448, %v2580
  %v2583 = vsel %vm2569, %v2450, %v2449
  %v2584 = vsel %vm2571, %v2451, %v2583
  %v2585 = vsel %vm2573, %v2452, %v2584
  %v2586 = vsel %vm2575, %v2453, %v2585
  %v2587 = vsel %vm2577, %v2454, %v2586
  %v2588 = vsel %vm2579, %v2455, %v2587
  %v2589 = vsel %vm2581, %v2456, %v2588
  %v2590 = vsel %vm2569, %v2458, %v2457
  %v2591 = vsel %vm2571, %v2459, %v2590
  %v2592 = vsel %vm2573, %v2460, %v2591
  %v2593 = vsel %vm2575, %v2461, %v2592
  %v2594 = vsel %vm2577, %v2462, %v2593
  %v2595 = vsel %vm2579, %v2463, %v2594
  %v2596 = vsel %vm2581, %v2464, %v2595
  %v2597 = vsel %vm2569, %v2466, %v2465
  %v2598 = vsel %vm2571, %v2467, %v2597
  %v2599 = vsel %vm2573, %v2468, %v2598
  %v2600 = vsel %vm2575, %v2469, %v2599
  %v2601 = vsel %vm2577, %v2470, %v2600
  %v2602 = vsel %vm2579, %v2471, %v2601
  %v2603 = vsel %vm2581, %v2472, %v2602
  %v2604 = vsel %vm2569, %v2474, %v2473
  %v2605 = vsel %vm2571, %v2475, %v2604
  %v2606 = vsel %vm2573, %v2476, %v2605
  %v2607 = vsel %vm2575, %v2477, %v2606
  %v2608 = vsel %vm2577, %v2478, %v2607
  %v2609 = vsel %vm2579, %v2479, %v2608
  %v2610 = vsel %vm2581, %v2480, %v2609
  %v2611 = vsel %vm2569, %v2482, %v2481
  %v2612 = vsel %vm2571, %v2483, %v2611
  %v2613 = vsel %vm2573, %v2484, %v2612
  %v2614 = vsel %vm2575, %v2485, %v2613
  %v2615 = vsel %vm2577, %v2486, %v2614
  %v2616 = vsel %vm2579, %v2487, %v2615
  %v2617 = vsel %vm2581, %v2488, %v2616
  %v2618 = vsel %vm2569, %v2490, %v2489
  %v2619 = vsel %vm2571, %v2491, %v2618
  %v2620 = vsel %vm2573, %v2492, %v2619
  %v2621 = vsel %vm2575, %v2493, %v2620
  %v2622 = vsel %vm2577, %v2494, %v2621
  %v2623 = vsel %vm2579, %v2495, %v2622
  %v2624 = vsel %vm2581, %v2496, %v2623
  %v2625 = vsel %vm2569, %v2498, %v2497
  %v2626 = vsel %vm2571, %v2499, %v2625
  %v2627 = vsel %vm2573, %v2500, %v2626
  %v2628 = vsel %vm2575, %v2501, %v2627
  %v2629 = vsel %vm2577, %v2502, %v2628
  %v2630 = vsel %vm2579, %v2503, %v2629
  %v2631 = vsel %vm2581, %v2504, %v2630
  %v2632 = vsel %vm2569, %v2506, %v2505
  %v2633 = vsel %vm2571, %v2507, %v2632
  %v2634 = vsel %vm2573, %v2508, %v2633
  %v2635 = vsel %vm2575, %v2509, %v2634
  %v2636 = vsel %vm2577, %v2510, %v2635
  %v2637 = vsel %vm2579, %v2511, %v2636
  %v2638 = vsel %vm2581, %v2512, %v2637
  %v2639 = vsel %vm2569, %v2514, %v2513
  %v2640 = vsel %vm2571, %v2515, %v2639
  %v2641 = vsel %vm2573, %v2516, %v2640
  %v2642 = vsel %vm2575, %v2517, %v2641
  %v2643 = vsel %vm2577, %v2518, %v2642
  %v2644 = vsel %vm2579, %v2519, %v2643
  %v2645 = vsel %vm2581, %v2520, %v2644
  %v2646 = vsel %vm2569, %v2522, %v2521
  %v2647 = vsel %vm2571, %v2523, %v2646
  %v2648 = vsel %vm2573, %v2524, %v2647
  %v2649 = vsel %vm2575, %v2525, %v2648
  %v2650 = vsel %vm2577, %v2526, %v2649
  %v2651 = vsel %vm2579, %v2527, %v2650
  %v2652 = vsel %vm2581, %v2528, %v2651
  %v2653 = vsel %vm2569, %v2530, %v2529
  %v2654 = vsel %vm2571, %v2531, %v2653
  %v2655 = vsel %vm2573, %v2532, %v2654
  %v2656 = vsel %vm2575, %v2533, %v2655
  %v2657 = vsel %vm2577, %v2534, %v2656
  %v2658 = vsel %vm2579, %v2535, %v2657
  %v2659 = vsel %vm2581, %v2536, %v2658
  %v2660 = vsel %vm2569, %v2538, %v2537
  %v2661 = vsel %vm2571, %v2539, %v2660
  %v2662 = vsel %vm2573, %v2540, %v2661
  %v2663 = vsel %vm2575, %v2541, %v2662
  %v2664 = vsel %vm2577, %v2542, %v2663
  %v2665 = vsel %vm2579, %v2543, %v2664
  %v2666 = vsel %vm2581, %v2544, %v2665
  %v2667 = vsel %vm2569, %v2546, %v2545
  %v2668 = vsel %vm2571, %v2547, %v2667
  %v2669 = vsel %vm2573, %v2548, %v2668
  %v2670 = vsel %vm2575, %v2549, %v2669
  %v2671 = vsel %vm2577, %v2550, %v2670
  %v2672 = vsel %vm2579, %v2551, %v2671
  %v2673 = vsel %vm2581, %v2552, %v2672
  %v2674 = vsel %vm2569, %v2554, %v2553
  %v2675 = vsel %vm2571, %v2555, %v2674
  %v2676 = vsel %vm2573, %v2556, %v2675
  %v2677 = vsel %vm2575, %v2557, %v2676
  %v2678 = vsel %vm2577, %v2558, %v2677
  %v2679 = vsel %vm2579, %v2559, %v2678
  %v2680 = vsel %vm2581, %v2560, %v2679
  %v2681 = vsel %vm2569, %v2562, %v2561
  %v2682 = vsel %vm2571, %v2563, %v2681
  %v2683 = vsel %vm2573, %v2564, %v2682
  %v2684 = vsel %vm2575, %v2565, %v2683
  %v2685 = vsel %vm2577, %v2566, %v2684
  %v2686 = vsel %vm2579, %v2567, %v2685
  %v2687 = vsel %vm2581, %v2568, %v2686
  %v2688 = vpack.c.b16 %v2582, %v2582
  %v2689 = vpack.c.b16 %v2589, %v2589
  %v2690 = vpack.c.b16 %v2596, %v2596
  %v2691 = vpack.c.b16 %v2603, %v2603
  %v2692 = vpack.c.b16 %v2610, %v2610
  %v2693 = vpack.c.b16 %v2617, %v2617
  %v2694 = vpack.c.b16 %v2624, %v2624
  %v2695 = vpack.c.b16 %v2631, %v2631
  %v2696 = vpack.c.b16 %v2638, %v2638
  %v2697 = vpack.c.b16 %v2645, %v2645
  %v2698 = vpack.c.b16 %v2652, %v2652
  %v2699 = vpack.c.b16 %v2659, %v2659
  %v2700 = vpack.c.b16 %v2666, %v2666
  %v2701 = vpack.c.b16 %v2673, %v2673
  %v2702 = vpack.c.b16 %v2680, %v2680
  %v2703 = vpack.c.b16 %v2687, %v2687
  %vm2720 = vcmask 27648
  %2721 = vst.msk [vmem:[%s1] sm:$0xf] %vm2720, %v2688
  %2722 = vst.msk [vmem:[%s1 + $0x4] sm:$0xf] %vm2720, %v2689
  %2723 = vst.msk [vmem:[%s1 + $0x8] sm:$0xf] %vm2720, %v2690
  %2724 = vst.msk [vmem:[%s1 + $0xc] sm:$0xf] %vm2720, %v2691
  %2725 = vst.msk [vmem:[%s1 + $0x10] sm:$0xf] %vm2720, %v2692
  %2726 = vst.msk [vmem:[%s1 + $0x14] sm:$0xf] %vm2720, %v2693
  %2727 = vst.msk [vmem:[%s1 + $0x18] sm:$0xf] %vm2720, %v2694
  %2728 = vst.msk [vmem:[%s1 + $0x1c] sm:$0xf] %vm2720, %v2695
  %2729 = vst.msk [vmem:[%s1 + $0x20] sm:$0xf] %vm2720, %v2696
  %2730 = vst.msk [vmem:[%s1 + $0x24] sm:$0xf] %vm2720, %v2697
  %2731 = vst.msk [vmem:[%s1 + $0x28] sm:$0xf] %vm2720, %v2698
  %2732 = vst.msk [vmem:[%s1 + $0x2c] sm:$0xf] %vm2720, %v2699
  %2733 = vst.msk [vmem:[%s1 + $0x30] sm:$0xf] %vm2720, %v2700
  %2734 = vst.msk [vmem:[%s1 + $0x34] sm:$0xf] %vm2720, %v2701
  %2735 = vst.msk [vmem:[%s1 + $0x38] sm:$0xf] %vm2720, %v2702
  %2736 = vst.msk [vmem:[%s1 + $0x3c] sm:$0xf] %vm2720, %v2703
  // Predicated region
  $region6: #{bottleneck_forward.9} parent=0 // pred_check
    _
  $region7: #{bottleneck_forward.9} parent=0 // pred_check_branch
    %2738 = sbr.rel (0) target = $region9
  $region8: #{bottleneck_forward.9} parent=0 // pred_region
    _
  $region9: #{bottleneck_forward.9} parent=0 // pred_fallthru
    _
  // Predicated region
  $region10: #{bottleneck_forward.9} parent=0 // pred_check
    _
  $region11: #{bottleneck_forward.9} parent=0 // pred_check_branch
    %2740 = sbr.rel (0) target = $region13
  $region12: #{bottleneck_forward.9} parent=0 // pred_region
    _
  $region13: #{bottleneck_forward.9} parent=0 // pred_fallthru
    _

// kernel: bottleneck_forward.8
$region0: #{bottleneck_forward.8}
  #allocation0 [shape = 'u32[]', space=smem, size = 0x4, offset = 0x4, fixed_abs, tag = 'smem constant byte address 0x4 - core index']
  #allocation1 [shape = 'u32[144,128]{1,0:T(1,128)}', space=vmem, size = 0x12000, scoped, tag = 'internal scratch']
  %s0 = inlined_call_operand.vmem [shape: bf16[16,2,8,2,8], index: 0, kind: input, shape index: {}]
  %s1 = inlined_call_operand.vmem [shape: bf16[16,8,8], index: 1, kind: output, shape index: {}]
  %s2 = sld [smem:[#allocation0]]
  $region14: #{bottleneck_forward.8} parent=0
    _
  %s4 = ssub.s32 1, %s2
  %s5 = scalar_select 0, %s4, %s2
  // Predicated region
  $region2: #{bottleneck_forward.8} parent=0 // pred_check
    _
  $region3: #{bottleneck_forward.8} parent=0 // pred_check_branch
    %7 = sbr.rel (0) target = $region5
  $region4: #{bottleneck_forward.8} parent=0 // pred_region
    _
  $region5: #{bottleneck_forward.8} parent=0 // pred_fallthru
    _
  %v8 = vld [vmem:[%s0] sm:$0x1]
  %v9 = vld [vmem:[%s0 + $0x1] sm:$0x1]
  %v10 = vld [vmem:[%s0 + $0x2] sm:$0x1]
  %v11 = vld [vmem:[%s0 + $0x3] sm:$0x1]
  %v12 = vld [vmem:[%s0 + $0x4] sm:$0x1]
  %v13 = vld [vmem:[%s0 + $0x5] sm:$0x1]
  %v14 = vld [vmem:[%s0 + $0x6] sm:$0x1]
  %v15 = vld [vmem:[%s0 + $0x7] sm:$0x1]
  %v16 = vld [vmem:[%s0 + $0x8] sm:$0x1]
  %v17 = vld [vmem:[%s0 + $0x9] sm:$0x1]
  %v18 = vld [vmem:[%s0 + $0xa] sm:$0x1]
  %v19 = vld [vmem:[%s0 + $0xb] sm:$0x1]
  %v20 = vld [vmem:[%s0 + $0xc] sm:$0x1]
  %v21 = vld [vmem:[%s0 + $0xd] sm:$0x1]
  %v22 = vld [vmem:[%s0 + $0xe] sm:$0x1]
  %v23 = vld [vmem:[%s0 + $0xf] sm:$0x1]
  %v24 = vld [vmem:[%s0 + $0x10] sm:$0x1]
  %v25 = vld [vmem:[%s0 + $0x11] sm:$0x1]
  %v26 = vld [vmem:[%s0 + $0x12] sm:$0x1]
  %v27 = vld [vmem:[%s0 + $0x13] sm:$0x1]
  %v28 = vld [vmem:[%s0 + $0x14] sm:$0x1]
  %v29 = vld [vmem:[%s0 + $0x15] sm:$0x1]
  %v30 = vld [vmem:[%s0 + $0x16] sm:$0x1]
  %v31 = vld [vmem:[%s0 + $0x17] sm:$0x1]
  %v32 = vld [vmem:[%s0 + $0x18] sm:$0x1]
  %v33 = vld [vmem:[%s0 + $0x19] sm:$0x1]
  %v34 = vld [vmem:[%s0 + $0x1a] sm:$0x1]
  %v35 = vld [vmem:[%s0 + $0x1b] sm:$0x1]
  %v36 = vld [vmem:[%s0 + $0x1c] sm:$0x1]
  %v37 = vld [vmem:[%s0 + $0x1d] sm:$0x1]
  %v38 = vld [vmem:[%s0 + $0x1e] sm:$0x1]
  %v39 = vld [vmem:[%s0 + $0x1f] sm:$0x1]
  %v40 = vld [vmem:[%s0 + $0x20] sm:$0x1]
  %v41 = vld [vmem:[%s0 + $0x21] sm:$0x1]
  %v42 = vld [vmem:[%s0 + $0x22] sm:$0x1]
  %v43 = vld [vmem:[%s0 + $0x23] sm:$0x1]
  %v44 = vld [vmem:[%s0 + $0x24] sm:$0x1]
  %v45 = vld [vmem:[%s0 + $0x25] sm:$0x1]
  %v46 = vld [vmem:[%s0 + $0x26] sm:$0x1]
  %v47 = vld [vmem:[%s0 + $0x27] sm:$0x1]
  %v48 = vld [vmem:[%s0 + $0x28] sm:$0x1]
  %v49 = vld [vmem:[%s0 + $0x29] sm:$0x1]
  %v50 = vld [vmem:[%s0 + $0x2a] sm:$0x1]
  %v51 = vld [vmem:[%s0 + $0x2b] sm:$0x1]
  %v52 = vld [vmem:[%s0 + $0x2c] sm:$0x1]
  %v53 = vld [vmem:[%s0 + $0x2d] sm:$0x1]
  %v54 = vld [vmem:[%s0 + $0x2e] sm:$0x1]
  %v55 = vld [vmem:[%s0 + $0x2f] sm:$0x1]
  %v56 = vld [vmem:[%s0 + $0x30] sm:$0x1]
  %v57 = vld [vmem:[%s0 + $0x31] sm:$0x1]
  %v58 = vld [vmem:[%s0 + $0x32] sm:$0x1]
  %v59 = vld [vmem:[%s0 + $0x33] sm:$0x1]
  %v60 = vld [vmem:[%s0 + $0x34] sm:$0x1]
  %v61 = vld [vmem:[%s0 + $0x35] sm:$0x1]
  %v62 = vld [vmem:[%s0 + $0x36] sm:$0x1]
  %v63 = vld [vmem:[%s0 + $0x37] sm:$0x1]
  %v64 = vld [vmem:[%s0 + $0x38] sm:$0x1]
  %v65 = vld [vmem:[%s0 + $0x39] sm:$0x1]
  %v66 = vld [vmem:[%s0 + $0x3a] sm:$0x1]
  %v67 = vld [vmem:[%s0 + $0x3b] sm:$0x1]
  %v68 = vld [vmem:[%s0 + $0x3c] sm:$0x1]
  %v69 = vld [vmem:[%s0 + $0x3d] sm:$0x1]
  %v70 = vld [vmem:[%s0 + $0x3e] sm:$0x1]
  %v71 = vld [vmem:[%s0 + $0x3f] sm:$0x1]
  %v72 = vld [vmem:[%s0 + $0x40] sm:$0x1]
  %v73 = vld [vmem:[%s0 + $0x41] sm:$0x1]
  %v74 = vld [vmem:[%s0 + $0x42] sm:$0x1]
  %v75 = vld [vmem:[%s0 + $0x43] sm:$0x1]
  %v76 = vld [vmem:[%s0 + $0x44] sm:$0x1]
  %v77 = vld [vmem:[%s0 + $0x45] sm:$0x1]
  %v78 = vld [vmem:[%s0 + $0x46] sm:$0x1]
  %v79 = vld [vmem:[%s0 + $0x47] sm:$0x1]
  %v80 = vld [vmem:[%s0 + $0x48] sm:$0x1]
  %v81 = vld [vmem:[%s0 + $0x49] sm:$0x1]
  %v82 = vld [vmem:[%s0 + $0x4a] sm:$0x1]
  %v83 = vld [vmem:[%s0 + $0x4b] sm:$0x1]
  %v84 = vld [vmem:[%s0 + $0x4c] sm:$0x1]
  %v85 = vld [vmem:[%s0 + $0x4d] sm:$0x1]
  %v86 = vld [vmem:[%s0 + $0x4e] sm:$0x1]
  %v87 = vld [vmem:[%s0 + $0x4f] sm:$0x1]
  %v88 = vld [vmem:[%s0 + $0x50] sm:$0x1]
  %v89 = vld [vmem:[%s0 + $0x51] sm:$0x1]
  %v90 = vld [vmem:[%s0 + $0x52] sm:$0x1]
  %v91 = vld [vmem:[%s0 + $0x53] sm:$0x1]
  %v92 = vld [vmem:[%s0 + $0x54] sm:$0x1]
  %v93 = vld [vmem:[%s0 + $0x55] sm:$0x1]
  %v94 = vld [vmem:[%s0 + $0x56] sm:$0x1]
  %v95 = vld [vmem:[%s0 + $0x57] sm:$0x1]
  %v96 = vld [vmem:[%s0 + $0x58] sm:$0x1]
  %v97 = vld [vmem:[%s0 + $0x59] sm:$0x1]
  %v98 = vld [vmem:[%s0 + $0x5a] sm:$0x1]
  %v99 = vld [vmem:[%s0 + $0x5b] sm:$0x1]
  %v100 = vld [vmem:[%s0 + $0x5c] sm:$0x1]
  %v101 = vld [vmem:[%s0 + $0x5d] sm:$0x1]
  %v102 = vld [vmem:[%s0 + $0x5e] sm:$0x1]
  %v103 = vld [vmem:[%s0 + $0x5f] sm:$0x1]
  %v104 = vld [vmem:[%s0 + $0x60] sm:$0x1]
  %v105 = vld [vmem:[%s0 + $0x61] sm:$0x1]
  %v106 = vld [vmem:[%s0 + $0x62] sm:$0x1]
  %v107 = vld [vmem:[%s0 + $0x63] sm:$0x1]
  %v108 = vld [vmem:[%s0 + $0x64] sm:$0x1]
  %v109 = vld [vmem:[%s0 + $0x65] sm:$0x1]
  %v110 = vld [vmem:[%s0 + $0x66] sm:$0x1]
  %v111 = vld [vmem:[%s0 + $0x67] sm:$0x1]
  %v112 = vld [vmem:[%s0 + $0x68] sm:$0x1]
  %v113 = vld [vmem:[%s0 + $0x69] sm:$0x1]
  %v114 = vld [vmem:[%s0 + $0x6a] sm:$0x1]
  %v115 = vld [vmem:[%s0 + $0x6b] sm:$0x1]
  %v116 = vld [vmem:[%s0 + $0x6c] sm:$0x1]
  %v117 = vld [vmem:[%s0 + $0x6d] sm:$0x1]
  %v118 = vld [vmem:[%s0 + $0x6e] sm:$0x1]
  %v119 = vld [vmem:[%s0 + $0x6f] sm:$0x1]
  %v120 = vld [vmem:[%s0 + $0x70] sm:$0x1]
  %v121 = vld [vmem:[%s0 + $0x71] sm:$0x1]
  %v122 = vld [vmem:[%s0 + $0x72] sm:$0x1]
  %v123 = vld [vmem:[%s0 + $0x73] sm:$0x1]
  %v124 = vld [vmem:[%s0 + $0x74] sm:$0x1]
  %v125 = vld [vmem:[%s0 + $0x75] sm:$0x1]
  %v126 = vld [vmem:[%s0 + $0x76] sm:$0x1]
  %v127 = vld [vmem:[%s0 + $0x77] sm:$0x1]
  %v128 = vld [vmem:[%s0 + $0x78] sm:$0x1]
  %v129 = vld [vmem:[%s0 + $0x79] sm:$0x1]
  %v130 = vld [vmem:[%s0 + $0x7a] sm:$0x1]
  %v131 = vld [vmem:[%s0 + $0x7b] sm:$0x1]
  %v132 = vld [vmem:[%s0 + $0x7c] sm:$0x1]
  %v133 = vld [vmem:[%s0 + $0x7d] sm:$0x1]
  %v134 = vld [vmem:[%s0 + $0x7e] sm:$0x1]
  %v135 = vld [vmem:[%s0 + $0x7f] sm:$0x1]
  %v136 = vld [vmem:[%s0 + $0x80] sm:$0x1]
  %v137 = vld [vmem:[%s0 + $0x81] sm:$0x1]
  %v138 = vld [vmem:[%s0 + $0x82] sm:$0x1]
  %v139 = vld [vmem:[%s0 + $0x83] sm:$0x1]
  %v140 = vld [vmem:[%s0 + $0x84] sm:$0x1]
  %v141 = vld [vmem:[%s0 + $0x85] sm:$0x1]
  %v142 = vld [vmem:[%s0 + $0x86] sm:$0x1]
  %v143 = vld [vmem:[%s0 + $0x87] sm:$0x1]
  %v144 = vld [vmem:[%s0 + $0x88] sm:$0x1]
  %v145 = vld [vmem:[%s0 + $0x89] sm:$0x1]
  %v146 = vld [vmem:[%s0 + $0x8a] sm:$0x1]
  %v147 = vld [vmem:[%s0 + $0x8b] sm:$0x1]
  %v148 = vld [vmem:[%s0 + $0x8c] sm:$0x1]
  %v149 = vld [vmem:[%s0 + $0x8d] sm:$0x1]
  %v150 = vld [vmem:[%s0 + $0x8e] sm:$0x1]
  %v151 = vld [vmem:[%s0 + $0x8f] sm:$0x1]
  %v152 = vld [vmem:[%s0 + $0x90] sm:$0x1]
  %v153 = vld [vmem:[%s0 + $0x91] sm:$0x1]
  %v154 = vld [vmem:[%s0 + $0x92] sm:$0x1]
  %v155 = vld [vmem:[%s0 + $0x93] sm:$0x1]
  %v156 = vld [vmem:[%s0 + $0x94] sm:$0x1]
  %v157 = vld [vmem:[%s0 + $0x95] sm:$0x1]
  %v158 = vld [vmem:[%s0 + $0x96] sm:$0x1]
  %v159 = vld [vmem:[%s0 + $0x97] sm:$0x1]
  %v160 = vld [vmem:[%s0 + $0x98] sm:$0x1]
  %v161 = vld [vmem:[%s0 + $0x99] sm:$0x1]
  %v162 = vld [vmem:[%s0 + $0x9a] sm:$0x1]
  %v163 = vld [vmem:[%s0 + $0x9b] sm:$0x1]
  %v164 = vld [vmem:[%s0 + $0x9c] sm:$0x1]
  %v165 = vld [vmem:[%s0 + $0x9d] sm:$0x1]
  %v166 = vld [vmem:[%s0 + $0x9e] sm:$0x1]
  %v167 = vld [vmem:[%s0 + $0x9f] sm:$0x1]
  %v168 = vld [vmem:[%s0 + $0xa0] sm:$0x1]
  %v169 = vld [vmem:[%s0 + $0xa1] sm:$0x1]
  %v170 = vld [vmem:[%s0 + $0xa2] sm:$0x1]
  %v171 = vld [vmem:[%s0 + $0xa3] sm:$0x1]
  %v172 = vld [vmem:[%s0 + $0xa4] sm:$0x1]
  %v173 = vld [vmem:[%s0 + $0xa5] sm:$0x1]
  %v174 = vld [vmem:[%s0 + $0xa6] sm:$0x1]
  %v175 = vld [vmem:[%s0 + $0xa7] sm:$0x1]
  %v176 = vld [vmem:[%s0 + $0xa8] sm:$0x1]
  %v177 = vld [vmem:[%s0 + $0xa9] sm:$0x1]
  %v178 = vld [vmem:[%s0 + $0xaa] sm:$0x1]
  %v179 = vld [vmem:[%s0 + $0xab] sm:$0x1]
  %v180 = vld [vmem:[%s0 + $0xac] sm:$0x1]
  %v181 = vld [vmem:[%s0 + $0xad] sm:$0x1]
  %v182 = vld [vmem:[%s0 + $0xae] sm:$0x1]
  %v183 = vld [vmem:[%s0 + $0xaf] sm:$0x1]
  %v184 = vld [vmem:[%s0 + $0xb0] sm:$0x1]
  %v185 = vld [vmem:[%s0 + $0xb1] sm:$0x1]
  %v186 = vld [vmem:[%s0 + $0xb2] sm:$0x1]
  %v187 = vld [vmem:[%s0 + $0xb3] sm:$0x1]
  %v188 = vld [vmem:[%s0 + $0xb4] sm:$0x1]
  %v189 = vld [vmem:[%s0 + $0xb5] sm:$0x1]
  %v190 = vld [vmem:[%s0 + $0xb6] sm:$0x1]
  %v191 = vld [vmem:[%s0 + $0xb7] sm:$0x1]
  %v192 = vld [vmem:[%s0 + $0xb8] sm:$0x1]
  %v193 = vld [vmem:[%s0 + $0xb9] sm:$0x1]
  %v194 = vld [vmem:[%s0 + $0xba] sm:$0x1]
  %v195 = vld [vmem:[%s0 + $0xbb] sm:$0x1]
  %v196 = vld [vmem:[%s0 + $0xbc] sm:$0x1]
  %v197 = vld [vmem:[%s0 + $0xbd] sm:$0x1]
  %v198 = vld [vmem:[%s0 + $0xbe] sm:$0x1]
  %v199 = vld [vmem:[%s0 + $0xbf] sm:$0x1]
  %v200 = vld [vmem:[%s0 + $0xc0] sm:$0x1]
  %v201 = vld [vmem:[%s0 + $0xc1] sm:$0x1]
  %v202 = vld [vmem:[%s0 + $0xc2] sm:$0x1]
  %v203 = vld [vmem:[%s0 + $0xc3] sm:$0x1]
  %v204 = vld [vmem:[%s0 + $0xc4] sm:$0x1]
  %v205 = vld [vmem:[%s0 + $0xc5] sm:$0x1]
  %v206 = vld [vmem:[%s0 + $0xc6] sm:$0x1]
  %v207 = vld [vmem:[%s0 + $0xc7] sm:$0x1]
  %v208 = vld [vmem:[%s0 + $0xc8] sm:$0x1]
  %v209 = vld [vmem:[%s0 + $0xc9] sm:$0x1]
  %v210 = vld [vmem:[%s0 + $0xca] sm:$0x1]
  %v211 = vld [vmem:[%s0 + $0xcb] sm:$0x1]
  %v212 = vld [vmem:[%s0 + $0xcc] sm:$0x1]
  %v213 = vld [vmem:[%s0 + $0xcd] sm:$0x1]
  %v214 = vld [vmem:[%s0 + $0xce] sm:$0x1]
  %v215 = vld [vmem:[%s0 + $0xcf] sm:$0x1]
  %v216 = vld [vmem:[%s0 + $0xd0] sm:$0x1]
  %v217 = vld [vmem:[%s0 + $0xd1] sm:$0x1]
  %v218 = vld [vmem:[%s0 + $0xd2] sm:$0x1]
  %v219 = vld [vmem:[%s0 + $0xd3] sm:$0x1]
  %v220 = vld [vmem:[%s0 + $0xd4] sm:$0x1]
  %v221 = vld [vmem:[%s0 + $0xd5] sm:$0x1]
  %v222 = vld [vmem:[%s0 + $0xd6] sm:$0x1]
  %v223 = vld [vmem:[%s0 + $0xd7] sm:$0x1]
  %v224 = vld [vmem:[%s0 + $0xd8] sm:$0x1]
  %v225 = vld [vmem:[%s0 + $0xd9] sm:$0x1]
  %v226 = vld [vmem:[%s0 + $0xda] sm:$0x1]
  %v227 = vld [vmem:[%s0 + $0xdb] sm:$0x1]
  %v228 = vld [vmem:[%s0 + $0xdc] sm:$0x1]
  %v229 = vld [vmem:[%s0 + $0xdd] sm:$0x1]
  %v230 = vld [vmem:[%s0 + $0xde] sm:$0x1]
  %v231 = vld [vmem:[%s0 + $0xdf] sm:$0x1]
  %v232 = vld [vmem:[%s0 + $0xe0] sm:$0x1]
  %v233 = vld [vmem:[%s0 + $0xe1] sm:$0x1]
  %v234 = vld [vmem:[%s0 + $0xe2] sm:$0x1]
  %v235 = vld [vmem:[%s0 + $0xe3] sm:$0x1]
  %v236 = vld [vmem:[%s0 + $0xe4] sm:$0x1]
  %v237 = vld [vmem:[%s0 + $0xe5] sm:$0x1]
  %v238 = vld [vmem:[%s0 + $0xe6] sm:$0x1]
  %v239 = vld [vmem:[%s0 + $0xe7] sm:$0x1]
  %v240 = vld [vmem:[%s0 + $0xe8] sm:$0x1]
  %v241 = vld [vmem:[%s0 + $0xe9] sm:$0x1]
  %v242 = vld [vmem:[%s0 + $0xea] sm:$0x1]
  %v243 = vld [vmem:[%s0 + $0xeb] sm:$0x1]
  %v244 = vld [vmem:[%s0 + $0xec] sm:$0x1]
  %v245 = vld [vmem:[%s0 + $0xed] sm:$0x1]
  %v246 = vld [vmem:[%s0 + $0xee] sm:$0x1]
  %v247 = vld [vmem:[%s0 + $0xef] sm:$0x1]
  %v248 = vld [vmem:[%s0 + $0xf0] sm:$0x1]
  %v249 = vld [vmem:[%s0 + $0xf1] sm:$0x1]
  %v250 = vld [vmem:[%s0 + $0xf2] sm:$0x1]
  %v251 = vld [vmem:[%s0 + $0xf3] sm:$0x1]
  %v252 = vld [vmem:[%s0 + $0xf4] sm:$0x1]
  %v253 = vld [vmem:[%s0 + $0xf5] sm:$0x1]
  %v254 = vld [vmem:[%s0 + $0xf6] sm:$0x1]
  %v255 = vld [vmem:[%s0 + $0xf7] sm:$0x1]
  %v256 = vld [vmem:[%s0 + $0xf8] sm:$0x1]
  %v257 = vld [vmem:[%s0 + $0xf9] sm:$0x1]
  %v258 = vld [vmem:[%s0 + $0xfa] sm:$0x1]
  %v259 = vld [vmem:[%s0 + $0xfb] sm:$0x1]
  %v260 = vld [vmem:[%s0 + $0xfc] sm:$0x1]
  %v261 = vld [vmem:[%s0 + $0xfd] sm:$0x1]
  %v262 = vld [vmem:[%s0 + $0xfe] sm:$0x1]
  %v263 = vld [vmem:[%s0 + $0xff] sm:$0x1]
  %v264 = vunpack.c.l.bf16 %v8
  %v265 = vunpack.c.l.bf16 %v9
  %v266 = vunpack.c.l.bf16 %v10
  %v267 = vunpack.c.l.bf16 %v11
  %v268 = vunpack.c.l.bf16 %v12
  %v269 = vunpack.c.l.bf16 %v13
  %v270 = vunpack.c.l.bf16 %v14
  %v271 = vunpack.c.l.bf16 %v15
  %v272 = vunpack.c.l.bf16 %v16
  %v273 = vunpack.c.l.bf16 %v17
  %v274 = vunpack.c.l.bf16 %v18
  %v275 = vunpack.c.l.bf16 %v19
  %v276 = vunpack.c.l.bf16 %v20
  %v277 = vunpack.c.l.bf16 %v21
  %v278 = vunpack.c.l.bf16 %v22
  %v279 = vunpack.c.l.bf16 %v23
  %v280 = vunpack.c.l.bf16 %v24
  %v281 = vunpack.c.l.bf16 %v25
  %v282 = vunpack.c.l.bf16 %v26
  %v283 = vunpack.c.l.bf16 %v27
  %v284 = vunpack.c.l.bf16 %v28
  %v285 = vunpack.c.l.bf16 %v29
  %v286 = vunpack.c.l.bf16 %v30
  %v287 = vunpack.c.l.bf16 %v31
  %v288 = vunpack.c.l.bf16 %v32
  %v289 = vunpack.c.l.bf16 %v33
  %v290 = vunpack.c.l.bf16 %v34
  %v291 = vunpack.c.l.bf16 %v35
  %v292 = vunpack.c.l.bf16 %v36
  %v293 = vunpack.c.l.bf16 %v37
  %v294 = vunpack.c.l.bf16 %v38
  %v295 = vunpack.c.l.bf16 %v39
  %v296 = vunpack.c.l.bf16 %v40
  %v297 = vunpack.c.l.bf16 %v41
  %v298 = vunpack.c.l.bf16 %v42
  %v299 = vunpack.c.l.bf16 %v43
  %v300 = vunpack.c.l.bf16 %v44
  %v301 = vunpack.c.l.bf16 %v45
  %v302 = vunpack.c.l.bf16 %v46
  %v303 = vunpack.c.l.bf16 %v47
  %v304 = vunpack.c.l.bf16 %v48
  %v305 = vunpack.c.l.bf16 %v49
  %v306 = vunpack.c.l.bf16 %v50
  %v307 = vunpack.c.l.bf16 %v51
  %v308 = vunpack.c.l.bf16 %v52
  %v309 = vunpack.c.l.bf16 %v53
  %v310 = vunpack.c.l.bf16 %v54
  %v311 = vunpack.c.l.bf16 %v55
  %v312 = vunpack.c.l.bf16 %v56
  %v313 = vunpack.c.l.bf16 %v57
  %v314 = vunpack.c.l.bf16 %v58
  %v315 = vunpack.c.l.bf16 %v59
  %v316 = vunpack.c.l.bf16 %v60
  %v317 = vunpack.c.l.bf16 %v61
  %v318 = vunpack.c.l.bf16 %v62
  %v319 = vunpack.c.l.bf16 %v63
  %v320 = vunpack.c.l.bf16 %v64
  %v321 = vunpack.c.l.bf16 %v65
  %v322 = vunpack.c.l.bf16 %v66
  %v323 = vunpack.c.l.bf16 %v67
  %v324 = vunpack.c.l.bf16 %v68
  %v325 = vunpack.c.l.bf16 %v69
  %v326 = vunpack.c.l.bf16 %v70
  %v327 = vunpack.c.l.bf16 %v71
  %v328 = vunpack.c.l.bf16 %v72
  %v329 = vunpack.c.l.bf16 %v73
  %v330 = vunpack.c.l.bf16 %v74
  %v331 = vunpack.c.l.bf16 %v75
  %v332 = vunpack.c.l.bf16 %v76
  %v333 = vunpack.c.l.bf16 %v77
  %v334 = vunpack.c.l.bf16 %v78
  %v335 = vunpack.c.l.bf16 %v79
  %v336 = vunpack.c.l.bf16 %v80
  %v337 = vunpack.c.l.bf16 %v81
  %v338 = vunpack.c.l.bf16 %v82
  %v339 = vunpack.c.l.bf16 %v83
  %v340 = vunpack.c.l.bf16 %v84
  %v341 = vunpack.c.l.bf16 %v85
  %v342 = vunpack.c.l.bf16 %v86
  %v343 = vunpack.c.l.bf16 %v87
  %v344 = vunpack.c.l.bf16 %v88
  %v345 = vunpack.c.l.bf16 %v89
  %v346 = vunpack.c.l.bf16 %v90
  %v347 = vunpack.c.l.bf16 %v91
  %v348 = vunpack.c.l.bf16 %v92
  %v349 = vunpack.c.l.bf16 %v93
  %v350 = vunpack.c.l.bf16 %v94
  %v351 = vunpack.c.l.bf16 %v95
  %v352 = vunpack.c.l.bf16 %v96
  %v353 = vunpack.c.l.bf16 %v97
  %v354 = vunpack.c.l.bf16 %v98
  %v355 = vunpack.c.l.bf16 %v99
  %v356 = vunpack.c.l.bf16 %v100
  %v357 = vunpack.c.l.bf16 %v101
  %v358 = vunpack.c.l.bf16 %v102
  %v359 = vunpack.c.l.bf16 %v103
  %v360 = vunpack.c.l.bf16 %v104
  %v361 = vunpack.c.l.bf16 %v105
  %v362 = vunpack.c.l.bf16 %v106
  %v363 = vunpack.c.l.bf16 %v107
  %v364 = vunpack.c.l.bf16 %v108
  %v365 = vunpack.c.l.bf16 %v109
  %v366 = vunpack.c.l.bf16 %v110
  %v367 = vunpack.c.l.bf16 %v111
  %v368 = vunpack.c.l.bf16 %v112
  %v369 = vunpack.c.l.bf16 %v113
  %v370 = vunpack.c.l.bf16 %v114
  %v371 = vunpack.c.l.bf16 %v115
  %v372 = vunpack.c.l.bf16 %v116
  %v373 = vunpack.c.l.bf16 %v117
  %v374 = vunpack.c.l.bf16 %v118
  %v375 = vunpack.c.l.bf16 %v119
  %v376 = vunpack.c.l.bf16 %v120
  %v377 = vunpack.c.l.bf16 %v121
  %v378 = vunpack.c.l.bf16 %v122
  %v379 = vunpack.c.l.bf16 %v123
  %v380 = vunpack.c.l.bf16 %v124
  %v381 = vunpack.c.l.bf16 %v125
  %v382 = vunpack.c.l.bf16 %v126
  %v383 = vunpack.c.l.bf16 %v127
  %v384 = vunpack.c.l.bf16 %v128
  %v385 = vunpack.c.l.bf16 %v129
  %v386 = vunpack.c.l.bf16 %v130
  %v387 = vunpack.c.l.bf16 %v131
  %v388 = vunpack.c.l.bf16 %v132
  %v389 = vunpack.c.l.bf16 %v133
  %v390 = vunpack.c.l.bf16 %v134
  %v391 = vunpack.c.l.bf16 %v135
  %v392 = vunpack.c.l.bf16 %v136
  %v393 = vunpack.c.l.bf16 %v137
  %v394 = vunpack.c.l.bf16 %v138
  %v395 = vunpack.c.l.bf16 %v139
  %v396 = vunpack.c.l.bf16 %v140
  %v397 = vunpack.c.l.bf16 %v141
  %v398 = vunpack.c.l.bf16 %v142
  %v399 = vunpack.c.l.bf16 %v143
  %v400 = vunpack.c.l.bf16 %v144
  %v401 = vunpack.c.l.bf16 %v145
  %v402 = vunpack.c.l.bf16 %v146
  %v403 = vunpack.c.l.bf16 %v147
  %v404 = vunpack.c.l.bf16 %v148
  %v405 = vunpack.c.l.bf16 %v149
  %v406 = vunpack.c.l.bf16 %v150
  %v407 = vunpack.c.l.bf16 %v151
  %v408 = vunpack.c.l.bf16 %v152
  %v409 = vunpack.c.l.bf16 %v153
  %v410 = vunpack.c.l.bf16 %v154
  %v411 = vunpack.c.l.bf16 %v155
  %v412 = vunpack.c.l.bf16 %v156
  %v413 = vunpack.c.l.bf16 %v157
  %v414 = vunpack.c.l.bf16 %v158
  %v415 = vunpack.c.l.bf16 %v159
  %v416 = vunpack.c.l.bf16 %v160
  %v417 = vunpack.c.l.bf16 %v161
  %v418 = vunpack.c.l.bf16 %v162
  %v419 = vunpack.c.l.bf16 %v163
  %v420 = vunpack.c.l.bf16 %v164
  %v421 = vunpack.c.l.bf16 %v165
  %v422 = vunpack.c.l.bf16 %v166
  %v423 = vunpack.c.l.bf16 %v167
  %v424 = vunpack.c.l.bf16 %v168
  %v425 = vunpack.c.l.bf16 %v169
  %v426 = vunpack.c.l.bf16 %v170
  %v427 = vunpack.c.l.bf16 %v171
  %v428 = vunpack.c.l.bf16 %v172
  %v429 = vunpack.c.l.bf16 %v173
  %v430 = vunpack.c.l.bf16 %v174
  %v431 = vunpack.c.l.bf16 %v175
  %v432 = vunpack.c.l.bf16 %v176
  %v433 = vunpack.c.l.bf16 %v177
  %v434 = vunpack.c.l.bf16 %v178
  %v435 = vunpack.c.l.bf16 %v179
  %v436 = vunpack.c.l.bf16 %v180
  %v437 = vunpack.c.l.bf16 %v181
  %v438 = vunpack.c.l.bf16 %v182
  %v439 = vunpack.c.l.bf16 %v183
  %v440 = vunpack.c.l.bf16 %v184
  %v441 = vunpack.c.l.bf16 %v185
  %v442 = vunpack.c.l.bf16 %v186
  %v443 = vunpack.c.l.bf16 %v187
  %v444 = vunpack.c.l.bf16 %v188
  %v445 = vunpack.c.l.bf16 %v189
  %v446 = vunpack.c.l.bf16 %v190
  %v447 = vunpack.c.l.bf16 %v191
  %v448 = vunpack.c.l.bf16 %v192
  %v449 = vunpack.c.l.bf16 %v193
  %v450 = vunpack.c.l.bf16 %v194
  %v451 = vunpack.c.l.bf16 %v195
  %v452 = vunpack.c.l.bf16 %v196
  %v453 = vunpack.c.l.bf16 %v197
  %v454 = vunpack.c.l.bf16 %v198
  %v455 = vunpack.c.l.bf16 %v199
  %v456 = vunpack.c.l.bf16 %v200
  %v457 = vunpack.c.l.bf16 %v201
  %v458 = vunpack.c.l.bf16 %v202
  %v459 = vunpack.c.l.bf16 %v203
  %v460 = vunpack.c.l.bf16 %v204
  %v461 = vunpack.c.l.bf16 %v205
  %v462 = vunpack.c.l.bf16 %v206
  %v463 = vunpack.c.l.bf16 %v207
  %v464 = vunpack.c.l.bf16 %v208
  %v465 = vunpack.c.l.bf16 %v209
  %v466 = vunpack.c.l.bf16 %v210
  %v467 = vunpack.c.l.bf16 %v211
  %v468 = vunpack.c.l.bf16 %v212
  %v469 = vunpack.c.l.bf16 %v213
  %v470 = vunpack.c.l.bf16 %v214
  %v471 = vunpack.c.l.bf16 %v215
  %v472 = vunpack.c.l.bf16 %v216
  %v473 = vunpack.c.l.bf16 %v217
  %v474 = vunpack.c.l.bf16 %v218
  %v475 = vunpack.c.l.bf16 %v219
  %v476 = vunpack.c.l.bf16 %v220
  %v477 = vunpack.c.l.bf16 %v221
  %v478 = vunpack.c.l.bf16 %v222
  %v479 = vunpack.c.l.bf16 %v223
  %v480 = vunpack.c.l.bf16 %v224
  %v481 = vunpack.c.l.bf16 %v225
  %v482 = vunpack.c.l.bf16 %v226
  %v483 = vunpack.c.l.bf16 %v227
  %v484 = vunpack.c.l.bf16 %v228
  %v485 = vunpack.c.l.bf16 %v229
  %v486 = vunpack.c.l.bf16 %v230
  %v487 = vunpack.c.l.bf16 %v231
  %v488 = vunpack.c.l.bf16 %v232
  %v489 = vunpack.c.l.bf16 %v233
  %v490 = vunpack.c.l.bf16 %v234
  %v491 = vunpack.c.l.bf16 %v235
  %v492 = vunpack.c.l.bf16 %v236
  %v493 = vunpack.c.l.bf16 %v237
  %v494 = vunpack.c.l.bf16 %v238
  %v495 = vunpack.c.l.bf16 %v239
  %v496 = vunpack.c.l.bf16 %v240
  %v497 = vunpack.c.l.bf16 %v241
  %v498 = vunpack.c.l.bf16 %v242
  %v499 = vunpack.c.l.bf16 %v243
  %v500 = vunpack.c.l.bf16 %v244
  %v501 = vunpack.c.l.bf16 %v245
  %v502 = vunpack.c.l.bf16 %v246
  %v503 = vunpack.c.l.bf16 %v247
  %v504 = vunpack.c.l.bf16 %v248
  %v505 = vunpack.c.l.bf16 %v249
  %v506 = vunpack.c.l.bf16 %v250
  %v507 = vunpack.c.l.bf16 %v251
  %v508 = vunpack.c.l.bf16 %v252
  %v509 = vunpack.c.l.bf16 %v253
  %v510 = vunpack.c.l.bf16 %v254
  %v511 = vunpack.c.l.bf16 %v255
  %v512 = vunpack.c.l.bf16 %v256
  %v513 = vunpack.c.l.bf16 %v257
  %v514 = vunpack.c.l.bf16 %v258
  %v515 = vunpack.c.l.bf16 %v259
  %v516 = vunpack.c.l.bf16 %v260
  %v517 = vunpack.c.l.bf16 %v261
  %v518 = vunpack.c.l.bf16 %v262
  %v519 = vunpack.c.l.bf16 %v263
  %vm520 = vcmask 58368
  %v521 = vsel %vm520, %v264, 0.0
  %v522 = vsel %vm520, %v272, 0.0
  %v523 = vadd.f32 %v521, %v522
  %v524 = vsel %vm520, %v265, 0.0
  %v525 = vsel %vm520, %v273, 0.0
  %v526 = vadd.f32 %v524, %v525
  %v527 = vsel %vm520, %v266, 0.0
  %v528 = vsel %vm520, %v274, 0.0
  %v529 = vadd.f32 %v527, %v528
  %v530 = vsel %vm520, %v267, 0.0
  %v531 = vsel %vm520, %v275, 0.0
  %v532 = vadd.f32 %v530, %v531
  %v533 = vsel %vm520, %v268, 0.0
  %v534 = vsel %vm520, %v276, 0.0
  %v535 = vadd.f32 %v533, %v534
  %v536 = vsel %vm520, %v269, 0.0
  %v537 = vsel %vm520, %v277, 0.0
  %v538 = vadd.f32 %v536, %v537
  %v539 = vsel %vm520, %v270, 0.0
  %v540 = vsel %vm520, %v278, 0.0
  %v541 = vadd.f32 %v539, %v540
  %v542 = vsel %vm520, %v271, 0.0
  %v543 = vsel %vm520, %v279, 0.0
  %v544 = vadd.f32 %v542, %v543
  %v545 = vsel %vm520, %v280, 0.0
  %v546 = vsel %vm520, %v288, 0.0
  %v547 = vadd.f32 %v545, %v546
  %v548 = vsel %vm520, %v281, 0.0
  %v549 = vsel %vm520, %v289, 0.0
  %v550 = vadd.f32 %v548, %v549
  %v551 = vsel %vm520, %v282, 0.0
  %v552 = vsel %vm520, %v290, 0.0
  %v553 = vadd.f32 %v551, %v552
  %v554 = vsel %vm520, %v283, 0.0
  %v555 = vsel %vm520, %v291, 0.0
  %v556 = vadd.f32 %v554, %v555
  %v557 = vsel %vm520, %v284, 0.0
  %v558 = vsel %vm520, %v292, 0.0
  %v559 = vadd.f32 %v557, %v558
  %v560 = vsel %vm520, %v285, 0.0
  %v561 = vsel %vm520, %v293, 0.0
  %v562 = vadd.f32 %v560, %v561
  %v563 = vsel %vm520, %v286, 0.0
  %v564 = vsel %vm520, %v294, 0.0
  %v565 = vadd.f32 %v563, %v564
  %v566 = vsel %vm520, %v287, 0.0
  %v567 = vsel %vm520, %v295, 0.0
  %v568 = vadd.f32 %v566, %v567
  %v569 = vsel %vm520, %v296, 0.0
  %v570 = vsel %vm520, %v304, 0.0
  %v571 = vadd.f32 %v569, %v570
  %v572 = vsel %vm520, %v297, 0.0
  %v573 = vsel %vm520, %v305, 0.0
  %v574 = vadd.f32 %v572, %v573
  %v575 = vsel %vm520, %v298, 0.0
  %v576 = vsel %vm520, %v306, 0.0
  %v577 = vadd.f32 %v575, %v576
  %v578 = vsel %vm520, %v299, 0.0
  %v579 = vsel %vm520, %v307, 0.0
  %v580 = vadd.f32 %v578, %v579
  %v581 = vsel %vm520, %v300, 0.0
  %v582 = vsel %vm520, %v308, 0.0
  %v583 = vadd.f32 %v581, %v582
  %v584 = vsel %vm520, %v301, 0.0
  %v585 = vsel %vm520, %v309, 0.0
  %v586 = vadd.f32 %v584, %v585
  %v587 = vsel %vm520, %v302, 0.0
  %v588 = vsel %vm520, %v310, 0.0
  %v589 = vadd.f32 %v587, %v588
  %v590 = vsel %vm520, %v303, 0.0
  %v591 = vsel %vm520, %v311, 0.0
  %v592 = vadd.f32 %v590, %v591
  %v593 = vsel %vm520, %v312, 0.0
  %v594 = vsel %vm520, %v320, 0.0
  %v595 = vadd.f32 %v593, %v594
  %v596 = vsel %vm520, %v313, 0.0
  %v597 = vsel %vm520, %v321, 0.0
  %v598 = vadd.f32 %v596, %v597
  %v599 = vsel %vm520, %v314, 0.0
  %v600 = vsel %vm520, %v322, 0.0
  %v601 = vadd.f32 %v599, %v600
  %v602 = vsel %vm520, %v315, 0.0
  %v603 = vsel %vm520, %v323, 0.0
  %v604 = vadd.f32 %v602, %v603
  %v605 = vsel %vm520, %v316, 0.0
  %v606 = vsel %vm520, %v324, 0.0
  %v607 = vadd.f32 %v605, %v606
  %v608 = vsel %vm520, %v317, 0.0
  %v609 = vsel %vm520, %v325, 0.0
  %v610 = vadd.f32 %v608, %v609
  %v611 = vsel %vm520, %v318, 0.0
  %v612 = vsel %vm520, %v326, 0.0
  %v613 = vadd.f32 %v611, %v612
  %v614 = vsel %vm520, %v319, 0.0
  %v615 = vsel %vm520, %v327, 0.0
  %v616 = vadd.f32 %v614, %v615
  %v617 = vsel %vm520, %v328, 0.0
  %v618 = vsel %vm520, %v336, 0.0
  %v619 = vadd.f32 %v617, %v618
  %v620 = vsel %vm520, %v329, 0.0
  %v621 = vsel %vm520, %v337, 0.0
  %v622 = vadd.f32 %v620, %v621
  %v623 = vsel %vm520, %v330, 0.0
  %v624 = vsel %vm520, %v338, 0.0
  %v625 = vadd.f32 %v623, %v624
  %v626 = vsel %vm520, %v331, 0.0
  %v627 = vsel %vm520, %v339, 0.0
  %v628 = vadd.f32 %v626, %v627
  %v629 = vsel %vm520, %v332, 0.0
  %v630 = vsel %vm520, %v340, 0.0
  %v631 = vadd.f32 %v629, %v630
  %v632 = vsel %vm520, %v333, 0.0
  %v633 = vsel %vm520, %v341, 0.0
  %v634 = vadd.f32 %v632, %v633
  %v635 = vsel %vm520, %v334, 0.0
  %v636 = vsel %vm520, %v342, 0.0
  %v637 = vadd.f32 %v635, %v636
  %v638 = vsel %vm520, %v335, 0.0
  %v639 = vsel %vm520, %v343, 0.0
  %v640 = vadd.f32 %v638, %v639
  %v641 = vsel %vm520, %v344, 0.0
  %v642 = vsel %vm520, %v352, 0.0
  %v643 = vadd.f32 %v641, %v642
  %v644 = vsel %vm520, %v345, 0.0
  %v645 = vsel %vm520, %v353, 0.0
  %v646 = vadd.f32 %v644, %v645
  %v647 = vsel %vm520, %v346, 0.0
  %v648 = vsel %vm520, %v354, 0.0
  %v649 = vadd.f32 %v647, %v648
  %v650 = vsel %vm520, %v347, 0.0
  %v651 = vsel %vm520, %v355, 0.0
  %v652 = vadd.f32 %v650, %v651
  %v653 = vsel %vm520, %v348, 0.0
  %v654 = vsel %vm520, %v356, 0.0
  %v655 = vadd.f32 %v653, %v654
  %v656 = vsel %vm520, %v349, 0.0
  %v657 = vsel %vm520, %v357, 0.0
  %v658 = vadd.f32 %v656, %v657
  %v659 = vsel %vm520, %v350, 0.0
  %v660 = vsel %vm520, %v358, 0.0
  %v661 = vadd.f32 %v659, %v660
  %v662 = vsel %vm520, %v351, 0.0
  %v663 = vsel %vm520, %v359, 0.0
  %v664 = vadd.f32 %v662, %v663
  %v665 = vsel %vm520, %v360, 0.0
  %v666 = vsel %vm520, %v368, 0.0
  %v667 = vadd.f32 %v665, %v666
  %v668 = vsel %vm520, %v361, 0.0
  %v669 = vsel %vm520, %v369, 0.0
  %v670 = vadd.f32 %v668, %v669
  %v671 = vsel %vm520, %v362, 0.0
  %v672 = vsel %vm520, %v370, 0.0
  %v673 = vadd.f32 %v671, %v672
  %v674 = vsel %vm520, %v363, 0.0
  %v675 = vsel %vm520, %v371, 0.0
  %v676 = vadd.f32 %v674, %v675
  %v677 = vsel %vm520, %v364, 0.0
  %v678 = vsel %vm520, %v372, 0.0
  %v679 = vadd.f32 %v677, %v678
  %v680 = vsel %vm520, %v365, 0.0
  %v681 = vsel %vm520, %v373, 0.0
  %v682 = vadd.f32 %v680, %v681
  %v683 = vsel %vm520, %v366, 0.0
  %v684 = vsel %vm520, %v374, 0.0
  %v685 = vadd.f32 %v683, %v684
  %v686 = vsel %vm520, %v367, 0.0
  %v687 = vsel %vm520, %v375, 0.0
  %v688 = vadd.f32 %v686, %v687
  %v689 = vsel %vm520, %v376, 0.0
  %v690 = vsel %vm520, %v384, 0.0
  %v691 = vadd.f32 %v689, %v690
  %v692 = vsel %vm520, %v377, 0.0
  %v693 = vsel %vm520, %v385, 0.0
  %v694 = vadd.f32 %v692, %v693
  %v695 = vsel %vm520, %v378, 0.0
  %v696 = vsel %vm520, %v386, 0.0
  %v697 = vadd.f32 %v695, %v696
  %v698 = vsel %vm520, %v379, 0.0
  %v699 = vsel %vm520, %v387, 0.0
  %v700 = vadd.f32 %v698, %v699
  %v701 = vsel %vm520, %v380, 0.0
  %v702 = vsel %vm520, %v388, 0.0
  %v703 = vadd.f32 %v701, %v702
  %v704 = vsel %vm520, %v381, 0.0
  %v705 = vsel %vm520, %v389, 0.0
  %v706 = vadd.f32 %v704, %v705
  %v707 = vsel %vm520, %v382, 0.0
  %v708 = vsel %vm520, %v390, 0.0
  %v709 = vadd.f32 %v707, %v708
  %v710 = vsel %vm520, %v383, 0.0
  %v711 = vsel %vm520, %v391, 0.0
  %v712 = vadd.f32 %v710, %v711
  %v713 = vsel %vm520, %v392, 0.0
  %v714 = vsel %vm520, %v400, 0.0
  %v715 = vadd.f32 %v713, %v714
  %v716 = vsel %vm520, %v393, 0.0
  %v717 = vsel %vm520, %v401, 0.0
  %v718 = vadd.f32 %v716, %v717
  %v719 = vsel %vm520, %v394, 0.0
  %v720 = vsel %vm520, %v402, 0.0
  %v721 = vadd.f32 %v719, %v720
  %v722 = vsel %vm520, %v395, 0.0
  %v723 = vsel %vm520, %v403, 0.0
  %v724 = vadd.f32 %v722, %v723
  %v725 = vsel %vm520, %v396, 0.0
  %v726 = vsel %vm520, %v404, 0.0
  %v727 = vadd.f32 %v725, %v726
  %v728 = vsel %vm520, %v397, 0.0
  %v729 = vsel %vm520, %v405, 0.0
  %v730 = vadd.f32 %v728, %v729
  %v731 = vsel %vm520, %v398, 0.0
  %v732 = vsel %vm520, %v406, 0.0
  %v733 = vadd.f32 %v731, %v732
  %v734 = vsel %vm520, %v399, 0.0
  %v735 = vsel %vm520, %v407, 0.0
  %v736 = vadd.f32 %v734, %v735
  %v737 = vsel %vm520, %v408, 0.0
  %v738 = vsel %vm520, %v416, 0.0
  %v739 = vadd.f32 %v737, %v738
  %v740 = vsel %vm520, %v409, 0.0
  %v741 = vsel %vm520, %v417, 0.0
  %v742 = vadd.f32 %v740, %v741
  %v743 = vsel %vm520, %v410, 0.0
  %v744 = vsel %vm520, %v418, 0.0
  %v745 = vadd.f32 %v743, %v744
  %v746 = vsel %vm520, %v411, 0.0
  %v747 = vsel %vm520, %v419, 0.0
  %v748 = vadd.f32 %v746, %v747
  %v749 = vsel %vm520, %v412, 0.0
  %v750 = vsel %vm520, %v420, 0.0
  %v751 = vadd.f32 %v749, %v750
  %v752 = vsel %vm520, %v413, 0.0
  %v753 = vsel %vm520, %v421, 0.0
  %v754 = vadd.f32 %v752, %v753
  %v755 = vsel %vm520, %v414, 0.0
  %v756 = vsel %vm520, %v422, 0.0
  %v757 = vadd.f32 %v755, %v756
  %v758 = vsel %vm520, %v415, 0.0
  %v759 = vsel %vm520, %v423, 0.0
  %v760 = vadd.f32 %v758, %v759
  %v761 = vsel %vm520, %v424, 0.0
  %v762 = vsel %vm520, %v432, 0.0
  %v763 = vadd.f32 %v761, %v762
  %v764 = vsel %vm520, %v425, 0.0
  %v765 = vsel %vm520, %v433, 0.0
  %v766 = vadd.f32 %v764, %v765
  %v767 = vsel %vm520, %v426, 0.0
  %v768 = vsel %vm520, %v434, 0.0
  %v769 = vadd.f32 %v767, %v768
  %v770 = vsel %vm520, %v427, 0.0
  %v771 = vsel %vm520, %v435, 0.0
  %v772 = vadd.f32 %v770, %v771
  %v773 = vsel %vm520, %v428, 0.0
  %v774 = vsel %vm520, %v436, 0.0
  %v775 = vadd.f32 %v773, %v774
  %v776 = vsel %vm520, %v429, 0.0
  %v777 = vsel %vm520, %v437, 0.0
  %v778 = vadd.f32 %v776, %v777
  %v779 = vsel %vm520, %v430, 0.0
  %v780 = vsel %vm520, %v438, 0.0
  %v781 = vadd.f32 %v779, %v780
  %v782 = vsel %vm520, %v431, 0.0
  %v783 = vsel %vm520, %v439, 0.0
  %v784 = vadd.f32 %v782, %v783
  %v785 = vsel %vm520, %v440, 0.0
  %v786 = vsel %vm520, %v448, 0.0
  %v787 = vadd.f32 %v785, %v786
  %v788 = vsel %vm520, %v441, 0.0
  %v789 = vsel %vm520, %v449, 0.0
  %v790 = vadd.f32 %v788, %v789
  %v791 = vsel %vm520, %v442, 0.0
  %v792 = vsel %vm520, %v450, 0.0
  %v793 = vadd.f32 %v791, %v792
  %v794 = vsel %vm520, %v443, 0.0
  %v795 = vsel %vm520, %v451, 0.0
  %v796 = vadd.f32 %v794, %v795
  %v797 = vsel %vm520, %v444, 0.0
  %v798 = vsel %vm520, %v452, 0.0
  %v799 = vadd.f32 %v797, %v798
  %v800 = vsel %vm520, %v445, 0.0
  %v801 = vsel %vm520, %v453, 0.0
  %v802 = vadd.f32 %v800, %v801
  %v803 = vsel %vm520, %v446, 0.0
  %v804 = vsel %vm520, %v454, 0.0
  %v805 = vadd.f32 %v803, %v804
  %v806 = vsel %vm520, %v447, 0.0
  %v807 = vsel %vm520, %v455, 0.0
  %v808 = vadd.f32 %v806, %v807
  %v809 = vsel %vm520, %v456, 0.0
  %v810 = vsel %vm520, %v464, 0.0
  %v811 = vadd.f32 %v809, %v810
  %v812 = vsel %vm520, %v457, 0.0
  %v813 = vsel %vm520, %v465, 0.0
  %v814 = vadd.f32 %v812, %v813
  %v815 = vsel %vm520, %v458, 0.0
  %v816 = vsel %vm520, %v466, 0.0
  %v817 = vadd.f32 %v815, %v816
  %v818 = vsel %vm520, %v459, 0.0
  %v819 = vsel %vm520, %v467, 0.0
  %v820 = vadd.f32 %v818, %v819
  %v821 = vsel %vm520, %v460, 0.0
  %v822 = vsel %vm520, %v468, 0.0
  %v823 = vadd.f32 %v821, %v822
  %v824 = vsel %vm520, %v461, 0.0
  %v825 = vsel %vm520, %v469, 0.0
  %v826 = vadd.f32 %v824, %v825
  %v827 = vsel %vm520, %v462, 0.0
  %v828 = vsel %vm520, %v470, 0.0
  %v829 = vadd.f32 %v827, %v828
  %v830 = vsel %vm520, %v463, 0.0
  %v831 = vsel %vm520, %v471, 0.0
  %v832 = vadd.f32 %v830, %v831
  %v833 = vsel %vm520, %v472, 0.0
  %v834 = vsel %vm520, %v480, 0.0
  %v835 = vadd.f32 %v833, %v834
  %v836 = vsel %vm520, %v473, 0.0
  %v837 = vsel %vm520, %v481, 0.0
  %v838 = vadd.f32 %v836, %v837
  %v839 = vsel %vm520, %v474, 0.0
  %v840 = vsel %vm520, %v482, 0.0
  %v841 = vadd.f32 %v839, %v840
  %v842 = vsel %vm520, %v475, 0.0
  %v843 = vsel %vm520, %v483, 0.0
  %v844 = vadd.f32 %v842, %v843
  %v845 = vsel %vm520, %v476, 0.0
  %v846 = vsel %vm520, %v484, 0.0
  %v847 = vadd.f32 %v845, %v846
  %v848 = vsel %vm520, %v477, 0.0
  %v849 = vsel %vm520, %v485, 0.0
  %v850 = vadd.f32 %v848, %v849
  %v851 = vsel %vm520, %v478, 0.0
  %v852 = vsel %vm520, %v486, 0.0
  %v853 = vadd.f32 %v851, %v852
  %v854 = vsel %vm520, %v479, 0.0
  %v855 = vsel %vm520, %v487, 0.0
  %v856 = vadd.f32 %v854, %v855
  %v857 = vsel %vm520, %v488, 0.0
  %v858 = vsel %vm520, %v496, 0.0
  %v859 = vadd.f32 %v857, %v858
  %v860 = vsel %vm520, %v489, 0.0
  %v861 = vsel %vm520, %v497, 0.0
  %v862 = vadd.f32 %v860, %v861
  %v863 = vsel %vm520, %v490, 0.0
  %v864 = vsel %vm520, %v498, 0.0
  %v865 = vadd.f32 %v863, %v864
  %v866 = vsel %vm520, %v491, 0.0
  %v867 = vsel %vm520, %v499, 0.0
  %v868 = vadd.f32 %v866, %v867
  %v869 = vsel %vm520, %v492, 0.0
  %v870 = vsel %vm520, %v500, 0.0
  %v871 = vadd.f32 %v869, %v870
  %v872 = vsel %vm520, %v493, 0.0
  %v873 = vsel %vm520, %v501, 0.0
  %v874 = vadd.f32 %v872, %v873
  %v875 = vsel %vm520, %v494, 0.0
  %v876 = vsel %vm520, %v502, 0.0
  %v877 = vadd.f32 %v875, %v876
  %v878 = vsel %vm520, %v495, 0.0
  %v879 = vsel %vm520, %v503, 0.0
  %v880 = vadd.f32 %v878, %v879
  %v881 = vsel %vm520, %v504, 0.0
  %v882 = vsel %vm520, %v512, 0.0
  %v883 = vadd.f32 %v881, %v882
  %v884 = vsel %vm520, %v505, 0.0
  %v885 = vsel %vm520, %v513, 0.0
  %v886 = vadd.f32 %v884, %v885
  %v887 = vsel %vm520, %v506, 0.0
  %v888 = vsel %vm520, %v514, 0.0
  %v889 = vadd.f32 %v887, %v888
  %v890 = vsel %vm520, %v507, 0.0
  %v891 = vsel %vm520, %v515, 0.0
  %v892 = vadd.f32 %v890, %v891
  %v893 = vsel %vm520, %v508, 0.0
  %v894 = vsel %vm520, %v516, 0.0
  %v895 = vadd.f32 %v893, %v894
  %v896 = vsel %vm520, %v509, 0.0
  %v897 = vsel %vm520, %v517, 0.0
  %v898 = vadd.f32 %v896, %v897
  %v899 = vsel %vm520, %v510, 0.0
  %v900 = vsel %vm520, %v518, 0.0
  %v901 = vadd.f32 %v899, %v900
  %v902 = vsel %vm520, %v511, 0.0
  %v903 = vsel %vm520, %v519, 0.0
  %v904 = vadd.f32 %v902, %v903
  %v905 = vsel %vm520, %v523, 0.0
  %v906 = vrot.slane %v905, 4
  %v907 = vadd.f32 %v905, %v906
  %v908 = vrot.slane %v907, 2
  %v909 = vadd.f32 %v907, %v908
  %v910 = vrot.slane %v909, 1
  %v911 = vadd.f32 %v909, %v910
  %v912 = vsel %vm520, %v526, 0.0
  %v913 = vrot.slane %v912, 4
  %v914 = vadd.f32 %v912, %v913
  %v915 = vrot.slane %v914, 2
  %v916 = vadd.f32 %v914, %v915
  %v917 = vrot.slane %v916, 1
  %v918 = vadd.f32 %v916, %v917
  %v919 = vsel %vm520, %v529, 0.0
  %v920 = vrot.slane %v919, 4
  %v921 = vadd.f32 %v919, %v920
  %v922 = vrot.slane %v921, 2
  %v923 = vadd.f32 %v921, %v922
  %v924 = vrot.slane %v923, 1
  %v925 = vadd.f32 %v923, %v924
  %v926 = vsel %vm520, %v532, 0.0
  %v927 = vrot.slane %v926, 4
  %v928 = vadd.f32 %v926, %v927
  %v929 = vrot.slane %v928, 2
  %v930 = vadd.f32 %v928, %v929
  %v931 = vrot.slane %v930, 1
  %v932 = vadd.f32 %v930, %v931
  %v933 = vsel %vm520, %v535, 0.0
  %v934 = vrot.slane %v933, 4
  %v935 = vadd.f32 %v933, %v934
  %v936 = vrot.slane %v935, 2
  %v937 = vadd.f32 %v935, %v936
  %v938 = vrot.slane %v937, 1
  %v939 = vadd.f32 %v937, %v938
  %v940 = vsel %vm520, %v538, 0.0
  %v941 = vrot.slane %v940, 4
  %v942 = vadd.f32 %v940, %v941
  %v943 = vrot.slane %v942, 2
  %v944 = vadd.f32 %v942, %v943
  %v945 = vrot.slane %v944, 1
  %v946 = vadd.f32 %v944, %v945
  %v947 = vsel %vm520, %v541, 0.0
  %v948 = vrot.slane %v947, 4
  %v949 = vadd.f32 %v947, %v948
  %v950 = vrot.slane %v949, 2
  %v951 = vadd.f32 %v949, %v950
  %v952 = vrot.slane %v951, 1
  %v953 = vadd.f32 %v951, %v952
  %v954 = vsel %vm520, %v544, 0.0
  %v955 = vrot.slane %v954, 4
  %v956 = vadd.f32 %v954, %v955
  %v957 = vrot.slane %v956, 2
  %v958 = vadd.f32 %v956, %v957
  %v959 = vrot.slane %v958, 1
  %v960 = vadd.f32 %v958, %v959
  %v961 = vsel %vm520, %v547, 0.0
  %v962 = vrot.slane %v961, 4
  %v963 = vadd.f32 %v961, %v962
  %v964 = vrot.slane %v963, 2
  %v965 = vadd.f32 %v963, %v964
  %v966 = vrot.slane %v965, 1
  %v967 = vadd.f32 %v965, %v966
  %v968 = vsel %vm520, %v550, 0.0
  %v969 = vrot.slane %v968, 4
  %v970 = vadd.f32 %v968, %v969
  %v971 = vrot.slane %v970, 2
  %v972 = vadd.f32 %v970, %v971
  %v973 = vrot.slane %v972, 1
  %v974 = vadd.f32 %v972, %v973
  %v975 = vsel %vm520, %v553, 0.0
  %v976 = vrot.slane %v975, 4
  %v977 = vadd.f32 %v975, %v976
  %v978 = vrot.slane %v977, 2
  %v979 = vadd.f32 %v977, %v978
  %v980 = vrot.slane %v979, 1
  %v981 = vadd.f32 %v979, %v980
  %v982 = vsel %vm520, %v556, 0.0
  %v983 = vrot.slane %v982, 4
  %v984 = vadd.f32 %v982, %v983
  %v985 = vrot.slane %v984, 2
  %v986 = vadd.f32 %v984, %v985
  %v987 = vrot.slane %v986, 1
  %v988 = vadd.f32 %v986, %v987
  %v989 = vsel %vm520, %v559, 0.0
  %v990 = vrot.slane %v989, 4
  %v991 = vadd.f32 %v989, %v990
  %v992 = vrot.slane %v991, 2
  %v993 = vadd.f32 %v991, %v992
  %v994 = vrot.slane %v993, 1
  %v995 = vadd.f32 %v993, %v994
  %v996 = vsel %vm520, %v562, 0.0
  %v997 = vrot.slane %v996, 4
  %v998 = vadd.f32 %v996, %v997
  %v999 = vrot.slane %v998, 2
  %v1000 = vadd.f32 %v998, %v999
  %v1001 = vrot.slane %v1000, 1
  %v1002 = vadd.f32 %v1000, %v1001
  %v1003 = vsel %vm520, %v565, 0.0
  %v1004 = vrot.slane %v1003, 4
  %v1005 = vadd.f32 %v1003, %v1004
  %v1006 = vrot.slane %v1005, 2
  %v1007 = vadd.f32 %v1005, %v1006
  %v1008 = vrot.slane %v1007, 1
  %v1009 = vadd.f32 %v1007, %v1008
  %v1010 = vsel %vm520, %v568, 0.0
  %v1011 = vrot.slane %v1010, 4
  %v1012 = vadd.f32 %v1010, %v1011
  %v1013 = vrot.slane %v1012, 2
  %v1014 = vadd.f32 %v1012, %v1013
  %v1015 = vrot.slane %v1014, 1
  %v1016 = vadd.f32 %v1014, %v1015
  %v1017 = vsel %vm520, %v571, 0.0
  %v1018 = vrot.slane %v1017, 4
  %v1019 = vadd.f32 %v1017, %v1018
  %v1020 = vrot.slane %v1019, 2
  %v1021 = vadd.f32 %v1019, %v1020
  %v1022 = vrot.slane %v1021, 1
  %v1023 = vadd.f32 %v1021, %v1022
  %v1024 = vsel %vm520, %v574, 0.0
  %v1025 = vrot.slane %v1024, 4
  %v1026 = vadd.f32 %v1024, %v1025
  %v1027 = vrot.slane %v1026, 2
  %v1028 = vadd.f32 %v1026, %v1027
  %v1029 = vrot.slane %v1028, 1
  %v1030 = vadd.f32 %v1028, %v1029
  %v1031 = vsel %vm520, %v577, 0.0
  %v1032 = vrot.slane %v1031, 4
  %v1033 = vadd.f32 %v1031, %v1032
  %v1034 = vrot.slane %v1033, 2
  %v1035 = vadd.f32 %v1033, %v1034
  %v1036 = vrot.slane %v1035, 1
  %v1037 = vadd.f32 %v1035, %v1036
  %v1038 = vsel %vm520, %v580, 0.0
  %v1039 = vrot.slane %v1038, 4
  %v1040 = vadd.f32 %v1038, %v1039
  %v1041 = vrot.slane %v1040, 2
  %v1042 = vadd.f32 %v1040, %v1041
  %v1043 = vrot.slane %v1042, 1
  %v1044 = vadd.f32 %v1042, %v1043
  %v1045 = vsel %vm520, %v583, 0.0
  %v1046 = vrot.slane %v1045, 4
  %v1047 = vadd.f32 %v1045, %v1046
  %v1048 = vrot.slane %v1047, 2
  %v1049 = vadd.f32 %v1047, %v1048
  %v1050 = vrot.slane %v1049, 1
  %v1051 = vadd.f32 %v1049, %v1050
  %v1052 = vsel %vm520, %v586, 0.0
  %v1053 = vrot.slane %v1052, 4
  %v1054 = vadd.f32 %v1052, %v1053
  %v1055 = vrot.slane %v1054, 2
  %v1056 = vadd.f32 %v1054, %v1055
  %v1057 = vrot.slane %v1056, 1
  %v1058 = vadd.f32 %v1056, %v1057
  %v1059 = vsel %vm520, %v589, 0.0
  %v1060 = vrot.slane %v1059, 4
  %v1061 = vadd.f32 %v1059, %v1060
  %v1062 = vrot.slane %v1061, 2
  %v1063 = vadd.f32 %v1061, %v1062
  %v1064 = vrot.slane %v1063, 1
  %v1065 = vadd.f32 %v1063, %v1064
  %v1066 = vsel %vm520, %v592, 0.0
  %v1067 = vrot.slane %v1066, 4
  %v1068 = vadd.f32 %v1066, %v1067
  %v1069 = vrot.slane %v1068, 2
  %v1070 = vadd.f32 %v1068, %v1069
  %v1071 = vrot.slane %v1070, 1
  %v1072 = vadd.f32 %v1070, %v1071
  %v1073 = vsel %vm520, %v595, 0.0
  %v1074 = vrot.slane %v1073, 4
  %v1075 = vadd.f32 %v1073, %v1074
  %v1076 = vrot.slane %v1075, 2
  %v1077 = vadd.f32 %v1075, %v1076
  %v1078 = vrot.slane %v1077, 1
  %v1079 = vadd.f32 %v1077, %v1078
  %v1080 = vsel %vm520, %v598, 0.0
  %v1081 = vrot.slane %v1080, 4
  %v1082 = vadd.f32 %v1080, %v1081
  %v1083 = vrot.slane %v1082, 2
  %v1084 = vadd.f32 %v1082, %v1083
  %v1085 = vrot.slane %v1084, 1
  %v1086 = vadd.f32 %v1084, %v1085
  %v1087 = vsel %vm520, %v601, 0.0
  %v1088 = vrot.slane %v1087, 4
  %v1089 = vadd.f32 %v1087, %v1088
  %v1090 = vrot.slane %v1089, 2
  %v1091 = vadd.f32 %v1089, %v1090
  %v1092 = vrot.slane %v1091, 1
  %v1093 = vadd.f32 %v1091, %v1092
  %v1094 = vsel %vm520, %v604, 0.0
  %v1095 = vrot.slane %v1094, 4
  %v1096 = vadd.f32 %v1094, %v1095
  %v1097 = vrot.slane %v1096, 2
  %v1098 = vadd.f32 %v1096, %v1097
  %v1099 = vrot.slane %v1098, 1
  %v1100 = vadd.f32 %v1098, %v1099
  %v1101 = vsel %vm520, %v607, 0.0
  %v1102 = vrot.slane %v1101, 4
  %v1103 = vadd.f32 %v1101, %v1102
  %v1104 = vrot.slane %v1103, 2
  %v1105 = vadd.f32 %v1103, %v1104
  %v1106 = vrot.slane %v1105, 1
  %v1107 = vadd.f32 %v1105, %v1106
  %v1108 = vsel %vm520, %v610, 0.0
  %v1109 = vrot.slane %v1108, 4
  %v1110 = vadd.f32 %v1108, %v1109
  %v1111 = vrot.slane %v1110, 2
  %v1112 = vadd.f32 %v1110, %v1111
  %v1113 = vrot.slane %v1112, 1
  %v1114 = vadd.f32 %v1112, %v1113
  %v1115 = vsel %vm520, %v613, 0.0
  %v1116 = vrot.slane %v1115, 4
  %v1117 = vadd.f32 %v1115, %v1116
  %v1118 = vrot.slane %v1117, 2
  %v1119 = vadd.f32 %v1117, %v1118
  %v1120 = vrot.slane %v1119, 1
  %v1121 = vadd.f32 %v1119, %v1120
  %v1122 = vsel %vm520, %v616, 0.0
  %v1123 = vrot.slane %v1122, 4
  %v1124 = vadd.f32 %v1122, %v1123
  %v1125 = vrot.slane %v1124, 2
  %v1126 = vadd.f32 %v1124, %v1125
  %v1127 = vrot.slane %v1126, 1
  %v1128 = vadd.f32 %v1126, %v1127
  %v1129 = vsel %vm520, %v619, 0.0
  %v1130 = vrot.slane %v1129, 4
  %v1131 = vadd.f32 %v1129, %v1130
  %v1132 = vrot.slane %v1131, 2
  %v1133 = vadd.f32 %v1131, %v1132
  %v1134 = vrot.slane %v1133, 1
  %v1135 = vadd.f32 %v1133, %v1134
  %v1136 = vsel %vm520, %v622, 0.0
  %v1137 = vrot.slane %v1136, 4
  %v1138 = vadd.f32 %v1136, %v1137
  %v1139 = vrot.slane %v1138, 2
  %v1140 = vadd.f32 %v1138, %v1139
  %v1141 = vrot.slane %v1140, 1
  %v1142 = vadd.f32 %v1140, %v1141
  %v1143 = vsel %vm520, %v625, 0.0
  %v1144 = vrot.slane %v1143, 4
  %v1145 = vadd.f32 %v1143, %v1144
  %v1146 = vrot.slane %v1145, 2
  %v1147 = vadd.f32 %v1145, %v1146
  %v1148 = vrot.slane %v1147, 1
  %v1149 = vadd.f32 %v1147, %v1148
  %v1150 = vsel %vm520, %v628, 0.0
  %v1151 = vrot.slane %v1150, 4
  %v1152 = vadd.f32 %v1150, %v1151
  %v1153 = vrot.slane %v1152, 2
  %v1154 = vadd.f32 %v1152, %v1153
  %v1155 = vrot.slane %v1154, 1
  %v1156 = vadd.f32 %v1154, %v1155
  %v1157 = vsel %vm520, %v631, 0.0
  %v1158 = vrot.slane %v1157, 4
  %v1159 = vadd.f32 %v1157, %v1158
  %v1160 = vrot.slane %v1159, 2
  %v1161 = vadd.f32 %v1159, %v1160
  %v1162 = vrot.slane %v1161, 1
  %v1163 = vadd.f32 %v1161, %v1162
  %v1164 = vsel %vm520, %v634, 0.0
  %v1165 = vrot.slane %v1164, 4
  %v1166 = vadd.f32 %v1164, %v1165
  %v1167 = vrot.slane %v1166, 2
  %v1168 = vadd.f32 %v1166, %v1167
  %v1169 = vrot.slane %v1168, 1
  %v1170 = vadd.f32 %v1168, %v1169
  %v1171 = vsel %vm520, %v637, 0.0
  %v1172 = vrot.slane %v1171, 4
  %v1173 = vadd.f32 %v1171, %v1172
  %v1174 = vrot.slane %v1173, 2
  %v1175 = vadd.f32 %v1173, %v1174
  %v1176 = vrot.slane %v1175, 1
  %v1177 = vadd.f32 %v1175, %v1176
  %v1178 = vsel %vm520, %v640, 0.0
  %v1179 = vrot.slane %v1178, 4
  %v1180 = vadd.f32 %v1178, %v1179
  %v1181 = vrot.slane %v1180, 2
  %v1182 = vadd.f32 %v1180, %v1181
  %v1183 = vrot.slane %v1182, 1
  %v1184 = vadd.f32 %v1182, %v1183
  %v1185 = vsel %vm520, %v643, 0.0
  %v1186 = vrot.slane %v1185, 4
  %v1187 = vadd.f32 %v1185, %v1186
  %v1188 = vrot.slane %v1187, 2
  %v1189 = vadd.f32 %v1187, %v1188
  %v1190 = vrot.slane %v1189, 1
  %v1191 = vadd.f32 %v1189, %v1190
  %v1192 = vsel %vm520, %v646, 0.0
  %v1193 = vrot.slane %v1192, 4
  %v1194 = vadd.f32 %v1192, %v1193
  %v1195 = vrot.slane %v1194, 2
  %v1196 = vadd.f32 %v1194, %v1195
  %v1197 = vrot.slane %v1196, 1
  %v1198 = vadd.f32 %v1196, %v1197
  %v1199 = vsel %vm520, %v649, 0.0
  %v1200 = vrot.slane %v1199, 4
  %v1201 = vadd.f32 %v1199, %v1200
  %v1202 = vrot.slane %v1201, 2
  %v1203 = vadd.f32 %v1201, %v1202
  %v1204 = vrot.slane %v1203, 1
  %v1205 = vadd.f32 %v1203, %v1204
  %v1206 = vsel %vm520, %v652, 0.0
  %v1207 = vrot.slane %v1206, 4
  %v1208 = vadd.f32 %v1206, %v1207
  %v1209 = vrot.slane %v1208, 2
  %v1210 = vadd.f32 %v1208, %v1209
  %v1211 = vrot.slane %v1210, 1
  %v1212 = vadd.f32 %v1210, %v1211
  %v1213 = vsel %vm520, %v655, 0.0
  %v1214 = vrot.slane %v1213, 4
  %v1215 = vadd.f32 %v1213, %v1214
  %v1216 = vrot.slane %v1215, 2
  %v1217 = vadd.f32 %v1215, %v1216
  %v1218 = vrot.slane %v1217, 1
  %v1219 = vadd.f32 %v1217, %v1218
  %v1220 = vsel %vm520, %v658, 0.0
  %v1221 = vrot.slane %v1220, 4
  %v1222 = vadd.f32 %v1220, %v1221
  %v1223 = vrot.slane %v1222, 2
  %v1224 = vadd.f32 %v1222, %v1223
  %v1225 = vrot.slane %v1224, 1
  %v1226 = vadd.f32 %v1224, %v1225
  %v1227 = vsel %vm520, %v661, 0.0
  %v1228 = vrot.slane %v1227, 4
  %v1229 = vadd.f32 %v1227, %v1228
  %v1230 = vrot.slane %v1229, 2
  %v1231 = vadd.f32 %v1229, %v1230
  %v1232 = vrot.slane %v1231, 1
  %v1233 = vadd.f32 %v1231, %v1232
  %v1234 = vsel %vm520, %v664, 0.0
  %v1235 = vrot.slane %v1234, 4
  %v1236 = vadd.f32 %v1234, %v1235
  %v1237 = vrot.slane %v1236, 2
  %v1238 = vadd.f32 %v1236, %v1237
  %v1239 = vrot.slane %v1238, 1
  %v1240 = vadd.f32 %v1238, %v1239
  %v1241 = vsel %vm520, %v667, 0.0
  %v1242 = vrot.slane %v1241, 4
  %v1243 = vadd.f32 %v1241, %v1242
  %v1244 = vrot.slane %v1243, 2
  %v1245 = vadd.f32 %v1243, %v1244
  %v1246 = vrot.slane %v1245, 1
  %v1247 = vadd.f32 %v1245, %v1246
  %v1248 = vsel %vm520, %v670, 0.0
  %v1249 = vrot.slane %v1248, 4
  %v1250 = vadd.f32 %v1248, %v1249
  %v1251 = vrot.slane %v1250, 2
  %v1252 = vadd.f32 %v1250, %v1251
  %v1253 = vrot.slane %v1252, 1
  %v1254 = vadd.f32 %v1252, %v1253
  %v1255 = vsel %vm520, %v673, 0.0
  %v1256 = vrot.slane %v1255, 4
  %v1257 = vadd.f32 %v1255, %v1256
  %v1258 = vrot.slane %v1257, 2
  %v1259 = vadd.f32 %v1257, %v1258
  %v1260 = vrot.slane %v1259, 1
  %v1261 = vadd.f32 %v1259, %v1260
  %v1262 = vsel %vm520, %v676, 0.0
  %v1263 = vrot.slane %v1262, 4
  %v1264 = vadd.f32 %v1262, %v1263
  %v1265 = vrot.slane %v1264, 2
  %v1266 = vadd.f32 %v1264, %v1265
  %v1267 = vrot.slane %v1266, 1
  %v1268 = vadd.f32 %v1266, %v1267
  %v1269 = vsel %vm520, %v679, 0.0
  %v1270 = vrot.slane %v1269, 4
  %v1271 = vadd.f32 %v1269, %v1270
  %v1272 = vrot.slane %v1271, 2
  %v1273 = vadd.f32 %v1271, %v1272
  %v1274 = vrot.slane %v1273, 1
  %v1275 = vadd.f32 %v1273, %v1274
  %v1276 = vsel %vm520, %v682, 0.0
  %v1277 = vrot.slane %v1276, 4
  %v1278 = vadd.f32 %v1276, %v1277
  %v1279 = vrot.slane %v1278, 2
  %v1280 = vadd.f32 %v1278, %v1279
  %v1281 = vrot.slane %v1280, 1
  %v1282 = vadd.f32 %v1280, %v1281
  %v1283 = vsel %vm520, %v685, 0.0
  %v1284 = vrot.slane %v1283, 4
  %v1285 = vadd.f32 %v1283, %v1284
  %v1286 = vrot.slane %v1285, 2
  %v1287 = vadd.f32 %v1285, %v1286
  %v1288 = vrot.slane %v1287, 1
  %v1289 = vadd.f32 %v1287, %v1288
  %v1290 = vsel %vm520, %v688, 0.0
  %v1291 = vrot.slane %v1290, 4
  %v1292 = vadd.f32 %v1290, %v1291
  %v1293 = vrot.slane %v1292, 2
  %v1294 = vadd.f32 %v1292, %v1293
  %v1295 = vrot.slane %v1294, 1
  %v1296 = vadd.f32 %v1294, %v1295
  %v1297 = vsel %vm520, %v691, 0.0
  %v1298 = vrot.slane %v1297, 4
  %v1299 = vadd.f32 %v1297, %v1298
  %v1300 = vrot.slane %v1299, 2
  %v1301 = vadd.f32 %v1299, %v1300
  %v1302 = vrot.slane %v1301, 1
  %v1303 = vadd.f32 %v1301, %v1302
  %v1304 = vsel %vm520, %v694, 0.0
  %v1305 = vrot.slane %v1304, 4
  %v1306 = vadd.f32 %v1304, %v1305
  %v1307 = vrot.slane %v1306, 2
  %v1308 = vadd.f32 %v1306, %v1307
  %v1309 = vrot.slane %v1308, 1
  %v1310 = vadd.f32 %v1308, %v1309
  %v1311 = vsel %vm520, %v697, 0.0
  %v1312 = vrot.slane %v1311, 4
  %v1313 = vadd.f32 %v1311, %v1312
  %v1314 = vrot.slane %v1313, 2
  %v1315 = vadd.f32 %v1313, %v1314
  %v1316 = vrot.slane %v1315, 1
  %v1317 = vadd.f32 %v1315, %v1316
  %v1318 = vsel %vm520, %v700, 0.0
  %v1319 = vrot.slane %v1318, 4
  %v1320 = vadd.f32 %v1318, %v1319
  %v1321 = vrot.slane %v1320, 2
  %v1322 = vadd.f32 %v1320, %v1321
  %v1323 = vrot.slane %v1322, 1
  %v1324 = vadd.f32 %v1322, %v1323
  %v1325 = vsel %vm520, %v703, 0.0
  %v1326 = vrot.slane %v1325, 4
  %v1327 = vadd.f32 %v1325, %v1326
  %v1328 = vrot.slane %v1327, 2
  %v1329 = vadd.f32 %v1327, %v1328
  %v1330 = vrot.slane %v1329, 1
  %v1331 = vadd.f32 %v1329, %v1330
  %v1332 = vsel %vm520, %v706, 0.0
  %v1333 = vrot.slane %v1332, 4
  %v1334 = vadd.f32 %v1332, %v1333
  %v1335 = vrot.slane %v1334, 2
  %v1336 = vadd.f32 %v1334, %v1335
  %v1337 = vrot.slane %v1336, 1
  %v1338 = vadd.f32 %v1336, %v1337
  %v1339 = vsel %vm520, %v709, 0.0
  %v1340 = vrot.slane %v1339, 4
  %v1341 = vadd.f32 %v1339, %v1340
  %v1342 = vrot.slane %v1341, 2
  %v1343 = vadd.f32 %v1341, %v1342
  %v1344 = vrot.slane %v1343, 1
  %v1345 = vadd.f32 %v1343, %v1344
  %v1346 = vsel %vm520, %v712, 0.0
  %v1347 = vrot.slane %v1346, 4
  %v1348 = vadd.f32 %v1346, %v1347
  %v1349 = vrot.slane %v1348, 2
  %v1350 = vadd.f32 %v1348, %v1349
  %v1351 = vrot.slane %v1350, 1
  %v1352 = vadd.f32 %v1350, %v1351
  %v1353 = vsel %vm520, %v715, 0.0
  %v1354 = vrot.slane %v1353, 4
  %v1355 = vadd.f32 %v1353, %v1354
  %v1356 = vrot.slane %v1355, 2
  %v1357 = vadd.f32 %v1355, %v1356
  %v1358 = vrot.slane %v1357, 1
  %v1359 = vadd.f32 %v1357, %v1358
  %v1360 = vsel %vm520, %v718, 0.0
  %v1361 = vrot.slane %v1360, 4
  %v1362 = vadd.f32 %v1360, %v1361
  %v1363 = vrot.slane %v1362, 2
  %v1364 = vadd.f32 %v1362, %v1363
  %v1365 = vrot.slane %v1364, 1
  %v1366 = vadd.f32 %v1364, %v1365
  %v1367 = vsel %vm520, %v721, 0.0
  %v1368 = vrot.slane %v1367, 4
  %v1369 = vadd.f32 %v1367, %v1368
  %v1370 = vrot.slane %v1369, 2
  %v1371 = vadd.f32 %v1369, %v1370
  %v1372 = vrot.slane %v1371, 1
  %v1373 = vadd.f32 %v1371, %v1372
  %v1374 = vsel %vm520, %v724, 0.0
  %v1375 = vrot.slane %v1374, 4
  %v1376 = vadd.f32 %v1374, %v1375
  %v1377 = vrot.slane %v1376, 2
  %v1378 = vadd.f32 %v1376, %v1377
  %v1379 = vrot.slane %v1378, 1
  %v1380 = vadd.f32 %v1378, %v1379
  %v1381 = vsel %vm520, %v727, 0.0
  %v1382 = vrot.slane %v1381, 4
  %v1383 = vadd.f32 %v1381, %v1382
  %v1384 = vrot.slane %v1383, 2
  %v1385 = vadd.f32 %v1383, %v1384
  %v1386 = vrot.slane %v1385, 1
  %v1387 = vadd.f32 %v1385, %v1386
  %v1388 = vsel %vm520, %v730, 0.0
  %v1389 = vrot.slane %v1388, 4
  %v1390 = vadd.f32 %v1388, %v1389
  %v1391 = vrot.slane %v1390, 2
  %v1392 = vadd.f32 %v1390, %v1391
  %v1393 = vrot.slane %v1392, 1
  %v1394 = vadd.f32 %v1392, %v1393
  %v1395 = vsel %vm520, %v733, 0.0
  %v1396 = vrot.slane %v1395, 4
  %v1397 = vadd.f32 %v1395, %v1396
  %v1398 = vrot.slane %v1397, 2
  %v1399 = vadd.f32 %v1397, %v1398
  %v1400 = vrot.slane %v1399, 1
  %v1401 = vadd.f32 %v1399, %v1400
  %v1402 = vsel %vm520, %v736, 0.0
  %v1403 = vrot.slane %v1402, 4
  %v1404 = vadd.f32 %v1402, %v1403
  %v1405 = vrot.slane %v1404, 2
  %v1406 = vadd.f32 %v1404, %v1405
  %v1407 = vrot.slane %v1406, 1
  %v1408 = vadd.f32 %v1406, %v1407
  %v1409 = vsel %vm520, %v739, 0.0
  %v1410 = vrot.slane %v1409, 4
  %v1411 = vadd.f32 %v1409, %v1410
  %v1412 = vrot.slane %v1411, 2
  %v1413 = vadd.f32 %v1411, %v1412
  %v1414 = vrot.slane %v1413, 1
  %v1415 = vadd.f32 %v1413, %v1414
  %v1416 = vsel %vm520, %v742, 0.0
  %v1417 = vrot.slane %v1416, 4
  %v1418 = vadd.f32 %v1416, %v1417
  %v1419 = vrot.slane %v1418, 2
  %v1420 = vadd.f32 %v1418, %v1419
  %v1421 = vrot.slane %v1420, 1
  %v1422 = vadd.f32 %v1420, %v1421
  %v1423 = vsel %vm520, %v745, 0.0
  %v1424 = vrot.slane %v1423, 4
  %v1425 = vadd.f32 %v1423, %v1424
  %v1426 = vrot.slane %v1425, 2
  %v1427 = vadd.f32 %v1425, %v1426
  %v1428 = vrot.slane %v1427, 1
  %v1429 = vadd.f32 %v1427, %v1428
  %v1430 = vsel %vm520, %v748, 0.0
  %v1431 = vrot.slane %v1430, 4
  %v1432 = vadd.f32 %v1430, %v1431
  %v1433 = vrot.slane %v1432, 2
  %v1434 = vadd.f32 %v1432, %v1433
  %v1435 = vrot.slane %v1434, 1
  %v1436 = vadd.f32 %v1434, %v1435
  %v1437 = vsel %vm520, %v751, 0.0
  %v1438 = vrot.slane %v1437, 4
  %v1439 = vadd.f32 %v1437, %v1438
  %v1440 = vrot.slane %v1439, 2
  %v1441 = vadd.f32 %v1439, %v1440
  %v1442 = vrot.slane %v1441, 1
  %v1443 = vadd.f32 %v1441, %v1442
  %v1444 = vsel %vm520, %v754, 0.0
  %v1445 = vrot.slane %v1444, 4
  %v1446 = vadd.f32 %v1444, %v1445
  %v1447 = vrot.slane %v1446, 2
  %v1448 = vadd.f32 %v1446, %v1447
  %v1449 = vrot.slane %v1448, 1
  %v1450 = vadd.f32 %v1448, %v1449
  %v1451 = vsel %vm520, %v757, 0.0
  %v1452 = vrot.slane %v1451, 4
  %v1453 = vadd.f32 %v1451, %v1452
  %v1454 = vrot.slane %v1453, 2
  %v1455 = vadd.f32 %v1453, %v1454
  %v1456 = vrot.slane %v1455, 1
  %v1457 = vadd.f32 %v1455, %v1456
  %v1458 = vsel %vm520, %v760, 0.0
  %v1459 = vrot.slane %v1458, 4
  %v1460 = vadd.f32 %v1458, %v1459
  %v1461 = vrot.slane %v1460, 2
  %v1462 = vadd.f32 %v1460, %v1461
  %v1463 = vrot.slane %v1462, 1
  %v1464 = vadd.f32 %v1462, %v1463
  %v1465 = vsel %vm520, %v763, 0.0
  %v1466 = vrot.slane %v1465, 4
  %v1467 = vadd.f32 %v1465, %v1466
  %v1468 = vrot.slane %v1467, 2
  %v1469 = vadd.f32 %v1467, %v1468
  %v1470 = vrot.slane %v1469, 1
  %v1471 = vadd.f32 %v1469, %v1470
  %v1472 = vsel %vm520, %v766, 0.0
  %v1473 = vrot.slane %v1472, 4
  %v1474 = vadd.f32 %v1472, %v1473
  %v1475 = vrot.slane %v1474, 2
  %v1476 = vadd.f32 %v1474, %v1475
  %v1477 = vrot.slane %v1476, 1
  %v1478 = vadd.f32 %v1476, %v1477
  %v1479 = vsel %vm520, %v769, 0.0
  %v1480 = vrot.slane %v1479, 4
  %v1481 = vadd.f32 %v1479, %v1480
  %v1482 = vrot.slane %v1481, 2
  %v1483 = vadd.f32 %v1481, %v1482
  %v1484 = vrot.slane %v1483, 1
  %v1485 = vadd.f32 %v1483, %v1484
  %v1486 = vsel %vm520, %v772, 0.0
  %v1487 = vrot.slane %v1486, 4
  %v1488 = vadd.f32 %v1486, %v1487
  %v1489 = vrot.slane %v1488, 2
  %v1490 = vadd.f32 %v1488, %v1489
  %v1491 = vrot.slane %v1490, 1
  %v1492 = vadd.f32 %v1490, %v1491
  %v1493 = vsel %vm520, %v775, 0.0
  %v1494 = vrot.slane %v1493, 4
  %v1495 = vadd.f32 %v1493, %v1494
  %v1496 = vrot.slane %v1495, 2
  %v1497 = vadd.f32 %v1495, %v1496
  %v1498 = vrot.slane %v1497, 1
  %v1499 = vadd.f32 %v1497, %v1498
  %v1500 = vsel %vm520, %v778, 0.0
  %v1501 = vrot.slane %v1500, 4
  %v1502 = vadd.f32 %v1500, %v1501
  %v1503 = vrot.slane %v1502, 2
  %v1504 = vadd.f32 %v1502, %v1503
  %v1505 = vrot.slane %v1504, 1
  %v1506 = vadd.f32 %v1504, %v1505
  %v1507 = vsel %vm520, %v781, 0.0
  %v1508 = vrot.slane %v1507, 4
  %v1509 = vadd.f32 %v1507, %v1508
  %v1510 = vrot.slane %v1509, 2
  %v1511 = vadd.f32 %v1509, %v1510
  %v1512 = vrot.slane %v1511, 1
  %v1513 = vadd.f32 %v1511, %v1512
  %v1514 = vsel %vm520, %v784, 0.0
  %v1515 = vrot.slane %v1514, 4
  %v1516 = vadd.f32 %v1514, %v1515
  %v1517 = vrot.slane %v1516, 2
  %v1518 = vadd.f32 %v1516, %v1517
  %v1519 = vrot.slane %v1518, 1
  %v1520 = vadd.f32 %v1518, %v1519
  %v1521 = vsel %vm520, %v787, 0.0
  %v1522 = vrot.slane %v1521, 4
  %v1523 = vadd.f32 %v1521, %v1522
  %v1524 = vrot.slane %v1523, 2
  %v1525 = vadd.f32 %v1523, %v1524
  %v1526 = vrot.slane %v1525, 1
  %v1527 = vadd.f32 %v1525, %v1526
  %v1528 = vsel %vm520, %v790, 0.0
  %v1529 = vrot.slane %v1528, 4
  %v1530 = vadd.f32 %v1528, %v1529
  %v1531 = vrot.slane %v1530, 2
  %v1532 = vadd.f32 %v1530, %v1531
  %v1533 = vrot.slane %v1532, 1
  %v1534 = vadd.f32 %v1532, %v1533
  %v1535 = vsel %vm520, %v793, 0.0
  %v1536 = vrot.slane %v1535, 4
  %v1537 = vadd.f32 %v1535, %v1536
  %v1538 = vrot.slane %v1537, 2
  %v1539 = vadd.f32 %v1537, %v1538
  %v1540 = vrot.slane %v1539, 1
  %v1541 = vadd.f32 %v1539, %v1540
  %v1542 = vsel %vm520, %v796, 0.0
  %v1543 = vrot.slane %v1542, 4
  %v1544 = vadd.f32 %v1542, %v1543
  %v1545 = vrot.slane %v1544, 2
  %v1546 = vadd.f32 %v1544, %v1545
  %v1547 = vrot.slane %v1546, 1
  %v1548 = vadd.f32 %v1546, %v1547
  %v1549 = vsel %vm520, %v799, 0.0
  %v1550 = vrot.slane %v1549, 4
  %v1551 = vadd.f32 %v1549, %v1550
  %v1552 = vrot.slane %v1551, 2
  %v1553 = vadd.f32 %v1551, %v1552
  %v1554 = vrot.slane %v1553, 1
  %v1555 = vadd.f32 %v1553, %v1554
  %v1556 = vsel %vm520, %v802, 0.0
  %v1557 = vrot.slane %v1556, 4
  %v1558 = vadd.f32 %v1556, %v1557
  %v1559 = vrot.slane %v1558, 2
  %v1560 = vadd.f32 %v1558, %v1559
  %v1561 = vrot.slane %v1560, 1
  %v1562 = vadd.f32 %v1560, %v1561
  %v1563 = vsel %vm520, %v805, 0.0
  %v1564 = vrot.slane %v1563, 4
  %v1565 = vadd.f32 %v1563, %v1564
  %v1566 = vrot.slane %v1565, 2
  %v1567 = vadd.f32 %v1565, %v1566
  %v1568 = vrot.slane %v1567, 1
  %v1569 = vadd.f32 %v1567, %v1568
  %v1570 = vsel %vm520, %v808, 0.0
  %v1571 = vrot.slane %v1570, 4
  %v1572 = vadd.f32 %v1570, %v1571
  %v1573 = vrot.slane %v1572, 2
  %v1574 = vadd.f32 %v1572, %v1573
  %v1575 = vrot.slane %v1574, 1
  %v1576 = vadd.f32 %v1574, %v1575
  %v1577 = vsel %vm520, %v811, 0.0
  %v1578 = vrot.slane %v1577, 4
  %v1579 = vadd.f32 %v1577, %v1578
  %v1580 = vrot.slane %v1579, 2
  %v1581 = vadd.f32 %v1579, %v1580
  %v1582 = vrot.slane %v1581, 1
  %v1583 = vadd.f32 %v1581, %v1582
  %v1584 = vsel %vm520, %v814, 0.0
  %v1585 = vrot.slane %v1584, 4
  %v1586 = vadd.f32 %v1584, %v1585
  %v1587 = vrot.slane %v1586, 2
  %v1588 = vadd.f32 %v1586, %v1587
  %v1589 = vrot.slane %v1588, 1
  %v1590 = vadd.f32 %v1588, %v1589
  %v1591 = vsel %vm520, %v817, 0.0
  %v1592 = vrot.slane %v1591, 4
  %v1593 = vadd.f32 %v1591, %v1592
  %v1594 = vrot.slane %v1593, 2
  %v1595 = vadd.f32 %v1593, %v1594
  %v1596 = vrot.slane %v1595, 1
  %v1597 = vadd.f32 %v1595, %v1596
  %v1598 = vsel %vm520, %v820, 0.0
  %v1599 = vrot.slane %v1598, 4
  %v1600 = vadd.f32 %v1598, %v1599
  %v1601 = vrot.slane %v1600, 2
  %v1602 = vadd.f32 %v1600, %v1601
  %v1603 = vrot.slane %v1602, 1
  %v1604 = vadd.f32 %v1602, %v1603
  %v1605 = vsel %vm520, %v823, 0.0
  %v1606 = vrot.slane %v1605, 4
  %v1607 = vadd.f32 %v1605, %v1606
  %v1608 = vrot.slane %v1607, 2
  %v1609 = vadd.f32 %v1607, %v1608
  %v1610 = vrot.slane %v1609, 1
  %v1611 = vadd.f32 %v1609, %v1610
  %v1612 = vsel %vm520, %v826, 0.0
  %v1613 = vrot.slane %v1612, 4
  %v1614 = vadd.f32 %v1612, %v1613
  %v1615 = vrot.slane %v1614, 2
  %v1616 = vadd.f32 %v1614, %v1615
  %v1617 = vrot.slane %v1616, 1
  %v1618 = vadd.f32 %v1616, %v1617
  %v1619 = vsel %vm520, %v829, 0.0
  %v1620 = vrot.slane %v1619, 4
  %v1621 = vadd.f32 %v1619, %v1620
  %v1622 = vrot.slane %v1621, 2
  %v1623 = vadd.f32 %v1621, %v1622
  %v1624 = vrot.slane %v1623, 1
  %v1625 = vadd.f32 %v1623, %v1624
  %v1626 = vsel %vm520, %v832, 0.0
  %v1627 = vrot.slane %v1626, 4
  %v1628 = vadd.f32 %v1626, %v1627
  %v1629 = vrot.slane %v1628, 2
  %v1630 = vadd.f32 %v1628, %v1629
  %v1631 = vrot.slane %v1630, 1
  %v1632 = vadd.f32 %v1630, %v1631
  %v1633 = vsel %vm520, %v835, 0.0
  %v1634 = vrot.slane %v1633, 4
  %v1635 = vadd.f32 %v1633, %v1634
  %v1636 = vrot.slane %v1635, 2
  %v1637 = vadd.f32 %v1635, %v1636
  %v1638 = vrot.slane %v1637, 1
  %v1639 = vadd.f32 %v1637, %v1638
  %v1640 = vsel %vm520, %v838, 0.0
  %v1641 = vrot.slane %v1640, 4
  %v1642 = vadd.f32 %v1640, %v1641
  %v1643 = vrot.slane %v1642, 2
  %v1644 = vadd.f32 %v1642, %v1643
  %v1645 = vrot.slane %v1644, 1
  %v1646 = vadd.f32 %v1644, %v1645
  %v1647 = vsel %vm520, %v841, 0.0
  %v1648 = vrot.slane %v1647, 4
  %v1649 = vadd.f32 %v1647, %v1648
  %v1650 = vrot.slane %v1649, 2
  %v1651 = vadd.f32 %v1649, %v1650
  %v1652 = vrot.slane %v1651, 1
  %v1653 = vadd.f32 %v1651, %v1652
  %v1654 = vsel %vm520, %v844, 0.0
  %v1655 = vrot.slane %v1654, 4
  %v1656 = vadd.f32 %v1654, %v1655
  %v1657 = vrot.slane %v1656, 2
  %v1658 = vadd.f32 %v1656, %v1657
  %v1659 = vrot.slane %v1658, 1
  %v1660 = vadd.f32 %v1658, %v1659
  %v1661 = vsel %vm520, %v847, 0.0
  %v1662 = vrot.slane %v1661, 4
  %v1663 = vadd.f32 %v1661, %v1662
  %v1664 = vrot.slane %v1663, 2
  %v1665 = vadd.f32 %v1663, %v1664
  %v1666 = vrot.slane %v1665, 1
  %v1667 = vadd.f32 %v1665, %v1666
  %v1668 = vsel %vm520, %v850, 0.0
  %v1669 = vrot.slane %v1668, 4
  %v1670 = vadd.f32 %v1668, %v1669
  %v1671 = vrot.slane %v1670, 2
  %v1672 = vadd.f32 %v1670, %v1671
  %v1673 = vrot.slane %v1672, 1
  %v1674 = vadd.f32 %v1672, %v1673
  %v1675 = vsel %vm520, %v853, 0.0
  %v1676 = vrot.slane %v1675, 4
  %v1677 = vadd.f32 %v1675, %v1676
  %v1678 = vrot.slane %v1677, 2
  %v1679 = vadd.f32 %v1677, %v1678
  %v1680 = vrot.slane %v1679, 1
  %v1681 = vadd.f32 %v1679, %v1680
  %v1682 = vsel %vm520, %v856, 0.0
  %v1683 = vrot.slane %v1682, 4
  %v1684 = vadd.f32 %v1682, %v1683
  %v1685 = vrot.slane %v1684, 2
  %v1686 = vadd.f32 %v1684, %v1685
  %v1687 = vrot.slane %v1686, 1
  %v1688 = vadd.f32 %v1686, %v1687
  %v1689 = vsel %vm520, %v859, 0.0
  %v1690 = vrot.slane %v1689, 4
  %v1691 = vadd.f32 %v1689, %v1690
  %v1692 = vrot.slane %v1691, 2
  %v1693 = vadd.f32 %v1691, %v1692
  %v1694 = vrot.slane %v1693, 1
  %v1695 = vadd.f32 %v1693, %v1694
  %v1696 = vsel %vm520, %v862, 0.0
  %v1697 = vrot.slane %v1696, 4
  %v1698 = vadd.f32 %v1696, %v1697
  %v1699 = vrot.slane %v1698, 2
  %v1700 = vadd.f32 %v1698, %v1699
  %v1701 = vrot.slane %v1700, 1
  %v1702 = vadd.f32 %v1700, %v1701
  %v1703 = vsel %vm520, %v865, 0.0
  %v1704 = vrot.slane %v1703, 4
  %v1705 = vadd.f32 %v1703, %v1704
  %v1706 = vrot.slane %v1705, 2
  %v1707 = vadd.f32 %v1705, %v1706
  %v1708 = vrot.slane %v1707, 1
  %v1709 = vadd.f32 %v1707, %v1708
  %v1710 = vsel %vm520, %v868, 0.0
  %v1711 = vrot.slane %v1710, 4
  %v1712 = vadd.f32 %v1710, %v1711
  %v1713 = vrot.slane %v1712, 2
  %v1714 = vadd.f32 %v1712, %v1713
  %v1715 = vrot.slane %v1714, 1
  %v1716 = vadd.f32 %v1714, %v1715
  %v1717 = vsel %vm520, %v871, 0.0
  %v1718 = vrot.slane %v1717, 4
  %v1719 = vadd.f32 %v1717, %v1718
  %v1720 = vrot.slane %v1719, 2
  %v1721 = vadd.f32 %v1719, %v1720
  %v1722 = vrot.slane %v1721, 1
  %v1723 = vadd.f32 %v1721, %v1722
  %v1724 = vsel %vm520, %v874, 0.0
  %v1725 = vrot.slane %v1724, 4
  %v1726 = vadd.f32 %v1724, %v1725
  %v1727 = vrot.slane %v1726, 2
  %v1728 = vadd.f32 %v1726, %v1727
  %v1729 = vrot.slane %v1728, 1
  %v1730 = vadd.f32 %v1728, %v1729
  %v1731 = vsel %vm520, %v877, 0.0
  %v1732 = vrot.slane %v1731, 4
  %v1733 = vadd.f32 %v1731, %v1732
  %v1734 = vrot.slane %v1733, 2
  %v1735 = vadd.f32 %v1733, %v1734
  %v1736 = vrot.slane %v1735, 1
  %v1737 = vadd.f32 %v1735, %v1736
  %v1738 = vsel %vm520, %v880, 0.0
  %v1739 = vrot.slane %v1738, 4
  %v1740 = vadd.f32 %v1738, %v1739
  %v1741 = vrot.slane %v1740, 2
  %v1742 = vadd.f32 %v1740, %v1741
  %v1743 = vrot.slane %v1742, 1
  %v1744 = vadd.f32 %v1742, %v1743
  %v1745 = vsel %vm520, %v883, 0.0
  %v1746 = vrot.slane %v1745, 4
  %v1747 = vadd.f32 %v1745, %v1746
  %v1748 = vrot.slane %v1747, 2
  %v1749 = vadd.f32 %v1747, %v1748
  %v1750 = vrot.slane %v1749, 1
  %v1751 = vadd.f32 %v1749, %v1750
  %v1752 = vsel %vm520, %v886, 0.0
  %v1753 = vrot.slane %v1752, 4
  %v1754 = vadd.f32 %v1752, %v1753
  %v1755 = vrot.slane %v1754, 2
  %v1756 = vadd.f32 %v1754, %v1755
  %v1757 = vrot.slane %v1756, 1
  %v1758 = vadd.f32 %v1756, %v1757
  %v1759 = vsel %vm520, %v889, 0.0
  %v1760 = vrot.slane %v1759, 4
  %v1761 = vadd.f32 %v1759, %v1760
  %v1762 = vrot.slane %v1761, 2
  %v1763 = vadd.f32 %v1761, %v1762
  %v1764 = vrot.slane %v1763, 1
  %v1765 = vadd.f32 %v1763, %v1764
  %v1766 = vsel %vm520, %v892, 0.0
  %v1767 = vrot.slane %v1766, 4
  %v1768 = vadd.f32 %v1766, %v1767
  %v1769 = vrot.slane %v1768, 2
  %v1770 = vadd.f32 %v1768, %v1769
  %v1771 = vrot.slane %v1770, 1
  %v1772 = vadd.f32 %v1770, %v1771
  %v1773 = vsel %vm520, %v895, 0.0
  %v1774 = vrot.slane %v1773, 4
  %v1775 = vadd.f32 %v1773, %v1774
  %v1776 = vrot.slane %v1775, 2
  %v1777 = vadd.f32 %v1775, %v1776
  %v1778 = vrot.slane %v1777, 1
  %v1779 = vadd.f32 %v1777, %v1778
  %v1780 = vsel %vm520, %v898, 0.0
  %v1781 = vrot.slane %v1780, 4
  %v1782 = vadd.f32 %v1780, %v1781
  %v1783 = vrot.slane %v1782, 2
  %v1784 = vadd.f32 %v1782, %v1783
  %v1785 = vrot.slane %v1784, 1
  %v1786 = vadd.f32 %v1784, %v1785
  %v1787 = vsel %vm520, %v901, 0.0
  %v1788 = vrot.slane %v1787, 4
  %v1789 = vadd.f32 %v1787, %v1788
  %v1790 = vrot.slane %v1789, 2
  %v1791 = vadd.f32 %v1789, %v1790
  %v1792 = vrot.slane %v1791, 1
  %v1793 = vadd.f32 %v1791, %v1792
  %v1794 = vsel %vm520, %v904, 0.0
  %v1795 = vrot.slane %v1794, 4
  %v1796 = vadd.f32 %v1794, %v1795
  %v1797 = vrot.slane %v1796, 2
  %v1798 = vadd.f32 %v1796, %v1797
  %v1799 = vrot.slane %v1798, 1
  %v1800 = vadd.f32 %v1798, %v1799
  %v1801 = vmul.f32 %v911, 0.25
  %v1802 = vmul.f32 %v918, 0.25
  %v1803 = vmul.f32 %v925, 0.25
  %v1804 = vmul.f32 %v932, 0.25
  %v1805 = vmul.f32 %v939, 0.25
  %v1806 = vmul.f32 %v946, 0.25
  %v1807 = vmul.f32 %v953, 0.25
  %v1808 = vmul.f32 %v960, 0.25
  %v1809 = vmul.f32 %v967, 0.25
  %v1810 = vmul.f32 %v974, 0.25
  %v1811 = vmul.f32 %v981, 0.25
  %v1812 = vmul.f32 %v988, 0.25
  %v1813 = vmul.f32 %v995, 0.25
  %v1814 = vmul.f32 %v1002, 0.25
  %v1815 = vmul.f32 %v1009, 0.25
  %v1816 = vmul.f32 %v1016, 0.25
  %v1817 = vmul.f32 %v1023, 0.25
  %v1818 = vmul.f32 %v1030, 0.25
  %v1819 = vmul.f32 %v1037, 0.25
  %v1820 = vmul.f32 %v1044, 0.25
  %v1821 = vmul.f32 %v1051, 0.25
  %v1822 = vmul.f32 %v1058, 0.25
  %v1823 = vmul.f32 %v1065, 0.25
  %v1824 = vmul.f32 %v1072, 0.25
  %v1825 = vmul.f32 %v1079, 0.25
  %v1826 = vmul.f32 %v1086, 0.25
  %v1827 = vmul.f32 %v1093, 0.25
  %v1828 = vmul.f32 %v1100, 0.25
  %v1829 = vmul.f32 %v1107, 0.25
  %v1830 = vmul.f32 %v1114, 0.25
  %v1831 = vmul.f32 %v1121, 0.25
  %v1832 = vmul.f32 %v1128, 0.25
  %v1833 = vmul.f32 %v1135, 0.25
  %v1834 = vmul.f32 %v1142, 0.25
  %v1835 = vmul.f32 %v1149, 0.25
  %v1836 = vmul.f32 %v1156, 0.25
  %v1837 = vmul.f32 %v1163, 0.25
  %v1838 = vmul.f32 %v1170, 0.25
  %v1839 = vmul.f32 %v1177, 0.25
  %v1840 = vmul.f32 %v1184, 0.25
  %v1841 = vmul.f32 %v1191, 0.25
  %v1842 = vmul.f32 %v1198, 0.25
  %v1843 = vmul.f32 %v1205, 0.25
  %v1844 = vmul.f32 %v1212, 0.25
  %v1845 = vmul.f32 %v1219, 0.25
  %v1846 = vmul.f32 %v1226, 0.25
  %v1847 = vmul.f32 %v1233, 0.25
  %v1848 = vmul.f32 %v1240, 0.25
  %v1849 = vmul.f32 %v1247, 0.25
  %v1850 = vmul.f32 %v1254, 0.25
  %v1851 = vmul.f32 %v1261, 0.25
  %v1852 = vmul.f32 %v1268, 0.25
  %v1853 = vmul.f32 %v1275, 0.25
  %v1854 = vmul.f32 %v1282, 0.25
  %v1855 = vmul.f32 %v1289, 0.25
  %v1856 = vmul.f32 %v1296, 0.25
  %v1857 = vmul.f32 %v1303, 0.25
  %v1858 = vmul.f32 %v1310, 0.25
  %v1859 = vmul.f32 %v1317, 0.25
  %v1860 = vmul.f32 %v1324, 0.25
  %v1861 = vmul.f32 %v1331, 0.25
  %v1862 = vmul.f32 %v1338, 0.25
  %v1863 = vmul.f32 %v1345, 0.25
  %v1864 = vmul.f32 %v1352, 0.25
  %v1865 = vmul.f32 %v1359, 0.25
  %v1866 = vmul.f32 %v1366, 0.25
  %v1867 = vmul.f32 %v1373, 0.25
  %v1868 = vmul.f32 %v1380, 0.25
  %v1869 = vmul.f32 %v1387, 0.25
  %v1870 = vmul.f32 %v1394, 0.25
  %v1871 = vmul.f32 %v1401, 0.25
  %v1872 = vmul.f32 %v1408, 0.25
  %v1873 = vmul.f32 %v1415, 0.25
  %v1874 = vmul.f32 %v1422, 0.25
  %v1875 = vmul.f32 %v1429, 0.25
  %v1876 = vmul.f32 %v1436, 0.25
  %v1877 = vmul.f32 %v1443, 0.25
  %v1878 = vmul.f32 %v1450, 0.25
  %v1879 = vmul.f32 %v1457, 0.25
  %v1880 = vmul.f32 %v1464, 0.25
  %v1881 = vmul.f32 %v1471, 0.25
  %v1882 = vmul.f32 %v1478, 0.25
  %v1883 = vmul.f32 %v1485, 0.25
  %v1884 = vmul.f32 %v1492, 0.25
  %v1885 = vmul.f32 %v1499, 0.25
  %v1886 = vmul.f32 %v1506, 0.25
  %v1887 = vmul.f32 %v1513, 0.25
  %v1888 = vmul.f32 %v1520, 0.25
  %v1889 = vmul.f32 %v1527, 0.25
  %v1890 = vmul.f32 %v1534, 0.25
  %v1891 = vmul.f32 %v1541, 0.25
  %v1892 = vmul.f32 %v1548, 0.25
  %v1893 = vmul.f32 %v1555, 0.25
  %v1894 = vmul.f32 %v1562, 0.25
  %v1895 = vmul.f32 %v1569, 0.25
  %v1896 = vmul.f32 %v1576, 0.25
  %v1897 = vmul.f32 %v1583, 0.25
  %v1898 = vmul.f32 %v1590, 0.25
  %v1899 = vmul.f32 %v1597, 0.25
  %v1900 = vmul.f32 %v1604, 0.25
  %v1901 = vmul.f32 %v1611, 0.25
  %v1902 = vmul.f32 %v1618, 0.25
  %v1903 = vmul.f32 %v1625, 0.25
  %v1904 = vmul.f32 %v1632, 0.25
  %v1905 = vmul.f32 %v1639, 0.25
  %v1906 = vmul.f32 %v1646, 0.25
  %v1907 = vmul.f32 %v1653, 0.25
  %v1908 = vmul.f32 %v1660, 0.25
  %v1909 = vmul.f32 %v1667, 0.25
  %v1910 = vmul.f32 %v1674, 0.25
  %v1911 = vmul.f32 %v1681, 0.25
  %v1912 = vmul.f32 %v1688, 0.25
  %v1913 = vmul.f32 %v1695, 0.25
  %v1914 = vmul.f32 %v1702, 0.25
  %v1915 = vmul.f32 %v1709, 0.25
  %v1916 = vmul.f32 %v1716, 0.25
  %v1917 = vmul.f32 %v1723, 0.25
  %v1918 = vmul.f32 %v1730, 0.25
  %v1919 = vmul.f32 %v1737, 0.25
  %v1920 = vmul.f32 %v1744, 0.25
  %v1921 = vmul.f32 %v1751, 0.25
  %v1922 = vmul.f32 %v1758, 0.25
  %v1923 = vmul.f32 %v1765, 0.25
  %v1924 = vmul.f32 %v1772, 0.25
  %v1925 = vmul.f32 %v1779, 0.25
  %v1926 = vmul.f32 %v1786, 0.25
  %v1927 = vmul.f32 %v1793, 0.25
  %v1928 = vmul.f32 %v1800, 0.25
  %v1929 = vpack.c.bf16 %v1801, %v1801
  %v1930 = vpack.c.bf16 %v1802, %v1802
  %v1931 = vpack.c.bf16 %v1803, %v1803
  %v1932 = vpack.c.bf16 %v1804, %v1804
  %v1933 = vpack.c.bf16 %v1805, %v1805
  %v1934 = vpack.c.bf16 %v1806, %v1806
  %v1935 = vpack.c.bf16 %v1807, %v1807
  %v1936 = vpack.c.bf16 %v1808, %v1808
  %v1937 = vpack.c.bf16 %v1809, %v1809
  %v1938 = vpack.c.bf16 %v1810, %v1810
  %v1939 = vpack.c.bf16 %v1811, %v1811
  %v1940 = vpack.c.bf16 %v1812, %v1812
  %v1941 = vpack.c.bf16 %v1813, %v1813
  %v1942 = vpack.c.bf16 %v1814, %v1814
  %v1943 = vpack.c.bf16 %v1815, %v1815
  %v1944 = vpack.c.bf16 %v1816, %v1816
  %v1945 = vpack.c.bf16 %v1817, %v1817
  %v1946 = vpack.c.bf16 %v1818, %v1818
  %v1947 = vpack.c.bf16 %v1819, %v1819
  %v1948 = vpack.c.bf16 %v1820, %v1820
  %v1949 = vpack.c.bf16 %v1821, %v1821
  %v1950 = vpack.c.bf16 %v1822, %v1822
  %v1951 = vpack.c.bf16 %v1823, %v1823
  %v1952 = vpack.c.bf16 %v1824, %v1824
  %v1953 = vpack.c.bf16 %v1825, %v1825
  %v1954 = vpack.c.bf16 %v1826, %v1826
  %v1955 = vpack.c.bf16 %v1827, %v1827
  %v1956 = vpack.c.bf16 %v1828, %v1828
  %v1957 = vpack.c.bf16 %v1829, %v1829
  %v1958 = vpack.c.bf16 %v1830, %v1830
  %v1959 = vpack.c.bf16 %v1831, %v1831
  %v1960 = vpack.c.bf16 %v1832, %v1832
  %v1961 = vpack.c.bf16 %v1833, %v1833
  %v1962 = vpack.c.bf16 %v1834, %v1834
  %v1963 = vpack.c.bf16 %v1835, %v1835
  %v1964 = vpack.c.bf16 %v1836, %v1836
  %v1965 = vpack.c.bf16 %v1837, %v1837
  %v1966 = vpack.c.bf16 %v1838, %v1838
  %v1967 = vpack.c.bf16 %v1839, %v1839
  %v1968 = vpack.c.bf16 %v1840, %v1840
  %v1969 = vpack.c.bf16 %v1841, %v1841
  %v1970 = vpack.c.bf16 %v1842, %v1842
  %v1971 = vpack.c.bf16 %v1843, %v1843
  %v1972 = vpack.c.bf16 %v1844, %v1844
  %v1973 = vpack.c.bf16 %v1845, %v1845
  %v1974 = vpack.c.bf16 %v1846, %v1846
  %v1975 = vpack.c.bf16 %v1847, %v1847
  %v1976 = vpack.c.bf16 %v1848, %v1848
  %v1977 = vpack.c.bf16 %v1849, %v1849
  %v1978 = vpack.c.bf16 %v1850, %v1850
  %v1979 = vpack.c.bf16 %v1851, %v1851
  %v1980 = vpack.c.bf16 %v1852, %v1852
  %v1981 = vpack.c.bf16 %v1853, %v1853
  %v1982 = vpack.c.bf16 %v1854, %v1854
  %v1983 = vpack.c.bf16 %v1855, %v1855
  %v1984 = vpack.c.bf16 %v1856, %v1856
  %v1985 = vpack.c.bf16 %v1857, %v1857
  %v1986 = vpack.c.bf16 %v1858, %v1858
  %v1987 = vpack.c.bf16 %v1859, %v1859
  %v1988 = vpack.c.bf16 %v1860, %v1860
  %v1989 = vpack.c.bf16 %v1861, %v1861
  %v1990 = vpack.c.bf16 %v1862, %v1862
  %v1991 = vpack.c.bf16 %v1863, %v1863
  %v1992 = vpack.c.bf16 %v1864, %v1864
  %v1993 = vpack.c.bf16 %v1865, %v1865
  %v1994 = vpack.c.bf16 %v1866, %v1866
  %v1995 = vpack.c.bf16 %v1867, %v1867
  %v1996 = vpack.c.bf16 %v1868, %v1868
  %v1997 = vpack.c.bf16 %v1869, %v1869
  %v1998 = vpack.c.bf16 %v1870, %v1870
  %v1999 = vpack.c.bf16 %v1871, %v1871
  %v2000 = vpack.c.bf16 %v1872, %v1872
  %v2001 = vpack.c.bf16 %v1873, %v1873
  %v2002 = vpack.c.bf16 %v1874, %v1874
  %v2003 = vpack.c.bf16 %v1875, %v1875
  %v2004 = vpack.c.bf16 %v1876, %v1876
  %v2005 = vpack.c.bf16 %v1877, %v1877
  %v2006 = vpack.c.bf16 %v1878, %v1878
  %v2007 = vpack.c.bf16 %v1879, %v1879
  %v2008 = vpack.c.bf16 %v1880, %v1880
  %v2009 = vpack.c.bf16 %v1881, %v1881
  %v2010 = vpack.c.bf16 %v1882, %v1882
  %v2011 = vpack.c.bf16 %v1883, %v1883
  %v2012 = vpack.c.bf16 %v1884, %v1884
  %v2013 = vpack.c.bf16 %v1885, %v1885
  %v2014 = vpack.c.bf16 %v1886, %v1886
  %v2015 = vpack.c.bf16 %v1887, %v1887
  %v2016 = vpack.c.bf16 %v1888, %v1888
  %v2017 = vpack.c.bf16 %v1889, %v1889
  %v2018 = vpack.c.bf16 %v1890, %v1890
  %v2019 = vpack.c.bf16 %v1891, %v1891
  %v2020 = vpack.c.bf16 %v1892, %v1892
  %v2021 = vpack.c.bf16 %v1893, %v1893
  %v2022 = vpack.c.bf16 %v1894, %v1894
  %v2023 = vpack.c.bf16 %v1895, %v1895
  %v2024 = vpack.c.bf16 %v1896, %v1896
  %v2025 = vpack.c.bf16 %v1897, %v1897
  %v2026 = vpack.c.bf16 %v1898, %v1898
  %v2027 = vpack.c.bf16 %v1899, %v1899
  %v2028 = vpack.c.bf16 %v1900, %v1900
  %v2029 = vpack.c.bf16 %v1901, %v1901
  %v2030 = vpack.c.bf16 %v1902, %v1902
  %v2031 = vpack.c.bf16 %v1903, %v1903
  %v2032 = vpack.c.bf16 %v1904, %v1904
  %v2033 = vpack.c.bf16 %v1905, %v1905
  %v2034 = vpack.c.bf16 %v1906, %v1906
  %v2035 = vpack.c.bf16 %v1907, %v1907
  %v2036 = vpack.c.bf16 %v1908, %v1908
  %v2037 = vpack.c.bf16 %v1909, %v1909
  %v2038 = vpack.c.bf16 %v1910, %v1910
  %v2039 = vpack.c.bf16 %v1911, %v1911
  %v2040 = vpack.c.bf16 %v1912, %v1912
  %v2041 = vpack.c.bf16 %v1913, %v1913
  %v2042 = vpack.c.bf16 %v1914, %v1914
  %v2043 = vpack.c.bf16 %v1915, %v1915
  %v2044 = vpack.c.bf16 %v1916, %v1916
  %v2045 = vpack.c.bf16 %v1917, %v1917
  %v2046 = vpack.c.bf16 %v1918, %v1918
  %v2047 = vpack.c.bf16 %v1919, %v1919
  %v2048 = vpack.c.bf16 %v1920, %v1920
  %v2049 = vpack.c.bf16 %v1921, %v1921
  %v2050 = vpack.c.bf16 %v1922, %v1922
  %v2051 = vpack.c.bf16 %v1923, %v1923
  %v2052 = vpack.c.bf16 %v1924, %v1924
  %v2053 = vpack.c.bf16 %v1925, %v1925
  %v2054 = vpack.c.bf16 %v1926, %v1926
  %v2055 = vpack.c.bf16 %v1927, %v1927
  %v2056 = vpack.c.bf16 %v1928, %v1928
  %v2185 = vunpack.c.l.b16 %v1929
  %v2186 = vunpack.c.l.b16 %v1930
  %v2187 = vunpack.c.l.b16 %v1931
  %v2188 = vunpack.c.l.b16 %v1932
  %v2189 = vunpack.c.l.b16 %v1933
  %v2190 = vunpack.c.l.b16 %v1934
  %v2191 = vunpack.c.l.b16 %v1935
  %v2192 = vunpack.c.l.b16 %v1936
  %v2193 = vunpack.c.l.b16 %v1937
  %v2194 = vunpack.c.l.b16 %v1938
  %v2195 = vunpack.c.l.b16 %v1939
  %v2196 = vunpack.c.l.b16 %v1940
  %v2197 = vunpack.c.l.b16 %v1941
  %v2198 = vunpack.c.l.b16 %v1942
  %v2199 = vunpack.c.l.b16 %v1943
  %v2200 = vunpack.c.l.b16 %v1944
  %v2201 = vunpack.c.l.b16 %v1945
  %v2202 = vunpack.c.l.b16 %v1946
  %v2203 = vunpack.c.l.b16 %v1947
  %v2204 = vunpack.c.l.b16 %v1948
  %v2205 = vunpack.c.l.b16 %v1949
  %v2206 = vunpack.c.l.b16 %v1950
  %v2207 = vunpack.c.l.b16 %v1951
  %v2208 = vunpack.c.l.b16 %v1952
  %v2209 = vunpack.c.l.b16 %v1953
  %v2210 = vunpack.c.l.b16 %v1954
  %v2211 = vunpack.c.l.b16 %v1955
  %v2212 = vunpack.c.l.b16 %v1956
  %v2213 = vunpack.c.l.b16 %v1957
  %v2214 = vunpack.c.l.b16 %v1958
  %v2215 = vunpack.c.l.b16 %v1959
  %v2216 = vunpack.c.l.b16 %v1960
  %v2217 = vunpack.c.l.b16 %v1961
  %v2218 = vunpack.c.l.b16 %v1962
  %v2219 = vunpack.c.l.b16 %v1963
  %v2220 = vunpack.c.l.b16 %v1964
  %v2221 = vunpack.c.l.b16 %v1965
  %v2222 = vunpack.c.l.b16 %v1966
  %v2223 = vunpack.c.l.b16 %v1967
  %v2224 = vunpack.c.l.b16 %v1968
  %v2225 = vunpack.c.l.b16 %v1969
  %v2226 = vunpack.c.l.b16 %v1970
  %v2227 = vunpack.c.l.b16 %v1971
  %v2228 = vunpack.c.l.b16 %v1972
  %v2229 = vunpack.c.l.b16 %v1973
  %v2230 = vunpack.c.l.b16 %v1974
  %v2231 = vunpack.c.l.b16 %v1975
  %v2232 = vunpack.c.l.b16 %v1976
  %v2233 = vunpack.c.l.b16 %v1977
  %v2234 = vunpack.c.l.b16 %v1978
  %v2235 = vunpack.c.l.b16 %v1979
  %v2236 = vunpack.c.l.b16 %v1980
  %v2237 = vunpack.c.l.b16 %v1981
  %v2238 = vunpack.c.l.b16 %v1982
  %v2239 = vunpack.c.l.b16 %v1983
  %v2240 = vunpack.c.l.b16 %v1984
  %v2241 = vunpack.c.l.b16 %v1985
  %v2242 = vunpack.c.l.b16 %v1986
  %v2243 = vunpack.c.l.b16 %v1987
  %v2244 = vunpack.c.l.b16 %v1988
  %v2245 = vunpack.c.l.b16 %v1989
  %v2246 = vunpack.c.l.b16 %v1990
  %v2247 = vunpack.c.l.b16 %v1991
  %v2248 = vunpack.c.l.b16 %v1992
  %v2249 = vunpack.c.l.b16 %v1993
  %v2250 = vunpack.c.l.b16 %v1994
  %v2251 = vunpack.c.l.b16 %v1995
  %v2252 = vunpack.c.l.b16 %v1996
  %v2253 = vunpack.c.l.b16 %v1997
  %v2254 = vunpack.c.l.b16 %v1998
  %v2255 = vunpack.c.l.b16 %v1999
  %v2256 = vunpack.c.l.b16 %v2000
  %v2257 = vunpack.c.l.b16 %v2001
  %v2258 = vunpack.c.l.b16 %v2002
  %v2259 = vunpack.c.l.b16 %v2003
  %v2260 = vunpack.c.l.b16 %v2004
  %v2261 = vunpack.c.l.b16 %v2005
  %v2262 = vunpack.c.l.b16 %v2006
  %v2263 = vunpack.c.l.b16 %v2007
  %v2264 = vunpack.c.l.b16 %v2008
  %v2265 = vunpack.c.l.b16 %v2009
  %v2266 = vunpack.c.l.b16 %v2010
  %v2267 = vunpack.c.l.b16 %v2011
  %v2268 = vunpack.c.l.b16 %v2012
  %v2269 = vunpack.c.l.b16 %v2013
  %v2270 = vunpack.c.l.b16 %v2014
  %v2271 = vunpack.c.l.b16 %v2015
  %v2272 = vunpack.c.l.b16 %v2016
  %v2273 = vunpack.c.l.b16 %v2017
  %v2274 = vunpack.c.l.b16 %v2018
  %v2275 = vunpack.c.l.b16 %v2019
  %v2276 = vunpack.c.l.b16 %v2020
  %v2277 = vunpack.c.l.b16 %v2021
  %v2278 = vunpack.c.l.b16 %v2022
  %v2279 = vunpack.c.l.b16 %v2023
  %v2280 = vunpack.c.l.b16 %v2024
  %v2281 = vunpack.c.l.b16 %v2025
  %v2282 = vunpack.c.l.b16 %v2026
  %v2283 = vunpack.c.l.b16 %v2027
  %v2284 = vunpack.c.l.b16 %v2028
  %v2285 = vunpack.c.l.b16 %v2029
  %v2286 = vunpack.c.l.b16 %v2030
  %v2287 = vunpack.c.l.b16 %v2031
  %v2288 = vunpack.c.l.b16 %v2032
  %v2289 = vunpack.c.l.b16 %v2033
  %v2290 = vunpack.c.l.b16 %v2034
  %v2291 = vunpack.c.l.b16 %v2035
  %v2292 = vunpack.c.l.b16 %v2036
  %v2293 = vunpack.c.l.b16 %v2037
  %v2294 = vunpack.c.l.b16 %v2038
  %v2295 = vunpack.c.l.b16 %v2039
  %v2296 = vunpack.c.l.b16 %v2040
  %v2297 = vunpack.c.l.b16 %v2041
  %v2298 = vunpack.c.l.b16 %v2042
  %v2299 = vunpack.c.l.b16 %v2043
  %v2300 = vunpack.c.l.b16 %v2044
  %v2301 = vunpack.c.l.b16 %v2045
  %v2302 = vunpack.c.l.b16 %v2046
  %v2303 = vunpack.c.l.b16 %v2047
  %v2304 = vunpack.c.l.b16 %v2048
  %v2305 = vunpack.c.l.b16 %v2049
  %v2306 = vunpack.c.l.b16 %v2050
  %v2307 = vunpack.c.l.b16 %v2051
  %v2308 = vunpack.c.l.b16 %v2052
  %v2309 = vunpack.c.l.b16 %v2053
  %v2310 = vunpack.c.l.b16 %v2054
  %v2311 = vunpack.c.l.b16 %v2055
  %v2312 = vunpack.c.l.b16 %v2056
  %v2313 = vpack.c.b16 %v2185, %v2185
  %v2314 = vpack.c.b16 %v2186, %v2186
  %v2315 = vpack.c.b16 %v2187, %v2187
  %v2316 = vpack.c.b16 %v2188, %v2188
  %v2317 = vpack.c.b16 %v2189, %v2189
  %v2318 = vpack.c.b16 %v2190, %v2190
  %v2319 = vpack.c.b16 %v2191, %v2191
  %v2320 = vpack.c.b16 %v2192, %v2192
  %v2321 = vpack.c.b16 %v2193, %v2193
  %v2322 = vpack.c.b16 %v2194, %v2194
  %v2323 = vpack.c.b16 %v2195, %v2195
  %v2324 = vpack.c.b16 %v2196, %v2196
  %v2325 = vpack.c.b16 %v2197, %v2197
  %v2326 = vpack.c.b16 %v2198, %v2198
  %v2327 = vpack.c.b16 %v2199, %v2199
  %v2328 = vpack.c.b16 %v2200, %v2200
  %v2329 = vpack.c.b16 %v2201, %v2201
  %v2330 = vpack.c.b16 %v2202, %v2202
  %v2331 = vpack.c.b16 %v2203, %v2203
  %v2332 = vpack.c.b16 %v2204, %v2204
  %v2333 = vpack.c.b16 %v2205, %v2205
  %v2334 = vpack.c.b16 %v2206, %v2206
  %v2335 = vpack.c.b16 %v2207, %v2207
  %v2336 = vpack.c.b16 %v2208, %v2208
  %v2337 = vpack.c.b16 %v2209, %v2209
  %v2338 = vpack.c.b16 %v2210, %v2210
  %v2339 = vpack.c.b16 %v2211, %v2211
  %v2340 = vpack.c.b16 %v2212, %v2212
  %v2341 = vpack.c.b16 %v2213, %v2213
  %v2342 = vpack.c.b16 %v2214, %v2214
  %v2343 = vpack.c.b16 %v2215, %v2215
  %v2344 = vpack.c.b16 %v2216, %v2216
  %v2345 = vpack.c.b16 %v2217, %v2217
  %v2346 = vpack.c.b16 %v2218, %v2218
  %v2347 = vpack.c.b16 %v2219, %v2219
  %v2348 = vpack.c.b16 %v2220, %v2220
  %v2349 = vpack.c.b16 %v2221, %v2221
  %v2350 = vpack.c.b16 %v2222, %v2222
  %v2351 = vpack.c.b16 %v2223, %v2223
  %v2352 = vpack.c.b16 %v2224, %v2224
  %v2353 = vpack.c.b16 %v2225, %v2225
  %v2354 = vpack.c.b16 %v2226, %v2226
  %v2355 = vpack.c.b16 %v2227, %v2227
  %v2356 = vpack.c.b16 %v2228, %v2228
  %v2357 = vpack.c.b16 %v2229, %v2229
  %v2358 = vpack.c.b16 %v2230, %v2230
  %v2359 = vpack.c.b16 %v2231, %v2231
  %v2360 = vpack.c.b16 %v2232, %v2232
  %v2361 = vpack.c.b16 %v2233, %v2233
  %v2362 = vpack.c.b16 %v2234, %v2234
  %v2363 = vpack.c.b16 %v2235, %v2235
  %v2364 = vpack.c.b16 %v2236, %v2236
  %v2365 = vpack.c.b16 %v2237, %v2237
  %v2366 = vpack.c.b16 %v2238, %v2238
  %v2367 = vpack.c.b16 %v2239, %v2239
  %v2368 = vpack.c.b16 %v2240, %v2240
  %v2369 = vpack.c.b16 %v2241, %v2241
  %v2370 = vpack.c.b16 %v2242, %v2242
  %v2371 = vpack.c.b16 %v2243, %v2243
  %v2372 = vpack.c.b16 %v2244, %v2244
  %v2373 = vpack.c.b16 %v2245, %v2245
  %v2374 = vpack.c.b16 %v2246, %v2246
  %v2375 = vpack.c.b16 %v2247, %v2247
  %v2376 = vpack.c.b16 %v2248, %v2248
  %v2377 = vpack.c.b16 %v2249, %v2249
  %v2378 = vpack.c.b16 %v2250, %v2250
  %v2379 = vpack.c.b16 %v2251, %v2251
  %v2380 = vpack.c.b16 %v2252, %v2252
  %v2381 = vpack.c.b16 %v2253, %v2253
  %v2382 = vpack.c.b16 %v2254, %v2254
  %v2383 = vpack.c.b16 %v2255, %v2255
  %v2384 = vpack.c.b16 %v2256, %v2256
  %v2385 = vpack.c.b16 %v2257, %v2257
  %v2386 = vpack.c.b16 %v2258, %v2258
  %v2387 = vpack.c.b16 %v2259, %v2259
  %v2388 = vpack.c.b16 %v2260, %v2260
  %v2389 = vpack.c.b16 %v2261, %v2261
  %v2390 = vpack.c.b16 %v2262, %v2262
  %v2391 = vpack.c.b16 %v2263, %v2263
  %v2392 = vpack.c.b16 %v2264, %v2264
  %v2393 = vpack.c.b16 %v2265, %v2265
  %v2394 = vpack.c.b16 %v2266, %v2266
  %v2395 = vpack.c.b16 %v2267, %v2267
  %v2396 = vpack.c.b16 %v2268, %v2268
  %v2397 = vpack.c.b16 %v2269, %v2269
  %v2398 = vpack.c.b16 %v2270, %v2270
  %v2399 = vpack.c.b16 %v2271, %v2271
  %v2400 = vpack.c.b16 %v2272, %v2272
  %v2401 = vpack.c.b16 %v2273, %v2273
  %v2402 = vpack.c.b16 %v2274, %v2274
  %v2403 = vpack.c.b16 %v2275, %v2275
  %v2404 = vpack.c.b16 %v2276, %v2276
  %v2405 = vpack.c.b16 %v2277, %v2277
  %v2406 = vpack.c.b16 %v2278, %v2278
  %v2407 = vpack.c.b16 %v2279, %v2279
  %v2408 = vpack.c.b16 %v2280, %v2280
  %v2409 = vpack.c.b16 %v2281, %v2281
  %v2410 = vpack.c.b16 %v2282, %v2282
  %v2411 = vpack.c.b16 %v2283, %v2283
  %v2412 = vpack.c.b16 %v2284, %v2284
  %v2413 = vpack.c.b16 %v2285, %v2285
  %v2414 = vpack.c.b16 %v2286, %v2286
  %v2415 = vpack.c.b16 %v2287, %v2287
  %v2416 = vpack.c.b16 %v2288, %v2288
  %v2417 = vpack.c.b16 %v2289, %v2289
  %v2418 = vpack.c.b16 %v2290, %v2290
  %v2419 = vpack.c.b16 %v2291, %v2291
  %v2420 = vpack.c.b16 %v2292, %v2292
  %v2421 = vpack.c.b16 %v2293, %v2293
  %v2422 = vpack.c.b16 %v2294, %v2294
  %v2423 = vpack.c.b16 %v2295, %v2295
  %v2424 = vpack.c.b16 %v2296, %v2296
  %v2425 = vpack.c.b16 %v2297, %v2297
  %v2426 = vpack.c.b16 %v2298, %v2298
  %v2427 = vpack.c.b16 %v2299, %v2299
  %v2428 = vpack.c.b16 %v2300, %v2300
  %v2429 = vpack.c.b16 %v2301, %v2301
  %v2430 = vpack.c.b16 %v2302, %v2302
  %v2431 = vpack.c.b16 %v2303, %v2303
  %v2432 = vpack.c.b16 %v2304, %v2304
  %v2433 = vpack.c.b16 %v2305, %v2305
  %v2434 = vpack.c.b16 %v2306, %v2306
  %v2435 = vpack.c.b16 %v2307, %v2307
  %v2436 = vpack.c.b16 %v2308, %v2308
  %v2437 = vpack.c.b16 %v2309, %v2309
  %v2438 = vpack.c.b16 %v2310, %v2310
  %v2439 = vpack.c.b16 %v2311, %v2311
  %v2440 = vpack.c.b16 %v2312, %v2312
  %v2441 = vunpack.c.l.b16 %v2313
  %v2442 = vunpack.c.l.b16 %v2314
  %v2443 = vunpack.c.l.b16 %v2315
  %v2444 = vunpack.c.l.b16 %v2316
  %v2445 = vunpack.c.l.b16 %v2317
  %v2446 = vunpack.c.l.b16 %v2318
  %v2447 = vunpack.c.l.b16 %v2319
  %v2448 = vunpack.c.l.b16 %v2320
  %v2449 = vunpack.c.l.b16 %v2321
  %v2450 = vunpack.c.l.b16 %v2322
  %v2451 = vunpack.c.l.b16 %v2323
  %v2452 = vunpack.c.l.b16 %v2324
  %v2453 = vunpack.c.l.b16 %v2325
  %v2454 = vunpack.c.l.b16 %v2326
  %v2455 = vunpack.c.l.b16 %v2327
  %v2456 = vunpack.c.l.b16 %v2328
  %v2457 = vunpack.c.l.b16 %v2329
  %v2458 = vunpack.c.l.b16 %v2330
  %v2459 = vunpack.c.l.b16 %v2331
  %v2460 = vunpack.c.l.b16 %v2332
  %v2461 = vunpack.c.l.b16 %v2333
  %v2462 = vunpack.c.l.b16 %v2334
  %v2463 = vunpack.c.l.b16 %v2335
  %v2464 = vunpack.c.l.b16 %v2336
  %v2465 = vunpack.c.l.b16 %v2337
  %v2466 = vunpack.c.l.b16 %v2338
  %v2467 = vunpack.c.l.b16 %v2339
  %v2468 = vunpack.c.l.b16 %v2340
  %v2469 = vunpack.c.l.b16 %v2341
  %v2470 = vunpack.c.l.b16 %v2342
  %v2471 = vunpack.c.l.b16 %v2343
  %v2472 = vunpack.c.l.b16 %v2344
  %v2473 = vunpack.c.l.b16 %v2345
  %v2474 = vunpack.c.l.b16 %v2346
  %v2475 = vunpack.c.l.b16 %v2347
  %v2476 = vunpack.c.l.b16 %v2348
  %v2477 = vunpack.c.l.b16 %v2349
  %v2478 = vunpack.c.l.b16 %v2350
  %v2479 = vunpack.c.l.b16 %v2351
  %v2480 = vunpack.c.l.b16 %v2352
  %v2481 = vunpack.c.l.b16 %v2353
  %v2482 = vunpack.c.l.b16 %v2354
  %v2483 = vunpack.c.l.b16 %v2355
  %v2484 = vunpack.c.l.b16 %v2356
  %v2485 = vunpack.c.l.b16 %v2357
  %v2486 = vunpack.c.l.b16 %v2358
  %v2487 = vunpack.c.l.b16 %v2359
  %v2488 = vunpack.c.l.b16 %v2360
  %v2489 = vunpack.c.l.b16 %v2361
  %v2490 = vunpack.c.l.b16 %v2362
  %v2491 = vunpack.c.l.b16 %v2363
  %v2492 = vunpack.c.l.b16 %v2364
  %v2493 = vunpack.c.l.b16 %v2365
  %v2494 = vunpack.c.l.b16 %v2366
  %v2495 = vunpack.c.l.b16 %v2367
  %v2496 = vunpack.c.l.b16 %v2368
  %v2497 = vunpack.c.l.b16 %v2369
  %v2498 = vunpack.c.l.b16 %v2370
  %v2499 = vunpack.c.l.b16 %v2371
  %v2500 = vunpack.c.l.b16 %v2372
  %v2501 = vunpack.c.l.b16 %v2373
  %v2502 = vunpack.c.l.b16 %v2374
  %v2503 = vunpack.c.l.b16 %v2375
  %v2504 = vunpack.c.l.b16 %v2376
  %v2505 = vunpack.c.l.b16 %v2377
  %v2506 = vunpack.c.l.b16 %v2378
  %v2507 = vunpack.c.l.b16 %v2379
  %v2508 = vunpack.c.l.b16 %v2380
  %v2509 = vunpack.c.l.b16 %v2381
  %v2510 = vunpack.c.l.b16 %v2382
  %v2511 = vunpack.c.l.b16 %v2383
  %v2512 = vunpack.c.l.b16 %v2384
  %v2513 = vunpack.c.l.b16 %v2385
  %v2514 = vunpack.c.l.b16 %v2386
  %v2515 = vunpack.c.l.b16 %v2387
  %v2516 = vunpack.c.l.b16 %v2388
  %v2517 = vunpack.c.l.b16 %v2389
  %v2518 = vunpack.c.l.b16 %v2390
  %v2519 = vunpack.c.l.b16 %v2391
  %v2520 = vunpack.c.l.b16 %v2392
  %v2521 = vunpack.c.l.b16 %v2393
  %v2522 = vunpack.c.l.b16 %v2394
  %v2523 = vunpack.c.l.b16 %v2395
  %v2524 = vunpack.c.l.b16 %v2396
  %v2525 = vunpack.c.l.b16 %v2397
  %v2526 = vunpack.c.l.b16 %v2398
  %v2527 = vunpack.c.l.b16 %v2399
  %v2528 = vunpack.c.l.b16 %v2400
  %v2529 = vunpack.c.l.b16 %v2401
  %v2530 = vunpack.c.l.b16 %v2402
  %v2531 = vunpack.c.l.b16 %v2403
  %v2532 = vunpack.c.l.b16 %v2404
  %v2533 = vunpack.c.l.b16 %v2405
  %v2534 = vunpack.c.l.b16 %v2406
  %v2535 = vunpack.c.l.b16 %v2407
  %v2536 = vunpack.c.l.b16 %v2408
  %v2537 = vunpack.c.l.b16 %v2409
  %v2538 = vunpack.c.l.b16 %v2410
  %v2539 = vunpack.c.l.b16 %v2411
  %v2540 = vunpack.c.l.b16 %v2412
  %v2541 = vunpack.c.l.b16 %v2413
  %v2542 = vunpack.c.l.b16 %v2414
  %v2543 = vunpack.c.l.b16 %v2415
  %v2544 = vunpack.c.l.b16 %v2416
  %v2545 = vunpack.c.l.b16 %v2417
  %v2546 = vunpack.c.l.b16 %v2418
  %v2547 = vunpack.c.l.b16 %v2419
  %v2548 = vunpack.c.l.b16 %v2420
  %v2549 = vunpack.c.l.b16 %v2421
  %v2550 = vunpack.c.l.b16 %v2422
  %v2551 = vunpack.c.l.b16 %v2423
  %v2552 = vunpack.c.l.b16 %v2424
  %v2553 = vunpack.c.l.b16 %v2425
  %v2554 = vunpack.c.l.b16 %v2426
  %v2555 = vunpack.c.l.b16 %v2427
  %v2556 = vunpack.c.l.b16 %v2428
  %v2557 = vunpack.c.l.b16 %v2429
  %v2558 = vunpack.c.l.b16 %v2430
  %v2559 = vunpack.c.l.b16 %v2431
  %v2560 = vunpack.c.l.b16 %v2432
  %v2561 = vunpack.c.l.b16 %v2433
  %v2562 = vunpack.c.l.b16 %v2434
  %v2563 = vunpack.c.l.b16 %v2435
  %v2564 = vunpack.c.l.b16 %v2436
  %v2565 = vunpack.c.l.b16 %v2437
  %v2566 = vunpack.c.l.b16 %v2438
  %v2567 = vunpack.c.l.b16 %v2439
  %v2568 = vunpack.c.l.b16 %v2440
  %vm2569 = vcmask 1041409
  %v2570 = vsel %vm2569, %v2442, %v2441
  %vm2571 = vcmask 1042434
  %v2572 = vsel %vm2571, %v2443, %v2570
  %vm2573 = vcmask 1043459
  %v2574 = vsel %vm2573, %v2444, %v2572
  %vm2575 = vcmask 1044484
  %v2576 = vsel %vm2575, %v2445, %v2574
  %vm2577 = vcmask 1045509
  %v2578 = vsel %vm2577, %v2446, %v2576
  %vm2579 = vcmask 1046534
  %v2580 = vsel %vm2579, %v2447, %v2578
  %vm2581 = vcmask 1047559
  %v2582 = vsel %vm2581, %v2448, %v2580
  %v2583 = vsel %vm2569, %v2450, %v2449
  %v2584 = vsel %vm2571, %v2451, %v2583
  %v2585 = vsel %vm2573, %v2452, %v2584
  %v2586 = vsel %vm2575, %v2453, %v2585
  %v2587 = vsel %vm2577, %v2454, %v2586
  %v2588 = vsel %vm2579, %v2455, %v2587
  %v2589 = vsel %vm2581, %v2456, %v2588
  %v2590 = vsel %vm2569, %v2458, %v2457
  %v2591 = vsel %vm2571, %v2459, %v2590
  %v2592 = vsel %vm2573, %v2460, %v2591
  %v2593 = vsel %vm2575, %v2461, %v2592
  %v2594 = vsel %vm2577, %v2462, %v2593
  %v2595 = vsel %vm2579, %v2463, %v2594
  %v2596 = vsel %vm2581, %v2464, %v2595
  %v2597 = vsel %vm2569, %v2466, %v2465
  %v2598 = vsel %vm2571, %v2467, %v2597
  %v2599 = vsel %vm2573, %v2468, %v2598
  %v2600 = vsel %vm2575, %v2469, %v2599
  %v2601 = vsel %vm2577, %v2470, %v2600
  %v2602 = vsel %vm2579, %v2471, %v2601
  %v2603 = vsel %vm2581, %v2472, %v2602
  %v2604 = vsel %vm2569, %v2474, %v2473
  %v2605 = vsel %vm2571, %v2475, %v2604
  %v2606 = vsel %vm2573, %v2476, %v2605
  %v2607 = vsel %vm2575, %v2477, %v2606
  %v2608 = vsel %vm2577, %v2478, %v2607
  %v2609 = vsel %vm2579, %v2479, %v2608
  %v2610 = vsel %vm2581, %v2480, %v2609
  %v2611 = vsel %vm2569, %v2482, %v2481
  %v2612 = vsel %vm2571, %v2483, %v2611
  %v2613 = vsel %vm2573, %v2484, %v2612
  %v2614 = vsel %vm2575, %v2485, %v2613
  %v2615 = vsel %vm2577, %v2486, %v2614
  %v2616 = vsel %vm2579, %v2487, %v2615
  %v2617 = vsel %vm2581, %v2488, %v2616
  %v2618 = vsel %vm2569, %v2490, %v2489
  %v2619 = vsel %vm2571, %v2491, %v2618
  %v2620 = vsel %vm2573, %v2492, %v2619
  %v2621 = vsel %vm2575, %v2493, %v2620
  %v2622 = vsel %vm2577, %v2494, %v2621
  %v2623 = vsel %vm2579, %v2495, %v2622
  %v2624 = vsel %vm2581, %v2496, %v2623
  %v2625 = vsel %vm2569, %v2498, %v2497
  %v2626 = vsel %vm2571, %v2499, %v2625
  %v2627 = vsel %vm2573, %v2500, %v2626
  %v2628 = vsel %vm2575, %v2501, %v2627
  %v2629 = vsel %vm2577, %v2502, %v2628
  %v2630 = vsel %vm2579, %v2503, %v2629
  %v2631 = vsel %vm2581, %v2504, %v2630
  %v2632 = vsel %vm2569, %v2506, %v2505
  %v2633 = vsel %vm2571, %v2507, %v2632
  %v2634 = vsel %vm2573, %v2508, %v2633
  %v2635 = vsel %vm2575, %v2509, %v2634
  %v2636 = vsel %vm2577, %v2510, %v2635
  %v2637 = vsel %vm2579, %v2511, %v2636
  %v2638 = vsel %vm2581, %v2512, %v2637
  %v2639 = vsel %vm2569, %v2514, %v2513
  %v2640 = vsel %vm2571, %v2515, %v2639
  %v2641 = vsel %vm2573, %v2516, %v2640
  %v2642 = vsel %vm2575, %v2517, %v2641
  %v2643 = vsel %vm2577, %v2518, %v2642
  %v2644 = vsel %vm2579, %v2519, %v2643
  %v2645 = vsel %vm2581, %v2520, %v2644
  %v2646 = vsel %vm2569, %v2522, %v2521
  %v2647 = vsel %vm2571, %v2523, %v2646
  %v2648 = vsel %vm2573, %v2524, %v2647
  %v2649 = vsel %vm2575, %v2525, %v2648
  %v2650 = vsel %vm2577, %v2526, %v2649
  %v2651 = vsel %vm2579, %v2527, %v2650
  %v2652 = vsel %vm2581, %v2528, %v2651
  %v2653 = vsel %vm2569, %v2530, %v2529
  %v2654 = vsel %vm2571, %v2531, %v2653
  %v2655 = vsel %vm2573, %v2532, %v2654
  %v2656 = vsel %vm2575, %v2533, %v2655
  %v2657 = vsel %vm2577, %v2534, %v2656
  %v2658 = vsel %vm2579, %v2535, %v2657
  %v2659 = vsel %vm2581, %v2536, %v2658
  %v2660 = vsel %vm2569, %v2538, %v2537
  %v2661 = vsel %vm2571, %v2539, %v2660
  %v2662 = vsel %vm2573, %v2540, %v2661
  %v2663 = vsel %vm2575, %v2541, %v2662
  %v2664 = vsel %vm2577, %v2542, %v2663
  %v2665 = vsel %vm2579, %v2543, %v2664
  %v2666 = vsel %vm2581, %v2544, %v2665
  %v2667 = vsel %vm2569, %v2546, %v2545
  %v2668 = vsel %vm2571, %v2547, %v2667
  %v2669 = vsel %vm2573, %v2548, %v2668
  %v2670 = vsel %vm2575, %v2549, %v2669
  %v2671 = vsel %vm2577, %v2550, %v2670
  %v2672 = vsel %vm2579, %v2551, %v2671
  %v2673 = vsel %vm2581, %v2552, %v2672
  %v2674 = vsel %vm2569, %v2554, %v2553
  %v2675 = vsel %vm2571, %v2555, %v2674
  %v2676 = vsel %vm2573, %v2556, %v2675
  %v2677 = vsel %vm2575, %v2557, %v2676
  %v2678 = vsel %vm2577, %v2558, %v2677
  %v2679 = vsel %vm2579, %v2559, %v2678
  %v2680 = vsel %vm2581, %v2560, %v2679
  %v2681 = vsel %vm2569, %v2562, %v2561
  %v2682 = vsel %vm2571, %v2563, %v2681
  %v2683 = vsel %vm2573, %v2564, %v2682
  %v2684 = vsel %vm2575, %v2565, %v2683
  %v2685 = vsel %vm2577, %v2566, %v2684
  %v2686 = vsel %vm2579, %v2567, %v2685
  %v2687 = vsel %vm2581, %v2568, %v2686
  %v2688 = vpack.c.b16 %v2582, %v2582
  %v2689 = vpack.c.b16 %v2589, %v2589
  %v2690 = vpack.c.b16 %v2596, %v2596
  %v2691 = vpack.c.b16 %v2603, %v2603
  %v2692 = vpack.c.b16 %v2610, %v2610
  %v2693 = vpack.c.b16 %v2617, %v2617
  %v2694 = vpack.c.b16 %v2624, %v2624
  %v2695 = vpack.c.b16 %v2631, %v2631
  %v2696 = vpack.c.b16 %v2638, %v2638
  %v2697 = vpack.c.b16 %v2645, %v2645
  %v2698 = vpack.c.b16 %v2652, %v2652
  %v2699 = vpack.c.b16 %v2659, %v2659
  %v2700 = vpack.c.b16 %v2666, %v2666
  %v2701 = vpack.c.b16 %v2673, %v2673
  %v2702 = vpack.c.b16 %v2680, %v2680
  %v2703 = vpack.c.b16 %v2687, %v2687
  %vm2720 = vcmask 60416
  %2721 = vst.msk [vmem:[%s1] sm:$0xf] %vm2720, %v2688
  %2722 = vst.msk [vmem:[%s1 + $0x4] sm:$0xf] %vm2720, %v2689
  %2723 = vst.msk [vmem:[%s1 + $0x8] sm:$0xf] %vm2720, %v2690
  %2724 = vst.msk [vmem:[%s1 + $0xc] sm:$0xf] %vm2720, %v2691
  %2725 = vst.msk [vmem:[%s1 + $0x10] sm:$0xf] %vm2720, %v2692
  %2726 = vst.msk [vmem:[%s1 + $0x14] sm:$0xf] %vm2720, %v2693
  %2727 = vst.msk [vmem:[%s1 + $0x18] sm:$0xf] %vm2720, %v2694
  %2728 = vst.msk [vmem:[%s1 + $0x1c] sm:$0xf] %vm2720, %v2695
  %2729 = vst.msk [vmem:[%s1 + $0x20] sm:$0xf] %vm2720, %v2696
  %2730 = vst.msk [vmem:[%s1 + $0x24] sm:$0xf] %vm2720, %v2697
  %2731 = vst.msk [vmem:[%s1 + $0x28] sm:$0xf] %vm2720, %v2698
  %2732 = vst.msk [vmem:[%s1 + $0x2c] sm:$0xf] %vm2720, %v2699
  %2733 = vst.msk [vmem:[%s1 + $0x30] sm:$0xf] %vm2720, %v2700
  %2734 = vst.msk [vmem:[%s1 + $0x34] sm:$0xf] %vm2720, %v2701
  %2735 = vst.msk [vmem:[%s1 + $0x38] sm:$0xf] %vm2720, %v2702
  %2736 = vst.msk [vmem:[%s1 + $0x3c] sm:$0xf] %vm2720, %v2703
  // Predicated region
  $region6: #{bottleneck_forward.8} parent=0 // pred_check
    _
  $region7: #{bottleneck_forward.8} parent=0 // pred_check_branch
    %2738 = sbr.rel (0) target = $region9
  $region8: #{bottleneck_forward.8} parent=0 // pred_region
    _
  $region9: #{bottleneck_forward.8} parent=0 // pred_fallthru
    _
  // Predicated region
  $region10: #{bottleneck_forward.8} parent=0 // pred_check
    _
  $region11: #{bottleneck_forward.8} parent=0 // pred_check_branch
    %2740 = sbr.rel (0) target = $region13
  $region12: #{bottleneck_forward.8} parent=0 // pred_region
    _
  $region13: #{bottleneck_forward.8} parent=0 // pred_fallthru
    _

// kernel: bottleneck_forward.7
$region0: #{bottleneck_forward.7}
  #allocation0 [shape = 'u32[]', space=smem, size = 0x4, offset = 0x4, fixed_abs, tag = 'smem constant byte address 0x4 - core index']
  #allocation1 [shape = 'u32[144,128]{1,0:T(1,128)}', space=vmem, size = 0x12000, scoped, tag = 'internal scratch']
  %s0 = inlined_call_operand.vmem [shape: bf16[2,18,18,8], index: 0, kind: input, shape index: {}]
  %s1 = inlined_call_operand.vmem [shape: bf16[3,3,8,8], index: 1, kind: input, shape index: {}]
  %s2 = inlined_call_operand.vmem [shape: f32[1,8], index: 2, kind: input, shape index: {}]
  %s3 = inlined_call_operand.vmem [shape: f32[1,8], index: 3, kind: input, shape index: {}]
  %s4 = inlined_call_operand.vmem [shape: bf16[2,256,8], index: 4, kind: output, shape index: {}]
  %s5 = sld [smem:[#allocation0]]
  $region49: #{bottleneck_forward.7} parent=0
    _
  %s7 = ssub.s32 1, %s5
  %s8 = scalar_select 0, %s7, %s5
  loop: start=0, step=1, limit=4
  $region2: #{bottleneck_forward.7} parent=0 // loop_pre_header
    _
  $region3: #{bottleneck_forward.7} parent=0 // loop_header
    %s10 = sphi 0, %s14
    %p11 = scmp.ge.s32.totalorder %s10, 4
    %s20 = sphi 0, %s22
    %s23 = sphi 0, %s20
    %s24 = sphi 0, %s23
    %s40 = sphi 0, %s24
    %s44 = sphi 0, %s44
    %s46 = sphi 0, %s44
    %s47 = sphi 0, %s46
    %s61 = sphi 0, %s47
    %s65 = sphi 0, %s65
    %s67 = sphi 0, %s65
    %s68 = sphi 0, %s67
    %s82 = sphi 0, %s68
    %s86 = sphi 0, %s86
    %s88 = sphi 0, %s86
    %s89 = sphi 0, %s88
    %s103 = sphi 0, %s89
    %s109 = sphi 0, %s111
    %s112 = sphi 0, %s109
    %s113 = sphi 0, %s112
    %s129 = sphi 0, %s113
  $region4: #{bottleneck_forward.7} parent=0 // loop_header_branch
    %13 = sbr.rel (%p11) target = $region8
  $region5: #{bottleneck_forward.7} parent=0 // loop_body
    %s15 = ssub.s32 %s10, 1
    %s16 = ssub.s32 %s10, 2
    %s17 = sadd.s32 %s10, 1
    %s18 = ssub.s32 %s10, %s17
    %p19 = scmp.eq.s32.totalorder %s18, 0
    %s21 = sadd.s32 %s20, 1
    %s22 = scalar_select %p19, %s20, %s21
    %p25 = pneg %p19
    %p26 = scmp.eq.s32.totalorder %s10, 1
    %p27 = por %p25, %p26
    %p28 = scmp.ne.s32.totalorder %s20, %s23
    %p29 = scmp.eq.s32.totalorder %s10, 0
    %p30 = por %p28, %p29
    %p31 = scmp.ne.s32.totalorder %s20, %s23
    %p32 = scmp.eq.s32.totalorder %s15, 1
    %p33 = por %p31, %p32
    %p34 = scmp.ne.s32.totalorder %s23, %s24
    %p35 = scmp.eq.s32.totalorder %s15, 0
    %p36 = por %p34, %p35
    %p37 = scmp.ne.s32.totalorder %s23, %s24
    %p38 = scmp.eq.s32.totalorder %s16, 1
    %p39 = por %p37, %p38
    %p41 = scmp.ne.s32.totalorder %s24, %s40
    %p42 = scmp.eq.s32.totalorder %s16, 0
    %p43 = por %p41, %p42
    %s45 = sadd.s32 %s44, 1
    %p48 = scmp.eq.s32.totalorder %s10, 1
    %p49 = scmp.ne.s32.totalorder %s44, %s46
    %p50 = scmp.eq.s32.totalorder %s10, 0
    %p51 = por %p49, %p50
    %p52 = scmp.ne.s32.totalorder %s44, %s46
    %p53 = scmp.eq.s32.totalorder %s15, 1
    %p54 = por %p52, %p53
    %p55 = scmp.ne.s32.totalorder %s46, %s47
    %p56 = scmp.eq.s32.totalorder %s15, 0
    %p57 = por %p55, %p56
    %p58 = scmp.ne.s32.totalorder %s46, %s47
    %p59 = scmp.eq.s32.totalorder %s16, 1
    %p60 = por %p58, %p59
    %p62 = scmp.ne.s32.totalorder %s47, %s61
    %p63 = scmp.eq.s32.totalorder %s16, 0
    %p64 = por %p62, %p63
    %s66 = sadd.s32 %s65, 1
    %p69 = scmp.eq.s32.totalorder %s10, 1
    %p70 = scmp.ne.s32.totalorder %s65, %s67
    %p71 = scmp.eq.s32.totalorder %s10, 0
    %p72 = por %p70, %p71
    %p73 = scmp.ne.s32.totalorder %s65, %s67
    %p74 = scmp.eq.s32.totalorder %s15, 1
    %p75 = por %p73, %p74
    %p76 = scmp.ne.s32.totalorder %s67, %s68
    %p77 = scmp.eq.s32.totalorder %s15, 0
    %p78 = por %p76, %p77
    %p79 = scmp.ne.s32.totalorder %s67, %s68
    %p80 = scmp.eq.s32.totalorder %s16, 1
    %p81 = por %p79, %p80
    %p83 = scmp.ne.s32.totalorder %s68, %s82
    %p84 = scmp.eq.s32.totalorder %s16, 0
    %p85 = por %p83, %p84
    %s87 = sadd.s32 %s86, 1
    %p90 = scmp.eq.s32.totalorder %s10, 1
    %p91 = scmp.ne.s32.totalorder %s86, %s88
    %p92 = scmp.eq.s32.totalorder %s10, 0
    %p93 = por %p91, %p92
    %p94 = scmp.ne.s32.totalorder %s86, %s88
    %p95 = scmp.eq.s32.totalorder %s15, 1
    %p96 = por %p94, %p95
    %p97 = scmp.ne.s32.totalorder %s88, %s89
    %p98 = scmp.eq.s32.totalorder %s15, 0
    %p99 = por %p97, %p98
    %p100 = scmp.ne.s32.totalorder %s88, %s89
    %p101 = scmp.eq.s32.totalorder %s16, 1
    %p102 = por %p100, %p101
    %p104 = scmp.ne.s32.totalorder %s89, %s103
    %p105 = scmp.eq.s32.totalorder %s16, 0
    %p106 = por %p104, %p105
    %s107 = ssub.s32 %s10, %s17
    %p108 = scmp.eq.s32.totalorder %s107, 0
    %s110 = sadd.s32 %s109, 1
    %s111 = scalar_select %p108, %s109, %s110
    %p114 = pneg %p108
    %p115 = scmp.eq.s32.totalorder %s10, 1
    %p116 = por %p114, %p115
    %p117 = scmp.ne.s32.totalorder %s109, %s112
    %p118 = scmp.eq.s32.totalorder %s10, 0
    %p119 = por %p117, %p118
    %p120 = scmp.ne.s32.totalorder %s109, %s112
    %p121 = scmp.eq.s32.totalorder %s15, 1
    %p122 = por %p120, %p121
    %p123 = scmp.ne.s32.totalorder %s112, %s113
    %p124 = scmp.eq.s32.totalorder %s15, 0
    %p125 = por %p123, %p124
    %p126 = scmp.ne.s32.totalorder %s112, %s113
    %p127 = scmp.eq.s32.totalorder %s16, 1
    %p128 = por %p126, %p127
    %p130 = scmp.ne.s32.totalorder %s113, %s129
    %p131 = scmp.eq.s32.totalorder %s16, 0
    %p132 = por %p130, %p131
    %p133 = scmp.le.s32.totalorder 1, %s10
    %p134 = scmp.lt.s32.totalorder %s10, 3
    %p135 = pnand %p133, %p134
    %p136 = pneg %p135
    // Predicated region
    $region9: #{bottleneck_forward.7} parent=5 // pred_check
      _
    $region10: #{bottleneck_forward.7} parent=5 // pred_check_branch
      %138 = sbr.rel (%p135) target = $region12
    $region11: #{bottleneck_forward.7} parent=5 // pred_region
      %s139 = ssub.s32 %s10, 1
      // Predicated region
      $region13: #{bottleneck_forward.7} parent=11 // pred_check
        %p140 = pneg %p57
      $region14: #{bottleneck_forward.7} parent=11 // pred_check_branch
        %142 = sbr.rel (%p140) target = $region16
      $region15: #{bottleneck_forward.7} parent=11 // pred_region
        _
      $region16: #{bottleneck_forward.7} parent=11 // pred_fallthru
        _
      // Predicated region
      $region17: #{bottleneck_forward.7} parent=11 // pred_check
        %p143 = pneg %p78
      $region18: #{bottleneck_forward.7} parent=11 // pred_check_branch
        %145 = sbr.rel (%p143) target = $region20
      $region19: #{bottleneck_forward.7} parent=11 // pred_region
        _
      $region20: #{bottleneck_forward.7} parent=11 // pred_fallthru
        _
      // Predicated region
      $region21: #{bottleneck_forward.7} parent=11 // pred_check
        %p146 = pneg %p99
      $region22: #{bottleneck_forward.7} parent=11 // pred_check_branch
        %148 = sbr.rel (%p146) target = $region24
      $region23: #{bottleneck_forward.7} parent=11 // pred_region
        _
      $region24: #{bottleneck_forward.7} parent=11 // pred_fallthru
        _
    $region12: #{bottleneck_forward.7} parent=5 // pred_fallthru
      _
    %p149 = scmp.lt.s32.totalorder %s10, 2
    // Predicated region
    $region25: #{bottleneck_forward.7} parent=5 // pred_check
      %p150 = pneg %p149
    $region26: #{bottleneck_forward.7} parent=5 // pred_check_branch
      %152 = sbr.rel (%p150) target = $region28
    $region27: #{bottleneck_forward.7} parent=5 // pred_region
      // Predicated region
      $region29: #{bottleneck_forward.7} parent=27 // pred_check
        %p153 = pneg %p30
      $region30: #{bottleneck_forward.7} parent=27 // pred_check_branch
        %155 = sbr.rel (%p153) target = $region32
      $region31: #{bottleneck_forward.7} parent=27 // pred_region
        %p156 = scmp.lt.s32.totalorder %s10, 1
        %s157 = scalar_select %p156, %s10, 1
        %s158 = smul.addr %s157, 54
        %s159 = smul.addr %s158, 4
        %s160 = scalar_lea.vmem %s0, %s159
      $region32: #{bottleneck_forward.7} parent=27 // pred_fallthru
        _
    $region28: #{bottleneck_forward.7} parent=5 // pred_fallthru
      _
    %p161 = scmp.le.s32.totalorder 1, %s10
    %p162 = scmp.lt.s32.totalorder %s10, 3
    %p163 = pnand %p161, %p162
    %p164 = pneg %p163
    // Predicated region
    $region33: #{bottleneck_forward.7} parent=5 // pred_check
      _
    $region34: #{bottleneck_forward.7} parent=5 // pred_check_branch
      %166 = sbr.rel (%p163) target = $region36
    $region35: #{bottleneck_forward.7} parent=5 // pred_region
      %s167 = ssub.s32 %s10, 1
      %p168 = scmp.lt.s32.totalorder %s15, 1
      %s169 = scalar_select %p168, %s15, 1
      %s170 = smul.addr %s169, 54
      %s171 = smul.addr %s170, 4
      %s172 = scalar_lea.vmem %s0, %s171
      %p173 = pneg %p36
      %p174 = pneg %p33
      %p175 = pneg %p57
      %p176 = pneg %p54
      %p177 = pneg %p78
      %p178 = pneg %p75
      %p179 = pneg %p99
      %p180 = pneg %p96
      %p181 = pneg %p125
      %p182 = pneg %p122
      %p183 = scmp.lt.s32.totalorder %s15, 1
      %s184 = scalar_select %p183, %s15, 1
      %s185 = smul.addr %s184, 32
      %s186 = smul.addr %s185, 4
      %s187 = scalar_lea.vmem %s4, %s186
      %p188 = scmp.lt.s32.totalorder %s15, 1
      %s189 = scalar_select %p188, %s15, 1
      %s190 = smul.addr %s189, 54
      %s191 = smul.addr %s190, 4
      %s192 = scalar_lea.vmem %s0, %s191
      %p193 = scmp.lt.s32.totalorder %s15, 1
      %s194 = scalar_select %p193, %s15, 1
      %s195 = smul.addr %s194, 32
      %s196 = smul.addr %s195, 4
      %s197 = scalar_lea.vmem %s4, %s196
      %v199 = vld [vmem:[%s192] sm:$0xf]
      %v200 = vld [vmem:[%s192 + $0x4] sm:$0xf]
      %v201 = vld [vmem:[%s192 + $0x8] sm:$0x1]
      %v202 = vld [vmem:[%s192 + $0xc] sm:$0xf]
      %v203 = vld [vmem:[%s192 + $0x10] sm:$0xf]
      %v204 = vld [vmem:[%s192 + $0x14] sm:$0x1]
      %v205 = vld [vmem:[%s192 + $0x18] sm:$0xf]
      %v206 = vld [vmem:[%s192 + $0x1c] sm:$0xf]
      %v207 = vld [vmem:[%s192 + $0x20] sm:$0x1]
      %v208 = vld [vmem:[%s192 + $0x24] sm:$0xf]
      %v209 = vld [vmem:[%s192 + $0x28] sm:$0xf]
      %v210 = vld [vmem:[%s192 + $0x2c] sm:$0x1]
      %v211 = vld [vmem:[%s192 + $0x30] sm:$0xf]
      %v212 = vld [vmem:[%s192 + $0x34] sm:$0xf]
      %v213 = vld [vmem:[%s192 + $0x38] sm:$0x1]
      %v214 = vld [vmem:[%s192 + $0x3c] sm:$0xf]
      %v215 = vld [vmem:[%s192 + $0x40] sm:$0xf]
      %v216 = vld [vmem:[%s192 + $0x44] sm:$0x1]
      %v217 = vld [vmem:[%s192 + $0x48] sm:$0xf]
      %v218 = vld [vmem:[%s192 + $0x4c] sm:$0xf]
      %v219 = vld [vmem:[%s192 + $0x50] sm:$0x1]
      %v220 = vld [vmem:[%s192 + $0x54] sm:$0xf]
      %v221 = vld [vmem:[%s192 + $0x58] sm:$0xf]
      %v222 = vld [vmem:[%s192 + $0x5c] sm:$0x1]
      %v223 = vld [vmem:[%s192 + $0x60] sm:$0xf]
      %v224 = vld [vmem:[%s192 + $0x64] sm:$0xf]
      %v225 = vld [vmem:[%s192 + $0x68] sm:$0x1]
      %v226 = vld [vmem:[%s192 + $0x6c] sm:$0xf]
      %v227 = vld [vmem:[%s192 + $0x70] sm:$0xf]
      %v228 = vld [vmem:[%s192 + $0x74] sm:$0x1]
      %v229 = vld [vmem:[%s192 + $0x78] sm:$0xf]
      %v230 = vld [vmem:[%s192 + $0x7c] sm:$0xf]
      %v231 = vld [vmem:[%s192 + $0x80] sm:$0x1]
      %v232 = vld [vmem:[%s192 + $0x84] sm:$0xf]
      %v233 = vld [vmem:[%s192 + $0x88] sm:$0xf]
      %v234 = vld [vmem:[%s192 + $0x8c] sm:$0x1]
      %v235 = vld [vmem:[%s192 + $0x90] sm:$0xf]
      %v236 = vld [vmem:[%s192 + $0x94] sm:$0xf]
      %v237 = vld [vmem:[%s192 + $0x98] sm:$0x1]
      %v238 = vld [vmem:[%s192 + $0x9c] sm:$0xf]
      %v239 = vld [vmem:[%s192 + $0xa0] sm:$0xf]
      %v240 = vld [vmem:[%s192 + $0xa4] sm:$0x1]
      %v241 = vld [vmem:[%s192 + $0xa8] sm:$0xf]
      %v242 = vld [vmem:[%s192 + $0xac] sm:$0xf]
      %v243 = vld [vmem:[%s192 + $0xb0] sm:$0x1]
      %v244 = vld [vmem:[%s192 + $0xb4] sm:$0xf]
      %v245 = vld [vmem:[%s192 + $0xb8] sm:$0xf]
      %v246 = vld [vmem:[%s192 + $0xbc] sm:$0x1]
      %v247 = vld [vmem:[%s192 + $0xc0] sm:$0xf]
      %v248 = vld [vmem:[%s192 + $0xc4] sm:$0xf]
      %v249 = vld [vmem:[%s192 + $0xc8] sm:$0x1]
      %v250 = vld [vmem:[%s192 + $0xcc] sm:$0xf]
      %v251 = vld [vmem:[%s192 + $0xd0] sm:$0xf]
      %v252 = vld [vmem:[%s192 + $0xd4] sm:$0x1]
      %v253 = vld [vmem:[%s1] sm:$0xf]
      %v254 = vld [vmem:[%s1 + $0x4] sm:$0xf]
      %v255 = vld [vmem:[%s1 + $0x8] sm:$0xf]
      %v256 = vld [vmem:[%s1 + $0xc] sm:$0xf]
      %v257 = vld [vmem:[%s1 + $0x10] sm:$0xf]
      %v258 = vld [vmem:[%s1 + $0x14] sm:$0xf]
      %v259 = vld [vmem:[%s1 + $0x18] sm:$0xf]
      %v260 = vld [vmem:[%s1 + $0x1c] sm:$0xf]
      %v261 = vld [vmem:[%s1 + $0x20] sm:$0xf]
      %vm262 = vsmask.f32 3328
      %vm263 = vsmask.f32 7440
      %vm264 = vmor %vm262, %vm263
      %v266 = vshrl.u32 %v199, 16
      %v268 = vrot.slane %v266, 4
      %v269 = vshll.u32 %v199, 16
      %v271 = vrot.slane %v269, 5
      %v272 = vor.u32 %v268, %v271
      %v273 = vrot.slane %v272, 4
      %v275 = vshll.u32 %v200, 16
      %v277 = vrot.slane %v275, 5
      %v278 = vsel %vm264, %v273, %v277
      %v279 = vshrl.u32 %v200, 16
      %v281 = vrot.slane %v279, 4
      %v282 = vor.u32 %v281, %v277
      %v283 = vrot.slane %v282, 4
      %v285 = vshll.u32 %v201, 16
      %v287 = vrot.slane %v285, 5
      %v288 = vsel %vm264, %v283, %v287
      %v290 = vshrl.u32 %v202, 16
      %v292 = vrot.slane %v290, 4
      %v293 = vshll.u32 %v202, 16
      %v295 = vrot.slane %v293, 5
      %v296 = vor.u32 %v292, %v295
      %v297 = vrot.slane %v296, 4
      %v299 = vshll.u32 %v203, 16
      %v301 = vrot.slane %v299, 5
      %v302 = vsel %vm264, %v297, %v301
      %v303 = vshrl.u32 %v203, 16
      %v305 = vrot.slane %v303, 4
      %v306 = vor.u32 %v305, %v301
      %v307 = vrot.slane %v306, 4
      %v309 = vshll.u32 %v204, 16
      %v311 = vrot.slane %v309, 5
      %v312 = vsel %vm264, %v307, %v311
      %v314 = vshrl.u32 %v205, 16
      %v316 = vrot.slane %v314, 4
      %v317 = vshll.u32 %v205, 16
      %v319 = vrot.slane %v317, 5
      %v320 = vor.u32 %v316, %v319
      %v321 = vrot.slane %v320, 4
      %v323 = vshll.u32 %v206, 16
      %v325 = vrot.slane %v323, 5
      %v326 = vsel %vm264, %v321, %v325
      %v327 = vshrl.u32 %v206, 16
      %v329 = vrot.slane %v327, 4
      %v330 = vor.u32 %v329, %v325
      %v331 = vrot.slane %v330, 4
      %v333 = vshll.u32 %v207, 16
      %v335 = vrot.slane %v333, 5
      %v336 = vsel %vm264, %v331, %v335
      %v338 = vshrl.u32 %v208, 16
      %v340 = vrot.slane %v338, 4
      %v341 = vshll.u32 %v208, 16
      %v343 = vrot.slane %v341, 5
      %v344 = vor.u32 %v340, %v343
      %v345 = vrot.slane %v344, 4
      %v347 = vshll.u32 %v209, 16
      %v349 = vrot.slane %v347, 5
      %v350 = vsel %vm264, %v345, %v349
      %v351 = vshrl.u32 %v209, 16
      %v353 = vrot.slane %v351, 4
      %v354 = vor.u32 %v353, %v349
      %v355 = vrot.slane %v354, 4
      %v357 = vshll.u32 %v210, 16
      %v359 = vrot.slane %v357, 5
      %v360 = vsel %vm264, %v355, %v359
      %v362 = vshrl.u32 %v211, 16
      %v364 = vrot.slane %v362, 4
      %v365 = vshll.u32 %v211, 16
      %v367 = vrot.slane %v365, 5
      %v368 = vor.u32 %v364, %v367
      %v369 = vrot.slane %v368, 4
      %v371 = vshll.u32 %v212, 16
      %v373 = vrot.slane %v371, 5
      %v374 = vsel %vm264, %v369, %v373
      %v375 = vshrl.u32 %v212, 16
      %v377 = vrot.slane %v375, 4
      %v378 = vor.u32 %v377, %v373
      %v379 = vrot.slane %v378, 4
      %v381 = vshll.u32 %v213, 16
      %v383 = vrot.slane %v381, 5
      %v384 = vsel %vm264, %v379, %v383
      %v386 = vshrl.u32 %v214, 16
      %v388 = vrot.slane %v386, 4
      %v389 = vshll.u32 %v214, 16
      %v391 = vrot.slane %v389, 5
      %v392 = vor.u32 %v388, %v391
      %v393 = vrot.slane %v392, 4
      %v395 = vshll.u32 %v215, 16
      %v397 = vrot.slane %v395, 5
      %v398 = vsel %vm264, %v393, %v397
      %v399 = vshrl.u32 %v215, 16
      %v401 = vrot.slane %v399, 4
      %v402 = vor.u32 %v401, %v397
      %v403 = vrot.slane %v402, 4
      %v405 = vshll.u32 %v216, 16
      %v407 = vrot.slane %v405, 5
      %v408 = vsel %vm264, %v403, %v407
      %v410 = vshrl.u32 %v217, 16
      %v412 = vrot.slane %v410, 4
      %v413 = vshll.u32 %v217, 16
      %v415 = vrot.slane %v413, 5
      %v416 = vor.u32 %v412, %v415
      %v417 = vrot.slane %v416, 4
      %v419 = vshll.u32 %v218, 16
      %v421 = vrot.slane %v419, 5
      %v422 = vsel %vm264, %v417, %v421
      %v423 = vshrl.u32 %v218, 16
      %v425 = vrot.slane %v423, 4
      %v426 = vor.u32 %v425, %v421
      %v427 = vrot.slane %v426, 4
      %v429 = vshll.u32 %v219, 16
      %v431 = vrot.slane %v429, 5
      %v432 = vsel %vm264, %v427, %v431
      %v434 = vshrl.u32 %v220, 16
      %v436 = vrot.slane %v434, 4
      %v437 = vshll.u32 %v220, 16
      %v439 = vrot.slane %v437, 5
      %v440 = vor.u32 %v436, %v439
      %v441 = vrot.slane %v440, 4
      %v443 = vshll.u32 %v221, 16
      %v445 = vrot.slane %v443, 5
      %v446 = vsel %vm264, %v441, %v445
      %v447 = vshrl.u32 %v221, 16
      %v449 = vrot.slane %v447, 4
      %v450 = vor.u32 %v449, %v445
      %v451 = vrot.slane %v450, 4
      %v453 = vshll.u32 %v222, 16
      %v455 = vrot.slane %v453, 5
      %v456 = vsel %vm264, %v451, %v455
      %v458 = vshrl.u32 %v223, 16
      %v460 = vrot.slane %v458, 4
      %v461 = vshll.u32 %v223, 16
      %v463 = vrot.slane %v461, 5
      %v464 = vor.u32 %v460, %v463
      %v465 = vrot.slane %v464, 4
      %v467 = vshll.u32 %v224, 16
      %v469 = vrot.slane %v467, 5
      %v470 = vsel %vm264, %v465, %v469
      %v471 = vshrl.u32 %v224, 16
      %v473 = vrot.slane %v471, 4
      %v474 = vor.u32 %v473, %v469
      %v475 = vrot.slane %v474, 4
      %v477 = vshll.u32 %v225, 16
      %v479 = vrot.slane %v477, 5
      %v480 = vsel %vm264, %v475, %v479
      %v482 = vshrl.u32 %v226, 16
      %v484 = vrot.slane %v482, 4
      %v485 = vshll.u32 %v226, 16
      %v487 = vrot.slane %v485, 5
      %v488 = vor.u32 %v484, %v487
      %v489 = vrot.slane %v488, 4
      %v491 = vshll.u32 %v227, 16
      %v493 = vrot.slane %v491, 5
      %v494 = vsel %vm264, %v489, %v493
      %v495 = vshrl.u32 %v227, 16
      %v497 = vrot.slane %v495, 4
      %v498 = vor.u32 %v497, %v493
      %v499 = vrot.slane %v498, 4
      %v501 = vshll.u32 %v228, 16
      %v503 = vrot.slane %v501, 5
      %v504 = vsel %vm264, %v499, %v503
      %v506 = vshrl.u32 %v229, 16
      %v508 = vrot.slane %v506, 4
      %v509 = vshll.u32 %v229, 16
      %v511 = vrot.slane %v509, 5
      %v512 = vor.u32 %v508, %v511
      %v513 = vrot.slane %v512, 4
      %v515 = vshll.u32 %v230, 16
      %v517 = vrot.slane %v515, 5
      %v518 = vsel %vm264, %v513, %v517
      %v519 = vshrl.u32 %v230, 16
      %v521 = vrot.slane %v519, 4
      %v522 = vor.u32 %v521, %v517
      %v523 = vrot.slane %v522, 4
      %v525 = vshll.u32 %v231, 16
      %v527 = vrot.slane %v525, 5
      %v528 = vsel %vm264, %v523, %v527
      %v530 = vshrl.u32 %v232, 16
      %v532 = vrot.slane %v530, 4
      %v533 = vshll.u32 %v232, 16
      %v535 = vrot.slane %v533, 5
      %v536 = vor.u32 %v532, %v535
      %v537 = vrot.slane %v536, 4
      %v539 = vshll.u32 %v233, 16
      %v541 = vrot.slane %v539, 5
      %v542 = vsel %vm264, %v537, %v541
      %v543 = vshrl.u32 %v233, 16
      %v545 = vrot.slane %v543, 4
      %v546 = vor.u32 %v545, %v541
      %v547 = vrot.slane %v546, 4
      %v549 = vshll.u32 %v234, 16
      %v551 = vrot.slane %v549, 5
      %v552 = vsel %vm264, %v547, %v551
      %v554 = vshrl.u32 %v235, 16
      %v556 = vrot.slane %v554, 4
      %v557 = vshll.u32 %v235, 16
      %v559 = vrot.slane %v557, 5
      %v560 = vor.u32 %v556, %v559
      %v561 = vrot.slane %v560, 4
      %v563 = vshll.u32 %v236, 16
      %v565 = vrot.slane %v563, 5
      %v566 = vsel %vm264, %v561, %v565
      %v567 = vshrl.u32 %v236, 16
      %v569 = vrot.slane %v567, 4
      %v570 = vor.u32 %v569, %v565
      %v571 = vrot.slane %v570, 4
      %v573 = vshll.u32 %v237, 16
      %v575 = vrot.slane %v573, 5
      %v576 = vsel %vm264, %v571, %v575
      %v578 = vshrl.u32 %v238, 16
      %v580 = vrot.slane %v578, 4
      %v581 = vshll.u32 %v238, 16
      %v583 = vrot.slane %v581, 5
      %v584 = vor.u32 %v580, %v583
      %v585 = vrot.slane %v584, 4
      %v587 = vshll.u32 %v239, 16
      %v589 = vrot.slane %v587, 5
      %v590 = vsel %vm264, %v585, %v589
      %v591 = vshrl.u32 %v239, 16
      %v593 = vrot.slane %v591, 4
      %v594 = vor.u32 %v593, %v589
      %v595 = vrot.slane %v594, 4
      %v597 = vshll.u32 %v240, 16
      %v599 = vrot.slane %v597, 5
      %v600 = vsel %vm264, %v595, %v599
      %v602 = vshrl.u32 %v241, 16
      %v604 = vrot.slane %v602, 4
      %v605 = vshll.u32 %v241, 16
      %v607 = vrot.slane %v605, 5
      %v608 = vor.u32 %v604, %v607
      %v609 = vrot.slane %v608, 4
      %v611 = vshll.u32 %v242, 16
      %v613 = vrot.slane %v611, 5
      %v614 = vsel %vm264, %v609, %v613
      %v615 = vshrl.u32 %v242, 16
      %v617 = vrot.slane %v615, 4
      %v618 = vor.u32 %v617, %v613
      %v619 = vrot.slane %v618, 4
      %v621 = vshll.u32 %v243, 16
      %v623 = vrot.slane %v621, 5
      %v624 = vsel %vm264, %v619, %v623
      %v626 = vshrl.u32 %v244, 16
      %v628 = vrot.slane %v626, 4
      %v629 = vshll.u32 %v244, 16
      %v631 = vrot.slane %v629, 5
      %v632 = vor.u32 %v628, %v631
      %v633 = vrot.slane %v632, 4
      %v635 = vshll.u32 %v245, 16
      %v637 = vrot.slane %v635, 5
      %v638 = vsel %vm264, %v633, %v637
      %v639 = vshrl.u32 %v245, 16
      %v641 = vrot.slane %v639, 4
      %v642 = vor.u32 %v641, %v637
      %v643 = vrot.slane %v642, 4
      %v645 = vshll.u32 %v246, 16
      %v647 = vrot.slane %v645, 5
      %v648 = vsel %vm264, %v643, %v647
      %v649 = vunpack.c.l.b16 %v278
      %v650 = vunpack.c.l.b16 %v288
      %v651 = vunpack.c.l.b16 %v302
      %v652 = vunpack.c.l.b16 %v312
      %v653 = vunpack.c.l.b16 %v326
      %v654 = vunpack.c.l.b16 %v336
      %v655 = vunpack.c.l.b16 %v350
      %v656 = vunpack.c.l.b16 %v360
      %v657 = vunpack.c.l.b16 %v374
      %v658 = vunpack.c.l.b16 %v384
      %v659 = vunpack.c.l.b16 %v398
      %v660 = vunpack.c.l.b16 %v408
      %v661 = vunpack.c.l.b16 %v422
      %v662 = vunpack.c.l.b16 %v432
      %v663 = vunpack.c.l.b16 %v446
      %v664 = vunpack.c.l.b16 %v456
      %v665 = vunpack.c.l.b16 %v470
      %v666 = vunpack.c.l.b16 %v480
      %v667 = vunpack.c.l.b16 %v494
      %v668 = vunpack.c.l.b16 %v504
      %v669 = vunpack.c.l.b16 %v518
      %v670 = vunpack.c.l.b16 %v528
      %v671 = vunpack.c.l.b16 %v542
      %v672 = vunpack.c.l.b16 %v552
      %v673 = vunpack.c.l.b16 %v566
      %v674 = vunpack.c.l.b16 %v576
      %v675 = vunpack.c.l.b16 %v590
      %v676 = vunpack.c.l.b16 %v600
      %v677 = vunpack.c.l.b16 %v614
      %v678 = vunpack.c.l.b16 %v624
      %v679 = vunpack.c.l.b16 %v638
      %v680 = vunpack.c.l.b16 %v648
      %v681 = vpack.c.b16 %v650, %v649
      %v682 = vpack.c.b16 %v652, %v651
      %v683 = vpack.c.b16 %v654, %v653
      %v684 = vpack.c.b16 %v656, %v655
      %v685 = vpack.c.b16 %v658, %v657
      %v686 = vpack.c.b16 %v660, %v659
      %v687 = vpack.c.b16 %v662, %v661
      %v688 = vpack.c.b16 %v664, %v663
      %v689 = vpack.c.b16 %v666, %v665
      %v690 = vpack.c.b16 %v668, %v667
      %v691 = vpack.c.b16 %v670, %v669
      %v692 = vpack.c.b16 %v672, %v671
      %v693 = vpack.c.b16 %v674, %v673
      %v694 = vpack.c.b16 %v676, %v675
      %v695 = vpack.c.b16 %v678, %v677
      %v696 = vpack.c.b16 %v680, %v679
      %vm697 = vcmask 64512
      %v699 = vsel %vm697, %v681, 0
      %v702 = vsel %vm697, %v682, 0
      %v705 = vsel %vm697, %v683, 0
      %v708 = vsel %vm697, %v684, 0
      %v711 = vsel %vm697, %v685, 0
      %v714 = vsel %vm697, %v686, 0
      %v717 = vsel %vm697, %v687, 0
      %v720 = vsel %vm697, %v688, 0
      %v723 = vsel %vm697, %v689, 0
      %v726 = vsel %vm697, %v690, 0
      %v729 = vsel %vm697, %v691, 0
      %v732 = vsel %vm697, %v692, 0
      %v735 = vsel %vm697, %v693, 0
      %v738 = vsel %vm697, %v694, 0
      %v741 = vsel %vm697, %v695, 0
      %v744 = vsel %vm697, %v696, 0
      %vm746 = vcmask 1043456
      %v748 = vsel %vm746, %v254, 0
      %750 = vmatprep.subr.bf16.mxu0 0
      %751 = vmatpush1.bf16.msra.mxu0 %v748
      %752 = vmatprep.subr.bf16.mxu0 0
      %753 = vmatpush1.bf16.msra.mxu0 0
      %754 = vmatprep.subr.bf16.mxu0 0
      %755 = vmatpush1.bf16.msra.mxu0 0
      %756 = vmatprep.subr.bf16.mxu0 0
      %757 = vmatpush1.bf16.msra.mxu0 0
      %758 = vmatprep.subr.bf16.mxu0 0
      %759 = vmatpush1.bf16.msra.mxu0 0
      %760 = vmatprep.subr.bf16.mxu0 0
      %761 = vmatpush1.bf16.msra.mxu0 0
      %762 = vmatprep.subr.bf16.mxu0 0
      %763 = vmatpush1.bf16.msra.mxu0 0
      %764 = vmatprep.subr.bf16.mxu0 0
      %765 = vmatpush1.bf16.msra.mxu0 0
      %766 = vmatprep.subr.bf16.mxu0 0
      %767 = vmatpush1.bf16.msra.mxu0 0
      %768 = vmatprep.subr.bf16.mxu0 0
      %769 = vmatpush1.bf16.msra.mxu0 0
      %770 = vmatprep.subr.bf16.mxu0 0
      %771 = vmatpush1.bf16.msra.mxu0 0
      %772 = vmatprep.subr.bf16.mxu0 0
      %773 = vmatpush1.bf16.msra.mxu0 0
      %774 = vmatprep.subr.bf16.mxu0 0
      %775 = vmatpush1.bf16.msra.mxu0 0
      %776 = vmatprep.subr.bf16.mxu0 0
      %777 = vmatpush1.bf16.msra.mxu0 0
      %778 = vmatprep.subr.bf16.mxu0 0
      %779 = vmatpush1.bf16.msra.mxu0 0
      %780 = vmatprep.subr.bf16.mxu0 0
      %781 = vmatpush1.bf16.msra.mxu0 0
      %782 = vmatprep.mubr.bf16.mxu0 0
      %783 = vmatmul.mubr.bf16.gmra.mrb[0].mxu0 %v699
      %v784 = vpop.f32.mrb[0].mxu0
      %v785 = vadd.f32 0.0, %v784
      %v786 = vpop.f32.mrb[0].mxu0
      %v787 = vpop.f32.mrb[0].mxu0
      %v788 = vadd.f32 0.0, %v787
      %v789 = vpop.f32.mrb[0].mxu0
      %790 = vmatprep.mubr.bf16.mxu0 0
      %791 = vmatmul.mubr.bf16.gmra.mrb[0].mxu0 %v702
      %v792 = vpop.f32.mrb[0].mxu0
      %v793 = vadd.f32 0.0, %v792
      %v794 = vpop.f32.mrb[0].mxu0
      %v795 = vpop.f32.mrb[0].mxu0
      %v796 = vadd.f32 0.0, %v795
      %v797 = vpop.f32.mrb[0].mxu0
      %798 = vmatprep.mubr.bf16.mxu0 0
      %799 = vmatmul.mubr.bf16.gmra.mrb[0].mxu0 %v705
      %v800 = vpop.f32.mrb[0].mxu0
      %v801 = vadd.f32 0.0, %v800
      %v802 = vpop.f32.mrb[0].mxu0
      %v803 = vpop.f32.mrb[0].mxu0
      %v804 = vadd.f32 0.0, %v803
      %v805 = vpop.f32.mrb[0].mxu0
      %806 = vmatprep.mubr.bf16.mxu0 0
      %807 = vmatmul.mubr.bf16.gmra.mrb[0].mxu0 %v708
      %v808 = vpop.f32.mrb[0].mxu0
      %v809 = vadd.f32 0.0, %v808
      %v810 = vpop.f32.mrb[0].mxu0
      %v811 = vpop.f32.mrb[0].mxu0
      %v812 = vadd.f32 0.0, %v811
      %v813 = vpop.f32.mrb[0].mxu0
      %814 = vmatprep.mubr.bf16.mxu0 0
      %815 = vmatmul.mubr.bf16.gmra.mrb[0].mxu0 %v711
      %v816 = vpop.f32.mrb[0].mxu0
      %v817 = vadd.f32 0.0, %v816
      %v818 = vpop.f32.mrb[0].mxu0
      %v819 = vpop.f32.mrb[0].mxu0
      %v820 = vadd.f32 0.0, %v819
      %v821 = vpop.f32.mrb[0].mxu0
      %822 = vmatprep.mubr.bf16.mxu0 0
      %823 = vmatmul.mubr.bf16.gmra.mrb[0].mxu0 %v714
      %v824 = vpop.f32.mrb[0].mxu0
      %v825 = vadd.f32 0.0, %v824
      %v826 = vpop.f32.mrb[0].mxu0
      %v827 = vpop.f32.mrb[0].mxu0
      %v828 = vadd.f32 0.0, %v827
      %v829 = vpop.f32.mrb[0].mxu0
      %830 = vmatprep.mubr.bf16.mxu0 0
      %831 = vmatmul.mubr.bf16.gmra.mrb[0].mxu0 %v717
      %v832 = vpop.f32.mrb[0].mxu0
      %v833 = vadd.f32 0.0, %v832
      %v834 = vpop.f32.mrb[0].mxu0
      %v835 = vpop.f32.mrb[0].mxu0
      %v836 = vadd.f32 0.0, %v835
      %v837 = vpop.f32.mrb[0].mxu0
      %838 = vmatprep.mubr.bf16.mxu0 0
      %839 = vmatmul.mubr.bf16.gmra.mrb[0].mxu0 %v720
      %v840 = vpop.f32.mrb[0].mxu0
      %v841 = vadd.f32 0.0, %v840
      %v842 = vpop.f32.mrb[0].mxu0
      %v843 = vpop.f32.mrb[0].mxu0
      %v844 = vadd.f32 0.0, %v843
      %v845 = vpop.f32.mrb[0].mxu0
      %846 = vmatprep.mubr.bf16.mxu0 0
      %847 = vmatmul.mubr.bf16.gmra.mrb[0].mxu0 %v723
      %v848 = vpop.f32.mrb[0].mxu0
      %v849 = vadd.f32 0.0, %v848
      %v850 = vpop.f32.mrb[0].mxu0
      %v851 = vpop.f32.mrb[0].mxu0
      %v852 = vadd.f32 0.0, %v851
      %v853 = vpop.f32.mrb[0].mxu0
      %854 = vmatprep.mubr.bf16.mxu0 0
      %855 = vmatmul.mubr.bf16.gmra.mrb[0].mxu0 %v726
      %v856 = vpop.f32.mrb[0].mxu0
      %v857 = vadd.f32 0.0, %v856
      %v858 = vpop.f32.mrb[0].mxu0
      %v859 = vpop.f32.mrb[0].mxu0
      %v860 = vadd.f32 0.0, %v859
      %v861 = vpop.f32.mrb[0].mxu0
      %862 = vmatprep.mubr.bf16.mxu0 0
      %863 = vmatmul.mubr.bf16.gmra.mrb[0].mxu0 %v729
      %v864 = vpop.f32.mrb[0].mxu0
      %v865 = vadd.f32 0.0, %v864
      %v866 = vpop.f32.mrb[0].mxu0
      %v867 = vpop.f32.mrb[0].mxu0
      %v868 = vadd.f32 0.0, %v867
      %v869 = vpop.f32.mrb[0].mxu0
      %870 = vmatprep.mubr.bf16.mxu0 0
      %871 = vmatmul.mubr.bf16.gmra.mrb[0].mxu0 %v732
      %v872 = vpop.f32.mrb[0].mxu0
      %v873 = vadd.f32 0.0, %v872
      %v874 = vpop.f32.mrb[0].mxu0
      %v875 = vpop.f32.mrb[0].mxu0
      %v876 = vadd.f32 0.0, %v875
      %v877 = vpop.f32.mrb[0].mxu0
      %878 = vmatprep.mubr.bf16.mxu0 0
      %879 = vmatmul.mubr.bf16.gmra.mrb[0].mxu0 %v735
      %v880 = vpop.f32.mrb[0].mxu0
      %v881 = vadd.f32 0.0, %v880
      %v882 = vpop.f32.mrb[0].mxu0
      %v883 = vpop.f32.mrb[0].mxu0
      %v884 = vadd.f32 0.0, %v883
      %v885 = vpop.f32.mrb[0].mxu0
      %886 = vmatprep.mubr.bf16.mxu0 0
      %887 = vmatmul.mubr.bf16.gmra.mrb[0].mxu0 %v738
      %v888 = vpop.f32.mrb[0].mxu0
      %v889 = vadd.f32 0.0, %v888
      %v890 = vpop.f32.mrb[0].mxu0
      %v891 = vpop.f32.mrb[0].mxu0
      %v892 = vadd.f32 0.0, %v891
      %v893 = vpop.f32.mrb[0].mxu0
      %894 = vmatprep.mubr.bf16.mxu0 0
      %895 = vmatmul.mubr.bf16.gmra.mrb[0].mxu0 %v741
      %v896 = vpop.f32.mrb[0].mxu0
      %v897 = vadd.f32 0.0, %v896
      %v898 = vpop.f32.mrb[0].mxu0
      %v899 = vpop.f32.mrb[0].mxu0
      %v900 = vadd.f32 0.0, %v899
      %v901 = vpop.f32.mrb[0].mxu0
      %902 = vmatprep.mubr.bf16.mxu0 0
      %903 = vmatmul.mubr.bf16.gmra.mrb[0].mxu0 %v744
      %v904 = vpop.f32.mrb[0].mxu0
      %v905 = vadd.f32 0.0, %v904
      %v906 = vpop.f32.mrb[0].mxu0
      %v907 = vpop.f32.mrb[0].mxu0
      %v908 = vadd.f32 0.0, %v907
      %v909 = vpop.f32.mrb[0].mxu0
      %910 = vdwg.mxu0
      %v943 = vunpack.c.l.b16 %v199
      %v944 = vunpack.c.l.b16 %v200
      %v945 = vunpack.c.l.b16 %v202
      %v946 = vunpack.c.l.b16 %v203
      %v947 = vunpack.c.l.b16 %v205
      %v948 = vunpack.c.l.b16 %v206
      %v949 = vunpack.c.l.b16 %v208
      %v950 = vunpack.c.l.b16 %v209
      %v951 = vunpack.c.l.b16 %v211
      %v952 = vunpack.c.l.b16 %v212
      %v953 = vunpack.c.l.b16 %v214
      %v954 = vunpack.c.l.b16 %v215
      %v955 = vunpack.c.l.b16 %v217
      %v956 = vunpack.c.l.b16 %v218
      %v957 = vunpack.c.l.b16 %v220
      %v958 = vunpack.c.l.b16 %v221
      %v959 = vunpack.c.l.b16 %v223
      %v960 = vunpack.c.l.b16 %v224
      %v961 = vunpack.c.l.b16 %v226
      %v962 = vunpack.c.l.b16 %v227
      %v963 = vunpack.c.l.b16 %v229
      %v964 = vunpack.c.l.b16 %v230
      %v965 = vunpack.c.l.b16 %v232
      %v966 = vunpack.c.l.b16 %v233
      %v967 = vunpack.c.l.b16 %v235
      %v968 = vunpack.c.l.b16 %v236
      %v969 = vunpack.c.l.b16 %v238
      %v970 = vunpack.c.l.b16 %v239
      %v971 = vunpack.c.l.b16 %v241
      %v972 = vunpack.c.l.b16 %v242
      %v973 = vunpack.c.l.b16 %v244
      %v974 = vunpack.c.l.b16 %v245
      %v975 = vpack.c.b16 %v944, %v943
      %v976 = vpack.c.b16 %v946, %v945
      %v977 = vpack.c.b16 %v948, %v947
      %v978 = vpack.c.b16 %v950, %v949
      %v979 = vpack.c.b16 %v952, %v951
      %v980 = vpack.c.b16 %v954, %v953
      %v981 = vpack.c.b16 %v956, %v955
      %v982 = vpack.c.b16 %v958, %v957
      %v983 = vpack.c.b16 %v960, %v959
      %v984 = vpack.c.b16 %v962, %v961
      %v985 = vpack.c.b16 %v964, %v963
      %v986 = vpack.c.b16 %v966, %v965
      %v987 = vpack.c.b16 %v968, %v967
      %v988 = vpack.c.b16 %v970, %v969
      %v989 = vpack.c.b16 %v972, %v971
      %v990 = vpack.c.b16 %v974, %v973
      %v992 = vsel %vm697, %v975, 0
      %v995 = vsel %vm697, %v976, 0
      %v998 = vsel %vm697, %v977, 0
      %v1001 = vsel %vm697, %v978, 0
      %v1004 = vsel %vm697, %v979, 0
      %v1007 = vsel %vm697, %v980, 0
      %v1010 = vsel %vm697, %v981, 0
      %v1013 = vsel %vm697, %v982, 0
      %v1016 = vsel %vm697, %v983, 0
      %v1019 = vsel %vm697, %v984, 0
      %v1022 = vsel %vm697, %v985, 0
      %v1025 = vsel %vm697, %v986, 0
      %v1028 = vsel %vm697, %v987, 0
      %v1031 = vsel %vm697, %v988, 0
      %v1034 = vsel %vm697, %v989, 0
      %v1037 = vsel %vm697, %v990, 0
      %v1040 = vsel %vm746, %v253, 0
      %1042 = vmatprep.subr.bf16.mxu0 0
      %1043 = vmatpush1.bf16.msra.mxu0 %v1040
      %1044 = vmatprep.subr.bf16.mxu0 0
      %1045 = vmatpush1.bf16.msra.mxu0 0
      %1046 = vmatprep.subr.bf16.mxu0 0
      %1047 = vmatpush1.bf16.msra.mxu0 0
      %1048 = vmatprep.subr.bf16.mxu0 0
      %1049 = vmatpush1.bf16.msra.mxu0 0
      %1050 = vmatprep.subr.bf16.mxu0 0
      %1051 = vmatpush1.bf16.msra.mxu0 0
      %1052 = vmatprep.subr.bf16.mxu0 0
      %1053 = vmatpush1.bf16.msra.mxu0 0
      %1054 = vmatprep.subr.bf16.mxu0 0
      %1055 = vmatpush1.bf16.msra.mxu0 0
      %1056 = vmatprep.subr.bf16.mxu0 0
      %1057 = vmatpush1.bf16.msra.mxu0 0
      %1058 = vmatprep.subr.bf16.mxu0 0
      %1059 = vmatpush1.bf16.msra.mxu0 0
      %1060 = vmatprep.subr.bf16.mxu0 0
      %1061 = vmatpush1.bf16.msra.mxu0 0
      %1062 = vmatprep.subr.bf16.mxu0 0
      %1063 = vmatpush1.bf16.msra.mxu0 0
      %1064 = vmatprep.subr.bf16.mxu0 0
      %1065 = vmatpush1.bf16.msra.mxu0 0
      %1066 = vmatprep.subr.bf16.mxu0 0
      %1067 = vmatpush1.bf16.msra.mxu0 0
      %1068 = vmatprep.subr.bf16.mxu0 0
      %1069 = vmatpush1.bf16.msra.mxu0 0
      %1070 = vmatprep.subr.bf16.mxu0 0
      %1071 = vmatpush1.bf16.msra.mxu0 0
      %1072 = vmatprep.subr.bf16.mxu0 0
      %1073 = vmatpush1.bf16.msra.mxu0 0
      %1074 = vmatprep.mubr.bf16.mxu0 0
      %1075 = vmatmul.mubr.bf16.gmra.mrb[0].mxu0 %v992
      %v1076 = vpop.f32.mrb[0].mxu0
      %v1077 = vadd.f32 %v785, %v1076
      %v1078 = vpop.f32.mrb[0].mxu0
      %v1079 = vpop.f32.mrb[0].mxu0
      %v1080 = vadd.f32 %v788, %v1079
      %v1081 = vpop.f32.mrb[0].mxu0
      %1082 = vmatprep.mubr.bf16.mxu0 0
      %1083 = vmatmul.mubr.bf16.gmra.mrb[0].mxu0 %v995
      %v1084 = vpop.f32.mrb[0].mxu0
      %v1085 = vadd.f32 %v793, %v1084
      %v1086 = vpop.f32.mrb[0].mxu0
      %v1087 = vpop.f32.mrb[0].mxu0
      %v1088 = vadd.f32 %v796, %v1087
      %v1089 = vpop.f32.mrb[0].mxu0
      %1090 = vmatprep.mubr.bf16.mxu0 0
      %1091 = vmatmul.mubr.bf16.gmra.mrb[0].mxu0 %v998
      %v1092 = vpop.f32.mrb[0].mxu0
      %v1093 = vadd.f32 %v801, %v1092
      %v1094 = vpop.f32.mrb[0].mxu0
      %v1095 = vpop.f32.mrb[0].mxu0
      %v1096 = vadd.f32 %v804, %v1095
      %v1097 = vpop.f32.mrb[0].mxu0
      %1098 = vmatprep.mubr.bf16.mxu0 0
      %1099 = vmatmul.mubr.bf16.gmra.mrb[0].mxu0 %v1001
      %v1100 = vpop.f32.mrb[0].mxu0
      %v1101 = vadd.f32 %v809, %v1100
      %v1102 = vpop.f32.mrb[0].mxu0
      %v1103 = vpop.f32.mrb[0].mxu0
      %v1104 = vadd.f32 %v812, %v1103
      %v1105 = vpop.f32.mrb[0].mxu0
      %1106 = vmatprep.mubr.bf16.mxu0 0
      %1107 = vmatmul.mubr.bf16.gmra.mrb[0].mxu0 %v1004
      %v1108 = vpop.f32.mrb[0].mxu0
      %v1109 = vadd.f32 %v817, %v1108
      %v1110 = vpop.f32.mrb[0].mxu0
      %v1111 = vpop.f32.mrb[0].mxu0
      %v1112 = vadd.f32 %v820, %v1111
      %v1113 = vpop.f32.mrb[0].mxu0
      %1114 = vmatprep.mubr.bf16.mxu0 0
      %1115 = vmatmul.mubr.bf16.gmra.mrb[0].mxu0 %v1007
      %v1116 = vpop.f32.mrb[0].mxu0
      %v1117 = vadd.f32 %v825, %v1116
      %v1118 = vpop.f32.mrb[0].mxu0
      %v1119 = vpop.f32.mrb[0].mxu0
      %v1120 = vadd.f32 %v828, %v1119
      %v1121 = vpop.f32.mrb[0].mxu0
      %1122 = vmatprep.mubr.bf16.mxu0 0
      %1123 = vmatmul.mubr.bf16.gmra.mrb[0].mxu0 %v1010
      %v1124 = vpop.f32.mrb[0].mxu0
      %v1125 = vadd.f32 %v833, %v1124
      %v1126 = vpop.f32.mrb[0].mxu0
      %v1127 = vpop.f32.mrb[0].mxu0
      %v1128 = vadd.f32 %v836, %v1127
      %v1129 = vpop.f32.mrb[0].mxu0
      %1130 = vmatprep.mubr.bf16.mxu0 0
      %1131 = vmatmul.mubr.bf16.gmra.mrb[0].mxu0 %v1013
      %v1132 = vpop.f32.mrb[0].mxu0
      %v1133 = vadd.f32 %v841, %v1132
      %v1134 = vpop.f32.mrb[0].mxu0
      %v1135 = vpop.f32.mrb[0].mxu0
      %v1136 = vadd.f32 %v844, %v1135
      %v1137 = vpop.f32.mrb[0].mxu0
      %1138 = vmatprep.mubr.bf16.mxu0 0
      %1139 = vmatmul.mubr.bf16.gmra.mrb[0].mxu0 %v1016
      %v1140 = vpop.f32.mrb[0].mxu0
      %v1141 = vadd.f32 %v849, %v1140
      %v1142 = vpop.f32.mrb[0].mxu0
      %v1143 = vpop.f32.mrb[0].mxu0
      %v1144 = vadd.f32 %v852, %v1143
      %v1145 = vpop.f32.mrb[0].mxu0
      %1146 = vmatprep.mubr.bf16.mxu0 0
      %1147 = vmatmul.mubr.bf16.gmra.mrb[0].mxu0 %v1019
      %v1148 = vpop.f32.mrb[0].mxu0
      %v1149 = vadd.f32 %v857, %v1148
      %v1150 = vpop.f32.mrb[0].mxu0
      %v1151 = vpop.f32.mrb[0].mxu0
      %v1152 = vadd.f32 %v860, %v1151
      %v1153 = vpop.f32.mrb[0].mxu0
      %1154 = vmatprep.mubr.bf16.mxu0 0
      %1155 = vmatmul.mubr.bf16.gmra.mrb[0].mxu0 %v1022
      %v1156 = vpop.f32.mrb[0].mxu0
      %v1157 = vadd.f32 %v865, %v1156
      %v1158 = vpop.f32.mrb[0].mxu0
      %v1159 = vpop.f32.mrb[0].mxu0
      %v1160 = vadd.f32 %v868, %v1159
      %v1161 = vpop.f32.mrb[0].mxu0
      %1162 = vmatprep.mubr.bf16.mxu0 0
      %1163 = vmatmul.mubr.bf16.gmra.mrb[0].mxu0 %v1025
      %v1164 = vpop.f32.mrb[0].mxu0
      %v1165 = vadd.f32 %v873, %v1164
      %v1166 = vpop.f32.mrb[0].mxu0
      %v1167 = vpop.f32.mrb[0].mxu0
      %v1168 = vadd.f32 %v876, %v1167
      %v1169 = vpop.f32.mrb[0].mxu0
      %1170 = vmatprep.mubr.bf16.mxu0 0
      %1171 = vmatmul.mubr.bf16.gmra.mrb[0].mxu0 %v1028
      %v1172 = vpop.f32.mrb[0].mxu0
      %v1173 = vadd.f32 %v881, %v1172
      %v1174 = vpop.f32.mrb[0].mxu0
      %v1175 = vpop.f32.mrb[0].mxu0
      %v1176 = vadd.f32 %v884, %v1175
      %v1177 = vpop.f32.mrb[0].mxu0
      %1178 = vmatprep.mubr.bf16.mxu0 0
      %1179 = vmatmul.mubr.bf16.gmra.mrb[0].mxu0 %v1031
      %v1180 = vpop.f32.mrb[0].mxu0
      %v1181 = vadd.f32 %v889, %v1180
      %v1182 = vpop.f32.mrb[0].mxu0
      %v1183 = vpop.f32.mrb[0].mxu0
      %v1184 = vadd.f32 %v892, %v1183
      %v1185 = vpop.f32.mrb[0].mxu0
      %1186 = vmatprep.mubr.bf16.mxu0 0
      %1187 = vmatmul.mubr.bf16.gmra.mrb[0].mxu0 %v1034
      %v1188 = vpop.f32.mrb[0].mxu0
      %v1189 = vadd.f32 %v897, %v1188
      %v1190 = vpop.f32.mrb[0].mxu0
      %v1191 = vpop.f32.mrb[0].mxu0
      %v1192 = vadd.f32 %v900, %v1191
      %v1193 = vpop.f32.mrb[0].mxu0
      %1194 = vmatprep.mubr.bf16.mxu0 0
      %1195 = vmatmul.mubr.bf16.gmra.mrb[0].mxu0 %v1037
      %v1196 = vpop.f32.mrb[0].mxu0
      %v1197 = vadd.f32 %v905, %v1196
      %v1198 = vpop.f32.mrb[0].mxu0
      %v1199 = vpop.f32.mrb[0].mxu0
      %v1200 = vadd.f32 %v908, %v1199
      %v1201 = vpop.f32.mrb[0].mxu0
      %1202 = vdwg.mxu0
      %vm1219 = vcmask 1042432
      %vm1220 = vcmask 1046532
      %vm1221 = vmor %vm1219, %vm1220
      %v1222 = vrot.slane %v199, 5
      %v1223 = vrot.slane %v1222, 4
      %v1224 = vrot.slane %v200, 5
      %v1225 = vsel %vm1221, %v1223, %v1224
      %v1226 = vrot.slane %v1224, 4
      %v1227 = vrot.slane %v201, 5
      %v1228 = vsel %vm1221, %v1226, %v1227
      %v1229 = vrot.slane %v202, 5
      %v1230 = vrot.slane %v1229, 4
      %v1231 = vrot.slane %v203, 5
      %v1232 = vsel %vm1221, %v1230, %v1231
      %v1233 = vrot.slane %v1231, 4
      %v1234 = vrot.slane %v204, 5
      %v1235 = vsel %vm1221, %v1233, %v1234
      %v1236 = vrot.slane %v205, 5
      %v1237 = vrot.slane %v1236, 4
      %v1238 = vrot.slane %v206, 5
      %v1239 = vsel %vm1221, %v1237, %v1238
      %v1240 = vrot.slane %v1238, 4
      %v1241 = vrot.slane %v207, 5
      %v1242 = vsel %vm1221, %v1240, %v1241
      %v1243 = vrot.slane %v208, 5
      %v1244 = vrot.slane %v1243, 4
      %v1245 = vrot.slane %v209, 5
      %v1246 = vsel %vm1221, %v1244, %v1245
      %v1247 = vrot.slane %v1245, 4
      %v1248 = vrot.slane %v210, 5
      %v1249 = vsel %vm1221, %v1247, %v1248
      %v1250 = vrot.slane %v211, 5
      %v1251 = vrot.slane %v1250, 4
      %v1252 = vrot.slane %v212, 5
      %v1253 = vsel %vm1221, %v1251, %v1252
      %v1254 = vrot.slane %v1252, 4
      %v1255 = vrot.slane %v213, 5
      %v1256 = vsel %vm1221, %v1254, %v1255
      %v1257 = vrot.slane %v214, 5
      %v1258 = vrot.slane %v1257, 4
      %v1259 = vrot.slane %v215, 5
      %v1260 = vsel %vm1221, %v1258, %v1259
      %v1261 = vrot.slane %v1259, 4
      %v1262 = vrot.slane %v216, 5
      %v1263 = vsel %vm1221, %v1261, %v1262
      %v1264 = vrot.slane %v217, 5
      %v1265 = vrot.slane %v1264, 4
      %v1266 = vrot.slane %v218, 5
      %v1267 = vsel %vm1221, %v1265, %v1266
      %v1268 = vrot.slane %v1266, 4
      %v1269 = vrot.slane %v219, 5
      %v1270 = vsel %vm1221, %v1268, %v1269
      %v1271 = vrot.slane %v220, 5
      %v1272 = vrot.slane %v1271, 4
      %v1273 = vrot.slane %v221, 5
      %v1274 = vsel %vm1221, %v1272, %v1273
      %v1275 = vrot.slane %v1273, 4
      %v1276 = vrot.slane %v222, 5
      %v1277 = vsel %vm1221, %v1275, %v1276
      %v1278 = vrot.slane %v223, 5
      %v1279 = vrot.slane %v1278, 4
      %v1280 = vrot.slane %v224, 5
      %v1281 = vsel %vm1221, %v1279, %v1280
      %v1282 = vrot.slane %v1280, 4
      %v1283 = vrot.slane %v225, 5
      %v1284 = vsel %vm1221, %v1282, %v1283
      %v1285 = vrot.slane %v226, 5
      %v1286 = vrot.slane %v1285, 4
      %v1287 = vrot.slane %v227, 5
      %v1288 = vsel %vm1221, %v1286, %v1287
      %v1289 = vrot.slane %v1287, 4
      %v1290 = vrot.slane %v228, 5
      %v1291 = vsel %vm1221, %v1289, %v1290
      %v1292 = vrot.slane %v229, 5
      %v1293 = vrot.slane %v1292, 4
      %v1294 = vrot.slane %v230, 5
      %v1295 = vsel %vm1221, %v1293, %v1294
      %v1296 = vrot.slane %v1294, 4
      %v1297 = vrot.slane %v231, 5
      %v1298 = vsel %vm1221, %v1296, %v1297
      %v1299 = vrot.slane %v232, 5
      %v1300 = vrot.slane %v1299, 4
      %v1301 = vrot.slane %v233, 5
      %v1302 = vsel %vm1221, %v1300, %v1301
      %v1303 = vrot.slane %v1301, 4
      %v1304 = vrot.slane %v234, 5
      %v1305 = vsel %vm1221, %v1303, %v1304
      %v1306 = vrot.slane %v235, 5
      %v1307 = vrot.slane %v1306, 4
      %v1308 = vrot.slane %v236, 5
      %v1309 = vsel %vm1221, %v1307, %v1308
      %v1310 = vrot.slane %v1308, 4
      %v1311 = vrot.slane %v237, 5
      %v1312 = vsel %vm1221, %v1310, %v1311
      %v1313 = vrot.slane %v238, 5
      %v1314 = vrot.slane %v1313, 4
      %v1315 = vrot.slane %v239, 5
      %v1316 = vsel %vm1221, %v1314, %v1315
      %v1317 = vrot.slane %v1315, 4
      %v1318 = vrot.slane %v240, 5
      %v1319 = vsel %vm1221, %v1317, %v1318
      %v1320 = vrot.slane %v241, 5
      %v1321 = vrot.slane %v1320, 4
      %v1322 = vrot.slane %v242, 5
      %v1323 = vsel %vm1221, %v1321, %v1322
      %v1324 = vrot.slane %v1322, 4
      %v1325 = vrot.slane %v243, 5
      %v1326 = vsel %vm1221, %v1324, %v1325
      %v1327 = vrot.slane %v244, 5
      %v1328 = vrot.slane %v1327, 4
      %v1329 = vrot.slane %v245, 5
      %v1330 = vsel %vm1221, %v1328, %v1329
      %v1331 = vrot.slane %v1329, 4
      %v1332 = vrot.slane %v246, 5
      %v1333 = vsel %vm1221, %v1331, %v1332
      %v1334 = vunpack.c.l.b16 %v1225
      %v1335 = vunpack.c.l.b16 %v1228
      %v1336 = vunpack.c.l.b16 %v1232
      %v1337 = vunpack.c.l.b16 %v1235
      %v1338 = vunpack.c.l.b16 %v1239
      %v1339 = vunpack.c.l.b16 %v1242
      %v1340 = vunpack.c.l.b16 %v1246
      %v1341 = vunpack.c.l.b16 %v1249
      %v1342 = vunpack.c.l.b16 %v1253
      %v1343 = vunpack.c.l.b16 %v1256
      %v1344 = vunpack.c.l.b16 %v1260
      %v1345 = vunpack.c.l.b16 %v1263
      %v1346 = vunpack.c.l.b16 %v1267
      %v1347 = vunpack.c.l.b16 %v1270
      %v1348 = vunpack.c.l.b16 %v1274
      %v1349 = vunpack.c.l.b16 %v1277
      %v1350 = vunpack.c.l.b16 %v1281
      %v1351 = vunpack.c.l.b16 %v1284
      %v1352 = vunpack.c.l.b16 %v1288
      %v1353 = vunpack.c.l.b16 %v1291
      %v1354 = vunpack.c.l.b16 %v1295
      %v1355 = vunpack.c.l.b16 %v1298
      %v1356 = vunpack.c.l.b16 %v1302
      %v1357 = vunpack.c.l.b16 %v1305
      %v1358 = vunpack.c.l.b16 %v1309
      %v1359 = vunpack.c.l.b16 %v1312
      %v1360 = vunpack.c.l.b16 %v1316
      %v1361 = vunpack.c.l.b16 %v1319
      %v1362 = vunpack.c.l.b16 %v1323
      %v1363 = vunpack.c.l.b16 %v1326
      %v1364 = vunpack.c.l.b16 %v1330
      %v1365 = vunpack.c.l.b16 %v1333
      %v1366 = vpack.c.b16 %v1335, %v1334
      %v1367 = vpack.c.b16 %v1337, %v1336
      %v1368 = vpack.c.b16 %v1339, %v1338
      %v1369 = vpack.c.b16 %v1341, %v1340
      %v1370 = vpack.c.b16 %v1343, %v1342
      %v1371 = vpack.c.b16 %v1345, %v1344
      %v1372 = vpack.c.b16 %v1347, %v1346
      %v1373 = vpack.c.b16 %v1349, %v1348
      %v1374 = vpack.c.b16 %v1351, %v1350
      %v1375 = vpack.c.b16 %v1353, %v1352
      %v1376 = vpack.c.b16 %v1355, %v1354
      %v1377 = vpack.c.b16 %v1357, %v1356
      %v1378 = vpack.c.b16 %v1359, %v1358
      %v1379 = vpack.c.b16 %v1361, %v1360
      %v1380 = vpack.c.b16 %v1363, %v1362
      %v1381 = vpack.c.b16 %v1365, %v1364
      %v1383 = vsel %vm697, %v1366, 0
      %v1386 = vsel %vm697, %v1367, 0
      %v1389 = vsel %vm697, %v1368, 0
      %v1392 = vsel %vm697, %v1369, 0
      %v1395 = vsel %vm697, %v1370, 0
      %v1398 = vsel %vm697, %v1371, 0
      %v1401 = vsel %vm697, %v1372, 0
      %v1404 = vsel %vm697, %v1373, 0
      %v1407 = vsel %vm697, %v1374, 0
      %v1410 = vsel %vm697, %v1375, 0
      %v1413 = vsel %vm697, %v1376, 0
      %v1416 = vsel %vm697, %v1377, 0
      %v1419 = vsel %vm697, %v1378, 0
      %v1422 = vsel %vm697, %v1379, 0
      %v1425 = vsel %vm697, %v1380, 0
      %v1428 = vsel %vm697, %v1381, 0
      %v1431 = vsel %vm746, %v255, 0
      %1433 = vmatprep.subr.bf16.mxu0 0
      %1434 = vmatpush1.bf16.msra.mxu0 %v1431
      %1435 = vmatprep.subr.bf16.mxu0 0
      %1436 = vmatpush1.bf16.msra.mxu0 0
      %1437 = vmatprep.subr.bf16.mxu0 0
      %1438 = vmatpush1.bf16.msra.mxu0 0
      %1439 = vmatprep.subr.bf16.mxu0 0
      %1440 = vmatpush1.bf16.msra.mxu0 0
      %1441 = vmatprep.subr.bf16.mxu0 0
      %1442 = vmatpush1.bf16.msra.mxu0 0
      %1443 = vmatprep.subr.bf16.mxu0 0
      %1444 = vmatpush1.bf16.msra.mxu0 0
      %1445 = vmatprep.subr.bf16.mxu0 0
      %1446 = vmatpush1.bf16.msra.mxu0 0
      %1447 = vmatprep.subr.bf16.mxu0 0
      %1448 = vmatpush1.bf16.msra.mxu0 0
      %1449 = vmatprep.subr.bf16.mxu0 0
      %1450 = vmatpush1.bf16.msra.mxu0 0
      %1451 = vmatprep.subr.bf16.mxu0 0
      %1452 = vmatpush1.bf16.msra.mxu0 0
      %1453 = vmatprep.subr.bf16.mxu0 0
      %1454 = vmatpush1.bf16.msra.mxu0 0
      %1455 = vmatprep.subr.bf16.mxu0 0
      %1456 = vmatpush1.bf16.msra.mxu0 0
      %1457 = vmatprep.subr.bf16.mxu0 0
      %1458 = vmatpush1.bf16.msra.mxu0 0
      %1459 = vmatprep.subr.bf16.mxu0 0
      %1460 = vmatpush1.bf16.msra.mxu0 0
      %1461 = vmatprep.subr.bf16.mxu0 0
      %1462 = vmatpush1.bf16.msra.mxu0 0
      %1463 = vmatprep.subr.bf16.mxu0 0
      %1464 = vmatpush1.bf16.msra.mxu0 0
      %1465 = vmatprep.mubr.bf16.mxu0 0
      %1466 = vmatmul.mubr.bf16.gmra.mrb[0].mxu0 %v1383
      %v1467 = vpop.f32.mrb[0].mxu0
      %v1468 = vadd.f32 0.0, %v1467
      %v1469 = vpop.f32.mrb[0].mxu0
      %v1470 = vpop.f32.mrb[0].mxu0
      %v1471 = vadd.f32 0.0, %v1470
      %v1472 = vpop.f32.mrb[0].mxu0
      %1473 = vmatprep.mubr.bf16.mxu0 0
      %1474 = vmatmul.mubr.bf16.gmra.mrb[0].mxu0 %v1386
      %v1475 = vpop.f32.mrb[0].mxu0
      %v1476 = vadd.f32 0.0, %v1475
      %v1477 = vpop.f32.mrb[0].mxu0
      %v1478 = vpop.f32.mrb[0].mxu0
      %v1479 = vadd.f32 0.0, %v1478
      %v1480 = vpop.f32.mrb[0].mxu0
      %1481 = vmatprep.mubr.bf16.mxu0 0
      %1482 = vmatmul.mubr.bf16.gmra.mrb[0].mxu0 %v1389
      %v1483 = vpop.f32.mrb[0].mxu0
      %v1484 = vadd.f32 0.0, %v1483
      %v1485 = vpop.f32.mrb[0].mxu0
      %v1486 = vpop.f32.mrb[0].mxu0
      %v1487 = vadd.f32 0.0, %v1486
      %v1488 = vpop.f32.mrb[0].mxu0
      %1489 = vmatprep.mubr.bf16.mxu0 0
      %1490 = vmatmul.mubr.bf16.gmra.mrb[0].mxu0 %v1392
      %v1491 = vpop.f32.mrb[0].mxu0
      %v1492 = vadd.f32 0.0, %v1491
      %v1493 = vpop.f32.mrb[0].mxu0
      %v1494 = vpop.f32.mrb[0].mxu0
      %v1495 = vadd.f32 0.0, %v1494
      %v1496 = vpop.f32.mrb[0].mxu0
      %1497 = vmatprep.mubr.bf16.mxu0 0
      %1498 = vmatmul.mubr.bf16.gmra.mrb[0].mxu0 %v1395
      %v1499 = vpop.f32.mrb[0].mxu0
      %v1500 = vadd.f32 0.0, %v1499
      %v1501 = vpop.f32.mrb[0].mxu0
      %v1502 = vpop.f32.mrb[0].mxu0
      %v1503 = vadd.f32 0.0, %v1502
      %v1504 = vpop.f32.mrb[0].mxu0
      %1505 = vmatprep.mubr.bf16.mxu0 0
      %1506 = vmatmul.mubr.bf16.gmra.mrb[0].mxu0 %v1398
      %v1507 = vpop.f32.mrb[0].mxu0
      %v1508 = vadd.f32 0.0, %v1507
      %v1509 = vpop.f32.mrb[0].mxu0
      %v1510 = vpop.f32.mrb[0].mxu0
      %v1511 = vadd.f32 0.0, %v1510
      %v1512 = vpop.f32.mrb[0].mxu0
      %1513 = vmatprep.mubr.bf16.mxu0 0
      %1514 = vmatmul.mubr.bf16.gmra.mrb[0].mxu0 %v1401
      %v1515 = vpop.f32.mrb[0].mxu0
      %v1516 = vadd.f32 0.0, %v1515
      %v1517 = vpop.f32.mrb[0].mxu0
      %v1518 = vpop.f32.mrb[0].mxu0
      %v1519 = vadd.f32 0.0, %v1518
      %v1520 = vpop.f32.mrb[0].mxu0
      %1521 = vmatprep.mubr.bf16.mxu0 0
      %1522 = vmatmul.mubr.bf16.gmra.mrb[0].mxu0 %v1404
      %v1523 = vpop.f32.mrb[0].mxu0
      %v1524 = vadd.f32 0.0, %v1523
      %v1525 = vpop.f32.mrb[0].mxu0
      %v1526 = vpop.f32.mrb[0].mxu0
      %v1527 = vadd.f32 0.0, %v1526
      %v1528 = vpop.f32.mrb[0].mxu0
      %1529 = vmatprep.mubr.bf16.mxu0 0
      %1530 = vmatmul.mubr.bf16.gmra.mrb[0].mxu0 %v1407
      %v1531 = vpop.f32.mrb[0].mxu0
      %v1532 = vadd.f32 0.0, %v1531
      %v1533 = vpop.f32.mrb[0].mxu0
      %v1534 = vpop.f32.mrb[0].mxu0
      %v1535 = vadd.f32 0.0, %v1534
      %v1536 = vpop.f32.mrb[0].mxu0
      %1537 = vmatprep.mubr.bf16.mxu0 0
      %1538 = vmatmul.mubr.bf16.gmra.mrb[0].mxu0 %v1410
      %v1539 = vpop.f32.mrb[0].mxu0
      %v1540 = vadd.f32 0.0, %v1539
      %v1541 = vpop.f32.mrb[0].mxu0
      %v1542 = vpop.f32.mrb[0].mxu0
      %v1543 = vadd.f32 0.0, %v1542
      %v1544 = vpop.f32.mrb[0].mxu0
      %1545 = vmatprep.mubr.bf16.mxu0 0
      %1546 = vmatmul.mubr.bf16.gmra.mrb[0].mxu0 %v1413
      %v1547 = vpop.f32.mrb[0].mxu0
      %v1548 = vadd.f32 0.0, %v1547
      %v1549 = vpop.f32.mrb[0].mxu0
      %v1550 = vpop.f32.mrb[0].mxu0
      %v1551 = vadd.f32 0.0, %v1550
      %v1552 = vpop.f32.mrb[0].mxu0
      %1553 = vmatprep.mubr.bf16.mxu0 0
      %1554 = vmatmul.mubr.bf16.gmra.mrb[0].mxu0 %v1416
      %v1555 = vpop.f32.mrb[0].mxu0
      %v1556 = vadd.f32 0.0, %v1555
      %v1557 = vpop.f32.mrb[0].mxu0
      %v1558 = vpop.f32.mrb[0].mxu0
      %v1559 = vadd.f32 0.0, %v1558
      %v1560 = vpop.f32.mrb[0].mxu0
      %1561 = vmatprep.mubr.bf16.mxu0 0
      %1562 = vmatmul.mubr.bf16.gmra.mrb[0].mxu0 %v1419
      %v1563 = vpop.f32.mrb[0].mxu0
      %v1564 = vadd.f32 0.0, %v1563
      %v1565 = vpop.f32.mrb[0].mxu0
      %v1566 = vpop.f32.mrb[0].mxu0
      %v1567 = vadd.f32 0.0, %v1566
      %v1568 = vpop.f32.mrb[0].mxu0
      %1569 = vmatprep.mubr.bf16.mxu0 0
      %1570 = vmatmul.mubr.bf16.gmra.mrb[0].mxu0 %v1422
      %v1571 = vpop.f32.mrb[0].mxu0
      %v1572 = vadd.f32 0.0, %v1571
      %v1573 = vpop.f32.mrb[0].mxu0
      %v1574 = vpop.f32.mrb[0].mxu0
      %v1575 = vadd.f32 0.0, %v1574
      %v1576 = vpop.f32.mrb[0].mxu0
      %1577 = vmatprep.mubr.bf16.mxu0 0
      %1578 = vmatmul.mubr.bf16.gmra.mrb[0].mxu0 %v1425
      %v1579 = vpop.f32.mrb[0].mxu0
      %v1580 = vadd.f32 0.0, %v1579
      %v1581 = vpop.f32.mrb[0].mxu0
      %v1582 = vpop.f32.mrb[0].mxu0
      %v1583 = vadd.f32 0.0, %v1582
      %v1584 = vpop.f32.mrb[0].mxu0
      %1585 = vmatprep.mubr.bf16.mxu0 0
      %1586 = vmatmul.mubr.bf16.gmra.mrb[0].mxu0 %v1428
      %v1587 = vpop.f32.mrb[0].mxu0
      %v1588 = vadd.f32 0.0, %v1587
      %v1589 = vpop.f32.mrb[0].mxu0
      %v1590 = vpop.f32.mrb[0].mxu0
      %v1591 = vadd.f32 0.0, %v1590
      %v1592 = vpop.f32.mrb[0].mxu0
      %1593 = vdwg.mxu0
      %v1594 = vadd.f32 %v1077, %v1468
      %v1595 = vadd.f32 %v1080, %v1471
      %v1596 = vadd.f32 %v1085, %v1476
      %v1597 = vadd.f32 %v1088, %v1479
      %v1598 = vadd.f32 %v1093, %v1484
      %v1599 = vadd.f32 %v1096, %v1487
      %v1600 = vadd.f32 %v1101, %v1492
      %v1601 = vadd.f32 %v1104, %v1495
      %v1602 = vadd.f32 %v1109, %v1500
      %v1603 = vadd.f32 %v1112, %v1503
      %v1604 = vadd.f32 %v1117, %v1508
      %v1605 = vadd.f32 %v1120, %v1511
      %v1606 = vadd.f32 %v1125, %v1516
      %v1607 = vadd.f32 %v1128, %v1519
      %v1608 = vadd.f32 %v1133, %v1524
      %v1609 = vadd.f32 %v1136, %v1527
      %v1610 = vadd.f32 %v1141, %v1532
      %v1611 = vadd.f32 %v1144, %v1535
      %v1612 = vadd.f32 %v1149, %v1540
      %v1613 = vadd.f32 %v1152, %v1543
      %v1614 = vadd.f32 %v1157, %v1548
      %v1615 = vadd.f32 %v1160, %v1551
      %v1616 = vadd.f32 %v1165, %v1556
      %v1617 = vadd.f32 %v1168, %v1559
      %v1618 = vadd.f32 %v1173, %v1564
      %v1619 = vadd.f32 %v1176, %v1567
      %v1620 = vadd.f32 %v1181, %v1572
      %v1621 = vadd.f32 %v1184, %v1575
      %v1622 = vadd.f32 %v1189, %v1580
      %v1623 = vadd.f32 %v1192, %v1583
      %v1624 = vadd.f32 %v1197, %v1588
      %v1625 = vadd.f32 %v1200, %v1591
      %v1628 = vunpack.c.l.b16 %v247
      %v1629 = vunpack.c.l.b16 %v248
      %v1630 = vpack.c.b16 %v1629, %v1628
      %v1632 = vsel %vm697, %v1630, 0
      %v1635 = vsel %vm746, %v256, 0
      %1637 = vmatprep.subr.bf16.mxu0 0
      %1638 = vmatpush1.bf16.msra.mxu0 %v1635
      %1639 = vmatprep.subr.bf16.mxu0 0
      %1640 = vmatpush1.bf16.msra.mxu0 0
      %1641 = vmatprep.subr.bf16.mxu0 0
      %1642 = vmatpush1.bf16.msra.mxu0 0
      %1643 = vmatprep.subr.bf16.mxu0 0
      %1644 = vmatpush1.bf16.msra.mxu0 0
      %1645 = vmatprep.subr.bf16.mxu0 0
      %1646 = vmatpush1.bf16.msra.mxu0 0
      %1647 = vmatprep.subr.bf16.mxu0 0
      %1648 = vmatpush1.bf16.msra.mxu0 0
      %1649 = vmatprep.subr.bf16.mxu0 0
      %1650 = vmatpush1.bf16.msra.mxu0 0
      %1651 = vmatprep.subr.bf16.mxu0 0
      %1652 = vmatpush1.bf16.msra.mxu0 0
      %1653 = vmatprep.subr.bf16.mxu0 0
      %1654 = vmatpush1.bf16.msra.mxu0 0
      %1655 = vmatprep.subr.bf16.mxu0 0
      %1656 = vmatpush1.bf16.msra.mxu0 0
      %1657 = vmatprep.subr.bf16.mxu0 0
      %1658 = vmatpush1.bf16.msra.mxu0 0
      %1659 = vmatprep.subr.bf16.mxu0 0
      %1660 = vmatpush1.bf16.msra.mxu0 0
      %1661 = vmatprep.subr.bf16.mxu0 0
      %1662 = vmatpush1.bf16.msra.mxu0 0
      %1663 = vmatprep.subr.bf16.mxu0 0
      %1664 = vmatpush1.bf16.msra.mxu0 0
      %1665 = vmatprep.subr.bf16.mxu0 0
      %1666 = vmatpush1.bf16.msra.mxu0 0
      %1667 = vmatprep.subr.bf16.mxu0 0
      %1668 = vmatpush1.bf16.msra.mxu0 0
      %1669 = vmatprep.mubr.bf16.mxu0 0
      %1670 = vmatmul.mubr.bf16.gmra.mrb[0].mxu0 %v995
      %v1671 = vpop.f32.mrb[0].mxu0
      %v1672 = vadd.f32 0.0, %v1671
      %v1673 = vpop.f32.mrb[0].mxu0
      %v1674 = vpop.f32.mrb[0].mxu0
      %v1675 = vadd.f32 0.0, %v1674
      %v1676 = vpop.f32.mrb[0].mxu0
      %1677 = vmatprep.mubr.bf16.mxu0 0
      %1678 = vmatmul.mubr.bf16.gmra.mrb[0].mxu0 %v998
      %v1679 = vpop.f32.mrb[0].mxu0
      %v1680 = vadd.f32 0.0, %v1679
      %v1681 = vpop.f32.mrb[0].mxu0
      %v1682 = vpop.f32.mrb[0].mxu0
      %v1683 = vadd.f32 0.0, %v1682
      %v1684 = vpop.f32.mrb[0].mxu0
      %1685 = vmatprep.mubr.bf16.mxu0 0
      %1686 = vmatmul.mubr.bf16.gmra.mrb[0].mxu0 %v1001
      %v1687 = vpop.f32.mrb[0].mxu0
      %v1688 = vadd.f32 0.0, %v1687
      %v1689 = vpop.f32.mrb[0].mxu0
      %v1690 = vpop.f32.mrb[0].mxu0
      %v1691 = vadd.f32 0.0, %v1690
      %v1692 = vpop.f32.mrb[0].mxu0
      %1693 = vmatprep.mubr.bf16.mxu0 0
      %1694 = vmatmul.mubr.bf16.gmra.mrb[0].mxu0 %v1004
      %v1695 = vpop.f32.mrb[0].mxu0
      %v1696 = vadd.f32 0.0, %v1695
      %v1697 = vpop.f32.mrb[0].mxu0
      %v1698 = vpop.f32.mrb[0].mxu0
      %v1699 = vadd.f32 0.0, %v1698
      %v1700 = vpop.f32.mrb[0].mxu0
      %1701 = vmatprep.mubr.bf16.mxu0 0
      %1702 = vmatmul.mubr.bf16.gmra.mrb[0].mxu0 %v1007
      %v1703 = vpop.f32.mrb[0].mxu0
      %v1704 = vadd.f32 0.0, %v1703
      %v1705 = vpop.f32.mrb[0].mxu0
      %v1706 = vpop.f32.mrb[0].mxu0
      %v1707 = vadd.f32 0.0, %v1706
      %v1708 = vpop.f32.mrb[0].mxu0
      %1709 = vmatprep.mubr.bf16.mxu0 0
      %1710 = vmatmul.mubr.bf16.gmra.mrb[0].mxu0 %v1010
      %v1711 = vpop.f32.mrb[0].mxu0
      %v1712 = vadd.f32 0.0, %v1711
      %v1713 = vpop.f32.mrb[0].mxu0
      %v1714 = vpop.f32.mrb[0].mxu0
      %v1715 = vadd.f32 0.0, %v1714
      %v1716 = vpop.f32.mrb[0].mxu0
      %1717 = vmatprep.mubr.bf16.mxu0 0
      %1718 = vmatmul.mubr.bf16.gmra.mrb[0].mxu0 %v1013
      %v1719 = vpop.f32.mrb[0].mxu0
      %v1720 = vadd.f32 0.0, %v1719
      %v1721 = vpop.f32.mrb[0].mxu0
      %v1722 = vpop.f32.mrb[0].mxu0
      %v1723 = vadd.f32 0.0, %v1722
      %v1724 = vpop.f32.mrb[0].mxu0
      %1725 = vmatprep.mubr.bf16.mxu0 0
      %1726 = vmatmul.mubr.bf16.gmra.mrb[0].mxu0 %v1016
      %v1727 = vpop.f32.mrb[0].mxu0
      %v1728 = vadd.f32 0.0, %v1727
      %v1729 = vpop.f32.mrb[0].mxu0
      %v1730 = vpop.f32.mrb[0].mxu0
      %v1731 = vadd.f32 0.0, %v1730
      %v1732 = vpop.f32.mrb[0].mxu0
      %1733 = vmatprep.mubr.bf16.mxu0 0
      %1734 = vmatmul.mubr.bf16.gmra.mrb[0].mxu0 %v1019
      %v1735 = vpop.f32.mrb[0].mxu0
      %v1736 = vadd.f32 0.0, %v1735
      %v1737 = vpop.f32.mrb[0].mxu0
      %v1738 = vpop.f32.mrb[0].mxu0
      %v1739 = vadd.f32 0.0, %v1738
      %v1740 = vpop.f32.mrb[0].mxu0
      %1741 = vmatprep.mubr.bf16.mxu0 0
      %1742 = vmatmul.mubr.bf16.gmra.mrb[0].mxu0 %v1022
      %v1743 = vpop.f32.mrb[0].mxu0
      %v1744 = vadd.f32 0.0, %v1743
      %v1745 = vpop.f32.mrb[0].mxu0
      %v1746 = vpop.f32.mrb[0].mxu0
      %v1747 = vadd.f32 0.0, %v1746
      %v1748 = vpop.f32.mrb[0].mxu0
      %1749 = vmatprep.mubr.bf16.mxu0 0
      %1750 = vmatmul.mubr.bf16.gmra.mrb[0].mxu0 %v1025
      %v1751 = vpop.f32.mrb[0].mxu0
      %v1752 = vadd.f32 0.0, %v1751
      %v1753 = vpop.f32.mrb[0].mxu0
      %v1754 = vpop.f32.mrb[0].mxu0
      %v1755 = vadd.f32 0.0, %v1754
      %v1756 = vpop.f32.mrb[0].mxu0
      %1757 = vmatprep.mubr.bf16.mxu0 0
      %1758 = vmatmul.mubr.bf16.gmra.mrb[0].mxu0 %v1028
      %v1759 = vpop.f32.mrb[0].mxu0
      %v1760 = vadd.f32 0.0, %v1759
      %v1761 = vpop.f32.mrb[0].mxu0
      %v1762 = vpop.f32.mrb[0].mxu0
      %v1763 = vadd.f32 0.0, %v1762
      %v1764 = vpop.f32.mrb[0].mxu0
      %1765 = vmatprep.mubr.bf16.mxu0 0
      %1766 = vmatmul.mubr.bf16.gmra.mrb[0].mxu0 %v1031
      %v1767 = vpop.f32.mrb[0].mxu0
      %v1768 = vadd.f32 0.0, %v1767
      %v1769 = vpop.f32.mrb[0].mxu0
      %v1770 = vpop.f32.mrb[0].mxu0
      %v1771 = vadd.f32 0.0, %v1770
      %v1772 = vpop.f32.mrb[0].mxu0
      %1773 = vmatprep.mubr.bf16.mxu0 0
      %1774 = vmatmul.mubr.bf16.gmra.mrb[0].mxu0 %v1034
      %v1775 = vpop.f32.mrb[0].mxu0
      %v1776 = vadd.f32 0.0, %v1775
      %v1777 = vpop.f32.mrb[0].mxu0
      %v1778 = vpop.f32.mrb[0].mxu0
      %v1779 = vadd.f32 0.0, %v1778
      %v1780 = vpop.f32.mrb[0].mxu0
      %1781 = vmatprep.mubr.bf16.mxu0 0
      %1782 = vmatmul.mubr.bf16.gmra.mrb[0].mxu0 %v1037
      %v1783 = vpop.f32.mrb[0].mxu0
      %v1784 = vadd.f32 0.0, %v1783
      %v1785 = vpop.f32.mrb[0].mxu0
      %v1786 = vpop.f32.mrb[0].mxu0
      %v1787 = vadd.f32 0.0, %v1786
      %v1788 = vpop.f32.mrb[0].mxu0
      %1789 = vmatprep.mubr.bf16.mxu0 0
      %1790 = vmatmul.mubr.bf16.gmra.mrb[0].mxu0 %v1632
      %v1791 = vpop.f32.mrb[0].mxu0
      %v1792 = vadd.f32 0.0, %v1791
      %v1793 = vpop.f32.mrb[0].mxu0
      %v1794 = vpop.f32.mrb[0].mxu0
      %v1795 = vadd.f32 0.0, %v1794
      %v1796 = vpop.f32.mrb[0].mxu0
      %1797 = vdwg.mxu0
      %v1798 = vadd.f32 %v1594, %v1672
      %v1799 = vadd.f32 %v1595, %v1675
      %v1800 = vadd.f32 %v1596, %v1680
      %v1801 = vadd.f32 %v1597, %v1683
      %v1802 = vadd.f32 %v1598, %v1688
      %v1803 = vadd.f32 %v1599, %v1691
      %v1804 = vadd.f32 %v1600, %v1696
      %v1805 = vadd.f32 %v1601, %v1699
      %v1806 = vadd.f32 %v1602, %v1704
      %v1807 = vadd.f32 %v1603, %v1707
      %v1808 = vadd.f32 %v1604, %v1712
      %v1809 = vadd.f32 %v1605, %v1715
      %v1810 = vadd.f32 %v1606, %v1720
      %v1811 = vadd.f32 %v1607, %v1723
      %v1812 = vadd.f32 %v1608, %v1728
      %v1813 = vadd.f32 %v1609, %v1731
      %v1814 = vadd.f32 %v1610, %v1736
      %v1815 = vadd.f32 %v1611, %v1739
      %v1816 = vadd.f32 %v1612, %v1744
      %v1817 = vadd.f32 %v1613, %v1747
      %v1818 = vadd.f32 %v1614, %v1752
      %v1819 = vadd.f32 %v1615, %v1755
      %v1820 = vadd.f32 %v1616, %v1760
      %v1821 = vadd.f32 %v1617, %v1763
      %v1822 = vadd.f32 %v1618, %v1768
      %v1823 = vadd.f32 %v1619, %v1771
      %v1824 = vadd.f32 %v1620, %v1776
      %v1825 = vadd.f32 %v1621, %v1779
      %v1826 = vadd.f32 %v1622, %v1784
      %v1827 = vadd.f32 %v1623, %v1787
      %v1828 = vadd.f32 %v1624, %v1792
      %v1829 = vadd.f32 %v1625, %v1795
      %v1831 = vshrl.u32 %v247, 16
      %v1833 = vrot.slane %v1831, 4
      %v1834 = vshll.u32 %v247, 16
      %v1836 = vrot.slane %v1834, 5
      %v1837 = vor.u32 %v1833, %v1836
      %v1838 = vrot.slane %v1837, 4
      %v1840 = vshll.u32 %v248, 16
      %v1842 = vrot.slane %v1840, 5
      %v1843 = vsel %vm264, %v1838, %v1842
      %v1844 = vshrl.u32 %v248, 16
      %v1846 = vrot.slane %v1844, 4
      %v1847 = vor.u32 %v1846, %v1842
      %v1848 = vrot.slane %v1847, 4
      %v1850 = vshll.u32 %v249, 16
      %v1852 = vrot.slane %v1850, 5
      %v1853 = vsel %vm264, %v1848, %v1852
      %v1854 = vunpack.c.l.b16 %v1843
      %v1855 = vunpack.c.l.b16 %v1853
      %v1856 = vpack.c.b16 %v1855, %v1854
      %v1858 = vsel %vm697, %v1856, 0
      %v1861 = vsel %vm746, %v257, 0
      %1863 = vmatprep.subr.bf16.mxu0 0
      %1864 = vmatpush1.bf16.msra.mxu0 %v1861
      %1865 = vmatprep.subr.bf16.mxu0 0
      %1866 = vmatpush1.bf16.msra.mxu0 0
      %1867 = vmatprep.subr.bf16.mxu0 0
      %1868 = vmatpush1.bf16.msra.mxu0 0
      %1869 = vmatprep.subr.bf16.mxu0 0
      %1870 = vmatpush1.bf16.msra.mxu0 0
      %1871 = vmatprep.subr.bf16.mxu0 0
      %1872 = vmatpush1.bf16.msra.mxu0 0
      %1873 = vmatprep.subr.bf16.mxu0 0
      %1874 = vmatpush1.bf16.msra.mxu0 0
      %1875 = vmatprep.subr.bf16.mxu0 0
      %1876 = vmatpush1.bf16.msra.mxu0 0
      %1877 = vmatprep.subr.bf16.mxu0 0
      %1878 = vmatpush1.bf16.msra.mxu0 0
      %1879 = vmatprep.subr.bf16.mxu0 0
      %1880 = vmatpush1.bf16.msra.mxu0 0
      %1881 = vmatprep.subr.bf16.mxu0 0
      %1882 = vmatpush1.bf16.msra.mxu0 0
      %1883 = vmatprep.subr.bf16.mxu0 0
      %1884 = vmatpush1.bf16.msra.mxu0 0
      %1885 = vmatprep.subr.bf16.mxu0 0
      %1886 = vmatpush1.bf16.msra.mxu0 0
      %1887 = vmatprep.subr.bf16.mxu0 0
      %1888 = vmatpush1.bf16.msra.mxu0 0
      %1889 = vmatprep.subr.bf16.mxu0 0
      %1890 = vmatpush1.bf16.msra.mxu0 0
      %1891 = vmatprep.subr.bf16.mxu0 0
      %1892 = vmatpush1.bf16.msra.mxu0 0
      %1893 = vmatprep.subr.bf16.mxu0 0
      %1894 = vmatpush1.bf16.msra.mxu0 0
      %1895 = vmatprep.mubr.bf16.mxu0 0
      %1896 = vmatmul.mubr.bf16.gmra.mrb[0].mxu0 %v702
      %v1897 = vpop.f32.mrb[0].mxu0
      %v1898 = vadd.f32 0.0, %v1897
      %v1899 = vpop.f32.mrb[0].mxu0
      %v1900 = vpop.f32.mrb[0].mxu0
      %v1901 = vadd.f32 0.0, %v1900
      %v1902 = vpop.f32.mrb[0].mxu0
      %1903 = vmatprep.mubr.bf16.mxu0 0
      %1904 = vmatmul.mubr.bf16.gmra.mrb[0].mxu0 %v705
      %v1905 = vpop.f32.mrb[0].mxu0
      %v1906 = vadd.f32 0.0, %v1905
      %v1907 = vpop.f32.mrb[0].mxu0
      %v1908 = vpop.f32.mrb[0].mxu0
      %v1909 = vadd.f32 0.0, %v1908
      %v1910 = vpop.f32.mrb[0].mxu0
      %1911 = vmatprep.mubr.bf16.mxu0 0
      %1912 = vmatmul.mubr.bf16.gmra.mrb[0].mxu0 %v708
      %v1913 = vpop.f32.mrb[0].mxu0
      %v1914 = vadd.f32 0.0, %v1913
      %v1915 = vpop.f32.mrb[0].mxu0
      %v1916 = vpop.f32.mrb[0].mxu0
      %v1917 = vadd.f32 0.0, %v1916
      %v1918 = vpop.f32.mrb[0].mxu0
      %1919 = vmatprep.mubr.bf16.mxu0 0
      %1920 = vmatmul.mubr.bf16.gmra.mrb[0].mxu0 %v711
      %v1921 = vpop.f32.mrb[0].mxu0
      %v1922 = vadd.f32 0.0, %v1921
      %v1923 = vpop.f32.mrb[0].mxu0
      %v1924 = vpop.f32.mrb[0].mxu0
      %v1925 = vadd.f32 0.0, %v1924
      %v1926 = vpop.f32.mrb[0].mxu0
      %1927 = vmatprep.mubr.bf16.mxu0 0
      %1928 = vmatmul.mubr.bf16.gmra.mrb[0].mxu0 %v714
      %v1929 = vpop.f32.mrb[0].mxu0
      %v1930 = vadd.f32 0.0, %v1929
      %v1931 = vpop.f32.mrb[0].mxu0
      %v1932 = vpop.f32.mrb[0].mxu0
      %v1933 = vadd.f32 0.0, %v1932
      %v1934 = vpop.f32.mrb[0].mxu0
      %1935 = vmatprep.mubr.bf16.mxu0 0
      %1936 = vmatmul.mubr.bf16.gmra.mrb[0].mxu0 %v717
      %v1937 = vpop.f32.mrb[0].mxu0
      %v1938 = vadd.f32 0.0, %v1937
      %v1939 = vpop.f32.mrb[0].mxu0
      %v1940 = vpop.f32.mrb[0].mxu0
      %v1941 = vadd.f32 0.0, %v1940
      %v1942 = vpop.f32.mrb[0].mxu0
      %1943 = vmatprep.mubr.bf16.mxu0 0
      %1944 = vmatmul.mubr.bf16.gmra.mrb[0].mxu0 %v720
      %v1945 = vpop.f32.mrb[0].mxu0
      %v1946 = vadd.f32 0.0, %v1945
      %v1947 = vpop.f32.mrb[0].mxu0
      %v1948 = vpop.f32.mrb[0].mxu0
      %v1949 = vadd.f32 0.0, %v1948
      %v1950 = vpop.f32.mrb[0].mxu0
      %1951 = vmatprep.mubr.bf16.mxu0 0
      %1952 = vmatmul.mubr.bf16.gmra.mrb[0].mxu0 %v723
      %v1953 = vpop.f32.mrb[0].mxu0
      %v1954 = vadd.f32 0.0, %v1953
      %v1955 = vpop.f32.mrb[0].mxu0
      %v1956 = vpop.f32.mrb[0].mxu0
      %v1957 = vadd.f32 0.0, %v1956
      %v1958 = vpop.f32.mrb[0].mxu0
      %1959 = vmatprep.mubr.bf16.mxu0 0
      %1960 = vmatmul.mubr.bf16.gmra.mrb[0].mxu0 %v726
      %v1961 = vpop.f32.mrb[0].mxu0
      %v1962 = vadd.f32 0.0, %v1961
      %v1963 = vpop.f32.mrb[0].mxu0
      %v1964 = vpop.f32.mrb[0].mxu0
      %v1965 = vadd.f32 0.0, %v1964
      %v1966 = vpop.f32.mrb[0].mxu0
      %1967 = vmatprep.mubr.bf16.mxu0 0
      %1968 = vmatmul.mubr.bf16.gmra.mrb[0].mxu0 %v729
      %v1969 = vpop.f32.mrb[0].mxu0
      %v1970 = vadd.f32 0.0, %v1969
      %v1971 = vpop.f32.mrb[0].mxu0
      %v1972 = vpop.f32.mrb[0].mxu0
      %v1973 = vadd.f32 0.0, %v1972
      %v1974 = vpop.f32.mrb[0].mxu0
      %1975 = vmatprep.mubr.bf16.mxu0 0
      %1976 = vmatmul.mubr.bf16.gmra.mrb[0].mxu0 %v732
      %v1977 = vpop.f32.mrb[0].mxu0
      %v1978 = vadd.f32 0.0, %v1977
      %v1979 = vpop.f32.mrb[0].mxu0
      %v1980 = vpop.f32.mrb[0].mxu0
      %v1981 = vadd.f32 0.0, %v1980
      %v1982 = vpop.f32.mrb[0].mxu0
      %1983 = vmatprep.mubr.bf16.mxu0 0
      %1984 = vmatmul.mubr.bf16.gmra.mrb[0].mxu0 %v735
      %v1985 = vpop.f32.mrb[0].mxu0
      %v1986 = vadd.f32 0.0, %v1985
      %v1987 = vpop.f32.mrb[0].mxu0
      %v1988 = vpop.f32.mrb[0].mxu0
      %v1989 = vadd.f32 0.0, %v1988
      %v1990 = vpop.f32.mrb[0].mxu0
      %1991 = vmatprep.mubr.bf16.mxu0 0
      %1992 = vmatmul.mubr.bf16.gmra.mrb[0].mxu0 %v738
      %v1993 = vpop.f32.mrb[0].mxu0
      %v1994 = vadd.f32 0.0, %v1993
      %v1995 = vpop.f32.mrb[0].mxu0
      %v1996 = vpop.f32.mrb[0].mxu0
      %v1997 = vadd.f32 0.0, %v1996
      %v1998 = vpop.f32.mrb[0].mxu0
      %1999 = vmatprep.mubr.bf16.mxu0 0
      %2000 = vmatmul.mubr.bf16.gmra.mrb[0].mxu0 %v741
      %v2001 = vpop.f32.mrb[0].mxu0
      %v2002 = vadd.f32 0.0, %v2001
      %v2003 = vpop.f32.mrb[0].mxu0
      %v2004 = vpop.f32.mrb[0].mxu0
      %v2005 = vadd.f32 0.0, %v2004
      %v2006 = vpop.f32.mrb[0].mxu0
      %2007 = vmatprep.mubr.bf16.mxu0 0
      %2008 = vmatmul.mubr.bf16.gmra.mrb[0].mxu0 %v744
      %v2009 = vpop.f32.mrb[0].mxu0
      %v2010 = vadd.f32 0.0, %v2009
      %v2011 = vpop.f32.mrb[0].mxu0
      %v2012 = vpop.f32.mrb[0].mxu0
      %v2013 = vadd.f32 0.0, %v2012
      %v2014 = vpop.f32.mrb[0].mxu0
      %2015 = vmatprep.mubr.bf16.mxu0 0
      %2016 = vmatmul.mubr.bf16.gmra.mrb[0].mxu0 %v1858
      %v2017 = vpop.f32.mrb[0].mxu0
      %v2018 = vadd.f32 0.0, %v2017
      %v2019 = vpop.f32.mrb[0].mxu0
      %v2020 = vpop.f32.mrb[0].mxu0
      %v2021 = vadd.f32 0.0, %v2020
      %v2022 = vpop.f32.mrb[0].mxu0
      %2023 = vdwg.mxu0
      %v2024 = vadd.f32 %v1798, %v1898
      %v2025 = vadd.f32 %v1799, %v1901
      %v2026 = vadd.f32 %v1800, %v1906
      %v2027 = vadd.f32 %v1801, %v1909
      %v2028 = vadd.f32 %v1802, %v1914
      %v2029 = vadd.f32 %v1803, %v1917
      %v2030 = vadd.f32 %v1804, %v1922
      %v2031 = vadd.f32 %v1805, %v1925
      %v2032 = vadd.f32 %v1806, %v1930
      %v2033 = vadd.f32 %v1807, %v1933
      %v2034 = vadd.f32 %v1808, %v1938
      %v2035 = vadd.f32 %v1809, %v1941
      %v2036 = vadd.f32 %v1810, %v1946
      %v2037 = vadd.f32 %v1811, %v1949
      %v2038 = vadd.f32 %v1812, %v1954
      %v2039 = vadd.f32 %v1813, %v1957
      %v2040 = vadd.f32 %v1814, %v1962
      %v2041 = vadd.f32 %v1815, %v1965
      %v2042 = vadd.f32 %v1816, %v1970
      %v2043 = vadd.f32 %v1817, %v1973
      %v2044 = vadd.f32 %v1818, %v1978
      %v2045 = vadd.f32 %v1819, %v1981
      %v2046 = vadd.f32 %v1820, %v1986
      %v2047 = vadd.f32 %v1821, %v1989
      %v2048 = vadd.f32 %v1822, %v1994
      %v2049 = vadd.f32 %v1823, %v1997
      %v2050 = vadd.f32 %v1824, %v2002
      %v2051 = vadd.f32 %v1825, %v2005
      %v2052 = vadd.f32 %v1826, %v2010
      %v2053 = vadd.f32 %v1827, %v2013
      %v2054 = vadd.f32 %v1828, %v2018
      %v2055 = vadd.f32 %v1829, %v2021
      %v2057 = vrot.slane %v247, 5
      %v2058 = vrot.slane %v2057, 4
      %v2059 = vrot.slane %v248, 5
      %v2060 = vsel %vm1221, %v2058, %v2059
      %v2061 = vrot.slane %v2059, 4
      %v2062 = vrot.slane %v249, 5
      %v2063 = vsel %vm1221, %v2061, %v2062
      %v2064 = vunpack.c.l.b16 %v2060
      %v2065 = vunpack.c.l.b16 %v2063
      %v2066 = vpack.c.b16 %v2065, %v2064
      %v2068 = vsel %vm697, %v2066, 0
      %v2071 = vsel %vm746, %v258, 0
      %2073 = vmatprep.subr.bf16.mxu0 0
      %2074 = vmatpush1.bf16.msra.mxu0 %v2071
      %2075 = vmatprep.subr.bf16.mxu0 0
      %2076 = vmatpush1.bf16.msra.mxu0 0
      %2077 = vmatprep.subr.bf16.mxu0 0
      %2078 = vmatpush1.bf16.msra.mxu0 0
      %2079 = vmatprep.subr.bf16.mxu0 0
      %2080 = vmatpush1.bf16.msra.mxu0 0
      %2081 = vmatprep.subr.bf16.mxu0 0
      %2082 = vmatpush1.bf16.msra.mxu0 0
      %2083 = vmatprep.subr.bf16.mxu0 0
      %2084 = vmatpush1.bf16.msra.mxu0 0
      %2085 = vmatprep.subr.bf16.mxu0 0
      %2086 = vmatpush1.bf16.msra.mxu0 0
      %2087 = vmatprep.subr.bf16.mxu0 0
      %2088 = vmatpush1.bf16.msra.mxu0 0
      %2089 = vmatprep.subr.bf16.mxu0 0
      %2090 = vmatpush1.bf16.msra.mxu0 0
      %2091 = vmatprep.subr.bf16.mxu0 0
      %2092 = vmatpush1.bf16.msra.mxu0 0
      %2093 = vmatprep.subr.bf16.mxu0 0
      %2094 = vmatpush1.bf16.msra.mxu0 0
      %2095 = vmatprep.subr.bf16.mxu0 0
      %2096 = vmatpush1.bf16.msra.mxu0 0
      %2097 = vmatprep.subr.bf16.mxu0 0
      %2098 = vmatpush1.bf16.msra.mxu0 0
      %2099 = vmatprep.subr.bf16.mxu0 0
      %2100 = vmatpush1.bf16.msra.mxu0 0
      %2101 = vmatprep.subr.bf16.mxu0 0
      %2102 = vmatpush1.bf16.msra.mxu0 0
      %2103 = vmatprep.subr.bf16.mxu0 0
      %2104 = vmatpush1.bf16.msra.mxu0 0
      %2105 = vmatprep.mubr.bf16.mxu0 0
      %2106 = vmatmul.mubr.bf16.gmra.mrb[0].mxu0 %v1386
      %v2107 = vpop.f32.mrb[0].mxu0
      %v2108 = vadd.f32 0.0, %v2107
      %v2109 = vpop.f32.mrb[0].mxu0
      %v2110 = vpop.f32.mrb[0].mxu0
      %v2111 = vadd.f32 0.0, %v2110
      %v2112 = vpop.f32.mrb[0].mxu0
      %2113 = vmatprep.mubr.bf16.mxu0 0
      %2114 = vmatmul.mubr.bf16.gmra.mrb[0].mxu0 %v1389
      %v2115 = vpop.f32.mrb[0].mxu0
      %v2116 = vadd.f32 0.0, %v2115
      %v2117 = vpop.f32.mrb[0].mxu0
      %v2118 = vpop.f32.mrb[0].mxu0
      %v2119 = vadd.f32 0.0, %v2118
      %v2120 = vpop.f32.mrb[0].mxu0
      %2121 = vmatprep.mubr.bf16.mxu0 0
      %2122 = vmatmul.mubr.bf16.gmra.mrb[0].mxu0 %v1392
      %v2123 = vpop.f32.mrb[0].mxu0
      %v2124 = vadd.f32 0.0, %v2123
      %v2125 = vpop.f32.mrb[0].mxu0
      %v2126 = vpop.f32.mrb[0].mxu0
      %v2127 = vadd.f32 0.0, %v2126
      %v2128 = vpop.f32.mrb[0].mxu0
      %2129 = vmatprep.mubr.bf16.mxu0 0
      %2130 = vmatmul.mubr.bf16.gmra.mrb[0].mxu0 %v1395
      %v2131 = vpop.f32.mrb[0].mxu0
      %v2132 = vadd.f32 0.0, %v2131
      %v2133 = vpop.f32.mrb[0].mxu0
      %v2134 = vpop.f32.mrb[0].mxu0
      %v2135 = vadd.f32 0.0, %v2134
      %v2136 = vpop.f32.mrb[0].mxu0
      %2137 = vmatprep.mubr.bf16.mxu0 0
      %2138 = vmatmul.mubr.bf16.gmra.mrb[0].mxu0 %v1398
      %v2139 = vpop.f32.mrb[0].mxu0
      %v2140 = vadd.f32 0.0, %v2139
      %v2141 = vpop.f32.mrb[0].mxu0
      %v2142 = vpop.f32.mrb[0].mxu0
      %v2143 = vadd.f32 0.0, %v2142
      %v2144 = vpop.f32.mrb[0].mxu0
      %2145 = vmatprep.mubr.bf16.mxu0 0
      %2146 = vmatmul.mubr.bf16.gmra.mrb[0].mxu0 %v1401
      %v2147 = vpop.f32.mrb[0].mxu0
      %v2148 = vadd.f32 0.0, %v2147
      %v2149 = vpop.f32.mrb[0].mxu0
      %v2150 = vpop.f32.mrb[0].mxu0
      %v2151 = vadd.f32 0.0, %v2150
      %v2152 = vpop.f32.mrb[0].mxu0
      %2153 = vmatprep.mubr.bf16.mxu0 0
      %2154 = vmatmul.mubr.bf16.gmra.mrb[0].mxu0 %v1404
      %v2155 = vpop.f32.mrb[0].mxu0
      %v2156 = vadd.f32 0.0, %v2155
      %v2157 = vpop.f32.mrb[0].mxu0
      %v2158 = vpop.f32.mrb[0].mxu0
      %v2159 = vadd.f32 0.0, %v2158
      %v2160 = vpop.f32.mrb[0].mxu0
      %2161 = vmatprep.mubr.bf16.mxu0 0
      %2162 = vmatmul.mubr.bf16.gmra.mrb[0].mxu0 %v1407
      %v2163 = vpop.f32.mrb[0].mxu0
      %v2164 = vadd.f32 0.0, %v2163
      %v2165 = vpop.f32.mrb[0].mxu0
      %v2166 = vpop.f32.mrb[0].mxu0
      %v2167 = vadd.f32 0.0, %v2166
      %v2168 = vpop.f32.mrb[0].mxu0
      %2169 = vmatprep.mubr.bf16.mxu0 0
      %2170 = vmatmul.mubr.bf16.gmra.mrb[0].mxu0 %v1410
      %v2171 = vpop.f32.mrb[0].mxu0
      %v2172 = vadd.f32 0.0, %v2171
      %v2173 = vpop.f32.mrb[0].mxu0
      %v2174 = vpop.f32.mrb[0].mxu0
      %v2175 = vadd.f32 0.0, %v2174
      %v2176 = vpop.f32.mrb[0].mxu0
      %2177 = vmatprep.mubr.bf16.mxu0 0
      %2178 = vmatmul.mubr.bf16.gmra.mrb[0].mxu0 %v1413
      %v2179 = vpop.f32.mrb[0].mxu0
      %v2180 = vadd.f32 0.0, %v2179
      %v2181 = vpop.f32.mrb[0].mxu0
      %v2182 = vpop.f32.mrb[0].mxu0
      %v2183 = vadd.f32 0.0, %v2182
      %v2184 = vpop.f32.mrb[0].mxu0
      %2185 = vmatprep.mubr.bf16.mxu0 0
      %2186 = vmatmul.mubr.bf16.gmra.mrb[0].mxu0 %v1416
      %v2187 = vpop.f32.mrb[0].mxu0
      %v2188 = vadd.f32 0.0, %v2187
      %v2189 = vpop.f32.mrb[0].mxu0
      %v2190 = vpop.f32.mrb[0].mxu0
      %v2191 = vadd.f32 0.0, %v2190
      %v2192 = vpop.f32.mrb[0].mxu0
      %2193 = vmatprep.mubr.bf16.mxu0 0
      %2194 = vmatmul.mubr.bf16.gmra.mrb[0].mxu0 %v1419
      %v2195 = vpop.f32.mrb[0].mxu0
      %v2196 = vadd.f32 0.0, %v2195
      %v2197 = vpop.f32.mrb[0].mxu0
      %v2198 = vpop.f32.mrb[0].mxu0
      %v2199 = vadd.f32 0.0, %v2198
      %v2200 = vpop.f32.mrb[0].mxu0
      %2201 = vmatprep.mubr.bf16.mxu0 0
      %2202 = vmatmul.mubr.bf16.gmra.mrb[0].mxu0 %v1422
      %v2203 = vpop.f32.mrb[0].mxu0
      %v2204 = vadd.f32 0.0, %v2203
      %v2205 = vpop.f32.mrb[0].mxu0
      %v2206 = vpop.f32.mrb[0].mxu0
      %v2207 = vadd.f32 0.0, %v2206
      %v2208 = vpop.f32.mrb[0].mxu0
      %2209 = vmatprep.mubr.bf16.mxu0 0
      %2210 = vmatmul.mubr.bf16.gmra.mrb[0].mxu0 %v1425
      %v2211 = vpop.f32.mrb[0].mxu0
      %v2212 = vadd.f32 0.0, %v2211
      %v2213 = vpop.f32.mrb[0].mxu0
      %v2214 = vpop.f32.mrb[0].mxu0
      %v2215 = vadd.f32 0.0, %v2214
      %v2216 = vpop.f32.mrb[0].mxu0
      %2217 = vmatprep.mubr.bf16.mxu0 0
      %2218 = vmatmul.mubr.bf16.gmra.mrb[0].mxu0 %v1428
      %v2219 = vpop.f32.mrb[0].mxu0
      %v2220 = vadd.f32 0.0, %v2219
      %v2221 = vpop.f32.mrb[0].mxu0
      %v2222 = vpop.f32.mrb[0].mxu0
      %v2223 = vadd.f32 0.0, %v2222
      %v2224 = vpop.f32.mrb[0].mxu0
      %2225 = vmatprep.mubr.bf16.mxu0 0
      %2226 = vmatmul.mubr.bf16.gmra.mrb[0].mxu0 %v2068
      %v2227 = vpop.f32.mrb[0].mxu0
      %v2228 = vadd.f32 0.0, %v2227
      %v2229 = vpop.f32.mrb[0].mxu0
      %v2230 = vpop.f32.mrb[0].mxu0
      %v2231 = vadd.f32 0.0, %v2230
      %v2232 = vpop.f32.mrb[0].mxu0
      %2233 = vdwg.mxu0
      %v2234 = vadd.f32 %v2024, %v2108
      %v2235 = vadd.f32 %v2025, %v2111
      %v2236 = vadd.f32 %v2026, %v2116
      %v2237 = vadd.f32 %v2027, %v2119
      %v2238 = vadd.f32 %v2028, %v2124
      %v2239 = vadd.f32 %v2029, %v2127
      %v2240 = vadd.f32 %v2030, %v2132
      %v2241 = vadd.f32 %v2031, %v2135
      %v2242 = vadd.f32 %v2032, %v2140
      %v2243 = vadd.f32 %v2033, %v2143
      %v2244 = vadd.f32 %v2034, %v2148
      %v2245 = vadd.f32 %v2035, %v2151
      %v2246 = vadd.f32 %v2036, %v2156
      %v2247 = vadd.f32 %v2037, %v2159
      %v2248 = vadd.f32 %v2038, %v2164
      %v2249 = vadd.f32 %v2039, %v2167
      %v2250 = vadd.f32 %v2040, %v2172
      %v2251 = vadd.f32 %v2041, %v2175
      %v2252 = vadd.f32 %v2042, %v2180
      %v2253 = vadd.f32 %v2043, %v2183
      %v2254 = vadd.f32 %v2044, %v2188
      %v2255 = vadd.f32 %v2045, %v2191
      %v2256 = vadd.f32 %v2046, %v2196
      %v2257 = vadd.f32 %v2047, %v2199
      %v2258 = vadd.f32 %v2048, %v2204
      %v2259 = vadd.f32 %v2049, %v2207
      %v2260 = vadd.f32 %v2050, %v2212
      %v2261 = vadd.f32 %v2051, %v2215
      %v2262 = vadd.f32 %v2052, %v2220
      %v2263 = vadd.f32 %v2053, %v2223
      %v2264 = vadd.f32 %v2054, %v2228
      %v2265 = vadd.f32 %v2055, %v2231
      %v2268 = vunpack.c.l.b16 %v250
      %v2269 = vunpack.c.l.b16 %v251
      %v2270 = vpack.c.b16 %v2269, %v2268
      %v2272 = vsel %vm697, %v2270, 0
      %v2275 = vsel %vm746, %v259, 0
      %2277 = vmatprep.subr.bf16.mxu0 0
      %2278 = vmatpush1.bf16.msra.mxu0 %v2275
      %2279 = vmatprep.subr.bf16.mxu0 0
      %2280 = vmatpush1.bf16.msra.mxu0 0
      %2281 = vmatprep.subr.bf16.mxu0 0
      %2282 = vmatpush1.bf16.msra.mxu0 0
      %2283 = vmatprep.subr.bf16.mxu0 0
      %2284 = vmatpush1.bf16.msra.mxu0 0
      %2285 = vmatprep.subr.bf16.mxu0 0
      %2286 = vmatpush1.bf16.msra.mxu0 0
      %2287 = vmatprep.subr.bf16.mxu0 0
      %2288 = vmatpush1.bf16.msra.mxu0 0
      %2289 = vmatprep.subr.bf16.mxu0 0
      %2290 = vmatpush1.bf16.msra.mxu0 0
      %2291 = vmatprep.subr.bf16.mxu0 0
      %2292 = vmatpush1.bf16.msra.mxu0 0
      %2293 = vmatprep.subr.bf16.mxu0 0
      %2294 = vmatpush1.bf16.msra.mxu0 0
      %2295 = vmatprep.subr.bf16.mxu0 0
      %2296 = vmatpush1.bf16.msra.mxu0 0
      %2297 = vmatprep.subr.bf16.mxu0 0
      %2298 = vmatpush1.bf16.msra.mxu0 0
      %2299 = vmatprep.subr.bf16.mxu0 0
      %2300 = vmatpush1.bf16.msra.mxu0 0
      %2301 = vmatprep.subr.bf16.mxu0 0
      %2302 = vmatpush1.bf16.msra.mxu0 0
      %2303 = vmatprep.subr.bf16.mxu0 0
      %2304 = vmatpush1.bf16.msra.mxu0 0
      %2305 = vmatprep.subr.bf16.mxu0 0
      %2306 = vmatpush1.bf16.msra.mxu0 0
      %2307 = vmatprep.subr.bf16.mxu0 0
      %2308 = vmatpush1.bf16.msra.mxu0 0
      %2309 = vmatprep.mubr.bf16.mxu0 0
      %2310 = vmatmul.mubr.bf16.gmra.mrb[0].mxu0 %v998
      %v2311 = vpop.f32.mrb[0].mxu0
      %v2312 = vadd.f32 0.0, %v2311
      %v2313 = vpop.f32.mrb[0].mxu0
      %v2314 = vpop.f32.mrb[0].mxu0
      %v2315 = vadd.f32 0.0, %v2314
      %v2316 = vpop.f32.mrb[0].mxu0
      %2317 = vmatprep.mubr.bf16.mxu0 0
      %2318 = vmatmul.mubr.bf16.gmra.mrb[0].mxu0 %v1001
      %v2319 = vpop.f32.mrb[0].mxu0
      %v2320 = vadd.f32 0.0, %v2319
      %v2321 = vpop.f32.mrb[0].mxu0
      %v2322 = vpop.f32.mrb[0].mxu0
      %v2323 = vadd.f32 0.0, %v2322
      %v2324 = vpop.f32.mrb[0].mxu0
      %2325 = vmatprep.mubr.bf16.mxu0 0
      %2326 = vmatmul.mubr.bf16.gmra.mrb[0].mxu0 %v1004
      %v2327 = vpop.f32.mrb[0].mxu0
      %v2328 = vadd.f32 0.0, %v2327
      %v2329 = vpop.f32.mrb[0].mxu0
      %v2330 = vpop.f32.mrb[0].mxu0
      %v2331 = vadd.f32 0.0, %v2330
      %v2332 = vpop.f32.mrb[0].mxu0
      %2333 = vmatprep.mubr.bf16.mxu0 0
      %2334 = vmatmul.mubr.bf16.gmra.mrb[0].mxu0 %v1007
      %v2335 = vpop.f32.mrb[0].mxu0
      %v2336 = vadd.f32 0.0, %v2335
      %v2337 = vpop.f32.mrb[0].mxu0
      %v2338 = vpop.f32.mrb[0].mxu0
      %v2339 = vadd.f32 0.0, %v2338
      %v2340 = vpop.f32.mrb[0].mxu0
      %2341 = vmatprep.mubr.bf16.mxu0 0
      %2342 = vmatmul.mubr.bf16.gmra.mrb[0].mxu0 %v1010
      %v2343 = vpop.f32.mrb[0].mxu0
      %v2344 = vadd.f32 0.0, %v2343
      %v2345 = vpop.f32.mrb[0].mxu0
      %v2346 = vpop.f32.mrb[0].mxu0
      %v2347 = vadd.f32 0.0, %v2346
      %v2348 = vpop.f32.mrb[0].mxu0
      %2349 = vmatprep.mubr.bf16.mxu0 0
      %2350 = vmatmul.mubr.bf16.gmra.mrb[0].mxu0 %v1013
      %v2351 = vpop.f32.mrb[0].mxu0
      %v2352 = vadd.f32 0.0, %v2351
      %v2353 = vpop.f32.mrb[0].mxu0
      %v2354 = vpop.f32.mrb[0].mxu0
      %v2355 = vadd.f32 0.0, %v2354
      %v2356 = vpop.f32.mrb[0].mxu0
      %2357 = vmatprep.mubr.bf16.mxu0 0
      %2358 = vmatmul.mubr.bf16.gmra.mrb[0].mxu0 %v1016
      %v2359 = vpop.f32.mrb[0].mxu0
      %v2360 = vadd.f32 0.0, %v2359
      %v2361 = vpop.f32.mrb[0].mxu0
      %v2362 = vpop.f32.mrb[0].mxu0
      %v2363 = vadd.f32 0.0, %v2362
      %v2364 = vpop.f32.mrb[0].mxu0
      %2365 = vmatprep.mubr.bf16.mxu0 0
      %2366 = vmatmul.mubr.bf16.gmra.mrb[0].mxu0 %v1019
      %v2367 = vpop.f32.mrb[0].mxu0
      %v2368 = vadd.f32 0.0, %v2367
      %v2369 = vpop.f32.mrb[0].mxu0
      %v2370 = vpop.f32.mrb[0].mxu0
      %v2371 = vadd.f32 0.0, %v2370
      %v2372 = vpop.f32.mrb[0].mxu0
      %2373 = vmatprep.mubr.bf16.mxu0 0
      %2374 = vmatmul.mubr.bf16.gmra.mrb[0].mxu0 %v1022
      %v2375 = vpop.f32.mrb[0].mxu0
      %v2376 = vadd.f32 0.0, %v2375
      %v2377 = vpop.f32.mrb[0].mxu0
      %v2378 = vpop.f32.mrb[0].mxu0
      %v2379 = vadd.f32 0.0, %v2378
      %v2380 = vpop.f32.mrb[0].mxu0
      %2381 = vmatprep.mubr.bf16.mxu0 0
      %2382 = vmatmul.mubr.bf16.gmra.mrb[0].mxu0 %v1025
      %v2383 = vpop.f32.mrb[0].mxu0
      %v2384 = vadd.f32 0.0, %v2383
      %v2385 = vpop.f32.mrb[0].mxu0
      %v2386 = vpop.f32.mrb[0].mxu0
      %v2387 = vadd.f32 0.0, %v2386
      %v2388 = vpop.f32.mrb[0].mxu0
      %2389 = vmatprep.mubr.bf16.mxu0 0
      %2390 = vmatmul.mubr.bf16.gmra.mrb[0].mxu0 %v1028
      %v2391 = vpop.f32.mrb[0].mxu0
      %v2392 = vadd.f32 0.0, %v2391
      %v2393 = vpop.f32.mrb[0].mxu0
      %v2394 = vpop.f32.mrb[0].mxu0
      %v2395 = vadd.f32 0.0, %v2394
      %v2396 = vpop.f32.mrb[0].mxu0
      %2397 = vmatprep.mubr.bf16.mxu0 0
      %2398 = vmatmul.mubr.bf16.gmra.mrb[0].mxu0 %v1031
      %v2399 = vpop.f32.mrb[0].mxu0
      %v2400 = vadd.f32 0.0, %v2399
      %v2401 = vpop.f32.mrb[0].mxu0
      %v2402 = vpop.f32.mrb[0].mxu0
      %v2403 = vadd.f32 0.0, %v2402
      %v2404 = vpop.f32.mrb[0].mxu0
      %2405 = vmatprep.mubr.bf16.mxu0 0
      %2406 = vmatmul.mubr.bf16.gmra.mrb[0].mxu0 %v1034
      %v2407 = vpop.f32.mrb[0].mxu0
      %v2408 = vadd.f32 0.0, %v2407
      %v2409 = vpop.f32.mrb[0].mxu0
      %v2410 = vpop.f32.mrb[0].mxu0
      %v2411 = vadd.f32 0.0, %v2410
      %v2412 = vpop.f32.mrb[0].mxu0
      %2413 = vmatprep.mubr.bf16.mxu0 0
      %2414 = vmatmul.mubr.bf16.gmra.mrb[0].mxu0 %v1037
      %v2415 = vpop.f32.mrb[0].mxu0
      %v2416 = vadd.f32 0.0, %v2415
      %v2417 = vpop.f32.mrb[0].mxu0
      %v2418 = vpop.f32.mrb[0].mxu0
      %v2419 = vadd.f32 0.0, %v2418
      %v2420 = vpop.f32.mrb[0].mxu0
      %2421 = vmatprep.mubr.bf16.mxu0 0
      %2422 = vmatmul.mubr.bf16.gmra.mrb[0].mxu0 %v1632
      %v2423 = vpop.f32.mrb[0].mxu0
      %v2424 = vadd.f32 0.0, %v2423
      %v2425 = vpop.f32.mrb[0].mxu0
      %v2426 = vpop.f32.mrb[0].mxu0
      %v2427 = vadd.f32 0.0, %v2426
      %v2428 = vpop.f32.mrb[0].mxu0
      %2429 = vmatprep.mubr.bf16.mxu0 0
      %2430 = vmatmul.mubr.bf16.gmra.mrb[0].mxu0 %v2272
      %v2431 = vpop.f32.mrb[0].mxu0
      %v2432 = vadd.f32 0.0, %v2431
      %v2433 = vpop.f32.mrb[0].mxu0
      %v2434 = vpop.f32.mrb[0].mxu0
      %v2435 = vadd.f32 0.0, %v2434
      %v2436 = vpop.f32.mrb[0].mxu0
      %2437 = vdwg.mxu0
      %v2438 = vadd.f32 %v2234, %v2312
      %v2439 = vadd.f32 %v2235, %v2315
      %v2440 = vadd.f32 %v2236, %v2320
      %v2441 = vadd.f32 %v2237, %v2323
      %v2442 = vadd.f32 %v2238, %v2328
      %v2443 = vadd.f32 %v2239, %v2331
      %v2444 = vadd.f32 %v2240, %v2336
      %v2445 = vadd.f32 %v2241, %v2339
      %v2446 = vadd.f32 %v2242, %v2344
      %v2447 = vadd.f32 %v2243, %v2347
      %v2448 = vadd.f32 %v2244, %v2352
      %v2449 = vadd.f32 %v2245, %v2355
      %v2450 = vadd.f32 %v2246, %v2360
      %v2451 = vadd.f32 %v2247, %v2363
      %v2452 = vadd.f32 %v2248, %v2368
      %v2453 = vadd.f32 %v2249, %v2371
      %v2454 = vadd.f32 %v2250, %v2376
      %v2455 = vadd.f32 %v2251, %v2379
      %v2456 = vadd.f32 %v2252, %v2384
      %v2457 = vadd.f32 %v2253, %v2387
      %v2458 = vadd.f32 %v2254, %v2392
      %v2459 = vadd.f32 %v2255, %v2395
      %v2460 = vadd.f32 %v2256, %v2400
      %v2461 = vadd.f32 %v2257, %v2403
      %v2462 = vadd.f32 %v2258, %v2408
      %v2463 = vadd.f32 %v2259, %v2411
      %v2464 = vadd.f32 %v2260, %v2416
      %v2465 = vadd.f32 %v2261, %v2419
      %v2466 = vadd.f32 %v2262, %v2424
      %v2467 = vadd.f32 %v2263, %v2427
      %v2468 = vadd.f32 %v2264, %v2432
      %v2469 = vadd.f32 %v2265, %v2435
      %v2471 = vshrl.u32 %v250, 16
      %v2473 = vrot.slane %v2471, 4
      %v2474 = vshll.u32 %v250, 16
      %v2476 = vrot.slane %v2474, 5
      %v2477 = vor.u32 %v2473, %v2476
      %v2478 = vrot.slane %v2477, 4
      %v2480 = vshll.u32 %v251, 16
      %v2482 = vrot.slane %v2480, 5
      %v2483 = vsel %vm264, %v2478, %v2482
      %v2484 = vshrl.u32 %v251, 16
      %v2486 = vrot.slane %v2484, 4
      %v2487 = vor.u32 %v2486, %v2482
      %v2488 = vrot.slane %v2487, 4
      %v2490 = vshll.u32 %v252, 16
      %v2492 = vrot.slane %v2490, 5
      %v2493 = vsel %vm264, %v2488, %v2492
      %v2494 = vunpack.c.l.b16 %v2483
      %v2495 = vunpack.c.l.b16 %v2493
      %v2496 = vpack.c.b16 %v2495, %v2494
      %v2498 = vsel %vm697, %v2496, 0
      %v2501 = vsel %vm746, %v260, 0
      %2503 = vmatprep.subr.bf16.mxu0 0
      %2504 = vmatpush1.bf16.msra.mxu0 %v2501
      %2505 = vmatprep.subr.bf16.mxu0 0
      %2506 = vmatpush1.bf16.msra.mxu0 0
      %2507 = vmatprep.subr.bf16.mxu0 0
      %2508 = vmatpush1.bf16.msra.mxu0 0
      %2509 = vmatprep.subr.bf16.mxu0 0
      %2510 = vmatpush1.bf16.msra.mxu0 0
      %2511 = vmatprep.subr.bf16.mxu0 0
      %2512 = vmatpush1.bf16.msra.mxu0 0
      %2513 = vmatprep.subr.bf16.mxu0 0
      %2514 = vmatpush1.bf16.msra.mxu0 0
      %2515 = vmatprep.subr.bf16.mxu0 0
      %2516 = vmatpush1.bf16.msra.mxu0 0
      %2517 = vmatprep.subr.bf16.mxu0 0
      %2518 = vmatpush1.bf16.msra.mxu0 0
      %2519 = vmatprep.subr.bf16.mxu0 0
      %2520 = vmatpush1.bf16.msra.mxu0 0
      %2521 = vmatprep.subr.bf16.mxu0 0
      %2522 = vmatpush1.bf16.msra.mxu0 0
      %2523 = vmatprep.subr.bf16.mxu0 0
      %2524 = vmatpush1.bf16.msra.mxu0 0
      %2525 = vmatprep.subr.bf16.mxu0 0
      %2526 = vmatpush1.bf16.msra.mxu0 0
      %2527 = vmatprep.subr.bf16.mxu0 0
      %2528 = vmatpush1.bf16.msra.mxu0 0
      %2529 = vmatprep.subr.bf16.mxu0 0
      %2530 = vmatpush1.bf16.msra.mxu0 0
      %2531 = vmatprep.subr.bf16.mxu0 0
      %2532 = vmatpush1.bf16.msra.mxu0 0
      %2533 = vmatprep.subr.bf16.mxu0 0
      %2534 = vmatpush1.bf16.msra.mxu0 0
      %2535 = vmatprep.mubr.bf16.mxu0 0
      %2536 = vmatmul.mubr.bf16.gmra.mrb[0].mxu0 %v705
      %v2537 = vpop.f32.mrb[0].mxu0
      %v2538 = vadd.f32 0.0, %v2537
      %v2539 = vpop.f32.mrb[0].mxu0
      %v2540 = vpop.f32.mrb[0].mxu0
      %v2541 = vadd.f32 0.0, %v2540
      %v2542 = vpop.f32.mrb[0].mxu0
      %2543 = vmatprep.mubr.bf16.mxu0 0
      %2544 = vmatmul.mubr.bf16.gmra.mrb[0].mxu0 %v708
      %v2545 = vpop.f32.mrb[0].mxu0
      %v2546 = vadd.f32 0.0, %v2545
      %v2547 = vpop.f32.mrb[0].mxu0
      %v2548 = vpop.f32.mrb[0].mxu0
      %v2549 = vadd.f32 0.0, %v2548
      %v2550 = vpop.f32.mrb[0].mxu0
      %2551 = vmatprep.mubr.bf16.mxu0 0
      %2552 = vmatmul.mubr.bf16.gmra.mrb[0].mxu0 %v711
      %v2553 = vpop.f32.mrb[0].mxu0
      %v2554 = vadd.f32 0.0, %v2553
      %v2555 = vpop.f32.mrb[0].mxu0
      %v2556 = vpop.f32.mrb[0].mxu0
      %v2557 = vadd.f32 0.0, %v2556
      %v2558 = vpop.f32.mrb[0].mxu0
      %2559 = vmatprep.mubr.bf16.mxu0 0
      %2560 = vmatmul.mubr.bf16.gmra.mrb[0].mxu0 %v714
      %v2561 = vpop.f32.mrb[0].mxu0
      %v2562 = vadd.f32 0.0, %v2561
      %v2563 = vpop.f32.mrb[0].mxu0
      %v2564 = vpop.f32.mrb[0].mxu0
      %v2565 = vadd.f32 0.0, %v2564
      %v2566 = vpop.f32.mrb[0].mxu0
      %2567 = vmatprep.mubr.bf16.mxu0 0
      %2568 = vmatmul.mubr.bf16.gmra.mrb[0].mxu0 %v717
      %v2569 = vpop.f32.mrb[0].mxu0
      %v2570 = vadd.f32 0.0, %v2569
      %v2571 = vpop.f32.mrb[0].mxu0
      %v2572 = vpop.f32.mrb[0].mxu0
      %v2573 = vadd.f32 0.0, %v2572
      %v2574 = vpop.f32.mrb[0].mxu0
      %2575 = vmatprep.mubr.bf16.mxu0 0
      %2576 = vmatmul.mubr.bf16.gmra.mrb[0].mxu0 %v720
      %v2577 = vpop.f32.mrb[0].mxu0
      %v2578 = vadd.f32 0.0, %v2577
      %v2579 = vpop.f32.mrb[0].mxu0
      %v2580 = vpop.f32.mrb[0].mxu0
      %v2581 = vadd.f32 0.0, %v2580
      %v2582 = vpop.f32.mrb[0].mxu0
      %2583 = vmatprep.mubr.bf16.mxu0 0
      %2584 = vmatmul.mubr.bf16.gmra.mrb[0].mxu0 %v723
      %v2585 = vpop.f32.mrb[0].mxu0
      %v2586 = vadd.f32 0.0, %v2585
      %v2587 = vpop.f32.mrb[0].mxu0
      %v2588 = vpop.f32.mrb[0].mxu0
      %v2589 = vadd.f32 0.0, %v2588
      %v2590 = vpop.f32.mrb[0].mxu0
      %2591 = vmatprep.mubr.bf16.mxu0 0
      %2592 = vmatmul.mubr.bf16.gmra.mrb[0].mxu0 %v726
      %v2593 = vpop.f32.mrb[0].mxu0
      %v2594 = vadd.f32 0.0, %v2593
      %v2595 = vpop.f32.mrb[0].mxu0
      %v2596 = vpop.f32.mrb[0].mxu0
      %v2597 = vadd.f32 0.0, %v2596
      %v2598 = vpop.f32.mrb[0].mxu0
      %2599 = vmatprep.mubr.bf16.mxu0 0
      %2600 = vmatmul.mubr.bf16.gmra.mrb[0].mxu0 %v729
      %v2601 = vpop.f32.mrb[0].mxu0
      %v2602 = vadd.f32 0.0, %v2601
      %v2603 = vpop.f32.mrb[0].mxu0
      %v2604 = vpop.f32.mrb[0].mxu0
      %v2605 = vadd.f32 0.0, %v2604
      %v2606 = vpop.f32.mrb[0].mxu0
      %2607 = vmatprep.mubr.bf16.mxu0 0
      %2608 = vmatmul.mubr.bf16.gmra.mrb[0].mxu0 %v732
      %v2609 = vpop.f32.mrb[0].mxu0
      %v2610 = vadd.f32 0.0, %v2609
      %v2611 = vpop.f32.mrb[0].mxu0
      %v2612 = vpop.f32.mrb[0].mxu0
      %v2613 = vadd.f32 0.0, %v2612
      %v2614 = vpop.f32.mrb[0].mxu0
      %2615 = vmatprep.mubr.bf16.mxu0 0
      %2616 = vmatmul.mubr.bf16.gmra.mrb[0].mxu0 %v735
      %v2617 = vpop.f32.mrb[0].mxu0
      %v2618 = vadd.f32 0.0, %v2617
      %v2619 = vpop.f32.mrb[0].mxu0
      %v2620 = vpop.f32.mrb[0].mxu0
      %v2621 = vadd.f32 0.0, %v2620
      %v2622 = vpop.f32.mrb[0].mxu0
      %2623 = vmatprep.mubr.bf16.mxu0 0
      %2624 = vmatmul.mubr.bf16.gmra.mrb[0].mxu0 %v738
      %v2625 = vpop.f32.mrb[0].mxu0
      %v2626 = vadd.f32 0.0, %v2625
      %v2627 = vpop.f32.mrb[0].mxu0
      %v2628 = vpop.f32.mrb[0].mxu0
      %v2629 = vadd.f32 0.0, %v2628
      %v2630 = vpop.f32.mrb[0].mxu0
      %2631 = vmatprep.mubr.bf16.mxu0 0
      %2632 = vmatmul.mubr.bf16.gmra.mrb[0].mxu0 %v741
      %v2633 = vpop.f32.mrb[0].mxu0
      %v2634 = vadd.f32 0.0, %v2633
      %v2635 = vpop.f32.mrb[0].mxu0
      %v2636 = vpop.f32.mrb[0].mxu0
      %v2637 = vadd.f32 0.0, %v2636
      %v2638 = vpop.f32.mrb[0].mxu0
      %2639 = vmatprep.mubr.bf16.mxu0 0
      %2640 = vmatmul.mubr.bf16.gmra.mrb[0].mxu0 %v744
      %v2641 = vpop.f32.mrb[0].mxu0
      %v2642 = vadd.f32 0.0, %v2641
      %v2643 = vpop.f32.mrb[0].mxu0
      %v2644 = vpop.f32.mrb[0].mxu0
      %v2645 = vadd.f32 0.0, %v2644
      %v2646 = vpop.f32.mrb[0].mxu0
      %2647 = vmatprep.mubr.bf16.mxu0 0
      %2648 = vmatmul.mubr.bf16.gmra.mrb[0].mxu0 %v1858
      %v2649 = vpop.f32.mrb[0].mxu0
      %v2650 = vadd.f32 0.0, %v2649
      %v2651 = vpop.f32.mrb[0].mxu0
      %v2652 = vpop.f32.mrb[0].mxu0
      %v2653 = vadd.f32 0.0, %v2652
      %v2654 = vpop.f32.mrb[0].mxu0
      %2655 = vmatprep.mubr.bf16.mxu0 0
      %2656 = vmatmul.mubr.bf16.gmra.mrb[0].mxu0 %v2498
      %v2657 = vpop.f32.mrb[0].mxu0
      %v2658 = vadd.f32 0.0, %v2657
      %v2659 = vpop.f32.mrb[0].mxu0
      %v2660 = vpop.f32.mrb[0].mxu0
      %v2661 = vadd.f32 0.0, %v2660
      %v2662 = vpop.f32.mrb[0].mxu0
      %2663 = vdwg.mxu0
      %v2664 = vadd.f32 %v2438, %v2538
      %v2665 = vadd.f32 %v2439, %v2541
      %v2666 = vadd.f32 %v2440, %v2546
      %v2667 = vadd.f32 %v2441, %v2549
      %v2668 = vadd.f32 %v2442, %v2554
      %v2669 = vadd.f32 %v2443, %v2557
      %v2670 = vadd.f32 %v2444, %v2562
      %v2671 = vadd.f32 %v2445, %v2565
      %v2672 = vadd.f32 %v2446, %v2570
      %v2673 = vadd.f32 %v2447, %v2573
      %v2674 = vadd.f32 %v2448, %v2578
      %v2675 = vadd.f32 %v2449, %v2581
      %v2676 = vadd.f32 %v2450, %v2586
      %v2677 = vadd.f32 %v2451, %v2589
      %v2678 = vadd.f32 %v2452, %v2594
      %v2679 = vadd.f32 %v2453, %v2597
      %v2680 = vadd.f32 %v2454, %v2602
      %v2681 = vadd.f32 %v2455, %v2605
      %v2682 = vadd.f32 %v2456, %v2610
      %v2683 = vadd.f32 %v2457, %v2613
      %v2684 = vadd.f32 %v2458, %v2618
      %v2685 = vadd.f32 %v2459, %v2621
      %v2686 = vadd.f32 %v2460, %v2626
      %v2687 = vadd.f32 %v2461, %v2629
      %v2688 = vadd.f32 %v2462, %v2634
      %v2689 = vadd.f32 %v2463, %v2637
      %v2690 = vadd.f32 %v2464, %v2642
      %v2691 = vadd.f32 %v2465, %v2645
      %v2692 = vadd.f32 %v2466, %v2650
      %v2693 = vadd.f32 %v2467, %v2653
      %v2694 = vadd.f32 %v2468, %v2658
      %v2695 = vadd.f32 %v2469, %v2661
      %v2697 = vrot.slane %v250, 5
      %v2698 = vrot.slane %v2697, 4
      %v2699 = vrot.slane %v251, 5
      %v2700 = vsel %vm1221, %v2698, %v2699
      %v2701 = vrot.slane %v2699, 4
      %v2702 = vrot.slane %v252, 5
      %v2703 = vsel %vm1221, %v2701, %v2702
      %v2704 = vunpack.c.l.b16 %v2700
      %v2705 = vunpack.c.l.b16 %v2703
      %v2706 = vpack.c.b16 %v2705, %v2704
      %v2708 = vsel %vm697, %v2706, 0
      %v2711 = vsel %vm746, %v261, 0
      %2713 = vmatprep.subr.bf16.mxu0 0
      %2714 = vmatpush1.bf16.msra.mxu0 %v2711
      %2715 = vmatprep.subr.bf16.mxu0 0
      %2716 = vmatpush1.bf16.msra.mxu0 0
      %2717 = vmatprep.subr.bf16.mxu0 0
      %2718 = vmatpush1.bf16.msra.mxu0 0
      %2719 = vmatprep.subr.bf16.mxu0 0
      %2720 = vmatpush1.bf16.msra.mxu0 0
      %2721 = vmatprep.subr.bf16.mxu0 0
      %2722 = vmatpush1.bf16.msra.mxu0 0
      %2723 = vmatprep.subr.bf16.mxu0 0
      %2724 = vmatpush1.bf16.msra.mxu0 0
      %2725 = vmatprep.subr.bf16.mxu0 0
      %2726 = vmatpush1.bf16.msra.mxu0 0
      %2727 = vmatprep.subr.bf16.mxu0 0
      %2728 = vmatpush1.bf16.msra.mxu0 0
      %2729 = vmatprep.subr.bf16.mxu0 0
      %2730 = vmatpush1.bf16.msra.mxu0 0
      %2731 = vmatprep.subr.bf16.mxu0 0
      %2732 = vmatpush1.bf16.msra.mxu0 0
      %2733 = vmatprep.subr.bf16.mxu0 0
      %2734 = vmatpush1.bf16.msra.mxu0 0
      %2735 = vmatprep.subr.bf16.mxu0 0
      %2736 = vmatpush1.bf16.msra.mxu0 0
      %2737 = vmatprep.subr.bf16.mxu0 0
      %2738 = vmatpush1.bf16.msra.mxu0 0
      %2739 = vmatprep.subr.bf16.mxu0 0
      %2740 = vmatpush1.bf16.msra.mxu0 0
      %2741 = vmatprep.subr.bf16.mxu0 0
      %2742 = vmatpush1.bf16.msra.mxu0 0
      %2743 = vmatprep.subr.bf16.mxu0 0
      %2744 = vmatpush1.bf16.msra.mxu0 0
      %2745 = vmatprep.mubr.bf16.mxu0 0
      %2746 = vmatmul.mubr.bf16.gmra.mrb[0].mxu0 %v1389
      %v2747 = vpop.f32.mrb[0].mxu0
      %v2748 = vadd.f32 0.0, %v2747
      %v2749 = vpop.f32.mrb[0].mxu0
      %v2750 = vpop.f32.mrb[0].mxu0
      %v2751 = vadd.f32 0.0, %v2750
      %v2752 = vpop.f32.mrb[0].mxu0
      %2753 = vmatprep.mubr.bf16.mxu0 0
      %2754 = vmatmul.mubr.bf16.gmra.mrb[0].mxu0 %v1392
      %v2755 = vpop.f32.mrb[0].mxu0
      %v2756 = vadd.f32 0.0, %v2755
      %v2757 = vpop.f32.mrb[0].mxu0
      %v2758 = vpop.f32.mrb[0].mxu0
      %v2759 = vadd.f32 0.0, %v2758
      %v2760 = vpop.f32.mrb[0].mxu0
      %2761 = vmatprep.mubr.bf16.mxu0 0
      %2762 = vmatmul.mubr.bf16.gmra.mrb[0].mxu0 %v1395
      %v2763 = vpop.f32.mrb[0].mxu0
      %v2764 = vadd.f32 0.0, %v2763
      %v2765 = vpop.f32.mrb[0].mxu0
      %v2766 = vpop.f32.mrb[0].mxu0
      %v2767 = vadd.f32 0.0, %v2766
      %v2768 = vpop.f32.mrb[0].mxu0
      %2769 = vmatprep.mubr.bf16.mxu0 0
      %2770 = vmatmul.mubr.bf16.gmra.mrb[0].mxu0 %v1398
      %v2771 = vpop.f32.mrb[0].mxu0
      %v2772 = vadd.f32 0.0, %v2771
      %v2773 = vpop.f32.mrb[0].mxu0
      %v2774 = vpop.f32.mrb[0].mxu0
      %v2775 = vadd.f32 0.0, %v2774
      %v2776 = vpop.f32.mrb[0].mxu0
      %2777 = vmatprep.mubr.bf16.mxu0 0
      %2778 = vmatmul.mubr.bf16.gmra.mrb[0].mxu0 %v1401
      %v2779 = vpop.f32.mrb[0].mxu0
      %v2780 = vadd.f32 0.0, %v2779
      %v2781 = vpop.f32.mrb[0].mxu0
      %v2782 = vpop.f32.mrb[0].mxu0
      %v2783 = vadd.f32 0.0, %v2782
      %v2784 = vpop.f32.mrb[0].mxu0
      %2785 = vmatprep.mubr.bf16.mxu0 0
      %2786 = vmatmul.mubr.bf16.gmra.mrb[0].mxu0 %v1404
      %v2787 = vpop.f32.mrb[0].mxu0
      %v2788 = vadd.f32 0.0, %v2787
      %v2789 = vpop.f32.mrb[0].mxu0
      %v2790 = vpop.f32.mrb[0].mxu0
      %v2791 = vadd.f32 0.0, %v2790
      %v2792 = vpop.f32.mrb[0].mxu0
      %2793 = vmatprep.mubr.bf16.mxu0 0
      %2794 = vmatmul.mubr.bf16.gmra.mrb[0].mxu0 %v1407
      %v2795 = vpop.f32.mrb[0].mxu0
      %v2796 = vadd.f32 0.0, %v2795
      %v2797 = vpop.f32.mrb[0].mxu0
      %v2798 = vpop.f32.mrb[0].mxu0
      %v2799 = vadd.f32 0.0, %v2798
      %v2800 = vpop.f32.mrb[0].mxu0
      %2801 = vmatprep.mubr.bf16.mxu0 0
      %2802 = vmatmul.mubr.bf16.gmra.mrb[0].mxu0 %v1410
      %v2803 = vpop.f32.mrb[0].mxu0
      %v2804 = vadd.f32 0.0, %v2803
      %v2805 = vpop.f32.mrb[0].mxu0
      %v2806 = vpop.f32.mrb[0].mxu0
      %v2807 = vadd.f32 0.0, %v2806
      %v2808 = vpop.f32.mrb[0].mxu0
      %2809 = vmatprep.mubr.bf16.mxu0 0
      %2810 = vmatmul.mubr.bf16.gmra.mrb[0].mxu0 %v1413
      %v2811 = vpop.f32.mrb[0].mxu0
      %v2812 = vadd.f32 0.0, %v2811
      %v2813 = vpop.f32.mrb[0].mxu0
      %v2814 = vpop.f32.mrb[0].mxu0
      %v2815 = vadd.f32 0.0, %v2814
      %v2816 = vpop.f32.mrb[0].mxu0
      %2817 = vmatprep.mubr.bf16.mxu0 0
      %2818 = vmatmul.mubr.bf16.gmra.mrb[0].mxu0 %v1416
      %v2819 = vpop.f32.mrb[0].mxu0
      %v2820 = vadd.f32 0.0, %v2819
      %v2821 = vpop.f32.mrb[0].mxu0
      %v2822 = vpop.f32.mrb[0].mxu0
      %v2823 = vadd.f32 0.0, %v2822
      %v2824 = vpop.f32.mrb[0].mxu0
      %2825 = vmatprep.mubr.bf16.mxu0 0
      %2826 = vmatmul.mubr.bf16.gmra.mrb[0].mxu0 %v1419
      %v2827 = vpop.f32.mrb[0].mxu0
      %v2828 = vadd.f32 0.0, %v2827
      %v2829 = vpop.f32.mrb[0].mxu0
      %v2830 = vpop.f32.mrb[0].mxu0
      %v2831 = vadd.f32 0.0, %v2830
      %v2832 = vpop.f32.mrb[0].mxu0
      %2833 = vmatprep.mubr.bf16.mxu0 0
      %2834 = vmatmul.mubr.bf16.gmra.mrb[0].mxu0 %v1422
      %v2835 = vpop.f32.mrb[0].mxu0
      %v2836 = vadd.f32 0.0, %v2835
      %v2837 = vpop.f32.mrb[0].mxu0
      %v2838 = vpop.f32.mrb[0].mxu0
      %v2839 = vadd.f32 0.0, %v2838
      %v2840 = vpop.f32.mrb[0].mxu0
      %2841 = vmatprep.mubr.bf16.mxu0 0
      %2842 = vmatmul.mubr.bf16.gmra.mrb[0].mxu0 %v1425
      %v2843 = vpop.f32.mrb[0].mxu0
      %v2844 = vadd.f32 0.0, %v2843
      %v2845 = vpop.f32.mrb[0].mxu0
      %v2846 = vpop.f32.mrb[0].mxu0
      %v2847 = vadd.f32 0.0, %v2846
      %v2848 = vpop.f32.mrb[0].mxu0
      %2849 = vmatprep.mubr.bf16.mxu0 0
      %2850 = vmatmul.mubr.bf16.gmra.mrb[0].mxu0 %v1428
      %v2851 = vpop.f32.mrb[0].mxu0
      %v2852 = vadd.f32 0.0, %v2851
      %v2853 = vpop.f32.mrb[0].mxu0
      %v2854 = vpop.f32.mrb[0].mxu0
      %v2855 = vadd.f32 0.0, %v2854
      %v2856 = vpop.f32.mrb[0].mxu0
      %2857 = vmatprep.mubr.bf16.mxu0 0
      %2858 = vmatmul.mubr.bf16.gmra.mrb[0].mxu0 %v2068
      %v2859 = vpop.f32.mrb[0].mxu0
      %v2860 = vadd.f32 0.0, %v2859
      %v2861 = vpop.f32.mrb[0].mxu0
      %v2862 = vpop.f32.mrb[0].mxu0
      %v2863 = vadd.f32 0.0, %v2862
      %v2864 = vpop.f32.mrb[0].mxu0
      %2865 = vmatprep.mubr.bf16.mxu0 0
      %2866 = vmatmul.mubr.bf16.gmra.mrb[0].mxu0 %v2708
      %v2867 = vpop.f32.mrb[0].mxu0
      %v2868 = vadd.f32 0.0, %v2867
      %v2869 = vpop.f32.mrb[0].mxu0
      %v2870 = vpop.f32.mrb[0].mxu0
      %v2871 = vadd.f32 0.0, %v2870
      %v2872 = vpop.f32.mrb[0].mxu0
      %2873 = vdwg.mxu0
      %v2874 = vadd.f32 %v2664, %v2748
      %v2875 = vadd.f32 %v2665, %v2751
      %v2876 = vadd.f32 %v2666, %v2756
      %v2877 = vadd.f32 %v2667, %v2759
      %v2878 = vadd.f32 %v2668, %v2764
      %v2879 = vadd.f32 %v2669, %v2767
      %v2880 = vadd.f32 %v2670, %v2772
      %v2881 = vadd.f32 %v2671, %v2775
      %v2882 = vadd.f32 %v2672, %v2780
      %v2883 = vadd.f32 %v2673, %v2783
      %v2884 = vadd.f32 %v2674, %v2788
      %v2885 = vadd.f32 %v2675, %v2791
      %v2886 = vadd.f32 %v2676, %v2796
      %v2887 = vadd.f32 %v2677, %v2799
      %v2888 = vadd.f32 %v2678, %v2804
      %v2889 = vadd.f32 %v2679, %v2807
      %v2890 = vadd.f32 %v2680, %v2812
      %v2891 = vadd.f32 %v2681, %v2815
      %v2892 = vadd.f32 %v2682, %v2820
      %v2893 = vadd.f32 %v2683, %v2823
      %v2894 = vadd.f32 %v2684, %v2828
      %v2895 = vadd.f32 %v2685, %v2831
      %v2896 = vadd.f32 %v2686, %v2836
      %v2897 = vadd.f32 %v2687, %v2839
      %v2898 = vadd.f32 %v2688, %v2844
      %v2899 = vadd.f32 %v2689, %v2847
      %v2900 = vadd.f32 %v2690, %v2852
      %v2901 = vadd.f32 %v2691, %v2855
      %v2902 = vadd.f32 %v2692, %v2860
      %v2903 = vadd.f32 %v2693, %v2863
      %v2904 = vadd.f32 %v2694, %v2868
      %v2905 = vadd.f32 %v2695, %v2871
      %v2906 = vld [vmem:[%s2] sm:$0x1]
      %v2908 = vlaneseq
      %v2909 = vshrl.u32 %v2908, 7
      %v2910 = vsub.s32 0, %v2909
      %v2911 = vrot.slane %v2906, %v2910
      %v2913 = vmul.f32 %v2874, %v2911
      %v2914 = vmul.f32 %v2875, %v2911
      %v2915 = vmul.f32 %v2876, %v2911
      %v2916 = vmul.f32 %v2877, %v2911
      %v2917 = vmul.f32 %v2878, %v2911
      %v2918 = vmul.f32 %v2879, %v2911
      %v2919 = vmul.f32 %v2880, %v2911
      %v2920 = vmul.f32 %v2881, %v2911
      %v2921 = vmul.f32 %v2882, %v2911
      %v2922 = vmul.f32 %v2883, %v2911
      %v2923 = vmul.f32 %v2884, %v2911
      %v2924 = vmul.f32 %v2885, %v2911
      %v2925 = vmul.f32 %v2886, %v2911
      %v2926 = vmul.f32 %v2887, %v2911
      %v2927 = vmul.f32 %v2888, %v2911
      %v2928 = vmul.f32 %v2889, %v2911
      %v2929 = vmul.f32 %v2890, %v2911
      %v2930 = vmul.f32 %v2891, %v2911
      %v2931 = vmul.f32 %v2892, %v2911
      %v2932 = vmul.f32 %v2893, %v2911
      %v2933 = vmul.f32 %v2894, %v2911
      %v2934 = vmul.f32 %v2895, %v2911
      %v2935 = vmul.f32 %v2896, %v2911
      %v2936 = vmul.f32 %v2897, %v2911
      %v2937 = vmul.f32 %v2898, %v2911
      %v2938 = vmul.f32 %v2899, %v2911
      %v2939 = vmul.f32 %v2900, %v2911
      %v2940 = vmul.f32 %v2901, %v2911
      %v2941 = vmul.f32 %v2902, %v2911
      %v2942 = vmul.f32 %v2903, %v2911
      %v2943 = vmul.f32 %v2904, %v2911
      %v2944 = vmul.f32 %v2905, %v2911
      %v2945 = vld [vmem:[%s3] sm:$0x1]
      %v2947 = vlaneseq
      %v2948 = vshrl.u32 %v2947, 7
      %v2949 = vsub.s32 0, %v2948
      %v2950 = vrot.slane %v2945, %v2949
      %v2952 = vadd.f32 %v2913, %v2950
      %v2953 = vadd.f32 %v2914, %v2950
      %v2954 = vadd.f32 %v2915, %v2950
      %v2955 = vadd.f32 %v2916, %v2950
      %v2956 = vadd.f32 %v2917, %v2950
      %v2957 = vadd.f32 %v2918, %v2950
      %v2958 = vadd.f32 %v2919, %v2950
      %v2959 = vadd.f32 %v2920, %v2950
      %v2960 = vadd.f32 %v2921, %v2950
      %v2961 = vadd.f32 %v2922, %v2950
      %v2962 = vadd.f32 %v2923, %v2950
      %v2963 = vadd.f32 %v2924, %v2950
      %v2964 = vadd.f32 %v2925, %v2950
      %v2965 = vadd.f32 %v2926, %v2950
      %v2966 = vadd.f32 %v2927, %v2950
      %v2967 = vadd.f32 %v2928, %v2950
      %v2968 = vadd.f32 %v2929, %v2950
      %v2969 = vadd.f32 %v2930, %v2950
      %v2970 = vadd.f32 %v2931, %v2950
      %v2971 = vadd.f32 %v2932, %v2950
      %v2972 = vadd.f32 %v2933, %v2950
      %v2973 = vadd.f32 %v2934, %v2950
      %v2974 = vadd.f32 %v2935, %v2950
      %v2975 = vadd.f32 %v2936, %v2950
      %v2976 = vadd.f32 %v2937, %v2950
      %v2977 = vadd.f32 %v2938, %v2950
      %v2978 = vadd.f32 %v2939, %v2950
      %v2979 = vadd.f32 %v2940, %v2950
      %v2980 = vadd.f32 %v2941, %v2950
      %v2981 = vadd.f32 %v2942, %v2950
      %v2982 = vadd.f32 %v2943, %v2950
      %v2983 = vadd.f32 %v2944, %v2950
      %v2984 = vmax.f32 %v2952, 0.0
      %v2985 = vmax.f32 %v2953, 0.0
      %v2986 = vmax.f32 %v2954, 0.0
      %v2987 = vmax.f32 %v2955, 0.0
      %v2988 = vmax.f32 %v2956, 0.0
      %v2989 = vmax.f32 %v2957, 0.0
      %v2990 = vmax.f32 %v2958, 0.0
      %v2991 = vmax.f32 %v2959, 0.0
      %v2992 = vmax.f32 %v2960, 0.0
      %v2993 = vmax.f32 %v2961, 0.0
      %v2994 = vmax.f32 %v2962, 0.0
      %v2995 = vmax.f32 %v2963, 0.0
      %v2996 = vmax.f32 %v2964, 0.0
      %v2997 = vmax.f32 %v2965, 0.0
      %v2998 = vmax.f32 %v2966, 0.0
      %v2999 = vmax.f32 %v2967, 0.0
      %v3000 = vmax.f32 %v2968, 0.0
      %v3001 = vmax.f32 %v2969, 0.0
      %v3002 = vmax.f32 %v2970, 0.0
      %v3003 = vmax.f32 %v2971, 0.0
      %v3004 = vmax.f32 %v2972, 0.0
      %v3005 = vmax.f32 %v2973, 0.0
      %v3006 = vmax.f32 %v2974, 0.0
      %v3007 = vmax.f32 %v2975, 0.0
      %v3008 = vmax.f32 %v2976, 0.0
      %v3009 = vmax.f32 %v2977, 0.0
      %v3010 = vmax.f32 %v2978, 0.0
      %v3011 = vmax.f32 %v2979, 0.0
      %v3012 = vmax.f32 %v2980, 0.0
      %v3013 = vmax.f32 %v2981, 0.0
      %v3014 = vmax.f32 %v2982, 0.0
      %v3015 = vmax.f32 %v2983, 0.0
      %v3016 = vpack.c.bf16 %v2985, %v2984
      %v3017 = vpack.c.bf16 %v2987, %v2986
      %v3018 = vpack.c.bf16 %v2989, %v2988
      %v3019 = vpack.c.bf16 %v2991, %v2990
      %v3020 = vpack.c.bf16 %v2993, %v2992
      %v3021 = vpack.c.bf16 %v2995, %v2994
      %v3022 = vpack.c.bf16 %v2997, %v2996
      %v3023 = vpack.c.bf16 %v2999, %v2998
      %v3024 = vpack.c.bf16 %v3001, %v3000
      %v3025 = vpack.c.bf16 %v3003, %v3002
      %v3026 = vpack.c.bf16 %v3005, %v3004
      %v3027 = vpack.c.bf16 %v3007, %v3006
      %v3028 = vpack.c.bf16 %v3009, %v3008
      %v3029 = vpack.c.bf16 %v3011, %v3010
      %v3030 = vpack.c.bf16 %v3013, %v3012
      %v3031 = vpack.c.bf16 %v3015, %v3014
      %v3048 = vunpack.c.l.b16 %v3016
      %v3049 = vunpack.c.h.b16 %v3016
      %v3050 = vunpack.c.l.b16 %v3017
      %v3051 = vunpack.c.h.b16 %v3017
      %v3052 = vunpack.c.l.b16 %v3018
      %v3053 = vunpack.c.h.b16 %v3018
      %v3054 = vunpack.c.l.b16 %v3019
      %v3055 = vunpack.c.h.b16 %v3019
      %v3056 = vunpack.c.l.b16 %v3020
      %v3057 = vunpack.c.h.b16 %v3020
      %v3058 = vunpack.c.l.b16 %v3021
      %v3059 = vunpack.c.h.b16 %v3021
      %v3060 = vunpack.c.l.b16 %v3022
      %v3061 = vunpack.c.h.b16 %v3022
      %v3062 = vunpack.c.l.b16 %v3023
      %v3063 = vunpack.c.h.b16 %v3023
      %v3064 = vunpack.c.l.b16 %v3024
      %v3065 = vunpack.c.h.b16 %v3024
      %v3066 = vunpack.c.l.b16 %v3025
      %v3067 = vunpack.c.h.b16 %v3025
      %v3068 = vunpack.c.l.b16 %v3026
      %v3069 = vunpack.c.h.b16 %v3026
      %v3070 = vunpack.c.l.b16 %v3027
      %v3071 = vunpack.c.h.b16 %v3027
      %v3072 = vunpack.c.l.b16 %v3028
      %v3073 = vunpack.c.h.b16 %v3028
      %v3074 = vunpack.c.l.b16 %v3029
      %v3075 = vunpack.c.h.b16 %v3029
      %v3076 = vunpack.c.l.b16 %v3030
      %v3077 = vunpack.c.h.b16 %v3030
      %v3078 = vunpack.c.l.b16 %v3031
      %v3079 = vunpack.c.h.b16 %v3031
      %v3080 = vpack.c.b16 %v3048, %v3048
      %v3081 = vpack.c.b16 %v3049, %v3049
      %v3082 = vpack.c.b16 %v3050, %v3050
      %v3083 = vpack.c.b16 %v3051, %v3051
      %v3084 = vpack.c.b16 %v3052, %v3052
      %v3085 = vpack.c.b16 %v3053, %v3053
      %v3086 = vpack.c.b16 %v3054, %v3054
      %v3087 = vpack.c.b16 %v3055, %v3055
      %v3088 = vpack.c.b16 %v3056, %v3056
      %v3089 = vpack.c.b16 %v3057, %v3057
      %v3090 = vpack.c.b16 %v3058, %v3058
      %v3091 = vpack.c.b16 %v3059, %v3059
      %v3092 = vpack.c.b16 %v3060, %v3060
      %v3093 = vpack.c.b16 %v3061, %v3061
      %v3094 = vpack.c.b16 %v3062, %v3062
      %v3095 = vpack.c.b16 %v3063, %v3063
      %v3096 = vpack.c.b16 %v3064, %v3064
      %v3097 = vpack.c.b16 %v3065, %v3065
      %v3098 = vpack.c.b16 %v3066, %v3066
      %v3099 = vpack.c.b16 %v3067, %v3067
      %v3100 = vpack.c.b16 %v3068, %v3068
      %v3101 = vpack.c.b16 %v3069, %v3069
      %v3102 = vpack.c.b16 %v3070, %v3070
      %v3103 = vpack.c.b16 %v3071, %v3071
      %v3104 = vpack.c.b16 %v3072, %v3072
      %v3105 = vpack.c.b16 %v3073, %v3073
      %v3106 = vpack.c.b16 %v3074, %v3074
      %v3107 = vpack.c.b16 %v3075, %v3075
      %v3108 = vpack.c.b16 %v3076, %v3076
      %v3109 = vpack.c.b16 %v3077, %v3077
      %v3110 = vpack.c.b16 %v3078, %v3078
      %v3111 = vpack.c.b16 %v3079, %v3079
      %vm3144 = vcmask 60416
      %3145 = vst.msk [vmem:[%s197] sm:$0xf] %vm3144, %v3080
      %3146 = vst.msk [vmem:[%s197 + $0x4] sm:$0xf] %vm3144, %v3081
      %3147 = vst.msk [vmem:[%s197 + $0x8] sm:$0xf] %vm3144, %v3082
      %3148 = vst.msk [vmem:[%s197 + $0xc] sm:$0xf] %vm3144, %v3083
      %3149 = vst.msk [vmem:[%s197 + $0x10] sm:$0xf] %vm3144, %v3084
      %3150 = vst.msk [vmem:[%s197 + $0x14] sm:$0xf] %vm3144, %v3085
      %3151 = vst.msk [vmem:[%s197 + $0x18] sm:$0xf] %vm3144, %v3086
      %3152 = vst.msk [vmem:[%s197 + $0x1c] sm:$0xf] %vm3144, %v3087
      %3153 = vst.msk [vmem:[%s197 + $0x20] sm:$0xf] %vm3144, %v3088
      %3154 = vst.msk [vmem:[%s197 + $0x24] sm:$0xf] %vm3144, %v3089
      %3155 = vst.msk [vmem:[%s197 + $0x28] sm:$0xf] %vm3144, %v3090
      %3156 = vst.msk [vmem:[%s197 + $0x2c] sm:$0xf] %vm3144, %v3091
      %3157 = vst.msk [vmem:[%s197 + $0x30] sm:$0xf] %vm3144, %v3092
      %3158 = vst.msk [vmem:[%s197 + $0x34] sm:$0xf] %vm3144, %v3093
      %3159 = vst.msk [vmem:[%s197 + $0x38] sm:$0xf] %vm3144, %v3094
      %3160 = vst.msk [vmem:[%s197 + $0x3c] sm:$0xf] %vm3144, %v3095
      %3161 = vst.msk [vmem:[%s197 + $0x40] sm:$0xf] %vm3144, %v3096
      %3162 = vst.msk [vmem:[%s197 + $0x44] sm:$0xf] %vm3144, %v3097
      %3163 = vst.msk [vmem:[%s197 + $0x48] sm:$0xf] %vm3144, %v3098
      %3164 = vst.msk [vmem:[%s197 + $0x4c] sm:$0xf] %vm3144, %v3099
      %3165 = vst.msk [vmem:[%s197 + $0x50] sm:$0xf] %vm3144, %v3100
      %3166 = vst.msk [vmem:[%s197 + $0x54] sm:$0xf] %vm3144, %v3101
      %3167 = vst.msk [vmem:[%s197 + $0x58] sm:$0xf] %vm3144, %v3102
      %3168 = vst.msk [vmem:[%s197 + $0x5c] sm:$0xf] %vm3144, %v3103
      %3169 = vst.msk [vmem:[%s197 + $0x60] sm:$0xf] %vm3144, %v3104
      %3170 = vst.msk [vmem:[%s197 + $0x64] sm:$0xf] %vm3144, %v3105
      %3171 = vst.msk [vmem:[%s197 + $0x68] sm:$0xf] %vm3144, %v3106
      %3172 = vst.msk [vmem:[%s197 + $0x6c] sm:$0xf] %vm3144, %v3107
      %3173 = vst.msk [vmem:[%s197 + $0x70] sm:$0xf] %vm3144, %v3108
      %3174 = vst.msk [vmem:[%s197 + $0x74] sm:$0xf] %vm3144, %v3109
      %3175 = vst.msk [vmem:[%s197 + $0x78] sm:$0xf] %vm3144, %v3110
      %3176 = vst.msk [vmem:[%s197 + $0x7c] sm:$0xf] %vm3144, %v3111
      %p3177 = scmp.lt.s32.totalorder %s15, 1
      %s3178 = scalar_select %p3177, %s15, 1
      %s3179 = smul.addr %s3178, 32
      %s3180 = smul.addr %s3179, 4
      %s3181 = scalar_lea.vmem %s4, %s3180
      // Predicated region
      $region37: #{bottleneck_forward.7} parent=35 // pred_check
        %p3182 = pneg %p122
      $region38: #{bottleneck_forward.7} parent=35 // pred_check_branch
        %3184 = sbr.rel (%p3182) target = $region40
      $region39: #{bottleneck_forward.7} parent=35 // pred_region
        _
      $region40: #{bottleneck_forward.7} parent=35 // pred_fallthru
        _
    $region36: #{bottleneck_forward.7} parent=5 // pred_fallthru
      _
    %p3185 = scmp.le.s32.totalorder 2, %s10
    // Predicated region
    $region41: #{bottleneck_forward.7} parent=5 // pred_check
      %p3186 = pneg %p3185
    $region42: #{bottleneck_forward.7} parent=5 // pred_check_branch
      %3188 = sbr.rel (%p3186) target = $region44
    $region43: #{bottleneck_forward.7} parent=5 // pred_region
      %s3189 = ssub.s32 %s10, 2
      // Predicated region
      $region45: #{bottleneck_forward.7} parent=43 // pred_check
        %p3190 = pneg %p128
      $region46: #{bottleneck_forward.7} parent=43 // pred_check_branch
        %3192 = sbr.rel (%p3190) target = $region48
      $region47: #{bottleneck_forward.7} parent=43 // pred_region
        %p3193 = scmp.lt.s32.totalorder %s16, 1
        %s3194 = scalar_select %p3193, %s16, 1
        %s3195 = smul.addr %s3194, 32
        %s3196 = smul.addr %s3195, 4
        %s3197 = scalar_lea.vmem %s4, %s3196
      $region48: #{bottleneck_forward.7} parent=43 // pred_fallthru
        _
    $region44: #{bottleneck_forward.7} parent=5 // pred_fallthru
      _
  $region6: #{bottleneck_forward.7} parent=0 // loop_footer
    %s14 = sadd.s32 1, %s10
  $region7: #{bottleneck_forward.7} parent=0 // loop_footer_branch
    %9 = sbr.rel target = $region3
  $region8: #{bottleneck_forward.7} parent=0 // loop_exit
    _

</llo_original>
